<compile_context>
chip_gen: v6e
topology: v6e:2x2x1
jax: 0.10.0
libtpu: 0.0.40
codegen_flags: <defaults>
</compile_context>

<pallas_src>
import math

import jax
import jax.numpy as jnp
from jax.experimental import pallas as pl
from jax.experimental.pallas import tpu as pltpu  # noqa: F401  (TPU backend)

# ------------------------- model dimensions (small) -------------------------
B, S, H = 4, 8, 64          # batch, seq, hidden (embed_dim)
NH = 2                      # heads
DH = H // NH                # head dim
FFN = 128                   # intermediate size
VOCAB = 128
NUM_CLASSES = 2             # args.MODEL.num_classes
NUM_TASKS = 3               # args.MODEL.num_tasks
NUM_LAYERS = 2
LN_EPS = 1e-7
INIT_STD = 0.02

HALF = B // 2
HEAD_COLS = 4 * NUM_CLASSES + NUM_TASKS            # wsd | md | task | fc0 | fc1
OUT_LANES = 128                                    # lane-dense output slab width

# concatenated head-weight column offsets
_HW_WSD = 0
_HW_MD = NUM_CLASSES
_HW_TASK = 2 * NUM_CLASSES
_HW_L0 = 2 * NUM_CLASSES + NUM_TASKS
_HW_L1 = 3 * NUM_CLASSES + NUM_TASKS

# output-slab column offsets
_COL_CLS = 0                                        # wsd_out / md_out
_COL_L0 = NUM_CLASSES                               # local0 (label_fc0)
_COL_L1 = 2 * NUM_CLASSES                           # local1 (label_fc1)
_COL_GLB = 3 * NUM_CLASSES                          # global_out
_COLS_USED = 3 * NUM_CLASSES + NUM_TASKS


# --------------------------- in-kernel helpers -------------------------------
def _ln(x, g, b):
    mu = jnp.mean(x, axis=-1, keepdims=True)
    var = jnp.mean(jnp.square(x - mu), axis=-1, keepdims=True)
    return (x - mu) * jax.lax.rsqrt(var + LN_EPS) * g + b


def _softmax_last(x):
    m = jnp.max(x, axis=-1, keepdims=True)
    e = jnp.exp(x - m)                                   # keep max subtraction!
    return e * pl.reciprocal(jnp.sum(e, axis=-1, keepdims=True), approx=True)


# ------------------------------ fused kernel ---------------------------------
def _deberta_fwd_kernel(
    ids_ref, tids_ref, mask_ref,
    word_ref, type_ref, pos_ref, emb_ln_ref,
    wqkv_ref, bqkv_ref, wo_ref, bo_ref, lnp_ref,
    w1_ref, b1_ref, w2_ref, b2_ref,
    pooler_w_ref, pooler_b_ref, head_w_ref, head_b_ref,
    out_ref,
):
    f32 = jnp.float32
    scale = 1.0 / math.sqrt(DH)

    # ---- embeddings: gather as one-hot matmul (MXU), type select, pos tile --
    ids = ids_ref[...]                                             # (B*S, 1) i32
    vocab_iota = jax.lax.broadcasted_iota(jnp.int32, (B * S, VOCAB), 1)
    onehot = (vocab_iota == ids).astype(f32)                       # (B*S, VOCAB)
    word = jnp.dot(onehot, word_ref[...], preferred_element_type=f32)

    tids = tids_ref[...]                                           # (B*S, 1) i32
    typed = jnp.where(tids == 0, type_ref[0:1, :], type_ref[1:2, :])

    pos = jnp.concatenate([pos_ref[...]] * B, axis=0)              # (B*S, H)

    h = _ln(word + typed + pos, emb_ln_ref[0:1, :], emb_ln_ref[1:2, :])

    # additive attention mask (B, S)
    neg_mask = (1.0 - mask_ref[...].astype(f32)) * (-1e9)

    # ---- encoder layers (statically unrolled, everything in VMEM) ----------
    for l in range(NUM_LAYERS):
        wqkv = wqkv_ref[l]
        bqkv = bqkv_ref[l]
        wo = wo_ref[l]
        bo = bo_ref[l]
        lnp = lnp_ref[l]                                           # (4, H)
        w1 = w1_ref[l]
        b1 = b1_ref[l]
        w2 = w2_ref[l]
        b2 = b2_ref[l]

        # fused QKV projection: lane-dense (B*S, 3H) = (32, 192)
        qkv = jnp.dot(h, wqkv, preferred_element_type=f32) + bqkv

        attn_rows = []
        for b in range(B):
            r0 = b * S
            mb = neg_mask[b:b + 1, :]                              # (1, S)
            head_outs = []
            for hd in range(NH):
                c0 = hd * DH
                qb = qkv[r0:r0 + S, c0:c0 + DH]                    # (S, DH)
                kb = qkv[r0:r0 + S, H + c0:H + c0 + DH]
                vb = qkv[r0:r0 + S, 2 * H + c0:2 * H + c0 + DH]
                scores = jax.lax.dot_general(
                    qb, kb, (((1,), (1,)), ((), ())),
                    preferred_element_type=f32) * scale + mb       # (S, S)
                p = _softmax_last(scores)
                head_outs.append(jnp.dot(p, vb, preferred_element_type=f32))
            attn_rows.append(jnp.concatenate(head_outs, axis=1))   # (S, H)
        ao = jnp.concatenate(attn_rows, axis=0)                    # (B*S, H)
        ao = jnp.dot(ao, wo, preferred_element_type=f32) + bo

        # residual + LN1 fused
        h1 = _ln(h + ao, lnp[0:1, :], lnp[1:2, :])

        # FFN (GELU) fused
        f = jnp.dot(h1, w1, preferred_element_type=f32) + b1
        f = jax.nn.gelu(f, approximate=True)
        f = jnp.dot(f, w2, preferred_element_type=f32) + b2

        # residual + LN2 fused
        h = _ln(h1 + f, lnp[2:3, :], lnp[3:4, :])

    # ---- pooler (first token per batch) + sequence mean ---------------------
    first_tok = jnp.concatenate([h[b * S:b * S + 1, :] for b in range(B)], axis=0)
    pooled = jnp.tanh(
        jnp.dot(first_tok, pooler_w_ref[...], preferred_element_type=f32)
        + pooler_b_ref[...])                                       # (B, H)
    # NOTE: mean includes padded positions, matching torch.mean(emb, dim=1).
    mean_emb = jnp.concatenate(
        [jnp.mean(h[b * S:(b + 1) * S, :], axis=0, keepdims=True) for b in range(B)],
        axis=0)                                                    # (B, H)

    # ---- classifier / adversarial heads -------------------------------------
    head_w = head_w_ref[...]                                       # (H, 11)
    head_b = head_b_ref[...]                                       # (1, 11)
    C, T = NUM_CLASSES, NUM_TASKS

    wsd_out = (jnp.dot(pooled[:HALF], head_w[:, _HW_WSD:_HW_WSD + C],
                       preferred_element_type=f32) + head_b[:, _HW_WSD:_HW_WSD + C])
    md_out = (jnp.dot(pooled[HALF:], head_w[:, _HW_MD:_HW_MD + C],
                      preferred_element_type=f32) + head_b[:, _HW_MD:_HW_MD + C])
    global_out = (jnp.dot(mean_emb, head_w[:, _HW_TASK:_HW_TASK + T],
                          preferred_element_type=f32) + head_b[:, _HW_TASK:_HW_TASK + T])

    wsd_prob = _softmax_last(wsd_out)
    md_prob = _softmax_last(md_out)
    wsd_rev = mean_emb[:HALF]                                      # GRLayer == id
    md_rev = mean_emb[HALF:]

    l0_w = head_w[:, _HW_L0:_HW_L0 + C]
    l0_b = head_b[:, _HW_L0:_HW_L0 + C]
    l1_w = head_w[:, _HW_L1:_HW_L1 + C]
    l1_b = head_b[:, _HW_L1:_HW_L1 + C]

    wsd_l0 = jnp.dot(wsd_prob[:, 0:1] * wsd_rev, l0_w, preferred_element_type=f32) + l0_b
    md_l0 = jnp.dot(md_prob[:, 0:1] * md_rev, l0_w, preferred_element_type=f32) + l0_b
    wsd_l1 = jnp.dot(wsd_prob[:, 1:2] * wsd_rev, l1_w, preferred_element_type=f32) + l1_b
    md_l1 = jnp.dot(md_prob[:, 1:2] * md_rev, l1_w, preferred_element_type=f32) + l1_b

    # lane-dense (B, 128) output slab, split in the JAX wrapper
    slab = jnp.concatenate(
        [jnp.concatenate([wsd_out, md_out], axis=0),               # cols 0:2
         jnp.concatenate([wsd_l0, md_l0], axis=0),                 # cols 2:4
         jnp.concatenate([wsd_l1, md_l1], axis=0),                 # cols 4:6
         global_out,                                               # cols 6:9
         jnp.zeros((B, OUT_LANES - _COLS_USED), f32)],
        axis=1)
    out_ref[...] = slab.astype(out_ref.dtype)


# ------------------------------ parameters -----------------------------------
def init_params(key):
    keys = iter(jax.random.split(key, 64))

    def nrm(shape):
        return jax.random.normal(next(keys), shape, dtype=jnp.float32) * INIT_STD

    wqkv, wo, w1, w2 = [], [], [], []
    for _ in range(NUM_LAYERS):
        wqkv.append(nrm((H, 3 * H)))
        wo.append(nrm((H, H)))
        w1.append(nrm((H, FFN)))
        w2.append(nrm((FFN, H)))

    one_row = jnp.ones((1, 1, H), jnp.float32)
    zero_row = jnp.zeros((1, 1, H), jnp.float32)

    params = {
        "word_emb": nrm((VOCAB, H)),
        "type_emb": nrm((2, H)),
        "pos_emb": nrm((S, H)),
        # rows: gamma, beta
        "emb_ln": jnp.concatenate([jnp.ones((1, H), jnp.float32),
                                   jnp.zeros((1, H), jnp.float32)], axis=0),
        "wqkv": jnp.stack(wqkv),                                   # (L, H, 3H)
        "bqkv": jnp.zeros((NUM_LAYERS, 1, 3 * H), jnp.float32),
        "wo": jnp.stack(wo),                                       # (L, H, H)
        "bo": jnp.zeros((NUM_LAYERS, 1, H), jnp.float32),
        # rows: ln1_gamma, ln1_beta, ln2_gamma, ln2_beta
        "lnp": jnp.tile(jnp.concatenate([one_row, zero_row, one_row, zero_row],
                                        axis=1), (NUM_LAYERS, 1, 1)),
        "w_ffn1": jnp.stack(w1),                                   # (L, H, FFN)
        "b_ffn1": jnp.zeros((NUM_LAYERS, 1, FFN), jnp.float32),
        "w_ffn2": jnp.stack(w2),                                   # (L, FFN, H)
        "b_ffn2": jnp.zeros((NUM_LAYERS, 1, H), jnp.float32),
        "pooler_w": nrm((H, H)),
        "pooler_b": jnp.zeros((1, H), jnp.float32),
        # columns: wsd | md | task | label_fc0 | label_fc1
        "head_w": jnp.concatenate(
            [nrm((H, NUM_CLASSES)), nrm((H, NUM_CLASSES)), nrm((H, NUM_TASKS)),
             nrm((H, NUM_CLASSES)), nrm((H, NUM_CLASSES))], axis=1),
        "head_b": jnp.zeros((1, HEAD_COLS), jnp.float32),
    }
    return params


# ------------------------------- wrapper --------------------------------------
def _full_spec(shape):
    nd = len(shape)

    def idx(*_):
        return (0,) * nd

    return pl.BlockSpec(shape, idx)


def deberta_base_forward(params, input_ids, type_ids, att_mask, adv_lmbd=0.01):
    """Training path of DeBERTa_base.forward — one fused Pallas kernel."""
    ids = input_ids.reshape(B * S, 1).astype(jnp.int32)
    tids = type_ids.reshape(B * S, 1).astype(jnp.int32)
    mask = att_mask.astype(jnp.int32)

    inputs = (
        ids, tids, mask,
        params["word_emb"], params["type_emb"], params["pos_emb"], params["emb_ln"],
        params["wqkv"], params["bqkv"], params["wo"], params["bo"], params["lnp"],
        params["w_ffn1"], params["b_ffn1"], params["w_ffn2"], params["b_ffn2"],
        params["pooler_w"], params["pooler_b"], params["head_w"], params["head_b"],
    )

    slab = pl.pallas_call(
        _deberta_fwd_kernel,
        out_shape=jax.ShapeDtypeStruct((B, OUT_LANES), jnp.float32),
        in_specs=[_full_spec(x.shape) for x in inputs],
        out_specs=_full_spec((B, OUT_LANES)),
    )(*inputs)

    C, T = NUM_CLASSES, NUM_TASKS
    wsd_out = slab[:HALF, _COL_CLS:_COL_CLS + C]
    md_out = slab[HALF:, _COL_CLS:_COL_CLS + C]
    wsd_local0 = slab[:HALF, _COL_L0:_COL_L0 + C]
    md_local0 = slab[HALF:, _COL_L0:_COL_L0 + C]
    wsd_local1 = slab[:HALF, _COL_L1:_COL_L1 + C]
    md_local1 = slab[HALF:, _COL_L1:_COL_L1 + C]
    global_out = slab[:, _COL_GLB:_COL_GLB + T]

    return (wsd_out, md_out, global_out,
            [wsd_local0, wsd_local1], [md_local0, md_local1])


# ---------------------------------- main --------------------------------------
if __name__ == "__main__":
    key = jax.random.PRNGKey(0)
    kp, kid = jax.random.split(key)
    params = init_params(kp)

    input_ids = jax.random.randint(kid, (B, S), 0, VOCAB, dtype=jnp.int32)
    type_ids = jnp.zeros((B, S), dtype=jnp.int32)
    att_mask = jnp.ones((B, S), dtype=jnp.int32).at[:, -2:].set(0)  # pad last 2 tokens

    outs = deberta_base_forward(params, input_ids, type_ids, att_mask)
    for leaf in jax.tree_util.tree_leaves(outs):
        jax.block_until_ready(leaf)

    wsd_out, md_out, global_out, wsd_local, md_local = outs
    assert wsd_out.shape == (HALF, NUM_CLASSES)
    assert md_out.shape == (HALF, NUM_CLASSES)
    assert global_out.shape == (B, NUM_TASKS)
    assert wsd_local[0].shape == (HALF, NUM_CLASSES)
    assert md_local[1].shape == (HALF, NUM_CLASSES)
    assert all(bool(jnp.all(jnp.isfinite(x)))
               for x in jax.tree_util.tree_leaves(outs))
    print("KERNEL_OK")
</pallas_src>

<mosaic_0001>
module attributes {stable_mosaic.version = 11 : i64} {
  func.func @_deberta_fwd_kernel(%arg0: memref<32x1xi32, #tpu.memory_space<vmem>>, %arg1: memref<32x1xi32, #tpu.memory_space<vmem>>, %arg2: memref<4x8xi32, #tpu.memory_space<vmem>>, %arg3: memref<128x64xf32, #tpu.memory_space<vmem>>, %arg4: memref<2x64xf32, #tpu.memory_space<vmem>>, %arg5: memref<8x64xf32, #tpu.memory_space<vmem>>, %arg6: memref<2x64xf32, #tpu.memory_space<vmem>>, %arg7: memref<2x64x192xf32, #tpu.memory_space<vmem>>, %arg8: memref<2x1x192xf32, #tpu.memory_space<vmem>>, %arg9: memref<2x64x64xf32, #tpu.memory_space<vmem>>, %arg10: memref<2x1x64xf32, #tpu.memory_space<vmem>>, %arg11: memref<2x4x64xf32, #tpu.memory_space<vmem>>, %arg12: memref<2x64x128xf32, #tpu.memory_space<vmem>>, %arg13: memref<2x1x128xf32, #tpu.memory_space<vmem>>, %arg14: memref<2x128x64xf32, #tpu.memory_space<vmem>>, %arg15: memref<2x1x64xf32, #tpu.memory_space<vmem>>, %arg16: memref<64x64xf32, #tpu.memory_space<vmem>>, %arg17: memref<1x64xf32, #tpu.memory_space<vmem>>, %arg18: memref<64x11xf32, #tpu.memory_space<vmem>>, %arg19: memref<1x11xf32, #tpu.memory_space<vmem>>, %arg20: memref<4x128xf32, #tpu.memory_space<vmem>>) attributes {dimension_semantics = [], scalar_prefetch = 0 : i64, scratch_operands = 0 : i64, tpu.core_type = #tpu.core_type<tc>} {
    %c0 = arith.constant 0 : index
    %c0_0 = arith.constant 0 : index
    %0 = vector.load %arg0[%c0, %c0_0] : memref<32x1xi32, #tpu.memory_space<vmem>>, vector<32x1xi32>
    %1 = tpu.iota {dimensions = array<i32: 1>} : vector<32x128xi32>
    %2 = vector.broadcast %0 : vector<32x1xi32> to vector<32x128xi32>
    %3 = arith.cmpi eq, %1, %2 : vector<32x128xi32>
    %4 = arith.extui %3 : vector<32x128xi1> to vector<32x128xi32>
    %5 = arith.sitofp %4 : vector<32x128xi32> to vector<32x128xf32>
    %c0_1 = arith.constant 0 : index
    %c0_2 = arith.constant 0 : index
    %6 = vector.load %arg3[%c0_1, %c0_2] : memref<128x64xf32, #tpu.memory_space<vmem>>, vector<128x64xf32>
    %cst = arith.constant dense<0.000000e+00> : vector<32x64xf32>
    %7 = tpu.matmul %5, %6, %cst {dimension_numbers = #tpu.dot_dimension_numbers<[1], [0], [0], [1], [0, 0, 1, 1], [], []>} : vector<32x128xf32>, vector<128x64xf32>, vector<32x64xf32> -> vector<32x64xf32>
    %c0_3 = arith.constant 0 : index
    %c0_4 = arith.constant 0 : index
    %8 = vector.load %arg1[%c0_3, %c0_4] : memref<32x1xi32, #tpu.memory_space<vmem>>, vector<32x1xi32>
    %c0_i32 = arith.constant 0 : i32
    %9 = vector.broadcast %c0_i32 : i32 to vector<32x1xi32>
    %10 = arith.cmpi eq, %8, %9 : vector<32x1xi32>
    %c0_5 = arith.constant 0 : index
    %c0_6 = arith.constant 0 : index
    %11 = vector.load %arg4[%c0_5, %c0_6] : memref<2x64xf32, #tpu.memory_space<vmem>>, vector<1x64xf32>
    %c1 = arith.constant 1 : index
    %c0_7 = arith.constant 0 : index
    %12 = vector.load %arg4[%c1, %c0_7] : memref<2x64xf32, #tpu.memory_space<vmem>>, vector<1x64xf32>
    %13 = vector.shape_cast %10 : vector<32x1xi1> to vector<32x1xi1>
    %14 = vector.broadcast %13 : vector<32x1xi1> to vector<32x64xi1>
    %15 = vector.shape_cast %11 : vector<1x64xf32> to vector<1x64xf32>
    %16 = vector.broadcast %15 : vector<1x64xf32> to vector<32x64xf32>
    %17 = vector.shape_cast %12 : vector<1x64xf32> to vector<1x64xf32>
    %18 = vector.broadcast %17 : vector<1x64xf32> to vector<32x64xf32>
    %19 = arith.select %14, %16, %18 : vector<32x64xi1>, vector<32x64xf32>
    %c0_8 = arith.constant 0 : index
    %c0_9 = arith.constant 0 : index
    %20 = vector.load %arg5[%c0_8, %c0_9] : memref<8x64xf32, #tpu.memory_space<vmem>>, vector<8x64xf32>
    %21 = tpu.concatenate %20, %20, %20, %20 in 0 : vector<8x64xf32>, vector<8x64xf32>, vector<8x64xf32>, vector<8x64xf32> -> vector<32x64xf32>
    %22 = arith.addf %7, %19 : vector<32x64xf32>
    %23 = arith.addf %22, %21 : vector<32x64xf32>
    %c0_10 = arith.constant 0 : index
    %c0_11 = arith.constant 0 : index
    %24 = vector.load %arg6[%c0_10, %c0_11] : memref<2x64xf32, #tpu.memory_space<vmem>>, vector<1x64xf32>
    %c1_12 = arith.constant 1 : index
    %c0_13 = arith.constant 0 : index
    %25 = vector.load %arg6[%c1_12, %c0_13] : memref<2x64xf32, #tpu.memory_space<vmem>>, vector<1x64xf32>
    %cst_14 = arith.constant dense<0.000000e+00> : vector<32xf32>
    %26 = vector.multi_reduction <add>, %23, %cst_14 [1] : vector<32x64xf32> to vector<32xf32>
    %27 = vector.shape_cast %26 : vector<32xf32> to vector<32x1xf32>
    %cst_15 = arith.constant 6.400000e+01 : f32
    %28 = vector.broadcast %cst_15 : f32 to vector<32x1xf32>
    %29 = arith.divf %27, %28 : vector<32x1xf32>
    %30 = vector.broadcast %29 : vector<32x1xf32> to vector<32x64xf32>
    %31 = arith.subf %23, %30 : vector<32x64xf32>
    %32 = arith.mulf %31, %31 : vector<32x64xf32>
    %cst_16 = arith.constant dense<0.000000e+00> : vector<32xf32>
    %33 = vector.multi_reduction <add>, %32, %cst_16 [1] : vector<32x64xf32> to vector<32xf32>
    %34 = vector.shape_cast %33 : vector<32xf32> to vector<32x1xf32>
    %cst_17 = arith.constant 6.400000e+01 : f32
    %35 = vector.broadcast %cst_17 : f32 to vector<32x1xf32>
    %36 = arith.divf %34, %35 : vector<32x1xf32>
    %37 = vector.broadcast %29 : vector<32x1xf32> to vector<32x64xf32>
    %38 = arith.subf %23, %37 : vector<32x64xf32>
    %cst_18 = arith.constant 1.000000e-07 : f32
    %39 = vector.broadcast %cst_18 : f32 to vector<32x1xf32>
    %40 = arith.addf %36, %39 : vector<32x1xf32>
    %41 = math.rsqrt %40 : vector<32x1xf32>
    %42 = vector.broadcast %41 : vector<32x1xf32> to vector<32x64xf32>
    %43 = arith.mulf %38, %42 : vector<32x64xf32>
    %44 = vector.broadcast %24 : vector<1x64xf32> to vector<32x64xf32>
    %45 = arith.mulf %43, %44 : vector<32x64xf32>
    %46 = vector.broadcast %25 : vector<1x64xf32> to vector<32x64xf32>
    %47 = arith.addf %45, %46 : vector<32x64xf32>
    %c0_19 = arith.constant 0 : index
    %c0_20 = arith.constant 0 : index
    %48 = vector.load %arg2[%c0_19, %c0_20] : memref<4x8xi32, #tpu.memory_space<vmem>>, vector<4x8xi32>
    %49 = arith.sitofp %48 : vector<4x8xi32> to vector<4x8xf32>
    %cst_21 = arith.constant 1.000000e+00 : f32
    %50 = vector.broadcast %cst_21 : f32 to vector<4x8xf32>
    %51 = arith.subf %50, %49 : vector<4x8xf32>
    %cst_22 = arith.constant -1.000000e+09 : f32
    %52 = vector.broadcast %cst_22 : f32 to vector<4x8xf32>
    %53 = arith.mulf %51, %52 : vector<4x8xf32>
    %c0_23 = arith.constant 0 : index
    %c0_24 = arith.constant 0 : index
    %c0_25 = arith.constant 0 : index
    %54 = vector.load %arg7[%c0_23, %c0_24, %c0_25] : memref<2x64x192xf32, #tpu.memory_space<vmem>>, vector<1x64x192xf32>
    %55 = vector.shape_cast %54 : vector<1x64x192xf32> to vector<64x192xf32>
    %c0_26 = arith.constant 0 : index
    %c0_27 = arith.constant 0 : index
    %c0_28 = arith.constant 0 : index
    %56 = vector.load %arg8[%c0_26, %c0_27, %c0_28] : memref<2x1x192xf32, #tpu.memory_space<vmem>>, vector<1x1x192xf32>
    %57 = vector.shape_cast %56 : vector<1x1x192xf32> to vector<1x192xf32>
    %c0_29 = arith.constant 0 : index
    %c0_30 = arith.constant 0 : index
    %c0_31 = arith.constant 0 : index
    %58 = vector.load %arg9[%c0_29, %c0_30, %c0_31] : memref<2x64x64xf32, #tpu.memory_space<vmem>>, vector<1x64x64xf32>
    %59 = vector.shape_cast %58 : vector<1x64x64xf32> to vector<64x64xf32>
    %c0_32 = arith.constant 0 : index
    %c0_33 = arith.constant 0 : index
    %c0_34 = arith.constant 0 : index
    %60 = vector.load %arg10[%c0_32, %c0_33, %c0_34] : memref<2x1x64xf32, #tpu.memory_space<vmem>>, vector<1x1x64xf32>
    %61 = vector.shape_cast %60 : vector<1x1x64xf32> to vector<1x64xf32>
    %c0_35 = arith.constant 0 : index
    %c0_36 = arith.constant 0 : index
    %c0_37 = arith.constant 0 : index
    %62 = vector.load %arg11[%c0_35, %c0_36, %c0_37] : memref<2x4x64xf32, #tpu.memory_space<vmem>>, vector<1x4x64xf32>
    %63 = vector.shape_cast %62 : vector<1x4x64xf32> to vector<4x64xf32>
    %c0_38 = arith.constant 0 : index
    %c0_39 = arith.constant 0 : index
    %c0_40 = arith.constant 0 : index
    %64 = vector.load %arg12[%c0_38, %c0_39, %c0_40] : memref<2x64x128xf32, #tpu.memory_space<vmem>>, vector<1x64x128xf32>
    %65 = vector.shape_cast %64 : vector<1x64x128xf32> to vector<64x128xf32>
    %c0_41 = arith.constant 0 : index
    %c0_42 = arith.constant 0 : index
    %c0_43 = arith.constant 0 : index
    %66 = vector.load %arg13[%c0_41, %c0_42, %c0_43] : memref<2x1x128xf32, #tpu.memory_space<vmem>>, vector<1x1x128xf32>
    %67 = vector.shape_cast %66 : vector<1x1x128xf32> to vector<1x128xf32>
    %c0_44 = arith.constant 0 : index
    %c0_45 = arith.constant 0 : index
    %c0_46 = arith.constant 0 : index
    %68 = vector.load %arg14[%c0_44, %c0_45, %c0_46] : memref<2x128x64xf32, #tpu.memory_space<vmem>>, vector<1x128x64xf32>
    %69 = vector.shape_cast %68 : vector<1x128x64xf32> to vector<128x64xf32>
    %c0_47 = arith.constant 0 : index
    %c0_48 = arith.constant 0 : index
    %c0_49 = arith.constant 0 : index
    %70 = vector.load %arg15[%c0_47, %c0_48, %c0_49] : memref<2x1x64xf32, #tpu.memory_space<vmem>>, vector<1x1x64xf32>
    %71 = vector.shape_cast %70 : vector<1x1x64xf32> to vector<1x64xf32>
    %cst_50 = arith.constant dense<0.000000e+00> : vector<32x192xf32>
    %72 = tpu.matmul %47, %55, %cst_50 {dimension_numbers = #tpu.dot_dimension_numbers<[1], [0], [0], [1], [0, 0, 1, 1], [], []>} : vector<32x64xf32>, vector<64x192xf32>, vector<32x192xf32> -> vector<32x192xf32>
    %73 = vector.broadcast %57 : vector<1x192xf32> to vector<32x192xf32>
    %74 = arith.addf %72, %73 : vector<32x192xf32>
    %75 = vector.extract_strided_slice %53 {offsets = [0, 0], sizes = [1, 8], strides = [1, 1]} : vector<4x8xf32> to vector<1x8xf32>
    %76 = vector.extract_strided_slice %74 {offsets = [0, 0], sizes = [8, 32], strides = [1, 1]} : vector<32x192xf32> to vector<8x32xf32>
    %77 = vector.extract_strided_slice %74 {offsets = [0, 64], sizes = [8, 32], strides = [1, 1]} : vector<32x192xf32> to vector<8x32xf32>
    %78 = vector.extract_strided_slice %74 {offsets = [0, 128], sizes = [8, 32], strides = [1, 1]} : vector<32x192xf32> to vector<8x32xf32>
    %cst_51 = arith.constant dense<0.000000e+00> : vector<8x8xf32>
    %79 = tpu.matmul %76, %77, %cst_51 {dimension_numbers = #tpu.dot_dimension_numbers<[1], [1], [0], [0], [0, 0, 1, 0], [], []>} : vector<8x32xf32>, vector<8x32xf32>, vector<8x8xf32> -> vector<8x8xf32>
    %cst_52 = arith.constant 0.176776692 : f32
    %80 = vector.broadcast %cst_52 : f32 to vector<8x8xf32>
    %81 = arith.mulf %79, %80 : vector<8x8xf32>
    %82 = vector.broadcast %75 : vector<1x8xf32> to vector<8x8xf32>
    %83 = arith.addf %81, %82 : vector<8x8xf32>
    %cst_53 = arith.constant dense<0xFF800000> : vector<8xf32>
    %84 = vector.multi_reduction <maximumf>, %83, %cst_53 [1] : vector<8x8xf32> to vector<8xf32>
    %85 = vector.shape_cast %84 : vector<8xf32> to vector<8x1xf32>
    %86 = vector.broadcast %85 : vector<8x1xf32> to vector<8x8xf32>
    %87 = arith.subf %83, %86 : vector<8x8xf32>
    %88 = math.exp %87 : vector<8x8xf32>
    %cst_54 = arith.constant dense<0.000000e+00> : vector<8xf32>
    %89 = vector.multi_reduction <add>, %88, %cst_54 [1] : vector<8x8xf32> to vector<8xf32>
    %90 = vector.shape_cast %89 : vector<8xf32> to vector<8x1xf32>
    %91 = tpu.reciprocal %90 {approx = true} : vector<8x1xf32> -> vector<8x1xf32>
    %92 = vector.broadcast %91 : vector<8x1xf32> to vector<8x8xf32>
    %93 = arith.mulf %88, %92 : vector<8x8xf32>
    %cst_55 = arith.constant dense<0.000000e+00> : vector<8x32xf32>
    %94 = tpu.matmul %93, %78, %cst_55 {dimension_numbers = #tpu.dot_dimension_numbers<[1], [0], [0], [1], [0, 0, 1, 1], [], []>} : vector<8x8xf32>, vector<8x32xf32>, vector<8x32xf32> -> vector<8x32xf32>
    %95 = vector.extract_strided_slice %74 {offsets = [0, 32], sizes = [8, 32], strides = [1, 1]} : vector<32x192xf32> to vector<8x32xf32>
    %96 = vector.extract_strided_slice %74 {offsets = [0, 96], sizes = [8, 32], strides = [1, 1]} : vector<32x192xf32> to vector<8x32xf32>
    %97 = vector.extract_strided_slice %74 {offsets = [0, 160], sizes = [8, 32], strides = [1, 1]} : vector<32x192xf32> to vector<8x32xf32>
    %cst_56 = arith.constant dense<0.000000e+00> : vector<8x8xf32>
    %98 = tpu.matmul %95, %96, %cst_56 {dimension_numbers = #tpu.dot_dimension_numbers<[1], [1], [0], [0], [0, 0, 1, 0], [], []>} : vector<8x32xf32>, vector<8x32xf32>, vector<8x8xf32> -> vector<8x8xf32>
    %cst_57 = arith.constant 0.176776692 : f32
    %99 = vector.broadcast %cst_57 : f32 to vector<8x8xf32>
    %100 = arith.mulf %98, %99 : vector<8x8xf32>
    %101 = vector.broadcast %75 : vector<1x8xf32> to vector<8x8xf32>
    %102 = arith.addf %100, %101 : vector<8x8xf32>
    %cst_58 = arith.constant dense<0xFF800000> : vector<8xf32>
    %103 = vector.multi_reduction <maximumf>, %102, %cst_58 [1] : vector<8x8xf32> to vector<8xf32>
    %104 = vector.shape_cast %103 : vector<8xf32> to vector<8x1xf32>
    %105 = vector.broadcast %104 : vector<8x1xf32> to vector<8x8xf32>
    %106 = arith.subf %102, %105 : vector<8x8xf32>
    %107 = math.exp %106 : vector<8x8xf32>
    %cst_59 = arith.constant dense<0.000000e+00> : vector<8xf32>
    %108 = vector.multi_reduction <add>, %107, %cst_59 [1] : vector<8x8xf32> to vector<8xf32>
    %109 = vector.shape_cast %108 : vector<8xf32> to vector<8x1xf32>
    %110 = tpu.reciprocal %109 {approx = true} : vector<8x1xf32> -> vector<8x1xf32>
    %111 = vector.broadcast %110 : vector<8x1xf32> to vector<8x8xf32>
    %112 = arith.mulf %107, %111 : vector<8x8xf32>
    %cst_60 = arith.constant dense<0.000000e+00> : vector<8x32xf32>
    %113 = tpu.matmul %112, %97, %cst_60 {dimension_numbers = #tpu.dot_dimension_numbers<[1], [0], [0], [1], [0, 0, 1, 1], [], []>} : vector<8x8xf32>, vector<8x32xf32>, vector<8x32xf32> -> vector<8x32xf32>
    %114 = tpu.concatenate %94, %113 in 1 : vector<8x32xf32>, vector<8x32xf32> -> vector<8x64xf32>
    %115 = vector.extract_strided_slice %53 {offsets = [1, 0], sizes = [1, 8], strides = [1, 1]} : vector<4x8xf32> to vector<1x8xf32>
    %116 = vector.extract_strided_slice %74 {offsets = [8, 0], sizes = [8, 32], strides = [1, 1]} : vector<32x192xf32> to vector<8x32xf32>
    %117 = vector.extract_strided_slice %74 {offsets = [8, 64], sizes = [8, 32], strides = [1, 1]} : vector<32x192xf32> to vector<8x32xf32>
    %118 = vector.extract_strided_slice %74 {offsets = [8, 128], sizes = [8, 32], strides = [1, 1]} : vector<32x192xf32> to vector<8x32xf32>
    %cst_61 = arith.constant dense<0.000000e+00> : vector<8x8xf32>
    %119 = tpu.matmul %116, %117, %cst_61 {dimension_numbers = #tpu.dot_dimension_numbers<[1], [1], [0], [0], [0, 0, 1, 0], [], []>} : vector<8x32xf32>, vector<8x32xf32>, vector<8x8xf32> -> vector<8x8xf32>
    %cst_62 = arith.constant 0.176776692 : f32
    %120 = vector.broadcast %cst_62 : f32 to vector<8x8xf32>
    %121 = arith.mulf %119, %120 : vector<8x8xf32>
    %122 = vector.broadcast %115 : vector<1x8xf32> to vector<8x8xf32>
    %123 = arith.addf %121, %122 : vector<8x8xf32>
    %cst_63 = arith.constant dense<0xFF800000> : vector<8xf32>
    %124 = vector.multi_reduction <maximumf>, %123, %cst_63 [1] : vector<8x8xf32> to vector<8xf32>
    %125 = vector.shape_cast %124 : vector<8xf32> to vector<8x1xf32>
    %126 = vector.broadcast %125 : vector<8x1xf32> to vector<8x8xf32>
    %127 = arith.subf %123, %126 : vector<8x8xf32>
    %128 = math.exp %127 : vector<8x8xf32>
    %cst_64 = arith.constant dense<0.000000e+00> : vector<8xf32>
    %129 = vector.multi_reduction <add>, %128, %cst_64 [1] : vector<8x8xf32> to vector<8xf32>
    %130 = vector.shape_cast %129 : vector<8xf32> to vector<8x1xf32>
    %131 = tpu.reciprocal %130 {approx = true} : vector<8x1xf32> -> vector<8x1xf32>
    %132 = vector.broadcast %131 : vector<8x1xf32> to vector<8x8xf32>
    %133 = arith.mulf %128, %132 : vector<8x8xf32>
    %cst_65 = arith.constant dense<0.000000e+00> : vector<8x32xf32>
    %134 = tpu.matmul %133, %118, %cst_65 {dimension_numbers = #tpu.dot_dimension_numbers<[1], [0], [0], [1], [0, 0, 1, 1], [], []>} : vector<8x8xf32>, vector<8x32xf32>, vector<8x32xf32> -> vector<8x32xf32>
    %135 = vector.extract_strided_slice %74 {offsets = [8, 32], sizes = [8, 32], strides = [1, 1]} : vector<32x192xf32> to vector<8x32xf32>
    %136 = vector.extract_strided_slice %74 {offsets = [8, 96], sizes = [8, 32], strides = [1, 1]} : vector<32x192xf32> to vector<8x32xf32>
    %137 = vector.extract_strided_slice %74 {offsets = [8, 160], sizes = [8, 32], strides = [1, 1]} : vector<32x192xf32> to vector<8x32xf32>
    %cst_66 = arith.constant dense<0.000000e+00> : vector<8x8xf32>
    %138 = tpu.matmul %135, %136, %cst_66 {dimension_numbers = #tpu.dot_dimension_numbers<[1], [1], [0], [0], [0, 0, 1, 0], [], []>} : vector<8x32xf32>, vector<8x32xf32>, vector<8x8xf32> -> vector<8x8xf32>
    %cst_67 = arith.constant 0.176776692 : f32
    %139 = vector.broadcast %cst_67 : f32 to vector<8x8xf32>
    %140 = arith.mulf %138, %139 : vector<8x8xf32>
    %141 = vector.broadcast %115 : vector<1x8xf32> to vector<8x8xf32>
    %142 = arith.addf %140, %141 : vector<8x8xf32>
    %cst_68 = arith.constant dense<0xFF800000> : vector<8xf32>
    %143 = vector.multi_reduction <maximumf>, %142, %cst_68 [1] : vector<8x8xf32> to vector<8xf32>
    %144 = vector.shape_cast %143 : vector<8xf32> to vector<8x1xf32>
    %145 = vector.broadcast %144 : vector<8x1xf32> to vector<8x8xf32>
    %146 = arith.subf %142, %145 : vector<8x8xf32>
    %147 = math.exp %146 : vector<8x8xf32>
    %cst_69 = arith.constant dense<0.000000e+00> : vector<8xf32>
    %148 = vector.multi_reduction <add>, %147, %cst_69 [1] : vector<8x8xf32> to vector<8xf32>
    %149 = vector.shape_cast %148 : vector<8xf32> to vector<8x1xf32>
    %150 = tpu.reciprocal %149 {approx = true} : vector<8x1xf32> -> vector<8x1xf32>
    %151 = vector.broadcast %150 : vector<8x1xf32> to vector<8x8xf32>
    %152 = arith.mulf %147, %151 : vector<8x8xf32>
    %cst_70 = arith.constant dense<0.000000e+00> : vector<8x32xf32>
    %153 = tpu.matmul %152, %137, %cst_70 {dimension_numbers = #tpu.dot_dimension_numbers<[1], [0], [0], [1], [0, 0, 1, 1], [], []>} : vector<8x8xf32>, vector<8x32xf32>, vector<8x32xf32> -> vector<8x32xf32>
    %154 = tpu.concatenate %134, %153 in 1 : vector<8x32xf32>, vector<8x32xf32> -> vector<8x64xf32>
    %155 = vector.extract_strided_slice %53 {offsets = [2, 0], sizes = [1, 8], strides = [1, 1]} : vector<4x8xf32> to vector<1x8xf32>
    %156 = vector.extract_strided_slice %74 {offsets = [16, 0], sizes = [8, 32], strides = [1, 1]} : vector<32x192xf32> to vector<8x32xf32>
    %157 = vector.extract_strided_slice %74 {offsets = [16, 64], sizes = [8, 32], strides = [1, 1]} : vector<32x192xf32> to vector<8x32xf32>
    %158 = vector.extract_strided_slice %74 {offsets = [16, 128], sizes = [8, 32], strides = [1, 1]} : vector<32x192xf32> to vector<8x32xf32>
    %cst_71 = arith.constant dense<0.000000e+00> : vector<8x8xf32>
    %159 = tpu.matmul %156, %157, %cst_71 {dimension_numbers = #tpu.dot_dimension_numbers<[1], [1], [0], [0], [0, 0, 1, 0], [], []>} : vector<8x32xf32>, vector<8x32xf32>, vector<8x8xf32> -> vector<8x8xf32>
    %cst_72 = arith.constant 0.176776692 : f32
    %160 = vector.broadcast %cst_72 : f32 to vector<8x8xf32>
    %161 = arith.mulf %159, %160 : vector<8x8xf32>
    %162 = vector.broadcast %155 : vector<1x8xf32> to vector<8x8xf32>
    %163 = arith.addf %161, %162 : vector<8x8xf32>
    %cst_73 = arith.constant dense<0xFF800000> : vector<8xf32>
    %164 = vector.multi_reduction <maximumf>, %163, %cst_73 [1] : vector<8x8xf32> to vector<8xf32>
    %165 = vector.shape_cast %164 : vector<8xf32> to vector<8x1xf32>
    %166 = vector.broadcast %165 : vector<8x1xf32> to vector<8x8xf32>
    %167 = arith.subf %163, %166 : vector<8x8xf32>
    %168 = math.exp %167 : vector<8x8xf32>
    %cst_74 = arith.constant dense<0.000000e+00> : vector<8xf32>
    %169 = vector.multi_reduction <add>, %168, %cst_74 [1] : vector<8x8xf32> to vector<8xf32>
    %170 = vector.shape_cast %169 : vector<8xf32> to vector<8x1xf32>
    %171 = tpu.reciprocal %170 {approx = true} : vector<8x1xf32> -> vector<8x1xf32>
    %172 = vector.broadcast %171 : vector<8x1xf32> to vector<8x8xf32>
    %173 = arith.mulf %168, %172 : vector<8x8xf32>
    %cst_75 = arith.constant dense<0.000000e+00> : vector<8x32xf32>
    %174 = tpu.matmul %173, %158, %cst_75 {dimension_numbers = #tpu.dot_dimension_numbers<[1], [0], [0], [1], [0, 0, 1, 1], [], []>} : vector<8x8xf32>, vector<8x32xf32>, vector<8x32xf32> -> vector<8x32xf32>
    %175 = vector.extract_strided_slice %74 {offsets = [16, 32], sizes = [8, 32], strides = [1, 1]} : vector<32x192xf32> to vector<8x32xf32>
    %176 = vector.extract_strided_slice %74 {offsets = [16, 96], sizes = [8, 32], strides = [1, 1]} : vector<32x192xf32> to vector<8x32xf32>
    %177 = vector.extract_strided_slice %74 {offsets = [16, 160], sizes = [8, 32], strides = [1, 1]} : vector<32x192xf32> to vector<8x32xf32>
    %cst_76 = arith.constant dense<0.000000e+00> : vector<8x8xf32>
    %178 = tpu.matmul %175, %176, %cst_76 {dimension_numbers = #tpu.dot_dimension_numbers<[1], [1], [0], [0], [0, 0, 1, 0], [], []>} : vector<8x32xf32>, vector<8x32xf32>, vector<8x8xf32> -> vector<8x8xf32>
    %cst_77 = arith.constant 0.176776692 : f32
    %179 = vector.broadcast %cst_77 : f32 to vector<8x8xf32>
    %180 = arith.mulf %178, %179 : vector<8x8xf32>
    %181 = vector.broadcast %155 : vector<1x8xf32> to vector<8x8xf32>
    %182 = arith.addf %180, %181 : vector<8x8xf32>
    %cst_78 = arith.constant dense<0xFF800000> : vector<8xf32>
    %183 = vector.multi_reduction <maximumf>, %182, %cst_78 [1] : vector<8x8xf32> to vector<8xf32>
    %184 = vector.shape_cast %183 : vector<8xf32> to vector<8x1xf32>
    %185 = vector.broadcast %184 : vector<8x1xf32> to vector<8x8xf32>
    %186 = arith.subf %182, %185 : vector<8x8xf32>
    %187 = math.exp %186 : vector<8x8xf32>
    %cst_79 = arith.constant dense<0.000000e+00> : vector<8xf32>
    %188 = vector.multi_reduction <add>, %187, %cst_79 [1] : vector<8x8xf32> to vector<8xf32>
    %189 = vector.shape_cast %188 : vector<8xf32> to vector<8x1xf32>
    %190 = tpu.reciprocal %189 {approx = true} : vector<8x1xf32> -> vector<8x1xf32>
    %191 = vector.broadcast %190 : vector<8x1xf32> to vector<8x8xf32>
    %192 = arith.mulf %187, %191 : vector<8x8xf32>
    %cst_80 = arith.constant dense<0.000000e+00> : vector<8x32xf32>
    %193 = tpu.matmul %192, %177, %cst_80 {dimension_numbers = #tpu.dot_dimension_numbers<[1], [0], [0], [1], [0, 0, 1, 1], [], []>} : vector<8x8xf32>, vector<8x32xf32>, vector<8x32xf32> -> vector<8x32xf32>
    %194 = tpu.concatenate %174, %193 in 1 : vector<8x32xf32>, vector<8x32xf32> -> vector<8x64xf32>
    %195 = vector.extract_strided_slice %53 {offsets = [3, 0], sizes = [1, 8], strides = [1, 1]} : vector<4x8xf32> to vector<1x8xf32>
    %196 = vector.extract_strided_slice %74 {offsets = [24, 0], sizes = [8, 32], strides = [1, 1]} : vector<32x192xf32> to vector<8x32xf32>
    %197 = vector.extract_strided_slice %74 {offsets = [24, 64], sizes = [8, 32], strides = [1, 1]} : vector<32x192xf32> to vector<8x32xf32>
    %198 = vector.extract_strided_slice %74 {offsets = [24, 128], sizes = [8, 32], strides = [1, 1]} : vector<32x192xf32> to vector<8x32xf32>
    %cst_81 = arith.constant dense<0.000000e+00> : vector<8x8xf32>
    %199 = tpu.matmul %196, %197, %cst_81 {dimension_numbers = #tpu.dot_dimension_numbers<[1], [1], [0], [0], [0, 0, 1, 0], [], []>} : vector<8x32xf32>, vector<8x32xf32>, vector<8x8xf32> -> vector<8x8xf32>
    %cst_82 = arith.constant 0.176776692 : f32
    %200 = vector.broadcast %cst_82 : f32 to vector<8x8xf32>
    %201 = arith.mulf %199, %200 : vector<8x8xf32>
    %202 = vector.broadcast %195 : vector<1x8xf32> to vector<8x8xf32>
    %203 = arith.addf %201, %202 : vector<8x8xf32>
    %cst_83 = arith.constant dense<0xFF800000> : vector<8xf32>
    %204 = vector.multi_reduction <maximumf>, %203, %cst_83 [1] : vector<8x8xf32> to vector<8xf32>
    %205 = vector.shape_cast %204 : vector<8xf32> to vector<8x1xf32>
    %206 = vector.broadcast %205 : vector<8x1xf32> to vector<8x8xf32>
    %207 = arith.subf %203, %206 : vector<8x8xf32>
    %208 = math.exp %207 : vector<8x8xf32>
    %cst_84 = arith.constant dense<0.000000e+00> : vector<8xf32>
    %209 = vector.multi_reduction <add>, %208, %cst_84 [1] : vector<8x8xf32> to vector<8xf32>
    %210 = vector.shape_cast %209 : vector<8xf32> to vector<8x1xf32>
    %211 = tpu.reciprocal %210 {approx = true} : vector<8x1xf32> -> vector<8x1xf32>
    %212 = vector.broadcast %211 : vector<8x1xf32> to vector<8x8xf32>
    %213 = arith.mulf %208, %212 : vector<8x8xf32>
    %cst_85 = arith.constant dense<0.000000e+00> : vector<8x32xf32>
    %214 = tpu.matmul %213, %198, %cst_85 {dimension_numbers = #tpu.dot_dimension_numbers<[1], [0], [0], [1], [0, 0, 1, 1], [], []>} : vector<8x8xf32>, vector<8x32xf32>, vector<8x32xf32> -> vector<8x32xf32>
    %215 = vector.extract_strided_slice %74 {offsets = [24, 32], sizes = [8, 32], strides = [1, 1]} : vector<32x192xf32> to vector<8x32xf32>
    %216 = vector.extract_strided_slice %74 {offsets = [24, 96], sizes = [8, 32], strides = [1, 1]} : vector<32x192xf32> to vector<8x32xf32>
    %217 = vector.extract_strided_slice %74 {offsets = [24, 160], sizes = [8, 32], strides = [1, 1]} : vector<32x192xf32> to vector<8x32xf32>
    %cst_86 = arith.constant dense<0.000000e+00> : vector<8x8xf32>
    %218 = tpu.matmul %215, %216, %cst_86 {dimension_numbers = #tpu.dot_dimension_numbers<[1], [1], [0], [0], [0, 0, 1, 0], [], []>} : vector<8x32xf32>, vector<8x32xf32>, vector<8x8xf32> -> vector<8x8xf32>
    %cst_87 = arith.constant 0.176776692 : f32
    %219 = vector.broadcast %cst_87 : f32 to vector<8x8xf32>
    %220 = arith.mulf %218, %219 : vector<8x8xf32>
    %221 = vector.broadcast %195 : vector<1x8xf32> to vector<8x8xf32>
    %222 = arith.addf %220, %221 : vector<8x8xf32>
    %cst_88 = arith.constant dense<0xFF800000> : vector<8xf32>
    %223 = vector.multi_reduction <maximumf>, %222, %cst_88 [1] : vector<8x8xf32> to vector<8xf32>
    %224 = vector.shape_cast %223 : vector<8xf32> to vector<8x1xf32>
    %225 = vector.broadcast %224 : vector<8x1xf32> to vector<8x8xf32>
    %226 = arith.subf %222, %225 : vector<8x8xf32>
    %227 = math.exp %226 : vector<8x8xf32>
    %cst_89 = arith.constant dense<0.000000e+00> : vector<8xf32>
    %228 = vector.multi_reduction <add>, %227, %cst_89 [1] : vector<8x8xf32> to vector<8xf32>
    %229 = vector.shape_cast %228 : vector<8xf32> to vector<8x1xf32>
    %230 = tpu.reciprocal %229 {approx = true} : vector<8x1xf32> -> vector<8x1xf32>
    %231 = vector.broadcast %230 : vector<8x1xf32> to vector<8x8xf32>
    %232 = arith.mulf %227, %231 : vector<8x8xf32>
    %cst_90 = arith.constant dense<0.000000e+00> : vector<8x32xf32>
    %233 = tpu.matmul %232, %217, %cst_90 {dimension_numbers = #tpu.dot_dimension_numbers<[1], [0], [0], [1], [0, 0, 1, 1], [], []>} : vector<8x8xf32>, vector<8x32xf32>, vector<8x32xf32> -> vector<8x32xf32>
    %234 = tpu.concatenate %214, %233 in 1 : vector<8x32xf32>, vector<8x32xf32> -> vector<8x64xf32>
    %235 = tpu.concatenate %114, %154, %194, %234 in 0 : vector<8x64xf32>, vector<8x64xf32>, vector<8x64xf32>, vector<8x64xf32> -> vector<32x64xf32>
    %cst_91 = arith.constant dense<0.000000e+00> : vector<32x64xf32>
    %236 = tpu.matmul %235, %59, %cst_91 {dimension_numbers = #tpu.dot_dimension_numbers<[1], [0], [0], [1], [0, 0, 1, 1], [], []>} : vector<32x64xf32>, vector<64x64xf32>, vector<32x64xf32> -> vector<32x64xf32>
    %237 = vector.broadcast %61 : vector<1x64xf32> to vector<32x64xf32>
    %238 = arith.addf %236, %237 : vector<32x64xf32>
    %239 = arith.addf %47, %238 : vector<32x64xf32>
    %240 = vector.extract_strided_slice %63 {offsets = [0, 0], sizes = [1, 64], strides = [1, 1]} : vector<4x64xf32> to vector<1x64xf32>
    %241 = vector.extract_strided_slice %63 {offsets = [1, 0], sizes = [1, 64], strides = [1, 1]} : vector<4x64xf32> to vector<1x64xf32>
    %cst_92 = arith.constant dense<0.000000e+00> : vector<32xf32>
    %242 = vector.multi_reduction <add>, %239, %cst_92 [1] : vector<32x64xf32> to vector<32xf32>
    %243 = vector.shape_cast %242 : vector<32xf32> to vector<32x1xf32>
    %cst_93 = arith.constant 6.400000e+01 : f32
    %244 = vector.broadcast %cst_93 : f32 to vector<32x1xf32>
    %245 = arith.divf %243, %244 : vector<32x1xf32>
    %246 = vector.broadcast %245 : vector<32x1xf32> to vector<32x64xf32>
    %247 = arith.subf %239, %246 : vector<32x64xf32>
    %248 = arith.mulf %247, %247 : vector<32x64xf32>
    %cst_94 = arith.constant dense<0.000000e+00> : vector<32xf32>
    %249 = vector.multi_reduction <add>, %248, %cst_94 [1] : vector<32x64xf32> to vector<32xf32>
    %250 = vector.shape_cast %249 : vector<32xf32> to vector<32x1xf32>
    %cst_95 = arith.constant 6.400000e+01 : f32
    %251 = vector.broadcast %cst_95 : f32 to vector<32x1xf32>
    %252 = arith.divf %250, %251 : vector<32x1xf32>
    %253 = vector.broadcast %245 : vector<32x1xf32> to vector<32x64xf32>
    %254 = arith.subf %239, %253 : vector<32x64xf32>
    %cst_96 = arith.constant 1.000000e-07 : f32
    %255 = vector.broadcast %cst_96 : f32 to vector<32x1xf32>
    %256 = arith.addf %252, %255 : vector<32x1xf32>
    %257 = math.rsqrt %256 : vector<32x1xf32>
    %258 = vector.broadcast %257 : vector<32x1xf32> to vector<32x64xf32>
    %259 = arith.mulf %254, %258 : vector<32x64xf32>
    %260 = vector.broadcast %240 : vector<1x64xf32> to vector<32x64xf32>
    %261 = arith.mulf %259, %260 : vector<32x64xf32>
    %262 = vector.broadcast %241 : vector<1x64xf32> to vector<32x64xf32>
    %263 = arith.addf %261, %262 : vector<32x64xf32>
    %cst_97 = arith.constant dense<0.000000e+00> : vector<32x128xf32>
    %264 = tpu.matmul %263, %65, %cst_97 {dimension_numbers = #tpu.dot_dimension_numbers<[1], [0], [0], [1], [0, 0, 1, 1], [], []>} : vector<32x64xf32>, vector<64x128xf32>, vector<32x128xf32> -> vector<32x128xf32>
    %265 = vector.broadcast %67 : vector<1x128xf32> to vector<32x128xf32>
    %266 = arith.addf %264, %265 : vector<32x128xf32>
    %267 = arith.mulf %266, %266 : vector<32x128xf32>
    %268 = arith.mulf %266, %267 : vector<32x128xf32>
    %cst_98 = arith.constant 4.471500e-02 : f32
    %269 = vector.broadcast %cst_98 : f32 to vector<32x128xf32>
    %270 = arith.mulf %269, %268 : vector<32x128xf32>
    %271 = arith.addf %266, %270 : vector<32x128xf32>
    %cst_99 = arith.constant 0.797884583 : f32
    %272 = vector.broadcast %cst_99 : f32 to vector<32x128xf32>
    %273 = arith.mulf %272, %271 : vector<32x128xf32>
    %274 = math.tanh %273 : vector<32x128xf32>
    %cst_100 = arith.constant 1.000000e+00 : f32
    %275 = vector.broadcast %cst_100 : f32 to vector<32x128xf32>
    %276 = arith.addf %275, %274 : vector<32x128xf32>
    %cst_101 = arith.constant 5.000000e-01 : f32
    %277 = vector.broadcast %cst_101 : f32 to vector<32x128xf32>
    %278 = arith.mulf %277, %276 : vector<32x128xf32>
    %279 = arith.mulf %266, %278 : vector<32x128xf32>
    %cst_102 = arith.constant dense<0.000000e+00> : vector<32x64xf32>
    %280 = tpu.matmul %279, %69, %cst_102 {dimension_numbers = #tpu.dot_dimension_numbers<[1], [0], [0], [1], [0, 0, 1, 1], [], []>} : vector<32x128xf32>, vector<128x64xf32>, vector<32x64xf32> -> vector<32x64xf32>
    %281 = vector.broadcast %71 : vector<1x64xf32> to vector<32x64xf32>
    %282 = arith.addf %280, %281 : vector<32x64xf32>
    %283 = arith.addf %263, %282 : vector<32x64xf32>
    %284 = vector.extract_strided_slice %63 {offsets = [2, 0], sizes = [1, 64], strides = [1, 1]} : vector<4x64xf32> to vector<1x64xf32>
    %285 = vector.extract_strided_slice %63 {offsets = [3, 0], sizes = [1, 64], strides = [1, 1]} : vector<4x64xf32> to vector<1x64xf32>
    %cst_103 = arith.constant dense<0.000000e+00> : vector<32xf32>
    %286 = vector.multi_reduction <add>, %283, %cst_103 [1] : vector<32x64xf32> to vector<32xf32>
    %287 = vector.shape_cast %286 : vector<32xf32> to vector<32x1xf32>
    %cst_104 = arith.constant 6.400000e+01 : f32
    %288 = vector.broadcast %cst_104 : f32 to vector<32x1xf32>
    %289 = arith.divf %287, %288 : vector<32x1xf32>
    %290 = vector.broadcast %289 : vector<32x1xf32> to vector<32x64xf32>
    %291 = arith.subf %283, %290 : vector<32x64xf32>
    %292 = arith.mulf %291, %291 : vector<32x64xf32>
    %cst_105 = arith.constant dense<0.000000e+00> : vector<32xf32>
    %293 = vector.multi_reduction <add>, %292, %cst_105 [1] : vector<32x64xf32> to vector<32xf32>
    %294 = vector.shape_cast %293 : vector<32xf32> to vector<32x1xf32>
    %cst_106 = arith.constant 6.400000e+01 : f32
    %295 = vector.broadcast %cst_106 : f32 to vector<32x1xf32>
    %296 = arith.divf %294, %295 : vector<32x1xf32>
    %297 = vector.broadcast %289 : vector<32x1xf32> to vector<32x64xf32>
    %298 = arith.subf %283, %297 : vector<32x64xf32>
    %cst_107 = arith.constant 1.000000e-07 : f32
    %299 = vector.broadcast %cst_107 : f32 to vector<32x1xf32>
    %300 = arith.addf %296, %299 : vector<32x1xf32>
    %301 = math.rsqrt %300 : vector<32x1xf32>
    %302 = vector.broadcast %301 : vector<32x1xf32> to vector<32x64xf32>
    %303 = arith.mulf %298, %302 : vector<32x64xf32>
    %304 = vector.broadcast %284 : vector<1x64xf32> to vector<32x64xf32>
    %305 = arith.mulf %303, %304 : vector<32x64xf32>
    %306 = vector.broadcast %285 : vector<1x64xf32> to vector<32x64xf32>
    %307 = arith.addf %305, %306 : vector<32x64xf32>
    %c1_108 = arith.constant 1 : index
    %c0_109 = arith.constant 0 : index
    %c0_110 = arith.constant 0 : index
    %308 = vector.load %arg7[%c1_108, %c0_109, %c0_110] : memref<2x64x192xf32, #tpu.memory_space<vmem>>, vector<1x64x192xf32>
    %309 = vector.shape_cast %308 : vector<1x64x192xf32> to vector<64x192xf32>
    %c1_111 = arith.constant 1 : index
    %c0_112 = arith.constant 0 : index
    %c0_113 = arith.constant 0 : index
    %310 = vector.load %arg8[%c1_111, %c0_112, %c0_113] : memref<2x1x192xf32, #tpu.memory_space<vmem>>, vector<1x1x192xf32>
    %311 = vector.shape_cast %310 : vector<1x1x192xf32> to vector<1x192xf32>
    %c1_114 = arith.constant 1 : index
    %c0_115 = arith.constant 0 : index
    %c0_116 = arith.constant 0 : index
    %312 = vector.load %arg9[%c1_114, %c0_115, %c0_116] : memref<2x64x64xf32, #tpu.memory_space<vmem>>, vector<1x64x64xf32>
    %313 = vector.shape_cast %312 : vector<1x64x64xf32> to vector<64x64xf32>
    %c1_117 = arith.constant 1 : index
    %c0_118 = arith.constant 0 : index
    %c0_119 = arith.constant 0 : index
    %314 = vector.load %arg10[%c1_117, %c0_118, %c0_119] : memref<2x1x64xf32, #tpu.memory_space<vmem>>, vector<1x1x64xf32>
    %315 = vector.shape_cast %314 : vector<1x1x64xf32> to vector<1x64xf32>
    %c1_120 = arith.constant 1 : index
    %c0_121 = arith.constant 0 : index
    %c0_122 = arith.constant 0 : index
    %316 = vector.load %arg11[%c1_120, %c0_121, %c0_122] : memref<2x4x64xf32, #tpu.memory_space<vmem>>, vector<1x4x64xf32>
    %317 = vector.shape_cast %316 : vector<1x4x64xf32> to vector<4x64xf32>
    %c1_123 = arith.constant 1 : index
    %c0_124 = arith.constant 0 : index
    %c0_125 = arith.constant 0 : index
    %318 = vector.load %arg12[%c1_123, %c0_124, %c0_125] : memref<2x64x128xf32, #tpu.memory_space<vmem>>, vector<1x64x128xf32>
    %319 = vector.shape_cast %318 : vector<1x64x128xf32> to vector<64x128xf32>
    %c1_126 = arith.constant 1 : index
    %c0_127 = arith.constant 0 : index
    %c0_128 = arith.constant 0 : index
    %320 = vector.load %arg13[%c1_126, %c0_127, %c0_128] : memref<2x1x128xf32, #tpu.memory_space<vmem>>, vector<1x1x128xf32>
    %321 = vector.shape_cast %320 : vector<1x1x128xf32> to vector<1x128xf32>
    %c1_129 = arith.constant 1 : index
    %c0_130 = arith.constant 0 : index
    %c0_131 = arith.constant 0 : index
    %322 = vector.load %arg14[%c1_129, %c0_130, %c0_131] : memref<2x128x64xf32, #tpu.memory_space<vmem>>, vector<1x128x64xf32>
    %323 = vector.shape_cast %322 : vector<1x128x64xf32> to vector<128x64xf32>
    %c1_132 = arith.constant 1 : index
    %c0_133 = arith.constant 0 : index
    %c0_134 = arith.constant 0 : index
    %324 = vector.load %arg15[%c1_132, %c0_133, %c0_134] : memref<2x1x64xf32, #tpu.memory_space<vmem>>, vector<1x1x64xf32>
    %325 = vector.shape_cast %324 : vector<1x1x64xf32> to vector<1x64xf32>
    %cst_135 = arith.constant dense<0.000000e+00> : vector<32x192xf32>
    %326 = tpu.matmul %307, %309, %cst_135 {dimension_numbers = #tpu.dot_dimension_numbers<[1], [0], [0], [1], [0, 0, 1, 1], [], []>} : vector<32x64xf32>, vector<64x192xf32>, vector<32x192xf32> -> vector<32x192xf32>
    %327 = vector.broadcast %311 : vector<1x192xf32> to vector<32x192xf32>
    %328 = arith.addf %326, %327 : vector<32x192xf32>
    %329 = vector.extract_strided_slice %53 {offsets = [0, 0], sizes = [1, 8], strides = [1, 1]} : vector<4x8xf32> to vector<1x8xf32>
    %330 = vector.extract_strided_slice %328 {offsets = [0, 0], sizes = [8, 32], strides = [1, 1]} : vector<32x192xf32> to vector<8x32xf32>
    %331 = vector.extract_strided_slice %328 {offsets = [0, 64], sizes = [8, 32], strides = [1, 1]} : vector<32x192xf32> to vector<8x32xf32>
    %332 = vector.extract_strided_slice %328 {offsets = [0, 128], sizes = [8, 32], strides = [1, 1]} : vector<32x192xf32> to vector<8x32xf32>
    %cst_136 = arith.constant dense<0.000000e+00> : vector<8x8xf32>
    %333 = tpu.matmul %330, %331, %cst_136 {dimension_numbers = #tpu.dot_dimension_numbers<[1], [1], [0], [0], [0, 0, 1, 0], [], []>} : vector<8x32xf32>, vector<8x32xf32>, vector<8x8xf32> -> vector<8x8xf32>
    %cst_137 = arith.constant 0.176776692 : f32
    %334 = vector.broadcast %cst_137 : f32 to vector<8x8xf32>
    %335 = arith.mulf %333, %334 : vector<8x8xf32>
    %336 = vector.broadcast %329 : vector<1x8xf32> to vector<8x8xf32>
    %337 = arith.addf %335, %336 : vector<8x8xf32>
    %cst_138 = arith.constant dense<0xFF800000> : vector<8xf32>
    %338 = vector.multi_reduction <maximumf>, %337, %cst_138 [1] : vector<8x8xf32> to vector<8xf32>
    %339 = vector.shape_cast %338 : vector<8xf32> to vector<8x1xf32>
    %340 = vector.broadcast %339 : vector<8x1xf32> to vector<8x8xf32>
    %341 = arith.subf %337, %340 : vector<8x8xf32>
    %342 = math.exp %341 : vector<8x8xf32>
    %cst_139 = arith.constant dense<0.000000e+00> : vector<8xf32>
    %343 = vector.multi_reduction <add>, %342, %cst_139 [1] : vector<8x8xf32> to vector<8xf32>
    %344 = vector.shape_cast %343 : vector<8xf32> to vector<8x1xf32>
    %345 = tpu.reciprocal %344 {approx = true} : vector<8x1xf32> -> vector<8x1xf32>
    %346 = vector.broadcast %345 : vector<8x1xf32> to vector<8x8xf32>
    %347 = arith.mulf %342, %346 : vector<8x8xf32>
    %cst_140 = arith.constant dense<0.000000e+00> : vector<8x32xf32>
    %348 = tpu.matmul %347, %332, %cst_140 {dimension_numbers = #tpu.dot_dimension_numbers<[1], [0], [0], [1], [0, 0, 1, 1], [], []>} : vector<8x8xf32>, vector<8x32xf32>, vector<8x32xf32> -> vector<8x32xf32>
    %349 = vector.extract_strided_slice %328 {offsets = [0, 32], sizes = [8, 32], strides = [1, 1]} : vector<32x192xf32> to vector<8x32xf32>
    %350 = vector.extract_strided_slice %328 {offsets = [0, 96], sizes = [8, 32], strides = [1, 1]} : vector<32x192xf32> to vector<8x32xf32>
    %351 = vector.extract_strided_slice %328 {offsets = [0, 160], sizes = [8, 32], strides = [1, 1]} : vector<32x192xf32> to vector<8x32xf32>
    %cst_141 = arith.constant dense<0.000000e+00> : vector<8x8xf32>
    %352 = tpu.matmul %349, %350, %cst_141 {dimension_numbers = #tpu.dot_dimension_numbers<[1], [1], [0], [0], [0, 0, 1, 0], [], []>} : vector<8x32xf32>, vector<8x32xf32>, vector<8x8xf32> -> vector<8x8xf32>
    %cst_142 = arith.constant 0.176776692 : f32
    %353 = vector.broadcast %cst_142 : f32 to vector<8x8xf32>
    %354 = arith.mulf %352, %353 : vector<8x8xf32>
    %355 = vector.broadcast %329 : vector<1x8xf32> to vector<8x8xf32>
    %356 = arith.addf %354, %355 : vector<8x8xf32>
    %cst_143 = arith.constant dense<0xFF800000> : vector<8xf32>
    %357 = vector.multi_reduction <maximumf>, %356, %cst_143 [1] : vector<8x8xf32> to vector<8xf32>
    %358 = vector.shape_cast %357 : vector<8xf32> to vector<8x1xf32>
    %359 = vector.broadcast %358 : vector<8x1xf32> to vector<8x8xf32>
    %360 = arith.subf %356, %359 : vector<8x8xf32>
    %361 = math.exp %360 : vector<8x8xf32>
    %cst_144 = arith.constant dense<0.000000e+00> : vector<8xf32>
    %362 = vector.multi_reduction <add>, %361, %cst_144 [1] : vector<8x8xf32> to vector<8xf32>
    %363 = vector.shape_cast %362 : vector<8xf32> to vector<8x1xf32>
    %364 = tpu.reciprocal %363 {approx = true} : vector<8x1xf32> -> vector<8x1xf32>
    %365 = vector.broadcast %364 : vector<8x1xf32> to vector<8x8xf32>
    %366 = arith.mulf %361, %365 : vector<8x8xf32>
    %cst_145 = arith.constant dense<0.000000e+00> : vector<8x32xf32>
    %367 = tpu.matmul %366, %351, %cst_145 {dimension_numbers = #tpu.dot_dimension_numbers<[1], [0], [0], [1], [0, 0, 1, 1], [], []>} : vector<8x8xf32>, vector<8x32xf32>, vector<8x32xf32> -> vector<8x32xf32>
    %368 = tpu.concatenate %348, %367 in 1 : vector<8x32xf32>, vector<8x32xf32> -> vector<8x64xf32>
    %369 = vector.extract_strided_slice %53 {offsets = [1, 0], sizes = [1, 8], strides = [1, 1]} : vector<4x8xf32> to vector<1x8xf32>
    %370 = vector.extract_strided_slice %328 {offsets = [8, 0], sizes = [8, 32], strides = [1, 1]} : vector<32x192xf32> to vector<8x32xf32>
    %371 = vector.extract_strided_slice %328 {offsets = [8, 64], sizes = [8, 32], strides = [1, 1]} : vector<32x192xf32> to vector<8x32xf32>
    %372 = vector.extract_strided_slice %328 {offsets = [8, 128], sizes = [8, 32], strides = [1, 1]} : vector<32x192xf32> to vector<8x32xf32>
    %cst_146 = arith.constant dense<0.000000e+00> : vector<8x8xf32>
    %373 = tpu.matmul %370, %371, %cst_146 {dimension_numbers = #tpu.dot_dimension_numbers<[1], [1], [0], [0], [0, 0, 1, 0], [], []>} : vector<8x32xf32>, vector<8x32xf32>, vector<8x8xf32> -> vector<8x8xf32>
    %cst_147 = arith.constant 0.176776692 : f32
    %374 = vector.broadcast %cst_147 : f32 to vector<8x8xf32>
    %375 = arith.mulf %373, %374 : vector<8x8xf32>
    %376 = vector.broadcast %369 : vector<1x8xf32> to vector<8x8xf32>
    %377 = arith.addf %375, %376 : vector<8x8xf32>
    %cst_148 = arith.constant dense<0xFF800000> : vector<8xf32>
    %378 = vector.multi_reduction <maximumf>, %377, %cst_148 [1] : vector<8x8xf32> to vector<8xf32>
    %379 = vector.shape_cast %378 : vector<8xf32> to vector<8x1xf32>
    %380 = vector.broadcast %379 : vector<8x1xf32> to vector<8x8xf32>
    %381 = arith.subf %377, %380 : vector<8x8xf32>
    %382 = math.exp %381 : vector<8x8xf32>
    %cst_149 = arith.constant dense<0.000000e+00> : vector<8xf32>
    %383 = vector.multi_reduction <add>, %382, %cst_149 [1] : vector<8x8xf32> to vector<8xf32>
    %384 = vector.shape_cast %383 : vector<8xf32> to vector<8x1xf32>
    %385 = tpu.reciprocal %384 {approx = true} : vector<8x1xf32> -> vector<8x1xf32>
    %386 = vector.broadcast %385 : vector<8x1xf32> to vector<8x8xf32>
    %387 = arith.mulf %382, %386 : vector<8x8xf32>
    %cst_150 = arith.constant dense<0.000000e+00> : vector<8x32xf32>
    %388 = tpu.matmul %387, %372, %cst_150 {dimension_numbers = #tpu.dot_dimension_numbers<[1], [0], [0], [1], [0, 0, 1, 1], [], []>} : vector<8x8xf32>, vector<8x32xf32>, vector<8x32xf32> -> vector<8x32xf32>
    %389 = vector.extract_strided_slice %328 {offsets = [8, 32], sizes = [8, 32], strides = [1, 1]} : vector<32x192xf32> to vector<8x32xf32>
    %390 = vector.extract_strided_slice %328 {offsets = [8, 96], sizes = [8, 32], strides = [1, 1]} : vector<32x192xf32> to vector<8x32xf32>
    %391 = vector.extract_strided_slice %328 {offsets = [8, 160], sizes = [8, 32], strides = [1, 1]} : vector<32x192xf32> to vector<8x32xf32>
    %cst_151 = arith.constant dense<0.000000e+00> : vector<8x8xf32>
    %392 = tpu.matmul %389, %390, %cst_151 {dimension_numbers = #tpu.dot_dimension_numbers<[1], [1], [0], [0], [0, 0, 1, 0], [], []>} : vector<8x32xf32>, vector<8x32xf32>, vector<8x8xf32> -> vector<8x8xf32>
    %cst_152 = arith.constant 0.176776692 : f32
    %393 = vector.broadcast %cst_152 : f32 to vector<8x8xf32>
    %394 = arith.mulf %392, %393 : vector<8x8xf32>
    %395 = vector.broadcast %369 : vector<1x8xf32> to vector<8x8xf32>
    %396 = arith.addf %394, %395 : vector<8x8xf32>
    %cst_153 = arith.constant dense<0xFF800000> : vector<8xf32>
    %397 = vector.multi_reduction <maximumf>, %396, %cst_153 [1] : vector<8x8xf32> to vector<8xf32>
    %398 = vector.shape_cast %397 : vector<8xf32> to vector<8x1xf32>
    %399 = vector.broadcast %398 : vector<8x1xf32> to vector<8x8xf32>
    %400 = arith.subf %396, %399 : vector<8x8xf32>
    %401 = math.exp %400 : vector<8x8xf32>
    %cst_154 = arith.constant dense<0.000000e+00> : vector<8xf32>
    %402 = vector.multi_reduction <add>, %401, %cst_154 [1] : vector<8x8xf32> to vector<8xf32>
    %403 = vector.shape_cast %402 : vector<8xf32> to vector<8x1xf32>
    %404 = tpu.reciprocal %403 {approx = true} : vector<8x1xf32> -> vector<8x1xf32>
    %405 = vector.broadcast %404 : vector<8x1xf32> to vector<8x8xf32>
    %406 = arith.mulf %401, %405 : vector<8x8xf32>
    %cst_155 = arith.constant dense<0.000000e+00> : vector<8x32xf32>
    %407 = tpu.matmul %406, %391, %cst_155 {dimension_numbers = #tpu.dot_dimension_numbers<[1], [0], [0], [1], [0, 0, 1, 1], [], []>} : vector<8x8xf32>, vector<8x32xf32>, vector<8x32xf32> -> vector<8x32xf32>
    %408 = tpu.concatenate %388, %407 in 1 : vector<8x32xf32>, vector<8x32xf32> -> vector<8x64xf32>
    %409 = vector.extract_strided_slice %53 {offsets = [2, 0], sizes = [1, 8], strides = [1, 1]} : vector<4x8xf32> to vector<1x8xf32>
    %410 = vector.extract_strided_slice %328 {offsets = [16, 0], sizes = [8, 32], strides = [1, 1]} : vector<32x192xf32> to vector<8x32xf32>
    %411 = vector.extract_strided_slice %328 {offsets = [16, 64], sizes = [8, 32], strides = [1, 1]} : vector<32x192xf32> to vector<8x32xf32>
    %412 = vector.extract_strided_slice %328 {offsets = [16, 128], sizes = [8, 32], strides = [1, 1]} : vector<32x192xf32> to vector<8x32xf32>
    %cst_156 = arith.constant dense<0.000000e+00> : vector<8x8xf32>
    %413 = tpu.matmul %410, %411, %cst_156 {dimension_numbers = #tpu.dot_dimension_numbers<[1], [1], [0], [0], [0, 0, 1, 0], [], []>} : vector<8x32xf32>, vector<8x32xf32>, vector<8x8xf32> -> vector<8x8xf32>
    %cst_157 = arith.constant 0.176776692 : f32
    %414 = vector.broadcast %cst_157 : f32 to vector<8x8xf32>
    %415 = arith.mulf %413, %414 : vector<8x8xf32>
    %416 = vector.broadcast %409 : vector<1x8xf32> to vector<8x8xf32>
    %417 = arith.addf %415, %416 : vector<8x8xf32>
    %cst_158 = arith.constant dense<0xFF800000> : vector<8xf32>
    %418 = vector.multi_reduction <maximumf>, %417, %cst_158 [1] : vector<8x8xf32> to vector<8xf32>
    %419 = vector.shape_cast %418 : vector<8xf32> to vector<8x1xf32>
    %420 = vector.broadcast %419 : vector<8x1xf32> to vector<8x8xf32>
    %421 = arith.subf %417, %420 : vector<8x8xf32>
    %422 = math.exp %421 : vector<8x8xf32>
    %cst_159 = arith.constant dense<0.000000e+00> : vector<8xf32>
    %423 = vector.multi_reduction <add>, %422, %cst_159 [1] : vector<8x8xf32> to vector<8xf32>
    %424 = vector.shape_cast %423 : vector<8xf32> to vector<8x1xf32>
    %425 = tpu.reciprocal %424 {approx = true} : vector<8x1xf32> -> vector<8x1xf32>
    %426 = vector.broadcast %425 : vector<8x1xf32> to vector<8x8xf32>
    %427 = arith.mulf %422, %426 : vector<8x8xf32>
    %cst_160 = arith.constant dense<0.000000e+00> : vector<8x32xf32>
    %428 = tpu.matmul %427, %412, %cst_160 {dimension_numbers = #tpu.dot_dimension_numbers<[1], [0], [0], [1], [0, 0, 1, 1], [], []>} : vector<8x8xf32>, vector<8x32xf32>, vector<8x32xf32> -> vector<8x32xf32>
    %429 = vector.extract_strided_slice %328 {offsets = [16, 32], sizes = [8, 32], strides = [1, 1]} : vector<32x192xf32> to vector<8x32xf32>
    %430 = vector.extract_strided_slice %328 {offsets = [16, 96], sizes = [8, 32], strides = [1, 1]} : vector<32x192xf32> to vector<8x32xf32>
    %431 = vector.extract_strided_slice %328 {offsets = [16, 160], sizes = [8, 32], strides = [1, 1]} : vector<32x192xf32> to vector<8x32xf32>
    %cst_161 = arith.constant dense<0.000000e+00> : vector<8x8xf32>
    %432 = tpu.matmul %429, %430, %cst_161 {dimension_numbers = #tpu.dot_dimension_numbers<[1], [1], [0], [0], [0, 0, 1, 0], [], []>} : vector<8x32xf32>, vector<8x32xf32>, vector<8x8xf32> -> vector<8x8xf32>
    %cst_162 = arith.constant 0.176776692 : f32
    %433 = vector.broadcast %cst_162 : f32 to vector<8x8xf32>
    %434 = arith.mulf %432, %433 : vector<8x8xf32>
    %435 = vector.broadcast %409 : vector<1x8xf32> to vector<8x8xf32>
    %436 = arith.addf %434, %435 : vector<8x8xf32>
    %cst_163 = arith.constant dense<0xFF800000> : vector<8xf32>
    %437 = vector.multi_reduction <maximumf>, %436, %cst_163 [1] : vector<8x8xf32> to vector<8xf32>
    %438 = vector.shape_cast %437 : vector<8xf32> to vector<8x1xf32>
    %439 = vector.broadcast %438 : vector<8x1xf32> to vector<8x8xf32>
    %440 = arith.subf %436, %439 : vector<8x8xf32>
    %441 = math.exp %440 : vector<8x8xf32>
    %cst_164 = arith.constant dense<0.000000e+00> : vector<8xf32>
    %442 = vector.multi_reduction <add>, %441, %cst_164 [1] : vector<8x8xf32> to vector<8xf32>
    %443 = vector.shape_cast %442 : vector<8xf32> to vector<8x1xf32>
    %444 = tpu.reciprocal %443 {approx = true} : vector<8x1xf32> -> vector<8x1xf32>
    %445 = vector.broadcast %444 : vector<8x1xf32> to vector<8x8xf32>
    %446 = arith.mulf %441, %445 : vector<8x8xf32>
    %cst_165 = arith.constant dense<0.000000e+00> : vector<8x32xf32>
    %447 = tpu.matmul %446, %431, %cst_165 {dimension_numbers = #tpu.dot_dimension_numbers<[1], [0], [0], [1], [0, 0, 1, 1], [], []>} : vector<8x8xf32>, vector<8x32xf32>, vector<8x32xf32> -> vector<8x32xf32>
    %448 = tpu.concatenate %428, %447 in 1 : vector<8x32xf32>, vector<8x32xf32> -> vector<8x64xf32>
    %449 = vector.extract_strided_slice %53 {offsets = [3, 0], sizes = [1, 8], strides = [1, 1]} : vector<4x8xf32> to vector<1x8xf32>
    %450 = vector.extract_strided_slice %328 {offsets = [24, 0], sizes = [8, 32], strides = [1, 1]} : vector<32x192xf32> to vector<8x32xf32>
    %451 = vector.extract_strided_slice %328 {offsets = [24, 64], sizes = [8, 32], strides = [1, 1]} : vector<32x192xf32> to vector<8x32xf32>
    %452 = vector.extract_strided_slice %328 {offsets = [24, 128], sizes = [8, 32], strides = [1, 1]} : vector<32x192xf32> to vector<8x32xf32>
    %cst_166 = arith.constant dense<0.000000e+00> : vector<8x8xf32>
    %453 = tpu.matmul %450, %451, %cst_166 {dimension_numbers = #tpu.dot_dimension_numbers<[1], [1], [0], [0], [0, 0, 1, 0], [], []>} : vector<8x32xf32>, vector<8x32xf32>, vector<8x8xf32> -> vector<8x8xf32>
    %cst_167 = arith.constant 0.176776692 : f32
    %454 = vector.broadcast %cst_167 : f32 to vector<8x8xf32>
    %455 = arith.mulf %453, %454 : vector<8x8xf32>
    %456 = vector.broadcast %449 : vector<1x8xf32> to vector<8x8xf32>
    %457 = arith.addf %455, %456 : vector<8x8xf32>
    %cst_168 = arith.constant dense<0xFF800000> : vector<8xf32>
    %458 = vector.multi_reduction <maximumf>, %457, %cst_168 [1] : vector<8x8xf32> to vector<8xf32>
    %459 = vector.shape_cast %458 : vector<8xf32> to vector<8x1xf32>
    %460 = vector.broadcast %459 : vector<8x1xf32> to vector<8x8xf32>
    %461 = arith.subf %457, %460 : vector<8x8xf32>
    %462 = math.exp %461 : vector<8x8xf32>
    %cst_169 = arith.constant dense<0.000000e+00> : vector<8xf32>
    %463 = vector.multi_reduction <add>, %462, %cst_169 [1] : vector<8x8xf32> to vector<8xf32>
    %464 = vector.shape_cast %463 : vector<8xf32> to vector<8x1xf32>
    %465 = tpu.reciprocal %464 {approx = true} : vector<8x1xf32> -> vector<8x1xf32>
    %466 = vector.broadcast %465 : vector<8x1xf32> to vector<8x8xf32>
    %467 = arith.mulf %462, %466 : vector<8x8xf32>
    %cst_170 = arith.constant dense<0.000000e+00> : vector<8x32xf32>
    %468 = tpu.matmul %467, %452, %cst_170 {dimension_numbers = #tpu.dot_dimension_numbers<[1], [0], [0], [1], [0, 0, 1, 1], [], []>} : vector<8x8xf32>, vector<8x32xf32>, vector<8x32xf32> -> vector<8x32xf32>
    %469 = vector.extract_strided_slice %328 {offsets = [24, 32], sizes = [8, 32], strides = [1, 1]} : vector<32x192xf32> to vector<8x32xf32>
    %470 = vector.extract_strided_slice %328 {offsets = [24, 96], sizes = [8, 32], strides = [1, 1]} : vector<32x192xf32> to vector<8x32xf32>
    %471 = vector.extract_strided_slice %328 {offsets = [24, 160], sizes = [8, 32], strides = [1, 1]} : vector<32x192xf32> to vector<8x32xf32>
    %cst_171 = arith.constant dense<0.000000e+00> : vector<8x8xf32>
    %472 = tpu.matmul %469, %470, %cst_171 {dimension_numbers = #tpu.dot_dimension_numbers<[1], [1], [0], [0], [0, 0, 1, 0], [], []>} : vector<8x32xf32>, vector<8x32xf32>, vector<8x8xf32> -> vector<8x8xf32>
    %cst_172 = arith.constant 0.176776692 : f32
    %473 = vector.broadcast %cst_172 : f32 to vector<8x8xf32>
    %474 = arith.mulf %472, %473 : vector<8x8xf32>
    %475 = vector.broadcast %449 : vector<1x8xf32> to vector<8x8xf32>
    %476 = arith.addf %474, %475 : vector<8x8xf32>
    %cst_173 = arith.constant dense<0xFF800000> : vector<8xf32>
    %477 = vector.multi_reduction <maximumf>, %476, %cst_173 [1] : vector<8x8xf32> to vector<8xf32>
    %478 = vector.shape_cast %477 : vector<8xf32> to vector<8x1xf32>
    %479 = vector.broadcast %478 : vector<8x1xf32> to vector<8x8xf32>
    %480 = arith.subf %476, %479 : vector<8x8xf32>
    %481 = math.exp %480 : vector<8x8xf32>
    %cst_174 = arith.constant dense<0.000000e+00> : vector<8xf32>
    %482 = vector.multi_reduction <add>, %481, %cst_174 [1] : vector<8x8xf32> to vector<8xf32>
    %483 = vector.shape_cast %482 : vector<8xf32> to vector<8x1xf32>
    %484 = tpu.reciprocal %483 {approx = true} : vector<8x1xf32> -> vector<8x1xf32>
    %485 = vector.broadcast %484 : vector<8x1xf32> to vector<8x8xf32>
    %486 = arith.mulf %481, %485 : vector<8x8xf32>
    %cst_175 = arith.constant dense<0.000000e+00> : vector<8x32xf32>
    %487 = tpu.matmul %486, %471, %cst_175 {dimension_numbers = #tpu.dot_dimension_numbers<[1], [0], [0], [1], [0, 0, 1, 1], [], []>} : vector<8x8xf32>, vector<8x32xf32>, vector<8x32xf32> -> vector<8x32xf32>
    %488 = tpu.concatenate %468, %487 in 1 : vector<8x32xf32>, vector<8x32xf32> -> vector<8x64xf32>
    %489 = tpu.concatenate %368, %408, %448, %488 in 0 : vector<8x64xf32>, vector<8x64xf32>, vector<8x64xf32>, vector<8x64xf32> -> vector<32x64xf32>
    %cst_176 = arith.constant dense<0.000000e+00> : vector<32x64xf32>
    %490 = tpu.matmul %489, %313, %cst_176 {dimension_numbers = #tpu.dot_dimension_numbers<[1], [0], [0], [1], [0, 0, 1, 1], [], []>} : vector<32x64xf32>, vector<64x64xf32>, vector<32x64xf32> -> vector<32x64xf32>
    %491 = vector.broadcast %315 : vector<1x64xf32> to vector<32x64xf32>
    %492 = arith.addf %490, %491 : vector<32x64xf32>
    %493 = arith.addf %307, %492 : vector<32x64xf32>
    %494 = vector.extract_strided_slice %317 {offsets = [0, 0], sizes = [1, 64], strides = [1, 1]} : vector<4x64xf32> to vector<1x64xf32>
    %495 = vector.extract_strided_slice %317 {offsets = [1, 0], sizes = [1, 64], strides = [1, 1]} : vector<4x64xf32> to vector<1x64xf32>
    %cst_177 = arith.constant dense<0.000000e+00> : vector<32xf32>
    %496 = vector.multi_reduction <add>, %493, %cst_177 [1] : vector<32x64xf32> to vector<32xf32>
    %497 = vector.shape_cast %496 : vector<32xf32> to vector<32x1xf32>
    %cst_178 = arith.constant 6.400000e+01 : f32
    %498 = vector.broadcast %cst_178 : f32 to vector<32x1xf32>
    %499 = arith.divf %497, %498 : vector<32x1xf32>
    %500 = vector.broadcast %499 : vector<32x1xf32> to vector<32x64xf32>
    %501 = arith.subf %493, %500 : vector<32x64xf32>
    %502 = arith.mulf %501, %501 : vector<32x64xf32>
    %cst_179 = arith.constant dense<0.000000e+00> : vector<32xf32>
    %503 = vector.multi_reduction <add>, %502, %cst_179 [1] : vector<32x64xf32> to vector<32xf32>
    %504 = vector.shape_cast %503 : vector<32xf32> to vector<32x1xf32>
    %cst_180 = arith.constant 6.400000e+01 : f32
    %505 = vector.broadcast %cst_180 : f32 to vector<32x1xf32>
    %506 = arith.divf %504, %505 : vector<32x1xf32>
    %507 = vector.broadcast %499 : vector<32x1xf32> to vector<32x64xf32>
    %508 = arith.subf %493, %507 : vector<32x64xf32>
    %cst_181 = arith.constant 1.000000e-07 : f32
    %509 = vector.broadcast %cst_181 : f32 to vector<32x1xf32>
    %510 = arith.addf %506, %509 : vector<32x1xf32>
    %511 = math.rsqrt %510 : vector<32x1xf32>
    %512 = vector.broadcast %511 : vector<32x1xf32> to vector<32x64xf32>
    %513 = arith.mulf %508, %512 : vector<32x64xf32>
    %514 = vector.broadcast %494 : vector<1x64xf32> to vector<32x64xf32>
    %515 = arith.mulf %513, %514 : vector<32x64xf32>
    %516 = vector.broadcast %495 : vector<1x64xf32> to vector<32x64xf32>
    %517 = arith.addf %515, %516 : vector<32x64xf32>
    %cst_182 = arith.constant dense<0.000000e+00> : vector<32x128xf32>
    %518 = tpu.matmul %517, %319, %cst_182 {dimension_numbers = #tpu.dot_dimension_numbers<[1], [0], [0], [1], [0, 0, 1, 1], [], []>} : vector<32x64xf32>, vector<64x128xf32>, vector<32x128xf32> -> vector<32x128xf32>
    %519 = vector.broadcast %321 : vector<1x128xf32> to vector<32x128xf32>
    %520 = arith.addf %518, %519 : vector<32x128xf32>
    %521 = arith.mulf %520, %520 : vector<32x128xf32>
    %522 = arith.mulf %520, %521 : vector<32x128xf32>
    %cst_183 = arith.constant 4.471500e-02 : f32
    %523 = vector.broadcast %cst_183 : f32 to vector<32x128xf32>
    %524 = arith.mulf %523, %522 : vector<32x128xf32>
    %525 = arith.addf %520, %524 : vector<32x128xf32>
    %cst_184 = arith.constant 0.797884583 : f32
    %526 = vector.broadcast %cst_184 : f32 to vector<32x128xf32>
    %527 = arith.mulf %526, %525 : vector<32x128xf32>
    %528 = math.tanh %527 : vector<32x128xf32>
    %cst_185 = arith.constant 1.000000e+00 : f32
    %529 = vector.broadcast %cst_185 : f32 to vector<32x128xf32>
    %530 = arith.addf %529, %528 : vector<32x128xf32>
    %cst_186 = arith.constant 5.000000e-01 : f32
    %531 = vector.broadcast %cst_186 : f32 to vector<32x128xf32>
    %532 = arith.mulf %531, %530 : vector<32x128xf32>
    %533 = arith.mulf %520, %532 : vector<32x128xf32>
    %cst_187 = arith.constant dense<0.000000e+00> : vector<32x64xf32>
    %534 = tpu.matmul %533, %323, %cst_187 {dimension_numbers = #tpu.dot_dimension_numbers<[1], [0], [0], [1], [0, 0, 1, 1], [], []>} : vector<32x128xf32>, vector<128x64xf32>, vector<32x64xf32> -> vector<32x64xf32>
    %535 = vector.broadcast %325 : vector<1x64xf32> to vector<32x64xf32>
    %536 = arith.addf %534, %535 : vector<32x64xf32>
    %537 = arith.addf %517, %536 : vector<32x64xf32>
    %538 = vector.extract_strided_slice %317 {offsets = [2, 0], sizes = [1, 64], strides = [1, 1]} : vector<4x64xf32> to vector<1x64xf32>
    %539 = vector.extract_strided_slice %317 {offsets = [3, 0], sizes = [1, 64], strides = [1, 1]} : vector<4x64xf32> to vector<1x64xf32>
    %cst_188 = arith.constant dense<0.000000e+00> : vector<32xf32>
    %540 = vector.multi_reduction <add>, %537, %cst_188 [1] : vector<32x64xf32> to vector<32xf32>
    %541 = vector.shape_cast %540 : vector<32xf32> to vector<32x1xf32>
    %cst_189 = arith.constant 6.400000e+01 : f32
    %542 = vector.broadcast %cst_189 : f32 to vector<32x1xf32>
    %543 = arith.divf %541, %542 : vector<32x1xf32>
    %544 = vector.broadcast %543 : vector<32x1xf32> to vector<32x64xf32>
    %545 = arith.subf %537, %544 : vector<32x64xf32>
    %546 = arith.mulf %545, %545 : vector<32x64xf32>
    %cst_190 = arith.constant dense<0.000000e+00> : vector<32xf32>
    %547 = vector.multi_reduction <add>, %546, %cst_190 [1] : vector<32x64xf32> to vector<32xf32>
    %548 = vector.shape_cast %547 : vector<32xf32> to vector<32x1xf32>
    %cst_191 = arith.constant 6.400000e+01 : f32
    %549 = vector.broadcast %cst_191 : f32 to vector<32x1xf32>
    %550 = arith.divf %548, %549 : vector<32x1xf32>
    %551 = vector.broadcast %543 : vector<32x1xf32> to vector<32x64xf32>
    %552 = arith.subf %537, %551 : vector<32x64xf32>
    %cst_192 = arith.constant 1.000000e-07 : f32
    %553 = vector.broadcast %cst_192 : f32 to vector<32x1xf32>
    %554 = arith.addf %550, %553 : vector<32x1xf32>
    %555 = math.rsqrt %554 : vector<32x1xf32>
    %556 = vector.broadcast %555 : vector<32x1xf32> to vector<32x64xf32>
    %557 = arith.mulf %552, %556 : vector<32x64xf32>
    %558 = vector.broadcast %538 : vector<1x64xf32> to vector<32x64xf32>
    %559 = arith.mulf %557, %558 : vector<32x64xf32>
    %560 = vector.broadcast %539 : vector<1x64xf32> to vector<32x64xf32>
    %561 = arith.addf %559, %560 : vector<32x64xf32>
    %562 = vector.extract_strided_slice %561 {offsets = [0, 0], sizes = [1, 64], strides = [1, 1]} : vector<32x64xf32> to vector<1x64xf32>
    %563 = vector.extract_strided_slice %561 {offsets = [8, 0], sizes = [1, 64], strides = [1, 1]} : vector<32x64xf32> to vector<1x64xf32>
    %564 = vector.extract_strided_slice %561 {offsets = [16, 0], sizes = [1, 64], strides = [1, 1]} : vector<32x64xf32> to vector<1x64xf32>
    %565 = vector.extract_strided_slice %561 {offsets = [24, 0], sizes = [1, 64], strides = [1, 1]} : vector<32x64xf32> to vector<1x64xf32>
    %566 = tpu.concatenate %562, %563, %564, %565 in 0 : vector<1x64xf32>, vector<1x64xf32>, vector<1x64xf32>, vector<1x64xf32> -> vector<4x64xf32>
    %c0_193 = arith.constant 0 : index
    %c0_194 = arith.constant 0 : index
    %567 = vector.load %arg16[%c0_193, %c0_194] : memref<64x64xf32, #tpu.memory_space<vmem>>, vector<64x64xf32>
    %cst_195 = arith.constant dense<0.000000e+00> : vector<4x64xf32>
    %568 = tpu.matmul %566, %567, %cst_195 {dimension_numbers = #tpu.dot_dimension_numbers<[1], [0], [0], [1], [0, 0, 1, 1], [], []>} : vector<4x64xf32>, vector<64x64xf32>, vector<4x64xf32> -> vector<4x64xf32>
    %c0_196 = arith.constant 0 : index
    %c0_197 = arith.constant 0 : index
    %569 = vector.load %arg17[%c0_196, %c0_197] : memref<1x64xf32, #tpu.memory_space<vmem>>, vector<1x64xf32>
    %570 = vector.broadcast %569 : vector<1x64xf32> to vector<4x64xf32>
    %571 = arith.addf %568, %570 : vector<4x64xf32>
    %572 = math.tanh %571 : vector<4x64xf32>
    %573 = vector.extract_strided_slice %561 {offsets = [0, 0], sizes = [8, 64], strides = [1, 1]} : vector<32x64xf32> to vector<8x64xf32>
    %cst_198 = arith.constant dense<0.000000e+00> : vector<64xf32>
    %574 = vector.multi_reduction <add>, %573, %cst_198 [0] : vector<8x64xf32> to vector<64xf32>
    %575 = vector.shape_cast %574 : vector<64xf32> to vector<1x64xf32>
    %cst_199 = arith.constant 8.000000e+00 : f32
    %576 = vector.broadcast %cst_199 : f32 to vector<1x64xf32>
    %577 = arith.divf %575, %576 : vector<1x64xf32>
    %578 = vector.extract_strided_slice %561 {offsets = [8, 0], sizes = [8, 64], strides = [1, 1]} : vector<32x64xf32> to vector<8x64xf32>
    %cst_200 = arith.constant dense<0.000000e+00> : vector<64xf32>
    %579 = vector.multi_reduction <add>, %578, %cst_200 [0] : vector<8x64xf32> to vector<64xf32>
    %580 = vector.shape_cast %579 : vector<64xf32> to vector<1x64xf32>
    %cst_201 = arith.constant 8.000000e+00 : f32
    %581 = vector.broadcast %cst_201 : f32 to vector<1x64xf32>
    %582 = arith.divf %580, %581 : vector<1x64xf32>
    %583 = vector.extract_strided_slice %561 {offsets = [16, 0], sizes = [8, 64], strides = [1, 1]} : vector<32x64xf32> to vector<8x64xf32>
    %cst_202 = arith.constant dense<0.000000e+00> : vector<64xf32>
    %584 = vector.multi_reduction <add>, %583, %cst_202 [0] : vector<8x64xf32> to vector<64xf32>
    %585 = vector.shape_cast %584 : vector<64xf32> to vector<1x64xf32>
    %cst_203 = arith.constant 8.000000e+00 : f32
    %586 = vector.broadcast %cst_203 : f32 to vector<1x64xf32>
    %587 = arith.divf %585, %586 : vector<1x64xf32>
    %588 = vector.extract_strided_slice %561 {offsets = [24, 0], sizes = [8, 64], strides = [1, 1]} : vector<32x64xf32> to vector<8x64xf32>
    %cst_204 = arith.constant dense<0.000000e+00> : vector<64xf32>
    %589 = vector.multi_reduction <add>, %588, %cst_204 [0] : vector<8x64xf32> to vector<64xf32>
    %590 = vector.shape_cast %589 : vector<64xf32> to vector<1x64xf32>
    %cst_205 = arith.constant 8.000000e+00 : f32
    %591 = vector.broadcast %cst_205 : f32 to vector<1x64xf32>
    %592 = arith.divf %590, %591 : vector<1x64xf32>
    %593 = tpu.concatenate %577, %582, %587, %592 in 0 : vector<1x64xf32>, vector<1x64xf32>, vector<1x64xf32>, vector<1x64xf32> -> vector<4x64xf32>
    %c0_206 = arith.constant 0 : index
    %c0_207 = arith.constant 0 : index
    %594 = vector.load %arg18[%c0_206, %c0_207] : memref<64x11xf32, #tpu.memory_space<vmem>>, vector<64x11xf32>
    %c0_208 = arith.constant 0 : index
    %c0_209 = arith.constant 0 : index
    %595 = vector.load %arg19[%c0_208, %c0_209] : memref<1x11xf32, #tpu.memory_space<vmem>>, vector<1x11xf32>
    %596 = vector.extract_strided_slice %572 {offsets = [0, 0], sizes = [2, 64], strides = [1, 1]} : vector<4x64xf32> to vector<2x64xf32>
    %597 = vector.extract_strided_slice %594 {offsets = [0, 0], sizes = [64, 2], strides = [1, 1]} : vector<64x11xf32> to vector<64x2xf32>
    %cst_210 = arith.constant dense<0.000000e+00> : vector<2x2xf32>
    %598 = tpu.matmul %596, %597, %cst_210 {dimension_numbers = #tpu.dot_dimension_numbers<[1], [0], [0], [1], [0, 0, 1, 1], [], []>} : vector<2x64xf32>, vector<64x2xf32>, vector<2x2xf32> -> vector<2x2xf32>
    %599 = vector.extract_strided_slice %595 {offsets = [0, 0], sizes = [1, 2], strides = [1, 1]} : vector<1x11xf32> to vector<1x2xf32>
    %600 = vector.broadcast %599 : vector<1x2xf32> to vector<2x2xf32>
    %601 = arith.addf %598, %600 : vector<2x2xf32>
    %602 = vector.extract_strided_slice %572 {offsets = [2, 0], sizes = [2, 64], strides = [1, 1]} : vector<4x64xf32> to vector<2x64xf32>
    %603 = vector.extract_strided_slice %594 {offsets = [0, 2], sizes = [64, 2], strides = [1, 1]} : vector<64x11xf32> to vector<64x2xf32>
    %cst_211 = arith.constant dense<0.000000e+00> : vector<2x2xf32>
    %604 = tpu.matmul %602, %603, %cst_211 {dimension_numbers = #tpu.dot_dimension_numbers<[1], [0], [0], [1], [0, 0, 1, 1], [], []>} : vector<2x64xf32>, vector<64x2xf32>, vector<2x2xf32> -> vector<2x2xf32>
    %605 = vector.extract_strided_slice %595 {offsets = [0, 2], sizes = [1, 2], strides = [1, 1]} : vector<1x11xf32> to vector<1x2xf32>
    %606 = vector.broadcast %605 : vector<1x2xf32> to vector<2x2xf32>
    %607 = arith.addf %604, %606 : vector<2x2xf32>
    %608 = vector.extract_strided_slice %594 {offsets = [0, 4], sizes = [64, 3], strides = [1, 1]} : vector<64x11xf32> to vector<64x3xf32>
    %cst_212 = arith.constant dense<0.000000e+00> : vector<4x3xf32>
    %609 = tpu.matmul %593, %608, %cst_212 {dimension_numbers = #tpu.dot_dimension_numbers<[1], [0], [0], [1], [0, 0, 1, 1], [], []>} : vector<4x64xf32>, vector<64x3xf32>, vector<4x3xf32> -> vector<4x3xf32>
    %610 = vector.extract_strided_slice %595 {offsets = [0, 4], sizes = [1, 3], strides = [1, 1]} : vector<1x11xf32> to vector<1x3xf32>
    %611 = vector.broadcast %610 : vector<1x3xf32> to vector<4x3xf32>
    %612 = arith.addf %609, %611 : vector<4x3xf32>
    %cst_213 = arith.constant dense<0xFF800000> : vector<2xf32>
    %613 = vector.multi_reduction <maximumf>, %601, %cst_213 [1] : vector<2x2xf32> to vector<2xf32>
    %614 = vector.shape_cast %613 : vector<2xf32> to vector<2x1xf32>
    %615 = vector.broadcast %614 : vector<2x1xf32> to vector<2x2xf32>
    %616 = arith.subf %601, %615 : vector<2x2xf32>
    %617 = math.exp %616 : vector<2x2xf32>
    %cst_214 = arith.constant dense<0.000000e+00> : vector<2xf32>
    %618 = vector.multi_reduction <add>, %617, %cst_214 [1] : vector<2x2xf32> to vector<2xf32>
    %619 = vector.shape_cast %618 : vector<2xf32> to vector<2x1xf32>
    %620 = tpu.reciprocal %619 {approx = true} : vector<2x1xf32> -> vector<2x1xf32>
    %621 = vector.broadcast %620 : vector<2x1xf32> to vector<2x2xf32>
    %622 = arith.mulf %617, %621 : vector<2x2xf32>
    %cst_215 = arith.constant dense<0xFF800000> : vector<2xf32>
    %623 = vector.multi_reduction <maximumf>, %607, %cst_215 [1] : vector<2x2xf32> to vector<2xf32>
    %624 = vector.shape_cast %623 : vector<2xf32> to vector<2x1xf32>
    %625 = vector.broadcast %624 : vector<2x1xf32> to vector<2x2xf32>
    %626 = arith.subf %607, %625 : vector<2x2xf32>
    %627 = math.exp %626 : vector<2x2xf32>
    %cst_216 = arith.constant dense<0.000000e+00> : vector<2xf32>
    %628 = vector.multi_reduction <add>, %627, %cst_216 [1] : vector<2x2xf32> to vector<2xf32>
    %629 = vector.shape_cast %628 : vector<2xf32> to vector<2x1xf32>
    %630 = tpu.reciprocal %629 {approx = true} : vector<2x1xf32> -> vector<2x1xf32>
    %631 = vector.broadcast %630 : vector<2x1xf32> to vector<2x2xf32>
    %632 = arith.mulf %627, %631 : vector<2x2xf32>
    %633 = vector.extract_strided_slice %593 {offsets = [0, 0], sizes = [2, 64], strides = [1, 1]} : vector<4x64xf32> to vector<2x64xf32>
    %634 = vector.extract_strided_slice %593 {offsets = [2, 0], sizes = [2, 64], strides = [1, 1]} : vector<4x64xf32> to vector<2x64xf32>
    %635 = vector.extract_strided_slice %594 {offsets = [0, 7], sizes = [64, 2], strides = [1, 1]} : vector<64x11xf32> to vector<64x2xf32>
    %636 = vector.extract_strided_slice %595 {offsets = [0, 7], sizes = [1, 2], strides = [1, 1]} : vector<1x11xf32> to vector<1x2xf32>
    %637 = vector.extract_strided_slice %594 {offsets = [0, 9], sizes = [64, 2], strides = [1, 1]} : vector<64x11xf32> to vector<64x2xf32>
    %638 = vector.extract_strided_slice %595 {offsets = [0, 9], sizes = [1, 2], strides = [1, 1]} : vector<1x11xf32> to vector<1x2xf32>
    %639 = vector.extract_strided_slice %622 {offsets = [0, 0], sizes = [2, 1], strides = [1, 1]} : vector<2x2xf32> to vector<2x1xf32>
    %640 = vector.broadcast %639 : vector<2x1xf32> to vector<2x64xf32>
    %641 = arith.mulf %640, %633 : vector<2x64xf32>
    %cst_217 = arith.constant dense<0.000000e+00> : vector<2x2xf32>
    %642 = tpu.matmul %641, %635, %cst_217 {dimension_numbers = #tpu.dot_dimension_numbers<[1], [0], [0], [1], [0, 0, 1, 1], [], []>} : vector<2x64xf32>, vector<64x2xf32>, vector<2x2xf32> -> vector<2x2xf32>
    %643 = vector.broadcast %636 : vector<1x2xf32> to vector<2x2xf32>
    %644 = arith.addf %642, %643 : vector<2x2xf32>
    %645 = vector.extract_strided_slice %632 {offsets = [0, 0], sizes = [2, 1], strides = [1, 1]} : vector<2x2xf32> to vector<2x1xf32>
    %646 = vector.broadcast %645 : vector<2x1xf32> to vector<2x64xf32>
    %647 = arith.mulf %646, %634 : vector<2x64xf32>
    %cst_218 = arith.constant dense<0.000000e+00> : vector<2x2xf32>
    %648 = tpu.matmul %647, %635, %cst_218 {dimension_numbers = #tpu.dot_dimension_numbers<[1], [0], [0], [1], [0, 0, 1, 1], [], []>} : vector<2x64xf32>, vector<64x2xf32>, vector<2x2xf32> -> vector<2x2xf32>
    %649 = vector.broadcast %636 : vector<1x2xf32> to vector<2x2xf32>
    %650 = arith.addf %648, %649 : vector<2x2xf32>
    %651 = vector.extract_strided_slice %622 {offsets = [0, 1], sizes = [2, 1], strides = [1, 1]} : vector<2x2xf32> to vector<2x1xf32>
    %652 = vector.broadcast %651 : vector<2x1xf32> to vector<2x64xf32>
    %653 = arith.mulf %652, %633 : vector<2x64xf32>
    %cst_219 = arith.constant dense<0.000000e+00> : vector<2x2xf32>
    %654 = tpu.matmul %653, %637, %cst_219 {dimension_numbers = #tpu.dot_dimension_numbers<[1], [0], [0], [1], [0, 0, 1, 1], [], []>} : vector<2x64xf32>, vector<64x2xf32>, vector<2x2xf32> -> vector<2x2xf32>
    %655 = vector.broadcast %638 : vector<1x2xf32> to vector<2x2xf32>
    %656 = arith.addf %654, %655 : vector<2x2xf32>
    %657 = vector.extract_strided_slice %632 {offsets = [0, 1], sizes = [2, 1], strides = [1, 1]} : vector<2x2xf32> to vector<2x1xf32>
    %658 = vector.broadcast %657 : vector<2x1xf32> to vector<2x64xf32>
    %659 = arith.mulf %658, %634 : vector<2x64xf32>
    %cst_220 = arith.constant dense<0.000000e+00> : vector<2x2xf32>
    %660 = tpu.matmul %659, %637, %cst_220 {dimension_numbers = #tpu.dot_dimension_numbers<[1], [0], [0], [1], [0, 0, 1, 1], [], []>} : vector<2x64xf32>, vector<64x2xf32>, vector<2x2xf32> -> vector<2x2xf32>
    %661 = vector.broadcast %638 : vector<1x2xf32> to vector<2x2xf32>
    %662 = arith.addf %660, %661 : vector<2x2xf32>
    %663 = tpu.concatenate %601, %607 in 0 : vector<2x2xf32>, vector<2x2xf32> -> vector<4x2xf32>
    %664 = tpu.concatenate %644, %650 in 0 : vector<2x2xf32>, vector<2x2xf32> -> vector<4x2xf32>
    %665 = tpu.concatenate %656, %662 in 0 : vector<2x2xf32>, vector<2x2xf32> -> vector<4x2xf32>
    %cst_221 = arith.constant 0.000000e+00 : f32
    %666 = vector.broadcast %cst_221 : f32 to vector<4x119xf32>
    %667 = tpu.concatenate %663, %664, %665, %612, %666 in 1 : vector<4x2xf32>, vector<4x2xf32>, vector<4x2xf32>, vector<4x3xf32>, vector<4x119xf32> -> vector<4x128xf32>
    %c0_222 = arith.constant 0 : index
    %c0_223 = arith.constant 0 : index
    %668 = vector.load %arg20[%c0_222, %c0_223] : memref<4x128xf32, #tpu.memory_space<vmem>>, vector<4x128xf32>
    tpu.vector_store %arg20[%c0_222, %c0_223], %667 {strides = array<i32>} : memref<4x128xf32, #tpu.memory_space<vmem>>, vector<4x128xf32>,
    return
  }
}

</mosaic_0001>

<llo_original>
// kernel: tpu_custom_call.1
$region0: #{tpu_custom_call.1}
  #allocation0 [shape = 'u32[]', space=smem, size = 0x4, offset = 0x4, fixed_abs, tag = 'smem constant byte address 0x4 - core index']
  #allocation1 [shape = 'u32[144,128]{1,0:T(1,128)}', space=vmem, size = 0x12000, scoped, tag = 'internal scratch']
  %s0 = inlined_call_operand.vmem [shape: s32[32,1], index: 0, kind: input, shape index: {}]
  %s1 = inlined_call_operand.vmem [shape: s32[32,1], index: 1, kind: input, shape index: {}]
  %s2 = inlined_call_operand.hbm [shape: s32[4,8], index: 2, kind: input, shape index: {}]
  %s3 = inlined_call_operand.vmem [shape: f32[128,64], index: 3, kind: input, shape index: {}]
  %s4 = inlined_call_operand.hbm [shape: f32[2,64], index: 4, kind: input, shape index: {}]
  %s5 = inlined_call_operand.vmem [shape: f32[8,64], index: 5, kind: input, shape index: {}]
  %s6 = inlined_call_operand.vmem [shape: f32[2,64], index: 6, kind: input, shape index: {}]
  %s7 = inlined_call_operand.vmem [shape: f32[2,64,192], index: 7, kind: input, shape index: {}]
  %s8 = inlined_call_operand.hbm [shape: f32[2,1,192], index: 8, kind: input, shape index: {}]
  %s9 = inlined_call_operand.vmem [shape: f32[2,64,64], index: 9, kind: input, shape index: {}]
  %s10 = inlined_call_operand.vmem [shape: f32[2,1,64], index: 10, kind: input, shape index: {}]
  %s11 = inlined_call_operand.vmem [shape: f32[2,4,64], index: 11, kind: input, shape index: {}]
  %s12 = inlined_call_operand.vmem [shape: f32[2,64,128], index: 12, kind: input, shape index: {}]
  %s13 = inlined_call_operand.hbm [shape: f32[2,1,128], index: 13, kind: input, shape index: {}]
  %s14 = inlined_call_operand.vmem [shape: f32[2,128,64], index: 14, kind: input, shape index: {}]
  %s15 = inlined_call_operand.vmem [shape: f32[2,1,64], index: 15, kind: input, shape index: {}]
  %s16 = inlined_call_operand.hbm [shape: f32[64,64], index: 16, kind: input, shape index: {}]
  %s17 = inlined_call_operand.vmem [shape: f32[1,64], index: 17, kind: input, shape index: {}]
  %s18 = inlined_call_operand.vmem [shape: f32[64,11], index: 18, kind: input, shape index: {}]
  %s19 = inlined_call_operand.vmem [shape: f32[1,11], index: 19, kind: input, shape index: {}]
  %s20 = inlined_call_operand.hbm [shape: f32[4,128], index: 20, kind: output, shape index: {}]
  %s21 = sld [smem:[#allocation0]]
  $region110: #{tpu_custom_call.1} parent=0
    _
  %s23 = ssub.s32 1, %s21
  %s24 = scalar_select 0, %s23, %s21
  $region1: #{tpu_custom_call.1} parent=0
    #allocation2 [shape = 'u8[2048]{0}', space=vmem, size = 0x800, scoped, tag = 'input window, operand 2, single buffered']
    #allocation3 [shape = 's32[1]{0}', space=sflag, size = 0x4, scoped, tag = 'scoped memory for tpu_custom_call.1']
    #allocation4 [shape = 's32[1]{0}', space=sflag, size = 0x4, scoped, tag = 'scoped memory for tpu_custom_call.1']
    #allocation5 [shape = 'u8[1024]{0}', space=vmem, size = 0x400, scoped, tag = 'input window, operand 4, single buffered']
    #allocation6 [shape = 's32[1]{0}', space=sflag, size = 0x4, scoped, tag = 'scoped memory for tpu_custom_call.1']
    #allocation7 [shape = 'u8[2048]{0}', space=vmem, size = 0x800, scoped, tag = 'input window, operand 8, single buffered']
    #allocation8 [shape = 'u8[1024]{0}', space=vmem, size = 0x400, scoped, tag = 'input window, operand 13, single buffered']
    #allocation9 [shape = 's32[1]{0}', space=sflag, size = 0x4, scoped, tag = 'scoped memory for tpu_custom_call.1']
    #allocation10 [shape = 'u8[32768]{0}', space=vmem, size = 0x8000, scoped, tag = 'input window, operand 16, single buffered']
    #allocation11 [shape = 'u8[2048]{0}', space=vmem, size = 0x800, scoped, tag = 'output window, operand 0, single buffered']
    %25 = vsyncpa [#allocation3], 0
    %26 = vsyncpa [#allocation6], 0
    %27 = vsyncpa [#allocation9], 0
    %28 = vsyncpa [#allocation4], 0
    // Predicated region
    $region2: #{tpu_custom_call.1} parent=1 // pred_check
      _
    $region3: #{tpu_custom_call.1} parent=1 // pred_check_branch
      %30 = sbr.rel (0) target = $region5
    $region4: #{tpu_custom_call.1} parent=1 // pred_region
      _
    $region5: #{tpu_custom_call.1} parent=1 // pred_fallthru
      _
    // Predicated region
    $region6: #{tpu_custom_call.1} parent=1 // pred_check
      _
    $region7: #{tpu_custom_call.1} parent=1 // pred_check_branch
      %32 = sbr.rel (0) target = $region9
    $region8: #{tpu_custom_call.1} parent=1 // pred_region
      _
    $region9: #{tpu_custom_call.1} parent=1 // pred_fallthru
      _
    // Predicated region
    $region10: #{tpu_custom_call.1} parent=1 // pred_check
      _
    $region11: #{tpu_custom_call.1} parent=1 // pred_check_branch
      %34 = sbr.rel (0) target = $region13
    $region12: #{tpu_custom_call.1} parent=1 // pred_region
      %s36 = ssub.s32 64, 64
      %37 = vsyncadd [#allocation3], %s36
      %s39 = sshll.u32 [#allocation2], 4
      %s40 = int_to_ptr.vmem [resolvable:$true] %s39
      %42 = dma.hbm_to_vmem [thread:$0]  %s2, 64, %s40, [#allocation3]
    $region13: #{tpu_custom_call.1} parent=1 // pred_fallthru
      _
    // Predicated region
    $region14: #{tpu_custom_call.1} parent=1 // pred_check
      _
    $region15: #{tpu_custom_call.1} parent=1 // pred_check_branch
      %44 = sbr.rel (0) target = $region17
    $region16: #{tpu_custom_call.1} parent=1 // pred_region
      _
    $region17: #{tpu_custom_call.1} parent=1 // pred_fallthru
      _
    // Predicated region
    $region18: #{tpu_custom_call.1} parent=1 // pred_check
      _
    $region19: #{tpu_custom_call.1} parent=1 // pred_check_branch
      %46 = sbr.rel (0) target = $region21
    $region20: #{tpu_custom_call.1} parent=1 // pred_region
      %s48 = ssub.s32 32, 32
      %49 = vsyncadd [#allocation6], %s48
      %s51 = sshll.u32 [#allocation5], 4
      %s52 = int_to_ptr.vmem [resolvable:$true] %s51
      %54 = dma.hbm_to_vmem [thread:$0]  %s4, 32, %s52, [#allocation6]
    $region21: #{tpu_custom_call.1} parent=1 // pred_fallthru
      _
    // Predicated region
    $region22: #{tpu_custom_call.1} parent=1 // pred_check
      _
    $region23: #{tpu_custom_call.1} parent=1 // pred_check_branch
      %56 = sbr.rel (0) target = $region25
    $region24: #{tpu_custom_call.1} parent=1 // pred_region
      _
    $region25: #{tpu_custom_call.1} parent=1 // pred_fallthru
      _
    // Predicated region
    $region26: #{tpu_custom_call.1} parent=1 // pred_check
      _
    $region27: #{tpu_custom_call.1} parent=1 // pred_check_branch
      %58 = sbr.rel (0) target = $region29
    $region28: #{tpu_custom_call.1} parent=1 // pred_region
      _
    $region29: #{tpu_custom_call.1} parent=1 // pred_fallthru
      _
    // Predicated region
    $region30: #{tpu_custom_call.1} parent=1 // pred_check
      _
    $region31: #{tpu_custom_call.1} parent=1 // pred_check_branch
      %60 = sbr.rel (0) target = $region33
    $region32: #{tpu_custom_call.1} parent=1 // pred_region
      _
    $region33: #{tpu_custom_call.1} parent=1 // pred_fallthru
      _
    // Predicated region
    $region34: #{tpu_custom_call.1} parent=1 // pred_check
      _
    $region35: #{tpu_custom_call.1} parent=1 // pred_check_branch
      %62 = sbr.rel (0) target = $region37
    $region36: #{tpu_custom_call.1} parent=1 // pred_region
      %s64 = ssub.s32 64, 64
      %65 = vsyncadd [#allocation6], %s64
      %s66 = sshll.u32 [#allocation7], 4
      %s67 = int_to_ptr.vmem [resolvable:$true] %s66
      %72 = dma.hbm_to_vmem [thread:$0]  %s8, 64, %s67, [#allocation6], 32, 32, 2
    $region37: #{tpu_custom_call.1} parent=1 // pred_fallthru
      _
    // Predicated region
    $region38: #{tpu_custom_call.1} parent=1 // pred_check
      _
    $region39: #{tpu_custom_call.1} parent=1 // pred_check_branch
      %74 = sbr.rel (0) target = $region41
    $region40: #{tpu_custom_call.1} parent=1 // pred_region
      _
    $region41: #{tpu_custom_call.1} parent=1 // pred_fallthru
      _
    // Predicated region
    $region42: #{tpu_custom_call.1} parent=1 // pred_check
      _
    $region43: #{tpu_custom_call.1} parent=1 // pred_check_branch
      %76 = sbr.rel (0) target = $region45
    $region44: #{tpu_custom_call.1} parent=1 // pred_region
      _
    $region45: #{tpu_custom_call.1} parent=1 // pred_fallthru
      _
    // Predicated region
    $region46: #{tpu_custom_call.1} parent=1 // pred_check
      _
    $region47: #{tpu_custom_call.1} parent=1 // pred_check_branch
      %78 = sbr.rel (0) target = $region49
    $region48: #{tpu_custom_call.1} parent=1 // pred_region
      _
    $region49: #{tpu_custom_call.1} parent=1 // pred_fallthru
      _
    // Predicated region
    $region50: #{tpu_custom_call.1} parent=1 // pred_check
      _
    $region51: #{tpu_custom_call.1} parent=1 // pred_check_branch
      %80 = sbr.rel (0) target = $region53
    $region52: #{tpu_custom_call.1} parent=1 // pred_region
      _
    $region53: #{tpu_custom_call.1} parent=1 // pred_fallthru
      _
    // Predicated region
    $region54: #{tpu_custom_call.1} parent=1 // pred_check
      _
    $region55: #{tpu_custom_call.1} parent=1 // pred_check_branch
      %82 = sbr.rel (0) target = $region57
    $region56: #{tpu_custom_call.1} parent=1 // pred_region
      %s84 = ssub.s32 32, 32
      %85 = vsyncadd [#allocation9], %s84
      %s86 = sshll.u32 [#allocation8], 4
      %s87 = int_to_ptr.vmem [resolvable:$true] %s86
      %92 = dma.hbm_to_vmem [thread:$0]  %s13, 32, %s87, [#allocation9], 16, 16, 1
    $region57: #{tpu_custom_call.1} parent=1 // pred_fallthru
      _
    // Predicated region
    $region58: #{tpu_custom_call.1} parent=1 // pred_check
      _
    $region59: #{tpu_custom_call.1} parent=1 // pred_check_branch
      %94 = sbr.rel (0) target = $region61
    $region60: #{tpu_custom_call.1} parent=1 // pred_region
      _
    $region61: #{tpu_custom_call.1} parent=1 // pred_fallthru
      _
    // Predicated region
    $region62: #{tpu_custom_call.1} parent=1 // pred_check
      _
    $region63: #{tpu_custom_call.1} parent=1 // pred_check_branch
      %96 = sbr.rel (0) target = $region65
    $region64: #{tpu_custom_call.1} parent=1 // pred_region
      _
    $region65: #{tpu_custom_call.1} parent=1 // pred_fallthru
      _
    // Predicated region
    $region66: #{tpu_custom_call.1} parent=1 // pred_check
      _
    $region67: #{tpu_custom_call.1} parent=1 // pred_check_branch
      %98 = sbr.rel (0) target = $region69
    $region68: #{tpu_custom_call.1} parent=1 // pred_region
      %s100 = ssub.s32 1024, 1024
      %101 = vsyncadd [#allocation9], %s100
      %s102 = sshll.u32 [#allocation10], 4
      %s103 = int_to_ptr.vmem [resolvable:$true] %s102
      %108 = dma.hbm_to_vmem [thread:$0]  %s16, 1024, %s103, [#allocation9], 128, 128, 8
    $region69: #{tpu_custom_call.1} parent=1 // pred_fallthru
      _
    // Predicated region
    $region70: #{tpu_custom_call.1} parent=1 // pred_check
      _
    $region71: #{tpu_custom_call.1} parent=1 // pred_check_branch
      %110 = sbr.rel (0) target = $region73
    $region72: #{tpu_custom_call.1} parent=1 // pred_region
      _
    $region73: #{tpu_custom_call.1} parent=1 // pred_fallthru
      _
    // Predicated region
    $region74: #{tpu_custom_call.1} parent=1 // pred_check
      _
    $region75: #{tpu_custom_call.1} parent=1 // pred_check_branch
      %112 = sbr.rel (0) target = $region77
    $region76: #{tpu_custom_call.1} parent=1 // pred_region
      _
    $region77: #{tpu_custom_call.1} parent=1 // pred_fallthru
      _
    // Predicated region
    $region78: #{tpu_custom_call.1} parent=1 // pred_check
      _
    $region79: #{tpu_custom_call.1} parent=1 // pred_check_branch
      %114 = sbr.rel (0) target = $region81
    $region80: #{tpu_custom_call.1} parent=1 // pred_region
      _
    $region81: #{tpu_custom_call.1} parent=1 // pred_fallthru
      _
    // Predicated region
    $region82: #{tpu_custom_call.1} parent=1 // pred_check
      _
    $region83: #{tpu_custom_call.1} parent=1 // pred_check_branch
      %116 = sbr.rel (0) target = $region85
    $region84: #{tpu_custom_call.1} parent=1 // pred_region
      %117 = dma.done [#allocation3], 64
    $region85: #{tpu_custom_call.1} parent=1 // pred_fallthru
      _
    // Predicated region
    $region86: #{tpu_custom_call.1} parent=1 // pred_check
      _
    $region87: #{tpu_custom_call.1} parent=1 // pred_check_branch
      %119 = sbr.rel (0) target = $region89
    $region88: #{tpu_custom_call.1} parent=1 // pred_region
      %120 = dma.done [#allocation6], 32
    $region89: #{tpu_custom_call.1} parent=1 // pred_fallthru
      _
    // Predicated region
    $region90: #{tpu_custom_call.1} parent=1 // pred_check
      _
    $region91: #{tpu_custom_call.1} parent=1 // pred_check_branch
      %122 = sbr.rel (0) target = $region93
    $region92: #{tpu_custom_call.1} parent=1 // pred_region
      %123 = dma.done [#allocation6], 64
    $region93: #{tpu_custom_call.1} parent=1 // pred_fallthru
      _
    // Predicated region
    $region94: #{tpu_custom_call.1} parent=1 // pred_check
      _
    $region95: #{tpu_custom_call.1} parent=1 // pred_check_branch
      %125 = sbr.rel (0) target = $region97
    $region96: #{tpu_custom_call.1} parent=1 // pred_region
      %126 = dma.done [#allocation9], 32
    $region97: #{tpu_custom_call.1} parent=1 // pred_fallthru
      _
    // Predicated region
    $region98: #{tpu_custom_call.1} parent=1 // pred_check
      _
    $region99: #{tpu_custom_call.1} parent=1 // pred_check_branch
      %128 = sbr.rel (0) target = $region101
    $region100: #{tpu_custom_call.1} parent=1 // pred_region
      %129 = dma.done [#allocation9], 1024
    $region101: #{tpu_custom_call.1} parent=1 // pred_fallthru
      _
    %v130 = vld [vmem:[%s0] sm:$0xff]
    %v131 = vld [vmem:[%s0 + $0x8] sm:$0xff]
    %v132 = vld [vmem:[%s0 + $0x10] sm:$0xff]
    %v133 = vld [vmem:[%s0 + $0x18] sm:$0xff]
    %v134 = vlaneseq
    %v135 = vand.u32 %v134, 127
    %136 = vset.pattern.permute.xlu0 0
    %137 = vperm.xlu0 %136, %v130
    %v138 = vpop.permute.xlu0 %137
    %139 = vset.pattern.permute.xlu0 0
    %140 = vperm.xlu0 %139, %v131
    %v141 = vpop.permute.xlu0 %140
    %142 = vset.pattern.permute.xlu0 0
    %143 = vperm.xlu0 %142, %v132
    %v144 = vpop.permute.xlu0 %143
    %145 = vset.pattern.permute.xlu0 0
    %146 = vperm.xlu0 %145, %v133
    %v147 = vpop.permute.xlu0 %146
    %vm148 = vcmp.eq.s32.totalorder %v135, %v138
    %vm149 = vcmp.eq.s32.totalorder %v135, %v141
    %vm150 = vcmp.eq.s32.totalorder %v135, %v144
    %vm151 = vcmp.eq.s32.totalorder %v135, %v147
    %v152 = vsel %vm148, 1, 0
    %v153 = vsel %vm149, 1, 0
    %v154 = vsel %vm150, 1, 0
    %v155 = vsel %vm151, 1, 0
    %v156 = vcvt.s32.f32 %v152
    %v157 = vcvt.s32.f32 %v153
    %v158 = vcvt.s32.f32 %v154
    %v159 = vcvt.s32.f32 %v155
    %v160 = vld [vmem:[%s3] sm:$0xff]
    %v161 = vld [vmem:[%s3 + $0x8] sm:$0xff]
    %v162 = vld [vmem:[%s3 + $0x10] sm:$0xff]
    %v163 = vld [vmem:[%s3 + $0x18] sm:$0xff]
    %v164 = vld [vmem:[%s3 + $0x20] sm:$0xff]
    %v165 = vld [vmem:[%s3 + $0x28] sm:$0xff]
    %v166 = vld [vmem:[%s3 + $0x30] sm:$0xff]
    %v167 = vld [vmem:[%s3 + $0x38] sm:$0xff]
    %v168 = vld [vmem:[%s3 + $0x40] sm:$0xff]
    %v169 = vld [vmem:[%s3 + $0x48] sm:$0xff]
    %v170 = vld [vmem:[%s3 + $0x50] sm:$0xff]
    %v171 = vld [vmem:[%s3 + $0x58] sm:$0xff]
    %v172 = vld [vmem:[%s3 + $0x60] sm:$0xff]
    %v173 = vld [vmem:[%s3 + $0x68] sm:$0xff]
    %v174 = vld [vmem:[%s3 + $0x70] sm:$0xff]
    %v175 = vld [vmem:[%s3 + $0x78] sm:$0xff]
    %v176 = vld [vmem:[%s1] sm:$0xff]
    %v177 = vld [vmem:[%s1 + $0x8] sm:$0xff]
    %v178 = vld [vmem:[%s1 + $0x10] sm:$0xff]
    %v179 = vld [vmem:[%s1 + $0x18] sm:$0xff]
    %vm180 = vcmp.eq.s32.totalorder %v176, 0
    %vm181 = vcmp.eq.s32.totalorder %v177, 0
    %vm182 = vcmp.eq.s32.totalorder %v178, 0
    %vm183 = vcmp.eq.s32.totalorder %v179, 0
    %v184 = vld [vmem:[#allocation5] sm:$0x1]
    %v185 = vld [vmem:[#allocation5 + $0x1] sm:$0x1]
    %v186 = vsel %vm180, 1, 0
    %v187 = vsel %vm181, 1, 0
    %v188 = vsel %vm182, 1, 0
    %v189 = vsel %vm183, 1, 0
    %190 = vset.pattern.permute.xlu0 0
    %191 = vperm.xlu0 %190, %v186
    %v192 = vpop.permute.xlu0 %191
    %193 = vset.pattern.permute.xlu0 0
    %194 = vperm.xlu0 %193, %v187
    %v195 = vpop.permute.xlu0 %194
    %196 = vset.pattern.permute.xlu0 0
    %197 = vperm.xlu0 %196, %v188
    %v198 = vpop.permute.xlu0 %197
    %199 = vset.pattern.permute.xlu0 0
    %200 = vperm.xlu0 %199, %v189
    %v201 = vpop.permute.xlu0 %200
    %vm202 = vcmp.eq.s32.totalorder %v192, 1
    %vm203 = vcmp.eq.s32.totalorder %v195, 1
    %vm204 = vcmp.eq.s32.totalorder %v198, 1
    %vm205 = vcmp.eq.s32.totalorder %v201, 1
    %v206 = vlaneseq
    %v207 = vshrl.u32 %v206, 7
    %v208 = vsub.s32 0, %v207
    %v209 = vrot.slane %v184, %v208
    %v210 = vlaneseq
    %v211 = vshrl.u32 %v210, 7
    %v212 = vsub.s32 0, %v211
    %v213 = vrot.slane %v185, %v212
    %v214 = vsel %vm202, %v209, %v213
    %v215 = vsel %vm203, %v209, %v213
    %v216 = vsel %vm204, %v209, %v213
    %v217 = vsel %vm205, %v209, %v213
    %v218 = vld [vmem:[%s5] sm:$0xff]
    %219 = vmatprep.subr.mxu0 0.0
    %220 = vmatpush1.msra.mxu0 %v175
    %221 = vmatprep.subr.mxu0 0.0
    %222 = vmatpush1.msra.mxu0 %v174
    %223 = vmatprep.subr.mxu0 0.0
    %224 = vmatpush1.msra.mxu0 %v173
    %225 = vmatprep.subr.mxu0 0.0
    %226 = vmatpush1.msra.mxu0 %v172
    %227 = vmatprep.subr.mxu0 0.0
    %228 = vmatpush1.msra.mxu0 %v171
    %229 = vmatprep.subr.mxu0 0.0
    %230 = vmatpush1.msra.mxu0 %v170
    %231 = vmatprep.subr.mxu0 0.0
    %232 = vmatpush1.msra.mxu0 %v169
    %233 = vmatprep.subr.mxu0 0.0
    %234 = vmatpush1.msra.mxu0 %v168
    %235 = vmatprep.subr.mxu0 0.0
    %236 = vmatpush1.msra.mxu0 %v167
    %237 = vmatprep.subr.mxu0 0.0
    %238 = vmatpush1.msra.mxu0 %v166
    %239 = vmatprep.subr.mxu0 0.0
    %240 = vmatpush1.msra.mxu0 %v165
    %241 = vmatprep.subr.mxu0 0.0
    %242 = vmatpush1.msra.mxu0 %v164
    %243 = vmatprep.subr.mxu0 0.0
    %244 = vmatpush1.msra.mxu0 %v163
    %245 = vmatprep.subr.mxu0 0.0
    %246 = vmatpush1.msra.mxu0 %v162
    %247 = vmatprep.subr.mxu0 0.0
    %248 = vmatpush1.msra.mxu0 %v161
    %249 = vmatprep.subr.mxu0 0.0
    %250 = vmatpush1.msra.mxu0 %v160
    %251 = vmatprep.subr.mxu0 0.0
    %252 = vmatpush2.msra.mxu0 0.0
    %253 = vmatprep.subr.mxu0 0.0
    %254 = vmatpush2.msra.mxu0 0.0
    %255 = vmatprep.subr.mxu0 0.0
    %256 = vmatpush2.msra.mxu0 0.0
    %257 = vmatprep.subr.mxu0 0.0
    %258 = vmatpush2.msra.mxu0 0.0
    %259 = vmatprep.subr.mxu0 0.0
    %260 = vmatpush2.msra.mxu0 0.0
    %261 = vmatprep.subr.mxu0 0.0
    %262 = vmatpush2.msra.mxu0 0.0
    %263 = vmatprep.subr.mxu0 0.0
    %264 = vmatpush2.msra.mxu0 0.0
    %265 = vmatprep.subr.mxu0 0.0
    %266 = vmatpush2.msra.mxu0 0.0
    %267 = vmatprep.subr.mxu0 0.0
    %268 = vmatpush2.msra.mxu0 0.0
    %269 = vmatprep.subr.mxu0 0.0
    %270 = vmatpush2.msra.mxu0 0.0
    %271 = vmatprep.subr.mxu0 0.0
    %272 = vmatpush2.msra.mxu0 0.0
    %273 = vmatprep.subr.mxu0 0.0
    %274 = vmatpush2.msra.mxu0 0.0
    %275 = vmatprep.subr.mxu0 0.0
    %276 = vmatpush2.msra.mxu0 0.0
    %277 = vmatprep.subr.mxu0 0.0
    %278 = vmatpush2.msra.mxu0 0.0
    %279 = vmatprep.subr.mxu0 0.0
    %280 = vmatpush2.msra.mxu0 0.0
    %281 = vmatprep.subr.mxu0 0.0
    %282 = vmatpush2.msra.mxu0 0.0
    %283 = vmatprep.mubr.f32.mxu0 0.0
    %284 = vmatmul.mubr.f32.gmra.mxu0 %v156
    %v285 = vpop.f32.mrf.mxu0
    %v286 = vadd.f32 %v214, %v285
    %v287 = vpop.f32.mrf.mxu0
    %288 = vmatprep.mubr.f32.mxu0 0.0
    %289 = vmatmul.mubr.f32.gmra.mxu0 %v157
    %v290 = vpop.f32.mrf.mxu0
    %v291 = vadd.f32 %v215, %v290
    %v292 = vpop.f32.mrf.mxu0
    %293 = vmatprep.mubr.f32.mxu0 0.0
    %294 = vmatmul.mubr.f32.gmra.mxu0 %v158
    %v295 = vpop.f32.mrf.mxu0
    %v296 = vadd.f32 %v216, %v295
    %v297 = vpop.f32.mrf.mxu0
    %298 = vmatprep.mubr.f32.mxu0 0.0
    %299 = vmatmul.mubr.f32.gmra.mxu0 %v159
    %v300 = vpop.f32.mrf.mxu0
    %v301 = vadd.f32 %v217, %v300
    %v302 = vpop.f32.mrf.mxu0
    %303 = vdwg.mxu0
    %v304 = vadd.f32 %v286, %v218
    %v305 = vadd.f32 %v291, %v218
    %v306 = vadd.f32 %v296, %v218
    %v307 = vadd.f32 %v301, %v218
    %v308 = vld [vmem:[%s6] sm:$0x1]
    %v309 = vld [vmem:[%s6 + $0x1] sm:$0x1]
    %vm310 = vcmask 523264
    %v311 = vsel %vm310, %v304, 0.0
    %312 = vadd.xlane.f32.xlu0 %v311
    %v313 = vpop.xlane.xlu0 %312
    %v314 = vsel %vm310, %v305, 0.0
    %315 = vadd.xlane.f32.xlu0 %v314
    %v316 = vpop.xlane.xlu0 %315
    %v317 = vsel %vm310, %v306, 0.0
    %318 = vadd.xlane.f32.xlu0 %v317
    %v319 = vpop.xlane.xlu0 %318
    %v320 = vsel %vm310, %v307, 0.0
    %321 = vadd.xlane.f32.xlu0 %v320
    %v322 = vpop.xlane.xlu0 %321
    %v323 = vrcp.pop 64.0
    %v324 = vmul.f32 %v313, %v323
    %v325 = vmul.f32 %v316, %v323
    %v326 = vmul.f32 %v319, %v323
    %v327 = vmul.f32 %v322, %v323
    %v328 = vsub.f32 %v304, %v324
    %v329 = vsub.f32 %v305, %v325
    %v330 = vsub.f32 %v306, %v326
    %v331 = vsub.f32 %v307, %v327
    %v332 = vmul.f32 %v328, %v328
    %v333 = vmul.f32 %v329, %v329
    %v334 = vmul.f32 %v330, %v330
    %v335 = vmul.f32 %v331, %v331
    %v336 = vsel %vm310, %v332, 0.0
    %337 = vadd.xlane.f32.xlu0 %v336
    %v338 = vpop.xlane.xlu0 %337
    %v339 = vsel %vm310, %v333, 0.0
    %340 = vadd.xlane.f32.xlu0 %v339
    %v341 = vpop.xlane.xlu0 %340
    %v342 = vsel %vm310, %v334, 0.0
    %343 = vadd.xlane.f32.xlu0 %v342
    %v344 = vpop.xlane.xlu0 %343
    %v345 = vsel %vm310, %v335, 0.0
    %346 = vadd.xlane.f32.xlu0 %v345
    %v347 = vpop.xlane.xlu0 %346
    %v348 = vmul.f32 %v338, %v323
    %v349 = vmul.f32 %v341, %v323
    %v350 = vmul.f32 %v344, %v323
    %v351 = vmul.f32 %v347, %v323
    %v352 = vadd.f32 %v348, 1e-07
    %v353 = vadd.f32 %v349, 1e-07
    %v354 = vadd.f32 %v350, 1e-07
    %v355 = vadd.f32 %v351, 1e-07
    %v356 = vrsqrt.pop %v352
    %v357 = vrsqrt.pop %v353
    %v358 = vrsqrt.pop %v354
    %v359 = vrsqrt.pop %v355
    %v360 = vmul.f32 %v328, %v356
    %v361 = vmul.f32 %v329, %v357
    %v362 = vmul.f32 %v330, %v358
    %v363 = vmul.f32 %v331, %v359
    %v364 = vlaneseq
    %v365 = vshrl.u32 %v364, 7
    %v366 = vsub.s32 0, %v365
    %v367 = vrot.slane %v308, %v366
    %v368 = vmul.f32 %v360, %v367
    %v369 = vmul.f32 %v361, %v367
    %v370 = vmul.f32 %v362, %v367
    %v371 = vmul.f32 %v363, %v367
    %v372 = vlaneseq
    %v373 = vshrl.u32 %v372, 7
    %v374 = vsub.s32 0, %v373
    %v375 = vrot.slane %v309, %v374
    %v376 = vadd.f32 %v368, %v375
    %v377 = vadd.f32 %v369, %v375
    %v378 = vadd.f32 %v370, %v375
    %v379 = vadd.f32 %v371, %v375
    %v380 = vld [vmem:[#allocation2] sm:$0xf]
    %v381 = vcvt.s32.f32 %v380
    %v382 = vsub.f32 1.0, %v381
    %v383 = vmul.f32 %v382, -1e+09
    %v384 = vld [vmem:[%s7] sm:$0xff]
    %v385 = vld [vmem:[%s7 + $0x8] sm:$0xff]
    %v386 = vld [vmem:[%s7 + $0x10] sm:$0xff]
    %v387 = vld [vmem:[%s7 + $0x18] sm:$0xff]
    %v388 = vld [vmem:[%s7 + $0x20] sm:$0xff]
    %v389 = vld [vmem:[%s7 + $0x28] sm:$0xff]
    %v390 = vld [vmem:[%s7 + $0x30] sm:$0xff]
    %v391 = vld [vmem:[%s7 + $0x38] sm:$0xff]
    %v392 = vld [vmem:[%s7 + $0x40] sm:$0xff]
    %v393 = vld [vmem:[%s7 + $0x48] sm:$0xff]
    %v394 = vld [vmem:[%s7 + $0x50] sm:$0xff]
    %v395 = vld [vmem:[%s7 + $0x58] sm:$0xff]
    %v396 = vld [vmem:[%s7 + $0x60] sm:$0xff]
    %v397 = vld [vmem:[%s7 + $0x68] sm:$0xff]
    %v398 = vld [vmem:[%s7 + $0x70] sm:$0xff]
    %v399 = vld [vmem:[%s7 + $0x78] sm:$0xff]
    %v400 = vld [vmem:[#allocation7] sm:$0x3]
    %v401 = vld [vmem:[%s9] sm:$0xff]
    %v402 = vld [vmem:[%s9 + $0x8] sm:$0xff]
    %v403 = vld [vmem:[%s9 + $0x10] sm:$0xff]
    %v404 = vld [vmem:[%s9 + $0x18] sm:$0xff]
    %v405 = vld [vmem:[%s9 + $0x20] sm:$0xff]
    %v406 = vld [vmem:[%s9 + $0x28] sm:$0xff]
    %v407 = vld [vmem:[%s9 + $0x30] sm:$0xff]
    %v408 = vld [vmem:[%s9 + $0x38] sm:$0xff]
    %v409 = vld [vmem:[%s10] sm:$0x1]
    %v410 = vld [vmem:[%s11] sm:$0xf]
    %v411 = vld [vmem:[%s12] sm:$0xff]
    %v412 = vld [vmem:[%s12 + $0x8] sm:$0xff]
    %v413 = vld [vmem:[%s12 + $0x10] sm:$0xff]
    %v414 = vld [vmem:[%s12 + $0x18] sm:$0xff]
    %v415 = vld [vmem:[%s12 + $0x20] sm:$0xff]
    %v416 = vld [vmem:[%s12 + $0x28] sm:$0xff]
    %v417 = vld [vmem:[%s12 + $0x30] sm:$0xff]
    %v418 = vld [vmem:[%s12 + $0x38] sm:$0xff]
    %v419 = vld [vmem:[#allocation8] sm:$0x1]
    %v420 = vld [vmem:[%s14] sm:$0xff]
    %v421 = vld [vmem:[%s14 + $0x8] sm:$0xff]
    %v422 = vld [vmem:[%s14 + $0x10] sm:$0xff]
    %v423 = vld [vmem:[%s14 + $0x18] sm:$0xff]
    %v424 = vld [vmem:[%s14 + $0x20] sm:$0xff]
    %v425 = vld [vmem:[%s14 + $0x28] sm:$0xff]
    %v426 = vld [vmem:[%s14 + $0x30] sm:$0xff]
    %v427 = vld [vmem:[%s14 + $0x38] sm:$0xff]
    %v428 = vld [vmem:[%s14 + $0x40] sm:$0xff]
    %v429 = vld [vmem:[%s14 + $0x48] sm:$0xff]
    %v430 = vld [vmem:[%s14 + $0x50] sm:$0xff]
    %v431 = vld [vmem:[%s14 + $0x58] sm:$0xff]
    %v432 = vld [vmem:[%s14 + $0x60] sm:$0xff]
    %v433 = vld [vmem:[%s14 + $0x68] sm:$0xff]
    %v434 = vld [vmem:[%s14 + $0x70] sm:$0xff]
    %v435 = vld [vmem:[%s14 + $0x78] sm:$0xff]
    %v436 = vld [vmem:[%s15] sm:$0x1]
    %v438 = vlaneseq
    %v439 = vshrl.u32 %v438, 7
    %v440 = vsub.s32 0, %v439
    %v441 = vrot.slane %v400, %v440
    %v442 = vlaneseq
    %v443 = vshrl.u32 %v442, 7
    %v444 = vsub.s32 1, %v443
    %v445 = vrot.slane %v400, %v444
    %v449 = vsel %vm310, %v376, 0
    %v452 = vsel %vm310, %v377, 0
    %v455 = vsel %vm310, %v378, 0
    %v458 = vsel %vm310, %v379, 0
    %460 = vmatprep.subr.mxu0 0.0
    %461 = vmatpush1.msra.mxu0 0.0
    %462 = vmatprep.subr.mxu0 0.0
    %463 = vmatpush1.msra.mxu0 0.0
    %464 = vmatprep.subr.mxu0 0.0
    %465 = vmatpush1.msra.mxu0 0.0
    %466 = vmatprep.subr.mxu0 0.0
    %467 = vmatpush1.msra.mxu0 0.0
    %468 = vmatprep.subr.mxu0 0.0
    %469 = vmatpush1.msra.mxu0 0.0
    %470 = vmatprep.subr.mxu0 0.0
    %471 = vmatpush1.msra.mxu0 0.0
    %472 = vmatprep.subr.mxu0 0.0
    %473 = vmatpush1.msra.mxu0 0.0
    %474 = vmatprep.subr.mxu0 0.0
    %475 = vmatpush1.msra.mxu0 0.0
    %476 = vmatprep.subr.mxu0 %v399
    %477 = vmatpush1.msra.mxu0 %v398
    %478 = vmatprep.subr.mxu0 %v397
    %479 = vmatpush1.msra.mxu0 %v396
    %480 = vmatprep.subr.mxu0 %v395
    %481 = vmatpush1.msra.mxu0 %v394
    %482 = vmatprep.subr.mxu0 %v393
    %483 = vmatpush1.msra.mxu0 %v392
    %484 = vmatprep.subr.mxu0 %v391
    %485 = vmatpush1.msra.mxu0 %v390
    %486 = vmatprep.subr.mxu0 %v389
    %487 = vmatpush1.msra.mxu0 %v388
    %488 = vmatprep.subr.mxu0 %v387
    %489 = vmatpush1.msra.mxu0 %v386
    %490 = vmatprep.subr.mxu0 %v385
    %491 = vmatpush1.msra.mxu0 %v384
    %492 = vmatprep.subr.mxu0 0.0
    %493 = vmatpush2.msra.mxu0 0.0
    %494 = vmatprep.subr.mxu0 0.0
    %495 = vmatpush2.msra.mxu0 0.0
    %496 = vmatprep.subr.mxu0 0.0
    %497 = vmatpush2.msra.mxu0 0.0
    %498 = vmatprep.subr.mxu0 0.0
    %499 = vmatpush2.msra.mxu0 0.0
    %500 = vmatprep.subr.mxu0 0.0
    %501 = vmatpush2.msra.mxu0 0.0
    %502 = vmatprep.subr.mxu0 0.0
    %503 = vmatpush2.msra.mxu0 0.0
    %504 = vmatprep.subr.mxu0 0.0
    %505 = vmatpush2.msra.mxu0 0.0
    %506 = vmatprep.subr.mxu0 0.0
    %507 = vmatpush2.msra.mxu0 0.0
    %508 = vmatprep.subr.mxu0 0.0
    %509 = vmatpush2.msra.mxu0 0.0
    %510 = vmatprep.subr.mxu0 0.0
    %511 = vmatpush2.msra.mxu0 0.0
    %512 = vmatprep.subr.mxu0 0.0
    %513 = vmatpush2.msra.mxu0 0.0
    %514 = vmatprep.subr.mxu0 0.0
    %515 = vmatpush2.msra.mxu0 0.0
    %516 = vmatprep.subr.mxu0 0.0
    %517 = vmatpush2.msra.mxu0 0.0
    %518 = vmatprep.subr.mxu0 0.0
    %519 = vmatpush2.msra.mxu0 0.0
    %520 = vmatprep.subr.mxu0 0.0
    %521 = vmatpush2.msra.mxu0 0.0
    %522 = vmatprep.subr.mxu0 0.0
    %523 = vmatpush2.msra.mxu0 0.0
    %524 = vmatprep.mubr.f32.mxu0 0.0
    %525 = vmatmul.mubr.f32.gmra.mxu0 %v449
    %v526 = vpop.f32.mrf.mxu0
    %v527 = vadd.f32 %v441, %v526
    %v528 = vpop.f32.mrf.mxu0
    %v529 = vadd.f32 %v445, %v528
    %530 = vmatprep.mubr.f32.mxu0 0.0
    %531 = vmatmul.mubr.f32.gmra.mxu0 %v452
    %v532 = vpop.f32.mrf.mxu0
    %v533 = vadd.f32 %v441, %v532
    %v534 = vpop.f32.mrf.mxu0
    %v535 = vadd.f32 %v445, %v534
    %536 = vmatprep.mubr.f32.mxu0 0.0
    %537 = vmatmul.mubr.f32.gmra.mxu0 %v455
    %v538 = vpop.f32.mrf.mxu0
    %v539 = vadd.f32 %v441, %v538
    %v540 = vpop.f32.mrf.mxu0
    %v541 = vadd.f32 %v445, %v540
    %542 = vmatprep.mubr.f32.mxu0 0.0
    %543 = vmatmul.mubr.f32.gmra.mxu0 %v458
    %v544 = vpop.f32.mrf.mxu0
    %v545 = vadd.f32 %v441, %v544
    %v546 = vpop.f32.mrf.mxu0
    %v547 = vadd.f32 %v445, %v546
    %548 = vdwg.mxu0
    %550 = vrot.lane.b32.xlu0 %v527, 64
    %v551 = vpop.permute.xlu0 %550
    %vm552 = vcmask 261120
    %v553 = vsel %vm552, %v527, 0
    %v555 = vsel %vm552, %v551, 0
    %557 = vmatprep.subr.mxu0 0.0
    %558 = vmatpush1.xpose.msra.mxu0 0.0
    %559 = vmatprep.subr.mxu0 0.0
    %560 = vmatpush1.xpose.msra.mxu0 0.0
    %561 = vmatprep.subr.mxu0 0.0
    %562 = vmatpush1.xpose.msra.mxu0 0.0
    %563 = vmatprep.subr.mxu0 0.0
    %564 = vmatpush1.xpose.msra.mxu0 0.0
    %565 = vmatprep.subr.mxu0 0.0
    %566 = vmatpush1.xpose.msra.mxu0 0.0
    %567 = vmatprep.subr.mxu0 0.0
    %568 = vmatpush1.xpose.msra.mxu0 0.0
    %569 = vmatprep.subr.mxu0 0.0
    %570 = vmatpush1.xpose.msra.mxu0 0.0
    %571 = vmatprep.subr.mxu0 0.0
    %572 = vmatpush1.xpose.msra.mxu0 0.0
    %573 = vmatprep.subr.mxu0 0.0
    %574 = vmatpush1.xpose.msra.mxu0 0.0
    %575 = vmatprep.subr.mxu0 0.0
    %576 = vmatpush1.xpose.msra.mxu0 0.0
    %577 = vmatprep.subr.mxu0 0.0
    %578 = vmatpush1.xpose.msra.mxu0 0.0
    %579 = vmatprep.subr.mxu0 0.0
    %580 = vmatpush1.xpose.msra.mxu0 0.0
    %581 = vmatprep.subr.mxu0 0.0
    %582 = vmatpush1.xpose.msra.mxu0 0.0
    %583 = vmatprep.subr.mxu0 0.0
    %584 = vmatpush1.xpose.msra.mxu0 0.0
    %585 = vmatprep.subr.mxu0 0.0
    %586 = vmatpush1.xpose.msra.mxu0 0.0
    %587 = vmatprep.subr.mxu0 0.0
    %588 = vmatpush1.xpose.msra.mxu0 %v555
    %589 = vmatprep.subr.mxu0 0.0
    %590 = vmatpush2.xpose.msra.mxu0 0.0
    %591 = vmatprep.subr.mxu0 0.0
    %592 = vmatpush2.xpose.msra.mxu0 0.0
    %593 = vmatprep.subr.mxu0 0.0
    %594 = vmatpush2.xpose.msra.mxu0 0.0
    %595 = vmatprep.subr.mxu0 0.0
    %596 = vmatpush2.xpose.msra.mxu0 0.0
    %597 = vmatprep.subr.mxu0 0.0
    %598 = vmatpush2.xpose.msra.mxu0 0.0
    %599 = vmatprep.subr.mxu0 0.0
    %600 = vmatpush2.xpose.msra.mxu0 0.0
    %601 = vmatprep.subr.mxu0 0.0
    %602 = vmatpush2.xpose.msra.mxu0 0.0
    %603 = vmatprep.subr.mxu0 0.0
    %604 = vmatpush2.xpose.msra.mxu0 0.0
    %605 = vmatprep.subr.mxu0 0.0
    %606 = vmatpush2.xpose.msra.mxu0 0.0
    %607 = vmatprep.subr.mxu0 0.0
    %608 = vmatpush2.xpose.msra.mxu0 0.0
    %609 = vmatprep.subr.mxu0 0.0
    %610 = vmatpush2.xpose.msra.mxu0 0.0
    %611 = vmatprep.subr.mxu0 0.0
    %612 = vmatpush2.xpose.msra.mxu0 0.0
    %613 = vmatprep.subr.mxu0 0.0
    %614 = vmatpush2.xpose.msra.mxu0 0.0
    %615 = vmatprep.subr.mxu0 0.0
    %616 = vmatpush2.xpose.msra.mxu0 0.0
    %617 = vmatprep.subr.mxu0 0.0
    %618 = vmatpush2.xpose.msra.mxu0 0.0
    %619 = vmatprep.subr.mxu0 0.0
    %620 = vmatpush2.xpose.msra.mxu0 0.0
    %621 = vmatprep.mubr.f32.mxu0 0.0
    %622 = vmatmul.mubr.f32.gmra.mxu0 %v553
    %v623 = vpop.f32.mrf.mxu0
    %v624 = vadd.f32 0.0, %v623
    %v625 = vpop.f32.mrf.mxu0
    %626 = vdwg.mxu0
    %v627 = vmul.f32 %v624, 0.17677669
    %v628 = vlaneseq
    %v629 = vshrl.u32 %v628, 7
    %v630 = vsub.s32 0, %v629
    %v631 = vrot.slane %v383, %v630
    %v632 = vadd.f32 %v627, %v631
    %vm633 = vcmask 64512
    %v634 = vsel %vm633, %v632, -inf
    %635 = vmax.xlane.f32.xlu0 %v634
    %v636 = vpop.xlane.xlu0 %635
    %v637 = vsub.f32 %v632, %v636
    %v638 = vmul.f32 %v637, 1.442695
    %v639 = vpow.pop %v638
    %v640 = vsel %vm633, %v639, 0.0
    %641 = vadd.xlane.f32.xlu0 %v640
    %v642 = vpop.xlane.xlu0 %641
    %v643 = vrcp.pop %v642
    %v644 = vmul.f32 %v639, %v643
    %v646 = vsel %vm633, %v644, 0
    %648 = vmatprep.subr.mxu0 0.0
    %649 = vmatpush1.msra.mxu0 0.0
    %650 = vmatprep.subr.mxu0 0.0
    %651 = vmatpush1.msra.mxu0 0.0
    %652 = vmatprep.subr.mxu0 0.0
    %653 = vmatpush1.msra.mxu0 0.0
    %654 = vmatprep.subr.mxu0 0.0
    %655 = vmatpush1.msra.mxu0 0.0
    %656 = vmatprep.subr.mxu0 0.0
    %657 = vmatpush1.msra.mxu0 0.0
    %658 = vmatprep.subr.mxu0 0.0
    %659 = vmatpush1.msra.mxu0 0.0
    %660 = vmatprep.subr.mxu0 0.0
    %661 = vmatpush1.msra.mxu0 0.0
    %662 = vmatprep.subr.mxu0 0.0
    %663 = vmatpush1.msra.mxu0 0.0
    %664 = vmatprep.subr.mxu0 0.0
    %665 = vmatpush1.msra.mxu0 0.0
    %666 = vmatprep.subr.mxu0 0.0
    %667 = vmatpush1.msra.mxu0 0.0
    %668 = vmatprep.subr.mxu0 0.0
    %669 = vmatpush1.msra.mxu0 0.0
    %670 = vmatprep.subr.mxu0 0.0
    %671 = vmatpush1.msra.mxu0 0.0
    %672 = vmatprep.subr.mxu0 0.0
    %673 = vmatpush1.msra.mxu0 0.0
    %674 = vmatprep.subr.mxu0 0.0
    %675 = vmatpush1.msra.mxu0 0.0
    %676 = vmatprep.subr.mxu0 0.0
    %677 = vmatpush1.msra.mxu0 0.0
    %678 = vmatprep.subr.mxu0 0.0
    %679 = vmatpush1.msra.mxu0 %v529
    %680 = vmatprep.subr.mxu0 0.0
    %681 = vmatpush2.msra.mxu0 0.0
    %682 = vmatprep.subr.mxu0 0.0
    %683 = vmatpush2.msra.mxu0 0.0
    %684 = vmatprep.subr.mxu0 0.0
    %685 = vmatpush2.msra.mxu0 0.0
    %686 = vmatprep.subr.mxu0 0.0
    %687 = vmatpush2.msra.mxu0 0.0
    %688 = vmatprep.subr.mxu0 0.0
    %689 = vmatpush2.msra.mxu0 0.0
    %690 = vmatprep.subr.mxu0 0.0
    %691 = vmatpush2.msra.mxu0 0.0
    %692 = vmatprep.subr.mxu0 0.0
    %693 = vmatpush2.msra.mxu0 0.0
    %694 = vmatprep.subr.mxu0 0.0
    %695 = vmatpush2.msra.mxu0 0.0
    %696 = vmatprep.subr.mxu0 0.0
    %697 = vmatpush2.msra.mxu0 0.0
    %698 = vmatprep.subr.mxu0 0.0
    %699 = vmatpush2.msra.mxu0 0.0
    %700 = vmatprep.subr.mxu0 0.0
    %701 = vmatpush2.msra.mxu0 0.0
    %702 = vmatprep.subr.mxu0 0.0
    %703 = vmatpush2.msra.mxu0 0.0
    %704 = vmatprep.subr.mxu0 0.0
    %705 = vmatpush2.msra.mxu0 0.0
    %706 = vmatprep.subr.mxu0 0.0
    %707 = vmatpush2.msra.mxu0 0.0
    %708 = vmatprep.subr.mxu0 0.0
    %709 = vmatpush2.msra.mxu0 0.0
    %710 = vmatprep.subr.mxu0 0.0
    %711 = vmatpush2.msra.mxu0 0.0
    %712 = vmatprep.mubr.f32.mxu0 0.0
    %713 = vmatmul.mubr.f32.gmra.mxu0 %v646
    %v714 = vpop.f32.mrf.mxu0
    %v715 = vadd.f32 0.0, %v714
    %v716 = vpop.f32.mrf.mxu0
    %717 = vdwg.mxu0
    %718 = vrot.lane.b32.xlu0 %v527, 96
    %v719 = vpop.permute.xlu0 %718
    %720 = vrot.lane.b32.xlu0 %v527, 32
    %v721 = vpop.permute.xlu0 %720
    %v722 = vsel %vm552, %v719, 0
    %v724 = vsel %vm552, %v721, 0
    %726 = vmatprep.subr.mxu0 0.0
    %727 = vmatpush1.xpose.msra.mxu0 0.0
    %728 = vmatprep.subr.mxu0 0.0
    %729 = vmatpush1.xpose.msra.mxu0 0.0
    %730 = vmatprep.subr.mxu0 0.0
    %731 = vmatpush1.xpose.msra.mxu0 0.0
    %732 = vmatprep.subr.mxu0 0.0
    %733 = vmatpush1.xpose.msra.mxu0 0.0
    %734 = vmatprep.subr.mxu0 0.0
    %735 = vmatpush1.xpose.msra.mxu0 0.0
    %736 = vmatprep.subr.mxu0 0.0
    %737 = vmatpush1.xpose.msra.mxu0 0.0
    %738 = vmatprep.subr.mxu0 0.0
    %739 = vmatpush1.xpose.msra.mxu0 0.0
    %740 = vmatprep.subr.mxu0 0.0
    %741 = vmatpush1.xpose.msra.mxu0 0.0
    %742 = vmatprep.subr.mxu0 0.0
    %743 = vmatpush1.xpose.msra.mxu0 0.0
    %744 = vmatprep.subr.mxu0 0.0
    %745 = vmatpush1.xpose.msra.mxu0 0.0
    %746 = vmatprep.subr.mxu0 0.0
    %747 = vmatpush1.xpose.msra.mxu0 0.0
    %748 = vmatprep.subr.mxu0 0.0
    %749 = vmatpush1.xpose.msra.mxu0 0.0
    %750 = vmatprep.subr.mxu0 0.0
    %751 = vmatpush1.xpose.msra.mxu0 0.0
    %752 = vmatprep.subr.mxu0 0.0
    %753 = vmatpush1.xpose.msra.mxu0 0.0
    %754 = vmatprep.subr.mxu0 0.0
    %755 = vmatpush1.xpose.msra.mxu0 0.0
    %756 = vmatprep.subr.mxu0 0.0
    %757 = vmatpush1.xpose.msra.mxu0 %v724
    %758 = vmatprep.subr.mxu0 0.0
    %759 = vmatpush2.xpose.msra.mxu0 0.0
    %760 = vmatprep.subr.mxu0 0.0
    %761 = vmatpush2.xpose.msra.mxu0 0.0
    %762 = vmatprep.subr.mxu0 0.0
    %763 = vmatpush2.xpose.msra.mxu0 0.0
    %764 = vmatprep.subr.mxu0 0.0
    %765 = vmatpush2.xpose.msra.mxu0 0.0
    %766 = vmatprep.subr.mxu0 0.0
    %767 = vmatpush2.xpose.msra.mxu0 0.0
    %768 = vmatprep.subr.mxu0 0.0
    %769 = vmatpush2.xpose.msra.mxu0 0.0
    %770 = vmatprep.subr.mxu0 0.0
    %771 = vmatpush2.xpose.msra.mxu0 0.0
    %772 = vmatprep.subr.mxu0 0.0
    %773 = vmatpush2.xpose.msra.mxu0 0.0
    %774 = vmatprep.subr.mxu0 0.0
    %775 = vmatpush2.xpose.msra.mxu0 0.0
    %776 = vmatprep.subr.mxu0 0.0
    %777 = vmatpush2.xpose.msra.mxu0 0.0
    %778 = vmatprep.subr.mxu0 0.0
    %779 = vmatpush2.xpose.msra.mxu0 0.0
    %780 = vmatprep.subr.mxu0 0.0
    %781 = vmatpush2.xpose.msra.mxu0 0.0
    %782 = vmatprep.subr.mxu0 0.0
    %783 = vmatpush2.xpose.msra.mxu0 0.0
    %784 = vmatprep.subr.mxu0 0.0
    %785 = vmatpush2.xpose.msra.mxu0 0.0
    %786 = vmatprep.subr.mxu0 0.0
    %787 = vmatpush2.xpose.msra.mxu0 0.0
    %788 = vmatprep.subr.mxu0 0.0
    %789 = vmatpush2.xpose.msra.mxu0 0.0
    %790 = vmatprep.mubr.f32.mxu0 0.0
    %791 = vmatmul.mubr.f32.gmra.mxu0 %v722
    %v792 = vpop.f32.mrf.mxu0
    %v793 = vadd.f32 0.0, %v792
    %v794 = vpop.f32.mrf.mxu0
    %795 = vdwg.mxu0
    %v796 = vmul.f32 %v793, 0.17677669
    %v797 = vadd.f32 %v796, %v631
    %v798 = vsel %vm633, %v797, -inf
    %799 = vmax.xlane.f32.xlu0 %v798
    %v800 = vpop.xlane.xlu0 %799
    %v801 = vsub.f32 %v797, %v800
    %v802 = vmul.f32 %v801, 1.442695
    %v803 = vpow.pop %v802
    %v804 = vsel %vm633, %v803, 0.0
    %805 = vadd.xlane.f32.xlu0 %v804
    %v806 = vpop.xlane.xlu0 %805
    %v807 = vrcp.pop %v806
    %v808 = vmul.f32 %v803, %v807
    %810 = vrot.lane.b32.xlu0 %v529, 96
    %v811 = vpop.permute.xlu0 %810
    %v814 = vsel %vm633, %v808, 0
    %816 = vmatprep.subr.mxu0 0.0
    %817 = vmatpush1.msra.mxu0 0.0
    %818 = vmatprep.subr.mxu0 0.0
    %819 = vmatpush1.msra.mxu0 0.0
    %820 = vmatprep.subr.mxu0 0.0
    %821 = vmatpush1.msra.mxu0 0.0
    %822 = vmatprep.subr.mxu0 0.0
    %823 = vmatpush1.msra.mxu0 0.0
    %824 = vmatprep.subr.mxu0 0.0
    %825 = vmatpush1.msra.mxu0 0.0
    %826 = vmatprep.subr.mxu0 0.0
    %827 = vmatpush1.msra.mxu0 0.0
    %828 = vmatprep.subr.mxu0 0.0
    %829 = vmatpush1.msra.mxu0 0.0
    %830 = vmatprep.subr.mxu0 0.0
    %831 = vmatpush1.msra.mxu0 0.0
    %832 = vmatprep.subr.mxu0 0.0
    %833 = vmatpush1.msra.mxu0 0.0
    %834 = vmatprep.subr.mxu0 0.0
    %835 = vmatpush1.msra.mxu0 0.0
    %836 = vmatprep.subr.mxu0 0.0
    %837 = vmatpush1.msra.mxu0 0.0
    %838 = vmatprep.subr.mxu0 0.0
    %839 = vmatpush1.msra.mxu0 0.0
    %840 = vmatprep.subr.mxu0 0.0
    %841 = vmatpush1.msra.mxu0 0.0
    %842 = vmatprep.subr.mxu0 0.0
    %843 = vmatpush1.msra.mxu0 0.0
    %844 = vmatprep.subr.mxu0 0.0
    %845 = vmatpush1.msra.mxu0 0.0
    %846 = vmatprep.subr.mxu0 0.0
    %847 = vmatpush1.msra.mxu0 %v811
    %848 = vmatprep.subr.mxu0 0.0
    %849 = vmatpush2.msra.mxu0 0.0
    %850 = vmatprep.subr.mxu0 0.0
    %851 = vmatpush2.msra.mxu0 0.0
    %852 = vmatprep.subr.mxu0 0.0
    %853 = vmatpush2.msra.mxu0 0.0
    %854 = vmatprep.subr.mxu0 0.0
    %855 = vmatpush2.msra.mxu0 0.0
    %856 = vmatprep.subr.mxu0 0.0
    %857 = vmatpush2.msra.mxu0 0.0
    %858 = vmatprep.subr.mxu0 0.0
    %859 = vmatpush2.msra.mxu0 0.0
    %860 = vmatprep.subr.mxu0 0.0
    %861 = vmatpush2.msra.mxu0 0.0
    %862 = vmatprep.subr.mxu0 0.0
    %863 = vmatpush2.msra.mxu0 0.0
    %864 = vmatprep.subr.mxu0 0.0
    %865 = vmatpush2.msra.mxu0 0.0
    %866 = vmatprep.subr.mxu0 0.0
    %867 = vmatpush2.msra.mxu0 0.0
    %868 = vmatprep.subr.mxu0 0.0
    %869 = vmatpush2.msra.mxu0 0.0
    %870 = vmatprep.subr.mxu0 0.0
    %871 = vmatpush2.msra.mxu0 0.0
    %872 = vmatprep.subr.mxu0 0.0
    %873 = vmatpush2.msra.mxu0 0.0
    %874 = vmatprep.subr.mxu0 0.0
    %875 = vmatpush2.msra.mxu0 0.0
    %876 = vmatprep.subr.mxu0 0.0
    %877 = vmatpush2.msra.mxu0 0.0
    %878 = vmatprep.subr.mxu0 0.0
    %879 = vmatpush2.msra.mxu0 0.0
    %880 = vmatprep.mubr.f32.mxu0 0.0
    %881 = vmatmul.mubr.f32.gmra.mxu0 %v814
    %v882 = vpop.f32.mrf.mxu0
    %v883 = vadd.f32 0.0, %v882
    %v884 = vpop.f32.mrf.mxu0
    %885 = vdwg.mxu0
    %887 = vrot.lane.b32.xlu0 %v883, 32
    %v888 = vpop.permute.xlu0 %887
    %v890 = vsel %vm552, %v715, %v888
    %892 = vrot.lane.b32.xlu0 %v533, 64
    %v893 = vpop.permute.xlu0 %892
    %v894 = vsel %vm552, %v533, 0
    %v896 = vsel %vm552, %v893, 0
    %898 = vmatprep.subr.mxu0 0.0
    %899 = vmatpush1.xpose.msra.mxu0 0.0
    %900 = vmatprep.subr.mxu0 0.0
    %901 = vmatpush1.xpose.msra.mxu0 0.0
    %902 = vmatprep.subr.mxu0 0.0
    %903 = vmatpush1.xpose.msra.mxu0 0.0
    %904 = vmatprep.subr.mxu0 0.0
    %905 = vmatpush1.xpose.msra.mxu0 0.0
    %906 = vmatprep.subr.mxu0 0.0
    %907 = vmatpush1.xpose.msra.mxu0 0.0
    %908 = vmatprep.subr.mxu0 0.0
    %909 = vmatpush1.xpose.msra.mxu0 0.0
    %910 = vmatprep.subr.mxu0 0.0
    %911 = vmatpush1.xpose.msra.mxu0 0.0
    %912 = vmatprep.subr.mxu0 0.0
    %913 = vmatpush1.xpose.msra.mxu0 0.0
    %914 = vmatprep.subr.mxu0 0.0
    %915 = vmatpush1.xpose.msra.mxu0 0.0
    %916 = vmatprep.subr.mxu0 0.0
    %917 = vmatpush1.xpose.msra.mxu0 0.0
    %918 = vmatprep.subr.mxu0 0.0
    %919 = vmatpush1.xpose.msra.mxu0 0.0
    %920 = vmatprep.subr.mxu0 0.0
    %921 = vmatpush1.xpose.msra.mxu0 0.0
    %922 = vmatprep.subr.mxu0 0.0
    %923 = vmatpush1.xpose.msra.mxu0 0.0
    %924 = vmatprep.subr.mxu0 0.0
    %925 = vmatpush1.xpose.msra.mxu0 0.0
    %926 = vmatprep.subr.mxu0 0.0
    %927 = vmatpush1.xpose.msra.mxu0 0.0
    %928 = vmatprep.subr.mxu0 0.0
    %929 = vmatpush1.xpose.msra.mxu0 %v896
    %930 = vmatprep.subr.mxu0 0.0
    %931 = vmatpush2.xpose.msra.mxu0 0.0
    %932 = vmatprep.subr.mxu0 0.0
    %933 = vmatpush2.xpose.msra.mxu0 0.0
    %934 = vmatprep.subr.mxu0 0.0
    %935 = vmatpush2.xpose.msra.mxu0 0.0
    %936 = vmatprep.subr.mxu0 0.0
    %937 = vmatpush2.xpose.msra.mxu0 0.0
    %938 = vmatprep.subr.mxu0 0.0
    %939 = vmatpush2.xpose.msra.mxu0 0.0
    %940 = vmatprep.subr.mxu0 0.0
    %941 = vmatpush2.xpose.msra.mxu0 0.0
    %942 = vmatprep.subr.mxu0 0.0
    %943 = vmatpush2.xpose.msra.mxu0 0.0
    %944 = vmatprep.subr.mxu0 0.0
    %945 = vmatpush2.xpose.msra.mxu0 0.0
    %946 = vmatprep.subr.mxu0 0.0
    %947 = vmatpush2.xpose.msra.mxu0 0.0
    %948 = vmatprep.subr.mxu0 0.0
    %949 = vmatpush2.xpose.msra.mxu0 0.0
    %950 = vmatprep.subr.mxu0 0.0
    %951 = vmatpush2.xpose.msra.mxu0 0.0
    %952 = vmatprep.subr.mxu0 0.0
    %953 = vmatpush2.xpose.msra.mxu0 0.0
    %954 = vmatprep.subr.mxu0 0.0
    %955 = vmatpush2.xpose.msra.mxu0 0.0
    %956 = vmatprep.subr.mxu0 0.0
    %957 = vmatpush2.xpose.msra.mxu0 0.0
    %958 = vmatprep.subr.mxu0 0.0
    %959 = vmatpush2.xpose.msra.mxu0 0.0
    %960 = vmatprep.subr.mxu0 0.0
    %961 = vmatpush2.xpose.msra.mxu0 0.0
    %962 = vmatprep.mubr.f32.mxu0 0.0
    %963 = vmatmul.mubr.f32.gmra.mxu0 %v894
    %v964 = vpop.f32.mrf.mxu0
    %v965 = vadd.f32 0.0, %v964
    %v966 = vpop.f32.mrf.mxu0
    %967 = vdwg.mxu0
    %v968 = vmul.f32 %v965, 0.17677669
    %v969 = vlaneseq
    %v970 = vshrl.u32 %v969, 7
    %v971 = vsub.s32 1, %v970
    %v972 = vrot.slane %v383, %v971
    %v973 = vadd.f32 %v968, %v972
    %v974 = vsel %vm633, %v973, -inf
    %975 = vmax.xlane.f32.xlu0 %v974
    %v976 = vpop.xlane.xlu0 %975
    %v977 = vsub.f32 %v973, %v976
    %v978 = vmul.f32 %v977, 1.442695
    %v979 = vpow.pop %v978
    %v980 = vsel %vm633, %v979, 0.0
    %981 = vadd.xlane.f32.xlu0 %v980
    %v982 = vpop.xlane.xlu0 %981
    %v983 = vrcp.pop %v982
    %v984 = vmul.f32 %v979, %v983
    %v986 = vsel %vm633, %v984, 0
    %988 = vmatprep.subr.mxu0 0.0
    %989 = vmatpush1.msra.mxu0 0.0
    %990 = vmatprep.subr.mxu0 0.0
    %991 = vmatpush1.msra.mxu0 0.0
    %992 = vmatprep.subr.mxu0 0.0
    %993 = vmatpush1.msra.mxu0 0.0
    %994 = vmatprep.subr.mxu0 0.0
    %995 = vmatpush1.msra.mxu0 0.0
    %996 = vmatprep.subr.mxu0 0.0
    %997 = vmatpush1.msra.mxu0 0.0
    %998 = vmatprep.subr.mxu0 0.0
    %999 = vmatpush1.msra.mxu0 0.0
    %1000 = vmatprep.subr.mxu0 0.0
    %1001 = vmatpush1.msra.mxu0 0.0
    %1002 = vmatprep.subr.mxu0 0.0
    %1003 = vmatpush1.msra.mxu0 0.0
    %1004 = vmatprep.subr.mxu0 0.0
    %1005 = vmatpush1.msra.mxu0 0.0
    %1006 = vmatprep.subr.mxu0 0.0
    %1007 = vmatpush1.msra.mxu0 0.0
    %1008 = vmatprep.subr.mxu0 0.0
    %1009 = vmatpush1.msra.mxu0 0.0
    %1010 = vmatprep.subr.mxu0 0.0
    %1011 = vmatpush1.msra.mxu0 0.0
    %1012 = vmatprep.subr.mxu0 0.0
    %1013 = vmatpush1.msra.mxu0 0.0
    %1014 = vmatprep.subr.mxu0 0.0
    %1015 = vmatpush1.msra.mxu0 0.0
    %1016 = vmatprep.subr.mxu0 0.0
    %1017 = vmatpush1.msra.mxu0 0.0
    %1018 = vmatprep.subr.mxu0 0.0
    %1019 = vmatpush1.msra.mxu0 %v535
    %1020 = vmatprep.subr.mxu0 0.0
    %1021 = vmatpush2.msra.mxu0 0.0
    %1022 = vmatprep.subr.mxu0 0.0
    %1023 = vmatpush2.msra.mxu0 0.0
    %1024 = vmatprep.subr.mxu0 0.0
    %1025 = vmatpush2.msra.mxu0 0.0
    %1026 = vmatprep.subr.mxu0 0.0
    %1027 = vmatpush2.msra.mxu0 0.0
    %1028 = vmatprep.subr.mxu0 0.0
    %1029 = vmatpush2.msra.mxu0 0.0
    %1030 = vmatprep.subr.mxu0 0.0
    %1031 = vmatpush2.msra.mxu0 0.0
    %1032 = vmatprep.subr.mxu0 0.0
    %1033 = vmatpush2.msra.mxu0 0.0
    %1034 = vmatprep.subr.mxu0 0.0
    %1035 = vmatpush2.msra.mxu0 0.0
    %1036 = vmatprep.subr.mxu0 0.0
    %1037 = vmatpush2.msra.mxu0 0.0
    %1038 = vmatprep.subr.mxu0 0.0
    %1039 = vmatpush2.msra.mxu0 0.0
    %1040 = vmatprep.subr.mxu0 0.0
    %1041 = vmatpush2.msra.mxu0 0.0
    %1042 = vmatprep.subr.mxu0 0.0
    %1043 = vmatpush2.msra.mxu0 0.0
    %1044 = vmatprep.subr.mxu0 0.0
    %1045 = vmatpush2.msra.mxu0 0.0
    %1046 = vmatprep.subr.mxu0 0.0
    %1047 = vmatpush2.msra.mxu0 0.0
    %1048 = vmatprep.subr.mxu0 0.0
    %1049 = vmatpush2.msra.mxu0 0.0
    %1050 = vmatprep.subr.mxu0 0.0
    %1051 = vmatpush2.msra.mxu0 0.0
    %1052 = vmatprep.mubr.f32.mxu0 0.0
    %1053 = vmatmul.mubr.f32.gmra.mxu0 %v986
    %v1054 = vpop.f32.mrf.mxu0
    %v1055 = vadd.f32 0.0, %v1054
    %v1056 = vpop.f32.mrf.mxu0
    %1057 = vdwg.mxu0
    %1058 = vrot.lane.b32.xlu0 %v533, 96
    %v1059 = vpop.permute.xlu0 %1058
    %1060 = vrot.lane.b32.xlu0 %v533, 32
    %v1061 = vpop.permute.xlu0 %1060
    %v1062 = vsel %vm552, %v1059, 0
    %v1064 = vsel %vm552, %v1061, 0
    %1066 = vmatprep.subr.mxu0 0.0
    %1067 = vmatpush1.xpose.msra.mxu0 0.0
    %1068 = vmatprep.subr.mxu0 0.0
    %1069 = vmatpush1.xpose.msra.mxu0 0.0
    %1070 = vmatprep.subr.mxu0 0.0
    %1071 = vmatpush1.xpose.msra.mxu0 0.0
    %1072 = vmatprep.subr.mxu0 0.0
    %1073 = vmatpush1.xpose.msra.mxu0 0.0
    %1074 = vmatprep.subr.mxu0 0.0
    %1075 = vmatpush1.xpose.msra.mxu0 0.0
    %1076 = vmatprep.subr.mxu0 0.0
    %1077 = vmatpush1.xpose.msra.mxu0 0.0
    %1078 = vmatprep.subr.mxu0 0.0
    %1079 = vmatpush1.xpose.msra.mxu0 0.0
    %1080 = vmatprep.subr.mxu0 0.0
    %1081 = vmatpush1.xpose.msra.mxu0 0.0
    %1082 = vmatprep.subr.mxu0 0.0
    %1083 = vmatpush1.xpose.msra.mxu0 0.0
    %1084 = vmatprep.subr.mxu0 0.0
    %1085 = vmatpush1.xpose.msra.mxu0 0.0
    %1086 = vmatprep.subr.mxu0 0.0
    %1087 = vmatpush1.xpose.msra.mxu0 0.0
    %1088 = vmatprep.subr.mxu0 0.0
    %1089 = vmatpush1.xpose.msra.mxu0 0.0
    %1090 = vmatprep.subr.mxu0 0.0
    %1091 = vmatpush1.xpose.msra.mxu0 0.0
    %1092 = vmatprep.subr.mxu0 0.0
    %1093 = vmatpush1.xpose.msra.mxu0 0.0
    %1094 = vmatprep.subr.mxu0 0.0
    %1095 = vmatpush1.xpose.msra.mxu0 0.0
    %1096 = vmatprep.subr.mxu0 0.0
    %1097 = vmatpush1.xpose.msra.mxu0 %v1064
    %1098 = vmatprep.subr.mxu0 0.0
    %1099 = vmatpush2.xpose.msra.mxu0 0.0
    %1100 = vmatprep.subr.mxu0 0.0
    %1101 = vmatpush2.xpose.msra.mxu0 0.0
    %1102 = vmatprep.subr.mxu0 0.0
    %1103 = vmatpush2.xpose.msra.mxu0 0.0
    %1104 = vmatprep.subr.mxu0 0.0
    %1105 = vmatpush2.xpose.msra.mxu0 0.0
    %1106 = vmatprep.subr.mxu0 0.0
    %1107 = vmatpush2.xpose.msra.mxu0 0.0
    %1108 = vmatprep.subr.mxu0 0.0
    %1109 = vmatpush2.xpose.msra.mxu0 0.0
    %1110 = vmatprep.subr.mxu0 0.0
    %1111 = vmatpush2.xpose.msra.mxu0 0.0
    %1112 = vmatprep.subr.mxu0 0.0
    %1113 = vmatpush2.xpose.msra.mxu0 0.0
    %1114 = vmatprep.subr.mxu0 0.0
    %1115 = vmatpush2.xpose.msra.mxu0 0.0
    %1116 = vmatprep.subr.mxu0 0.0
    %1117 = vmatpush2.xpose.msra.mxu0 0.0
    %1118 = vmatprep.subr.mxu0 0.0
    %1119 = vmatpush2.xpose.msra.mxu0 0.0
    %1120 = vmatprep.subr.mxu0 0.0
    %1121 = vmatpush2.xpose.msra.mxu0 0.0
    %1122 = vmatprep.subr.mxu0 0.0
    %1123 = vmatpush2.xpose.msra.mxu0 0.0
    %1124 = vmatprep.subr.mxu0 0.0
    %1125 = vmatpush2.xpose.msra.mxu0 0.0
    %1126 = vmatprep.subr.mxu0 0.0
    %1127 = vmatpush2.xpose.msra.mxu0 0.0
    %1128 = vmatprep.subr.mxu0 0.0
    %1129 = vmatpush2.xpose.msra.mxu0 0.0
    %1130 = vmatprep.mubr.f32.mxu0 0.0
    %1131 = vmatmul.mubr.f32.gmra.mxu0 %v1062
    %v1132 = vpop.f32.mrf.mxu0
    %v1133 = vadd.f32 0.0, %v1132
    %v1134 = vpop.f32.mrf.mxu0
    %1135 = vdwg.mxu0
    %v1136 = vmul.f32 %v1133, 0.17677669
    %v1137 = vadd.f32 %v1136, %v972
    %v1138 = vsel %vm633, %v1137, -inf
    %1139 = vmax.xlane.f32.xlu0 %v1138
    %v1140 = vpop.xlane.xlu0 %1139
    %v1141 = vsub.f32 %v1137, %v1140
    %v1142 = vmul.f32 %v1141, 1.442695
    %v1143 = vpow.pop %v1142
    %v1144 = vsel %vm633, %v1143, 0.0
    %1145 = vadd.xlane.f32.xlu0 %v1144
    %v1146 = vpop.xlane.xlu0 %1145
    %v1147 = vrcp.pop %v1146
    %v1148 = vmul.f32 %v1143, %v1147
    %1150 = vrot.lane.b32.xlu0 %v535, 96
    %v1151 = vpop.permute.xlu0 %1150
    %v1154 = vsel %vm633, %v1148, 0
    %1156 = vmatprep.subr.mxu0 0.0
    %1157 = vmatpush1.msra.mxu0 0.0
    %1158 = vmatprep.subr.mxu0 0.0
    %1159 = vmatpush1.msra.mxu0 0.0
    %1160 = vmatprep.subr.mxu0 0.0
    %1161 = vmatpush1.msra.mxu0 0.0
    %1162 = vmatprep.subr.mxu0 0.0
    %1163 = vmatpush1.msra.mxu0 0.0
    %1164 = vmatprep.subr.mxu0 0.0
    %1165 = vmatpush1.msra.mxu0 0.0
    %1166 = vmatprep.subr.mxu0 0.0
    %1167 = vmatpush1.msra.mxu0 0.0
    %1168 = vmatprep.subr.mxu0 0.0
    %1169 = vmatpush1.msra.mxu0 0.0
    %1170 = vmatprep.subr.mxu0 0.0
    %1171 = vmatpush1.msra.mxu0 0.0
    %1172 = vmatprep.subr.mxu0 0.0
    %1173 = vmatpush1.msra.mxu0 0.0
    %1174 = vmatprep.subr.mxu0 0.0
    %1175 = vmatpush1.msra.mxu0 0.0
    %1176 = vmatprep.subr.mxu0 0.0
    %1177 = vmatpush1.msra.mxu0 0.0
    %1178 = vmatprep.subr.mxu0 0.0
    %1179 = vmatpush1.msra.mxu0 0.0
    %1180 = vmatprep.subr.mxu0 0.0
    %1181 = vmatpush1.msra.mxu0 0.0
    %1182 = vmatprep.subr.mxu0 0.0
    %1183 = vmatpush1.msra.mxu0 0.0
    %1184 = vmatprep.subr.mxu0 0.0
    %1185 = vmatpush1.msra.mxu0 0.0
    %1186 = vmatprep.subr.mxu0 0.0
    %1187 = vmatpush1.msra.mxu0 %v1151
    %1188 = vmatprep.subr.mxu0 0.0
    %1189 = vmatpush2.msra.mxu0 0.0
    %1190 = vmatprep.subr.mxu0 0.0
    %1191 = vmatpush2.msra.mxu0 0.0
    %1192 = vmatprep.subr.mxu0 0.0
    %1193 = vmatpush2.msra.mxu0 0.0
    %1194 = vmatprep.subr.mxu0 0.0
    %1195 = vmatpush2.msra.mxu0 0.0
    %1196 = vmatprep.subr.mxu0 0.0
    %1197 = vmatpush2.msra.mxu0 0.0
    %1198 = vmatprep.subr.mxu0 0.0
    %1199 = vmatpush2.msra.mxu0 0.0
    %1200 = vmatprep.subr.mxu0 0.0
    %1201 = vmatpush2.msra.mxu0 0.0
    %1202 = vmatprep.subr.mxu0 0.0
    %1203 = vmatpush2.msra.mxu0 0.0
    %1204 = vmatprep.subr.mxu0 0.0
    %1205 = vmatpush2.msra.mxu0 0.0
    %1206 = vmatprep.subr.mxu0 0.0
    %1207 = vmatpush2.msra.mxu0 0.0
    %1208 = vmatprep.subr.mxu0 0.0
    %1209 = vmatpush2.msra.mxu0 0.0
    %1210 = vmatprep.subr.mxu0 0.0
    %1211 = vmatpush2.msra.mxu0 0.0
    %1212 = vmatprep.subr.mxu0 0.0
    %1213 = vmatpush2.msra.mxu0 0.0
    %1214 = vmatprep.subr.mxu0 0.0
    %1215 = vmatpush2.msra.mxu0 0.0
    %1216 = vmatprep.subr.mxu0 0.0
    %1217 = vmatpush2.msra.mxu0 0.0
    %1218 = vmatprep.subr.mxu0 0.0
    %1219 = vmatpush2.msra.mxu0 0.0
    %1220 = vmatprep.mubr.f32.mxu0 0.0
    %1221 = vmatmul.mubr.f32.gmra.mxu0 %v1154
    %v1222 = vpop.f32.mrf.mxu0
    %v1223 = vadd.f32 0.0, %v1222
    %v1224 = vpop.f32.mrf.mxu0
    %1225 = vdwg.mxu0
    %1227 = vrot.lane.b32.xlu0 %v1223, 32
    %v1228 = vpop.permute.xlu0 %1227
    %v1230 = vsel %vm552, %v1055, %v1228
    %1232 = vrot.lane.b32.xlu0 %v539, 64
    %v1233 = vpop.permute.xlu0 %1232
    %v1234 = vsel %vm552, %v539, 0
    %v1236 = vsel %vm552, %v1233, 0
    %1238 = vmatprep.subr.mxu0 0.0
    %1239 = vmatpush1.xpose.msra.mxu0 0.0
    %1240 = vmatprep.subr.mxu0 0.0
    %1241 = vmatpush1.xpose.msra.mxu0 0.0
    %1242 = vmatprep.subr.mxu0 0.0
    %1243 = vmatpush1.xpose.msra.mxu0 0.0
    %1244 = vmatprep.subr.mxu0 0.0
    %1245 = vmatpush1.xpose.msra.mxu0 0.0
    %1246 = vmatprep.subr.mxu0 0.0
    %1247 = vmatpush1.xpose.msra.mxu0 0.0
    %1248 = vmatprep.subr.mxu0 0.0
    %1249 = vmatpush1.xpose.msra.mxu0 0.0
    %1250 = vmatprep.subr.mxu0 0.0
    %1251 = vmatpush1.xpose.msra.mxu0 0.0
    %1252 = vmatprep.subr.mxu0 0.0
    %1253 = vmatpush1.xpose.msra.mxu0 0.0
    %1254 = vmatprep.subr.mxu0 0.0
    %1255 = vmatpush1.xpose.msra.mxu0 0.0
    %1256 = vmatprep.subr.mxu0 0.0
    %1257 = vmatpush1.xpose.msra.mxu0 0.0
    %1258 = vmatprep.subr.mxu0 0.0
    %1259 = vmatpush1.xpose.msra.mxu0 0.0
    %1260 = vmatprep.subr.mxu0 0.0
    %1261 = vmatpush1.xpose.msra.mxu0 0.0
    %1262 = vmatprep.subr.mxu0 0.0
    %1263 = vmatpush1.xpose.msra.mxu0 0.0
    %1264 = vmatprep.subr.mxu0 0.0
    %1265 = vmatpush1.xpose.msra.mxu0 0.0
    %1266 = vmatprep.subr.mxu0 0.0
    %1267 = vmatpush1.xpose.msra.mxu0 0.0
    %1268 = vmatprep.subr.mxu0 0.0
    %1269 = vmatpush1.xpose.msra.mxu0 %v1236
    %1270 = vmatprep.subr.mxu0 0.0
    %1271 = vmatpush2.xpose.msra.mxu0 0.0
    %1272 = vmatprep.subr.mxu0 0.0
    %1273 = vmatpush2.xpose.msra.mxu0 0.0
    %1274 = vmatprep.subr.mxu0 0.0
    %1275 = vmatpush2.xpose.msra.mxu0 0.0
    %1276 = vmatprep.subr.mxu0 0.0
    %1277 = vmatpush2.xpose.msra.mxu0 0.0
    %1278 = vmatprep.subr.mxu0 0.0
    %1279 = vmatpush2.xpose.msra.mxu0 0.0
    %1280 = vmatprep.subr.mxu0 0.0
    %1281 = vmatpush2.xpose.msra.mxu0 0.0
    %1282 = vmatprep.subr.mxu0 0.0
    %1283 = vmatpush2.xpose.msra.mxu0 0.0
    %1284 = vmatprep.subr.mxu0 0.0
    %1285 = vmatpush2.xpose.msra.mxu0 0.0
    %1286 = vmatprep.subr.mxu0 0.0
    %1287 = vmatpush2.xpose.msra.mxu0 0.0
    %1288 = vmatprep.subr.mxu0 0.0
    %1289 = vmatpush2.xpose.msra.mxu0 0.0
    %1290 = vmatprep.subr.mxu0 0.0
    %1291 = vmatpush2.xpose.msra.mxu0 0.0
    %1292 = vmatprep.subr.mxu0 0.0
    %1293 = vmatpush2.xpose.msra.mxu0 0.0
    %1294 = vmatprep.subr.mxu0 0.0
    %1295 = vmatpush2.xpose.msra.mxu0 0.0
    %1296 = vmatprep.subr.mxu0 0.0
    %1297 = vmatpush2.xpose.msra.mxu0 0.0
    %1298 = vmatprep.subr.mxu0 0.0
    %1299 = vmatpush2.xpose.msra.mxu0 0.0
    %1300 = vmatprep.subr.mxu0 0.0
    %1301 = vmatpush2.xpose.msra.mxu0 0.0
    %1302 = vmatprep.mubr.f32.mxu0 0.0
    %1303 = vmatmul.mubr.f32.gmra.mxu0 %v1234
    %v1304 = vpop.f32.mrf.mxu0
    %v1305 = vadd.f32 0.0, %v1304
    %v1306 = vpop.f32.mrf.mxu0
    %1307 = vdwg.mxu0
    %v1308 = vmul.f32 %v1305, 0.17677669
    %v1309 = vlaneseq
    %v1310 = vshrl.u32 %v1309, 7
    %v1311 = vsub.s32 2, %v1310
    %v1312 = vrot.slane %v383, %v1311
    %v1313 = vadd.f32 %v1308, %v1312
    %v1314 = vsel %vm633, %v1313, -inf
    %1315 = vmax.xlane.f32.xlu0 %v1314
    %v1316 = vpop.xlane.xlu0 %1315
    %v1317 = vsub.f32 %v1313, %v1316
    %v1318 = vmul.f32 %v1317, 1.442695
    %v1319 = vpow.pop %v1318
    %v1320 = vsel %vm633, %v1319, 0.0
    %1321 = vadd.xlane.f32.xlu0 %v1320
    %v1322 = vpop.xlane.xlu0 %1321
    %v1323 = vrcp.pop %v1322
    %v1324 = vmul.f32 %v1319, %v1323
    %v1326 = vsel %vm633, %v1324, 0
    %1328 = vmatprep.subr.mxu0 0.0
    %1329 = vmatpush1.msra.mxu0 0.0
    %1330 = vmatprep.subr.mxu0 0.0
    %1331 = vmatpush1.msra.mxu0 0.0
    %1332 = vmatprep.subr.mxu0 0.0
    %1333 = vmatpush1.msra.mxu0 0.0
    %1334 = vmatprep.subr.mxu0 0.0
    %1335 = vmatpush1.msra.mxu0 0.0
    %1336 = vmatprep.subr.mxu0 0.0
    %1337 = vmatpush1.msra.mxu0 0.0
    %1338 = vmatprep.subr.mxu0 0.0
    %1339 = vmatpush1.msra.mxu0 0.0
    %1340 = vmatprep.subr.mxu0 0.0
    %1341 = vmatpush1.msra.mxu0 0.0
    %1342 = vmatprep.subr.mxu0 0.0
    %1343 = vmatpush1.msra.mxu0 0.0
    %1344 = vmatprep.subr.mxu0 0.0
    %1345 = vmatpush1.msra.mxu0 0.0
    %1346 = vmatprep.subr.mxu0 0.0
    %1347 = vmatpush1.msra.mxu0 0.0
    %1348 = vmatprep.subr.mxu0 0.0
    %1349 = vmatpush1.msra.mxu0 0.0
    %1350 = vmatprep.subr.mxu0 0.0
    %1351 = vmatpush1.msra.mxu0 0.0
    %1352 = vmatprep.subr.mxu0 0.0
    %1353 = vmatpush1.msra.mxu0 0.0
    %1354 = vmatprep.subr.mxu0 0.0
    %1355 = vmatpush1.msra.mxu0 0.0
    %1356 = vmatprep.subr.mxu0 0.0
    %1357 = vmatpush1.msra.mxu0 0.0
    %1358 = vmatprep.subr.mxu0 0.0
    %1359 = vmatpush1.msra.mxu0 %v541
    %1360 = vmatprep.subr.mxu0 0.0
    %1361 = vmatpush2.msra.mxu0 0.0
    %1362 = vmatprep.subr.mxu0 0.0
    %1363 = vmatpush2.msra.mxu0 0.0
    %1364 = vmatprep.subr.mxu0 0.0
    %1365 = vmatpush2.msra.mxu0 0.0
    %1366 = vmatprep.subr.mxu0 0.0
    %1367 = vmatpush2.msra.mxu0 0.0
    %1368 = vmatprep.subr.mxu0 0.0
    %1369 = vmatpush2.msra.mxu0 0.0
    %1370 = vmatprep.subr.mxu0 0.0
    %1371 = vmatpush2.msra.mxu0 0.0
    %1372 = vmatprep.subr.mxu0 0.0
    %1373 = vmatpush2.msra.mxu0 0.0
    %1374 = vmatprep.subr.mxu0 0.0
    %1375 = vmatpush2.msra.mxu0 0.0
    %1376 = vmatprep.subr.mxu0 0.0
    %1377 = vmatpush2.msra.mxu0 0.0
    %1378 = vmatprep.subr.mxu0 0.0
    %1379 = vmatpush2.msra.mxu0 0.0
    %1380 = vmatprep.subr.mxu0 0.0
    %1381 = vmatpush2.msra.mxu0 0.0
    %1382 = vmatprep.subr.mxu0 0.0
    %1383 = vmatpush2.msra.mxu0 0.0
    %1384 = vmatprep.subr.mxu0 0.0
    %1385 = vmatpush2.msra.mxu0 0.0
    %1386 = vmatprep.subr.mxu0 0.0
    %1387 = vmatpush2.msra.mxu0 0.0
    %1388 = vmatprep.subr.mxu0 0.0
    %1389 = vmatpush2.msra.mxu0 0.0
    %1390 = vmatprep.subr.mxu0 0.0
    %1391 = vmatpush2.msra.mxu0 0.0
    %1392 = vmatprep.mubr.f32.mxu0 0.0
    %1393 = vmatmul.mubr.f32.gmra.mxu0 %v1326
    %v1394 = vpop.f32.mrf.mxu0
    %v1395 = vadd.f32 0.0, %v1394
    %v1396 = vpop.f32.mrf.mxu0
    %1397 = vdwg.mxu0
    %1398 = vrot.lane.b32.xlu0 %v539, 96
    %v1399 = vpop.permute.xlu0 %1398
    %1400 = vrot.lane.b32.xlu0 %v539, 32
    %v1401 = vpop.permute.xlu0 %1400
    %v1402 = vsel %vm552, %v1399, 0
    %v1404 = vsel %vm552, %v1401, 0
    %1406 = vmatprep.subr.mxu0 0.0
    %1407 = vmatpush1.xpose.msra.mxu0 0.0
    %1408 = vmatprep.subr.mxu0 0.0
    %1409 = vmatpush1.xpose.msra.mxu0 0.0
    %1410 = vmatprep.subr.mxu0 0.0
    %1411 = vmatpush1.xpose.msra.mxu0 0.0
    %1412 = vmatprep.subr.mxu0 0.0
    %1413 = vmatpush1.xpose.msra.mxu0 0.0
    %1414 = vmatprep.subr.mxu0 0.0
    %1415 = vmatpush1.xpose.msra.mxu0 0.0
    %1416 = vmatprep.subr.mxu0 0.0
    %1417 = vmatpush1.xpose.msra.mxu0 0.0
    %1418 = vmatprep.subr.mxu0 0.0
    %1419 = vmatpush1.xpose.msra.mxu0 0.0
    %1420 = vmatprep.subr.mxu0 0.0
    %1421 = vmatpush1.xpose.msra.mxu0 0.0
    %1422 = vmatprep.subr.mxu0 0.0
    %1423 = vmatpush1.xpose.msra.mxu0 0.0
    %1424 = vmatprep.subr.mxu0 0.0
    %1425 = vmatpush1.xpose.msra.mxu0 0.0
    %1426 = vmatprep.subr.mxu0 0.0
    %1427 = vmatpush1.xpose.msra.mxu0 0.0
    %1428 = vmatprep.subr.mxu0 0.0
    %1429 = vmatpush1.xpose.msra.mxu0 0.0
    %1430 = vmatprep.subr.mxu0 0.0
    %1431 = vmatpush1.xpose.msra.mxu0 0.0
    %1432 = vmatprep.subr.mxu0 0.0
    %1433 = vmatpush1.xpose.msra.mxu0 0.0
    %1434 = vmatprep.subr.mxu0 0.0
    %1435 = vmatpush1.xpose.msra.mxu0 0.0
    %1436 = vmatprep.subr.mxu0 0.0
    %1437 = vmatpush1.xpose.msra.mxu0 %v1404
    %1438 = vmatprep.subr.mxu0 0.0
    %1439 = vmatpush2.xpose.msra.mxu0 0.0
    %1440 = vmatprep.subr.mxu0 0.0
    %1441 = vmatpush2.xpose.msra.mxu0 0.0
    %1442 = vmatprep.subr.mxu0 0.0
    %1443 = vmatpush2.xpose.msra.mxu0 0.0
    %1444 = vmatprep.subr.mxu0 0.0
    %1445 = vmatpush2.xpose.msra.mxu0 0.0
    %1446 = vmatprep.subr.mxu0 0.0
    %1447 = vmatpush2.xpose.msra.mxu0 0.0
    %1448 = vmatprep.subr.mxu0 0.0
    %1449 = vmatpush2.xpose.msra.mxu0 0.0
    %1450 = vmatprep.subr.mxu0 0.0
    %1451 = vmatpush2.xpose.msra.mxu0 0.0
    %1452 = vmatprep.subr.mxu0 0.0
    %1453 = vmatpush2.xpose.msra.mxu0 0.0
    %1454 = vmatprep.subr.mxu0 0.0
    %1455 = vmatpush2.xpose.msra.mxu0 0.0
    %1456 = vmatprep.subr.mxu0 0.0
    %1457 = vmatpush2.xpose.msra.mxu0 0.0
    %1458 = vmatprep.subr.mxu0 0.0
    %1459 = vmatpush2.xpose.msra.mxu0 0.0
    %1460 = vmatprep.subr.mxu0 0.0
    %1461 = vmatpush2.xpose.msra.mxu0 0.0
    %1462 = vmatprep.subr.mxu0 0.0
    %1463 = vmatpush2.xpose.msra.mxu0 0.0
    %1464 = vmatprep.subr.mxu0 0.0
    %1465 = vmatpush2.xpose.msra.mxu0 0.0
    %1466 = vmatprep.subr.mxu0 0.0
    %1467 = vmatpush2.xpose.msra.mxu0 0.0
    %1468 = vmatprep.subr.mxu0 0.0
    %1469 = vmatpush2.xpose.msra.mxu0 0.0
    %1470 = vmatprep.mubr.f32.mxu0 0.0
    %1471 = vmatmul.mubr.f32.gmra.mxu0 %v1402
    %v1472 = vpop.f32.mrf.mxu0
    %v1473 = vadd.f32 0.0, %v1472
    %v1474 = vpop.f32.mrf.mxu0
    %1475 = vdwg.mxu0
    %v1476 = vmul.f32 %v1473, 0.17677669
    %v1477 = vadd.f32 %v1476, %v1312
    %v1478 = vsel %vm633, %v1477, -inf
    %1479 = vmax.xlane.f32.xlu0 %v1478
    %v1480 = vpop.xlane.xlu0 %1479
    %v1481 = vsub.f32 %v1477, %v1480
    %v1482 = vmul.f32 %v1481, 1.442695
    %v1483 = vpow.pop %v1482
    %v1484 = vsel %vm633, %v1483, 0.0
    %1485 = vadd.xlane.f32.xlu0 %v1484
    %v1486 = vpop.xlane.xlu0 %1485
    %v1487 = vrcp.pop %v1486
    %v1488 = vmul.f32 %v1483, %v1487
    %1490 = vrot.lane.b32.xlu0 %v541, 96
    %v1491 = vpop.permute.xlu0 %1490
    %v1494 = vsel %vm633, %v1488, 0
    %1496 = vmatprep.subr.mxu0 0.0
    %1497 = vmatpush1.msra.mxu0 0.0
    %1498 = vmatprep.subr.mxu0 0.0
    %1499 = vmatpush1.msra.mxu0 0.0
    %1500 = vmatprep.subr.mxu0 0.0
    %1501 = vmatpush1.msra.mxu0 0.0
    %1502 = vmatprep.subr.mxu0 0.0
    %1503 = vmatpush1.msra.mxu0 0.0
    %1504 = vmatprep.subr.mxu0 0.0
    %1505 = vmatpush1.msra.mxu0 0.0
    %1506 = vmatprep.subr.mxu0 0.0
    %1507 = vmatpush1.msra.mxu0 0.0
    %1508 = vmatprep.subr.mxu0 0.0
    %1509 = vmatpush1.msra.mxu0 0.0
    %1510 = vmatprep.subr.mxu0 0.0
    %1511 = vmatpush1.msra.mxu0 0.0
    %1512 = vmatprep.subr.mxu0 0.0
    %1513 = vmatpush1.msra.mxu0 0.0
    %1514 = vmatprep.subr.mxu0 0.0
    %1515 = vmatpush1.msra.mxu0 0.0
    %1516 = vmatprep.subr.mxu0 0.0
    %1517 = vmatpush1.msra.mxu0 0.0
    %1518 = vmatprep.subr.mxu0 0.0
    %1519 = vmatpush1.msra.mxu0 0.0
    %1520 = vmatprep.subr.mxu0 0.0
    %1521 = vmatpush1.msra.mxu0 0.0
    %1522 = vmatprep.subr.mxu0 0.0
    %1523 = vmatpush1.msra.mxu0 0.0
    %1524 = vmatprep.subr.mxu0 0.0
    %1525 = vmatpush1.msra.mxu0 0.0
    %1526 = vmatprep.subr.mxu0 0.0
    %1527 = vmatpush1.msra.mxu0 %v1491
    %1528 = vmatprep.subr.mxu0 0.0
    %1529 = vmatpush2.msra.mxu0 0.0
    %1530 = vmatprep.subr.mxu0 0.0
    %1531 = vmatpush2.msra.mxu0 0.0
    %1532 = vmatprep.subr.mxu0 0.0
    %1533 = vmatpush2.msra.mxu0 0.0
    %1534 = vmatprep.subr.mxu0 0.0
    %1535 = vmatpush2.msra.mxu0 0.0
    %1536 = vmatprep.subr.mxu0 0.0
    %1537 = vmatpush2.msra.mxu0 0.0
    %1538 = vmatprep.subr.mxu0 0.0
    %1539 = vmatpush2.msra.mxu0 0.0
    %1540 = vmatprep.subr.mxu0 0.0
    %1541 = vmatpush2.msra.mxu0 0.0
    %1542 = vmatprep.subr.mxu0 0.0
    %1543 = vmatpush2.msra.mxu0 0.0
    %1544 = vmatprep.subr.mxu0 0.0
    %1545 = vmatpush2.msra.mxu0 0.0
    %1546 = vmatprep.subr.mxu0 0.0
    %1547 = vmatpush2.msra.mxu0 0.0
    %1548 = vmatprep.subr.mxu0 0.0
    %1549 = vmatpush2.msra.mxu0 0.0
    %1550 = vmatprep.subr.mxu0 0.0
    %1551 = vmatpush2.msra.mxu0 0.0
    %1552 = vmatprep.subr.mxu0 0.0
    %1553 = vmatpush2.msra.mxu0 0.0
    %1554 = vmatprep.subr.mxu0 0.0
    %1555 = vmatpush2.msra.mxu0 0.0
    %1556 = vmatprep.subr.mxu0 0.0
    %1557 = vmatpush2.msra.mxu0 0.0
    %1558 = vmatprep.subr.mxu0 0.0
    %1559 = vmatpush2.msra.mxu0 0.0
    %1560 = vmatprep.mubr.f32.mxu0 0.0
    %1561 = vmatmul.mubr.f32.gmra.mxu0 %v1494
    %v1562 = vpop.f32.mrf.mxu0
    %v1563 = vadd.f32 0.0, %v1562
    %v1564 = vpop.f32.mrf.mxu0
    %1565 = vdwg.mxu0
    %1567 = vrot.lane.b32.xlu0 %v1563, 32
    %v1568 = vpop.permute.xlu0 %1567
    %v1570 = vsel %vm552, %v1395, %v1568
    %1572 = vrot.lane.b32.xlu0 %v545, 64
    %v1573 = vpop.permute.xlu0 %1572
    %v1574 = vsel %vm552, %v545, 0
    %v1576 = vsel %vm552, %v1573, 0
    %1578 = vmatprep.subr.mxu0 0.0
    %1579 = vmatpush1.xpose.msra.mxu0 0.0
    %1580 = vmatprep.subr.mxu0 0.0
    %1581 = vmatpush1.xpose.msra.mxu0 0.0
    %1582 = vmatprep.subr.mxu0 0.0
    %1583 = vmatpush1.xpose.msra.mxu0 0.0
    %1584 = vmatprep.subr.mxu0 0.0
    %1585 = vmatpush1.xpose.msra.mxu0 0.0
    %1586 = vmatprep.subr.mxu0 0.0
    %1587 = vmatpush1.xpose.msra.mxu0 0.0
    %1588 = vmatprep.subr.mxu0 0.0
    %1589 = vmatpush1.xpose.msra.mxu0 0.0
    %1590 = vmatprep.subr.mxu0 0.0
    %1591 = vmatpush1.xpose.msra.mxu0 0.0
    %1592 = vmatprep.subr.mxu0 0.0
    %1593 = vmatpush1.xpose.msra.mxu0 0.0
    %1594 = vmatprep.subr.mxu0 0.0
    %1595 = vmatpush1.xpose.msra.mxu0 0.0
    %1596 = vmatprep.subr.mxu0 0.0
    %1597 = vmatpush1.xpose.msra.mxu0 0.0
    %1598 = vmatprep.subr.mxu0 0.0
    %1599 = vmatpush1.xpose.msra.mxu0 0.0
    %1600 = vmatprep.subr.mxu0 0.0
    %1601 = vmatpush1.xpose.msra.mxu0 0.0
    %1602 = vmatprep.subr.mxu0 0.0
    %1603 = vmatpush1.xpose.msra.mxu0 0.0
    %1604 = vmatprep.subr.mxu0 0.0
    %1605 = vmatpush1.xpose.msra.mxu0 0.0
    %1606 = vmatprep.subr.mxu0 0.0
    %1607 = vmatpush1.xpose.msra.mxu0 0.0
    %1608 = vmatprep.subr.mxu0 0.0
    %1609 = vmatpush1.xpose.msra.mxu0 %v1576
    %1610 = vmatprep.subr.mxu0 0.0
    %1611 = vmatpush2.xpose.msra.mxu0 0.0
    %1612 = vmatprep.subr.mxu0 0.0
    %1613 = vmatpush2.xpose.msra.mxu0 0.0
    %1614 = vmatprep.subr.mxu0 0.0
    %1615 = vmatpush2.xpose.msra.mxu0 0.0
    %1616 = vmatprep.subr.mxu0 0.0
    %1617 = vmatpush2.xpose.msra.mxu0 0.0
    %1618 = vmatprep.subr.mxu0 0.0
    %1619 = vmatpush2.xpose.msra.mxu0 0.0
    %1620 = vmatprep.subr.mxu0 0.0
    %1621 = vmatpush2.xpose.msra.mxu0 0.0
    %1622 = vmatprep.subr.mxu0 0.0
    %1623 = vmatpush2.xpose.msra.mxu0 0.0
    %1624 = vmatprep.subr.mxu0 0.0
    %1625 = vmatpush2.xpose.msra.mxu0 0.0
    %1626 = vmatprep.subr.mxu0 0.0
    %1627 = vmatpush2.xpose.msra.mxu0 0.0
    %1628 = vmatprep.subr.mxu0 0.0
    %1629 = vmatpush2.xpose.msra.mxu0 0.0
    %1630 = vmatprep.subr.mxu0 0.0
    %1631 = vmatpush2.xpose.msra.mxu0 0.0
    %1632 = vmatprep.subr.mxu0 0.0
    %1633 = vmatpush2.xpose.msra.mxu0 0.0
    %1634 = vmatprep.subr.mxu0 0.0
    %1635 = vmatpush2.xpose.msra.mxu0 0.0
    %1636 = vmatprep.subr.mxu0 0.0
    %1637 = vmatpush2.xpose.msra.mxu0 0.0
    %1638 = vmatprep.subr.mxu0 0.0
    %1639 = vmatpush2.xpose.msra.mxu0 0.0
    %1640 = vmatprep.subr.mxu0 0.0
    %1641 = vmatpush2.xpose.msra.mxu0 0.0
    %1642 = vmatprep.mubr.f32.mxu0 0.0
    %1643 = vmatmul.mubr.f32.gmra.mxu0 %v1574
    %v1644 = vpop.f32.mrf.mxu0
    %v1645 = vadd.f32 0.0, %v1644
    %v1646 = vpop.f32.mrf.mxu0
    %1647 = vdwg.mxu0
    %v1648 = vmul.f32 %v1645, 0.17677669
    %v1649 = vlaneseq
    %v1650 = vshrl.u32 %v1649, 7
    %v1651 = vsub.s32 3, %v1650
    %v1652 = vrot.slane %v383, %v1651
    %v1653 = vadd.f32 %v1648, %v1652
    %v1654 = vsel %vm633, %v1653, -inf
    %1655 = vmax.xlane.f32.xlu0 %v1654
    %v1656 = vpop.xlane.xlu0 %1655
    %v1657 = vsub.f32 %v1653, %v1656
    %v1658 = vmul.f32 %v1657, 1.442695
    %v1659 = vpow.pop %v1658
    %v1660 = vsel %vm633, %v1659, 0.0
    %1661 = vadd.xlane.f32.xlu0 %v1660
    %v1662 = vpop.xlane.xlu0 %1661
    %v1663 = vrcp.pop %v1662
    %v1664 = vmul.f32 %v1659, %v1663
    %v1666 = vsel %vm633, %v1664, 0
    %1668 = vmatprep.subr.mxu0 0.0
    %1669 = vmatpush1.msra.mxu0 0.0
    %1670 = vmatprep.subr.mxu0 0.0
    %1671 = vmatpush1.msra.mxu0 0.0
    %1672 = vmatprep.subr.mxu0 0.0
    %1673 = vmatpush1.msra.mxu0 0.0
    %1674 = vmatprep.subr.mxu0 0.0
    %1675 = vmatpush1.msra.mxu0 0.0
    %1676 = vmatprep.subr.mxu0 0.0
    %1677 = vmatpush1.msra.mxu0 0.0
    %1678 = vmatprep.subr.mxu0 0.0
    %1679 = vmatpush1.msra.mxu0 0.0
    %1680 = vmatprep.subr.mxu0 0.0
    %1681 = vmatpush1.msra.mxu0 0.0
    %1682 = vmatprep.subr.mxu0 0.0
    %1683 = vmatpush1.msra.mxu0 0.0
    %1684 = vmatprep.subr.mxu0 0.0
    %1685 = vmatpush1.msra.mxu0 0.0
    %1686 = vmatprep.subr.mxu0 0.0
    %1687 = vmatpush1.msra.mxu0 0.0
    %1688 = vmatprep.subr.mxu0 0.0
    %1689 = vmatpush1.msra.mxu0 0.0
    %1690 = vmatprep.subr.mxu0 0.0
    %1691 = vmatpush1.msra.mxu0 0.0
    %1692 = vmatprep.subr.mxu0 0.0
    %1693 = vmatpush1.msra.mxu0 0.0
    %1694 = vmatprep.subr.mxu0 0.0
    %1695 = vmatpush1.msra.mxu0 0.0
    %1696 = vmatprep.subr.mxu0 0.0
    %1697 = vmatpush1.msra.mxu0 0.0
    %1698 = vmatprep.subr.mxu0 0.0
    %1699 = vmatpush1.msra.mxu0 %v547
    %1700 = vmatprep.subr.mxu0 0.0
    %1701 = vmatpush2.msra.mxu0 0.0
    %1702 = vmatprep.subr.mxu0 0.0
    %1703 = vmatpush2.msra.mxu0 0.0
    %1704 = vmatprep.subr.mxu0 0.0
    %1705 = vmatpush2.msra.mxu0 0.0
    %1706 = vmatprep.subr.mxu0 0.0
    %1707 = vmatpush2.msra.mxu0 0.0
    %1708 = vmatprep.subr.mxu0 0.0
    %1709 = vmatpush2.msra.mxu0 0.0
    %1710 = vmatprep.subr.mxu0 0.0
    %1711 = vmatpush2.msra.mxu0 0.0
    %1712 = vmatprep.subr.mxu0 0.0
    %1713 = vmatpush2.msra.mxu0 0.0
    %1714 = vmatprep.subr.mxu0 0.0
    %1715 = vmatpush2.msra.mxu0 0.0
    %1716 = vmatprep.subr.mxu0 0.0
    %1717 = vmatpush2.msra.mxu0 0.0
    %1718 = vmatprep.subr.mxu0 0.0
    %1719 = vmatpush2.msra.mxu0 0.0
    %1720 = vmatprep.subr.mxu0 0.0
    %1721 = vmatpush2.msra.mxu0 0.0
    %1722 = vmatprep.subr.mxu0 0.0
    %1723 = vmatpush2.msra.mxu0 0.0
    %1724 = vmatprep.subr.mxu0 0.0
    %1725 = vmatpush2.msra.mxu0 0.0
    %1726 = vmatprep.subr.mxu0 0.0
    %1727 = vmatpush2.msra.mxu0 0.0
    %1728 = vmatprep.subr.mxu0 0.0
    %1729 = vmatpush2.msra.mxu0 0.0
    %1730 = vmatprep.subr.mxu0 0.0
    %1731 = vmatpush2.msra.mxu0 0.0
    %1732 = vmatprep.mubr.f32.mxu0 0.0
    %1733 = vmatmul.mubr.f32.gmra.mxu0 %v1666
    %v1734 = vpop.f32.mrf.mxu0
    %v1735 = vadd.f32 0.0, %v1734
    %v1736 = vpop.f32.mrf.mxu0
    %1737 = vdwg.mxu0
    %1738 = vrot.lane.b32.xlu0 %v545, 96
    %v1739 = vpop.permute.xlu0 %1738
    %1740 = vrot.lane.b32.xlu0 %v545, 32
    %v1741 = vpop.permute.xlu0 %1740
    %v1742 = vsel %vm552, %v1739, 0
    %v1744 = vsel %vm552, %v1741, 0
    %1746 = vmatprep.subr.mxu0 0.0
    %1747 = vmatpush1.xpose.msra.mxu0 0.0
    %1748 = vmatprep.subr.mxu0 0.0
    %1749 = vmatpush1.xpose.msra.mxu0 0.0
    %1750 = vmatprep.subr.mxu0 0.0
    %1751 = vmatpush1.xpose.msra.mxu0 0.0
    %1752 = vmatprep.subr.mxu0 0.0
    %1753 = vmatpush1.xpose.msra.mxu0 0.0
    %1754 = vmatprep.subr.mxu0 0.0
    %1755 = vmatpush1.xpose.msra.mxu0 0.0
    %1756 = vmatprep.subr.mxu0 0.0
    %1757 = vmatpush1.xpose.msra.mxu0 0.0
    %1758 = vmatprep.subr.mxu0 0.0
    %1759 = vmatpush1.xpose.msra.mxu0 0.0
    %1760 = vmatprep.subr.mxu0 0.0
    %1761 = vmatpush1.xpose.msra.mxu0 0.0
    %1762 = vmatprep.subr.mxu0 0.0
    %1763 = vmatpush1.xpose.msra.mxu0 0.0
    %1764 = vmatprep.subr.mxu0 0.0
    %1765 = vmatpush1.xpose.msra.mxu0 0.0
    %1766 = vmatprep.subr.mxu0 0.0
    %1767 = vmatpush1.xpose.msra.mxu0 0.0
    %1768 = vmatprep.subr.mxu0 0.0
    %1769 = vmatpush1.xpose.msra.mxu0 0.0
    %1770 = vmatprep.subr.mxu0 0.0
    %1771 = vmatpush1.xpose.msra.mxu0 0.0
    %1772 = vmatprep.subr.mxu0 0.0
    %1773 = vmatpush1.xpose.msra.mxu0 0.0
    %1774 = vmatprep.subr.mxu0 0.0
    %1775 = vmatpush1.xpose.msra.mxu0 0.0
    %1776 = vmatprep.subr.mxu0 0.0
    %1777 = vmatpush1.xpose.msra.mxu0 %v1744
    %1778 = vmatprep.subr.mxu0 0.0
    %1779 = vmatpush2.xpose.msra.mxu0 0.0
    %1780 = vmatprep.subr.mxu0 0.0
    %1781 = vmatpush2.xpose.msra.mxu0 0.0
    %1782 = vmatprep.subr.mxu0 0.0
    %1783 = vmatpush2.xpose.msra.mxu0 0.0
    %1784 = vmatprep.subr.mxu0 0.0
    %1785 = vmatpush2.xpose.msra.mxu0 0.0
    %1786 = vmatprep.subr.mxu0 0.0
    %1787 = vmatpush2.xpose.msra.mxu0 0.0
    %1788 = vmatprep.subr.mxu0 0.0
    %1789 = vmatpush2.xpose.msra.mxu0 0.0
    %1790 = vmatprep.subr.mxu0 0.0
    %1791 = vmatpush2.xpose.msra.mxu0 0.0
    %1792 = vmatprep.subr.mxu0 0.0
    %1793 = vmatpush2.xpose.msra.mxu0 0.0
    %1794 = vmatprep.subr.mxu0 0.0
    %1795 = vmatpush2.xpose.msra.mxu0 0.0
    %1796 = vmatprep.subr.mxu0 0.0
    %1797 = vmatpush2.xpose.msra.mxu0 0.0
    %1798 = vmatprep.subr.mxu0 0.0
    %1799 = vmatpush2.xpose.msra.mxu0 0.0
    %1800 = vmatprep.subr.mxu0 0.0
    %1801 = vmatpush2.xpose.msra.mxu0 0.0
    %1802 = vmatprep.subr.mxu0 0.0
    %1803 = vmatpush2.xpose.msra.mxu0 0.0
    %1804 = vmatprep.subr.mxu0 0.0
    %1805 = vmatpush2.xpose.msra.mxu0 0.0
    %1806 = vmatprep.subr.mxu0 0.0
    %1807 = vmatpush2.xpose.msra.mxu0 0.0
    %1808 = vmatprep.subr.mxu0 0.0
    %1809 = vmatpush2.xpose.msra.mxu0 0.0
    %1810 = vmatprep.mubr.f32.mxu0 0.0
    %1811 = vmatmul.mubr.f32.gmra.mxu0 %v1742
    %v1812 = vpop.f32.mrf.mxu0
    %v1813 = vadd.f32 0.0, %v1812
    %v1814 = vpop.f32.mrf.mxu0
    %1815 = vdwg.mxu0
    %v1816 = vmul.f32 %v1813, 0.17677669
    %v1817 = vadd.f32 %v1816, %v1652
    %v1818 = vsel %vm633, %v1817, -inf
    %1819 = vmax.xlane.f32.xlu0 %v1818
    %v1820 = vpop.xlane.xlu0 %1819
    %v1821 = vsub.f32 %v1817, %v1820
    %v1822 = vmul.f32 %v1821, 1.442695
    %v1823 = vpow.pop %v1822
    %v1824 = vsel %vm633, %v1823, 0.0
    %1825 = vadd.xlane.f32.xlu0 %v1824
    %v1826 = vpop.xlane.xlu0 %1825
    %v1827 = vrcp.pop %v1826
    %v1828 = vmul.f32 %v1823, %v1827
    %1830 = vrot.lane.b32.xlu0 %v547, 96
    %v1831 = vpop.permute.xlu0 %1830
    %v1834 = vsel %vm633, %v1828, 0
    %1836 = vmatprep.subr.mxu0 0.0
    %1837 = vmatpush1.msra.mxu0 0.0
    %1838 = vmatprep.subr.mxu0 0.0
    %1839 = vmatpush1.msra.mxu0 0.0
    %1840 = vmatprep.subr.mxu0 0.0
    %1841 = vmatpush1.msra.mxu0 0.0
    %1842 = vmatprep.subr.mxu0 0.0
    %1843 = vmatpush1.msra.mxu0 0.0
    %1844 = vmatprep.subr.mxu0 0.0
    %1845 = vmatpush1.msra.mxu0 0.0
    %1846 = vmatprep.subr.mxu0 0.0
    %1847 = vmatpush1.msra.mxu0 0.0
    %1848 = vmatprep.subr.mxu0 0.0
    %1849 = vmatpush1.msra.mxu0 0.0
    %1850 = vmatprep.subr.mxu0 0.0
    %1851 = vmatpush1.msra.mxu0 0.0
    %1852 = vmatprep.subr.mxu0 0.0
    %1853 = vmatpush1.msra.mxu0 0.0
    %1854 = vmatprep.subr.mxu0 0.0
    %1855 = vmatpush1.msra.mxu0 0.0
    %1856 = vmatprep.subr.mxu0 0.0
    %1857 = vmatpush1.msra.mxu0 0.0
    %1858 = vmatprep.subr.mxu0 0.0
    %1859 = vmatpush1.msra.mxu0 0.0
    %1860 = vmatprep.subr.mxu0 0.0
    %1861 = vmatpush1.msra.mxu0 0.0
    %1862 = vmatprep.subr.mxu0 0.0
    %1863 = vmatpush1.msra.mxu0 0.0
    %1864 = vmatprep.subr.mxu0 0.0
    %1865 = vmatpush1.msra.mxu0 0.0
    %1866 = vmatprep.subr.mxu0 0.0
    %1867 = vmatpush1.msra.mxu0 %v1831
    %1868 = vmatprep.subr.mxu0 0.0
    %1869 = vmatpush2.msra.mxu0 0.0
    %1870 = vmatprep.subr.mxu0 0.0
    %1871 = vmatpush2.msra.mxu0 0.0
    %1872 = vmatprep.subr.mxu0 0.0
    %1873 = vmatpush2.msra.mxu0 0.0
    %1874 = vmatprep.subr.mxu0 0.0
    %1875 = vmatpush2.msra.mxu0 0.0
    %1876 = vmatprep.subr.mxu0 0.0
    %1877 = vmatpush2.msra.mxu0 0.0
    %1878 = vmatprep.subr.mxu0 0.0
    %1879 = vmatpush2.msra.mxu0 0.0
    %1880 = vmatprep.subr.mxu0 0.0
    %1881 = vmatpush2.msra.mxu0 0.0
    %1882 = vmatprep.subr.mxu0 0.0
    %1883 = vmatpush2.msra.mxu0 0.0
    %1884 = vmatprep.subr.mxu0 0.0
    %1885 = vmatpush2.msra.mxu0 0.0
    %1886 = vmatprep.subr.mxu0 0.0
    %1887 = vmatpush2.msra.mxu0 0.0
    %1888 = vmatprep.subr.mxu0 0.0
    %1889 = vmatpush2.msra.mxu0 0.0
    %1890 = vmatprep.subr.mxu0 0.0
    %1891 = vmatpush2.msra.mxu0 0.0
    %1892 = vmatprep.subr.mxu0 0.0
    %1893 = vmatpush2.msra.mxu0 0.0
    %1894 = vmatprep.subr.mxu0 0.0
    %1895 = vmatpush2.msra.mxu0 0.0
    %1896 = vmatprep.subr.mxu0 0.0
    %1897 = vmatpush2.msra.mxu0 0.0
    %1898 = vmatprep.subr.mxu0 0.0
    %1899 = vmatpush2.msra.mxu0 0.0
    %1900 = vmatprep.mubr.f32.mxu0 0.0
    %1901 = vmatmul.mubr.f32.gmra.mxu0 %v1834
    %v1902 = vpop.f32.mrf.mxu0
    %v1903 = vadd.f32 0.0, %v1902
    %v1904 = vpop.f32.mrf.mxu0
    %1905 = vdwg.mxu0
    %1907 = vrot.lane.b32.xlu0 %v1903, 32
    %v1908 = vpop.permute.xlu0 %1907
    %v1910 = vsel %vm552, %v1735, %v1908
    %v1912 = vlaneseq
    %v1913 = vshrl.u32 %v1912, 7
    %v1914 = vsub.s32 0, %v1913
    %v1915 = vrot.slane %v409, %v1914
    %v1918 = vsel %vm310, %v890, 0
    %v1921 = vsel %vm310, %v1230, 0
    %v1924 = vsel %vm310, %v1570, 0
    %v1927 = vsel %vm310, %v1910, 0
    %1929 = vmatprep.subr.mxu0 0.0
    %1930 = vmatpush1.msra.mxu0 0.0
    %1931 = vmatprep.subr.mxu0 0.0
    %1932 = vmatpush1.msra.mxu0 0.0
    %1933 = vmatprep.subr.mxu0 0.0
    %1934 = vmatpush1.msra.mxu0 0.0
    %1935 = vmatprep.subr.mxu0 0.0
    %1936 = vmatpush1.msra.mxu0 0.0
    %1937 = vmatprep.subr.mxu0 0.0
    %1938 = vmatpush1.msra.mxu0 0.0
    %1939 = vmatprep.subr.mxu0 0.0
    %1940 = vmatpush1.msra.mxu0 0.0
    %1941 = vmatprep.subr.mxu0 0.0
    %1942 = vmatpush1.msra.mxu0 0.0
    %1943 = vmatprep.subr.mxu0 0.0
    %1944 = vmatpush1.msra.mxu0 0.0
    %1945 = vmatprep.subr.mxu0 0.0
    %1946 = vmatpush1.msra.mxu0 %v408
    %1947 = vmatprep.subr.mxu0 0.0
    %1948 = vmatpush1.msra.mxu0 %v407
    %1949 = vmatprep.subr.mxu0 0.0
    %1950 = vmatpush1.msra.mxu0 %v406
    %1951 = vmatprep.subr.mxu0 0.0
    %1952 = vmatpush1.msra.mxu0 %v405
    %1953 = vmatprep.subr.mxu0 0.0
    %1954 = vmatpush1.msra.mxu0 %v404
    %1955 = vmatprep.subr.mxu0 0.0
    %1956 = vmatpush1.msra.mxu0 %v403
    %1957 = vmatprep.subr.mxu0 0.0
    %1958 = vmatpush1.msra.mxu0 %v402
    %1959 = vmatprep.subr.mxu0 0.0
    %1960 = vmatpush1.msra.mxu0 %v401
    %1961 = vmatprep.subr.mxu0 0.0
    %1962 = vmatpush2.msra.mxu0 0.0
    %1963 = vmatprep.subr.mxu0 0.0
    %1964 = vmatpush2.msra.mxu0 0.0
    %1965 = vmatprep.subr.mxu0 0.0
    %1966 = vmatpush2.msra.mxu0 0.0
    %1967 = vmatprep.subr.mxu0 0.0
    %1968 = vmatpush2.msra.mxu0 0.0
    %1969 = vmatprep.subr.mxu0 0.0
    %1970 = vmatpush2.msra.mxu0 0.0
    %1971 = vmatprep.subr.mxu0 0.0
    %1972 = vmatpush2.msra.mxu0 0.0
    %1973 = vmatprep.subr.mxu0 0.0
    %1974 = vmatpush2.msra.mxu0 0.0
    %1975 = vmatprep.subr.mxu0 0.0
    %1976 = vmatpush2.msra.mxu0 0.0
    %1977 = vmatprep.subr.mxu0 0.0
    %1978 = vmatpush2.msra.mxu0 0.0
    %1979 = vmatprep.subr.mxu0 0.0
    %1980 = vmatpush2.msra.mxu0 0.0
    %1981 = vmatprep.subr.mxu0 0.0
    %1982 = vmatpush2.msra.mxu0 0.0
    %1983 = vmatprep.subr.mxu0 0.0
    %1984 = vmatpush2.msra.mxu0 0.0
    %1985 = vmatprep.subr.mxu0 0.0
    %1986 = vmatpush2.msra.mxu0 0.0
    %1987 = vmatprep.subr.mxu0 0.0
    %1988 = vmatpush2.msra.mxu0 0.0
    %1989 = vmatprep.subr.mxu0 0.0
    %1990 = vmatpush2.msra.mxu0 0.0
    %1991 = vmatprep.subr.mxu0 0.0
    %1992 = vmatpush2.msra.mxu0 0.0
    %1993 = vmatprep.mubr.f32.mxu0 0.0
    %1994 = vmatmul.mubr.f32.gmra.mxu0 %v1918
    %v1995 = vpop.f32.mrf.mxu0
    %v1996 = vadd.f32 %v1915, %v1995
    %v1997 = vpop.f32.mrf.mxu0
    %1998 = vmatprep.mubr.f32.mxu0 0.0
    %1999 = vmatmul.mubr.f32.gmra.mxu0 %v1921
    %v2000 = vpop.f32.mrf.mxu0
    %v2001 = vadd.f32 %v1915, %v2000
    %v2002 = vpop.f32.mrf.mxu0
    %2003 = vmatprep.mubr.f32.mxu0 0.0
    %2004 = vmatmul.mubr.f32.gmra.mxu0 %v1924
    %v2005 = vpop.f32.mrf.mxu0
    %v2006 = vadd.f32 %v1915, %v2005
    %v2007 = vpop.f32.mrf.mxu0
    %2008 = vmatprep.mubr.f32.mxu0 0.0
    %2009 = vmatmul.mubr.f32.gmra.mxu0 %v1927
    %v2010 = vpop.f32.mrf.mxu0
    %v2011 = vadd.f32 %v1915, %v2010
    %v2012 = vpop.f32.mrf.mxu0
    %2013 = vdwg.mxu0
    %v2014 = vadd.f32 %v376, %v1996
    %v2015 = vadd.f32 %v377, %v2001
    %v2016 = vadd.f32 %v378, %v2006
    %v2017 = vadd.f32 %v379, %v2011
    %v2018 = vsel %vm310, %v2014, 0.0
    %2019 = vadd.xlane.f32.xlu0 %v2018
    %v2020 = vpop.xlane.xlu0 %2019
    %v2021 = vsel %vm310, %v2015, 0.0
    %2022 = vadd.xlane.f32.xlu0 %v2021
    %v2023 = vpop.xlane.xlu0 %2022
    %v2024 = vsel %vm310, %v2016, 0.0
    %2025 = vadd.xlane.f32.xlu0 %v2024
    %v2026 = vpop.xlane.xlu0 %2025
    %v2027 = vsel %vm310, %v2017, 0.0
    %2028 = vadd.xlane.f32.xlu0 %v2027
    %v2029 = vpop.xlane.xlu0 %2028
    %v2030 = vmul.f32 %v2020, %v323
    %v2031 = vmul.f32 %v2023, %v323
    %v2032 = vmul.f32 %v2026, %v323
    %v2033 = vmul.f32 %v2029, %v323
    %v2034 = vsub.f32 %v2014, %v2030
    %v2035 = vsub.f32 %v2015, %v2031
    %v2036 = vsub.f32 %v2016, %v2032
    %v2037 = vsub.f32 %v2017, %v2033
    %v2038 = vmul.f32 %v2034, %v2034
    %v2039 = vmul.f32 %v2035, %v2035
    %v2040 = vmul.f32 %v2036, %v2036
    %v2041 = vmul.f32 %v2037, %v2037
    %v2042 = vsel %vm310, %v2038, 0.0
    %2043 = vadd.xlane.f32.xlu0 %v2042
    %v2044 = vpop.xlane.xlu0 %2043
    %v2045 = vsel %vm310, %v2039, 0.0
    %2046 = vadd.xlane.f32.xlu0 %v2045
    %v2047 = vpop.xlane.xlu0 %2046
    %v2048 = vsel %vm310, %v2040, 0.0
    %2049 = vadd.xlane.f32.xlu0 %v2048
    %v2050 = vpop.xlane.xlu0 %2049
    %v2051 = vsel %vm310, %v2041, 0.0
    %2052 = vadd.xlane.f32.xlu0 %v2051
    %v2053 = vpop.xlane.xlu0 %2052
    %v2054 = vmul.f32 %v2044, %v323
    %v2055 = vmul.f32 %v2047, %v323
    %v2056 = vmul.f32 %v2050, %v323
    %v2057 = vmul.f32 %v2053, %v323
    %v2058 = vadd.f32 %v2054, 1e-07
    %v2059 = vadd.f32 %v2055, 1e-07
    %v2060 = vadd.f32 %v2056, 1e-07
    %v2061 = vadd.f32 %v2057, 1e-07
    %v2062 = vrsqrt.pop %v2058
    %v2063 = vrsqrt.pop %v2059
    %v2064 = vrsqrt.pop %v2060
    %v2065 = vrsqrt.pop %v2061
    %v2066 = vmul.f32 %v2034, %v2062
    %v2067 = vmul.f32 %v2035, %v2063
    %v2068 = vmul.f32 %v2036, %v2064
    %v2069 = vmul.f32 %v2037, %v2065
    %v2070 = vlaneseq
    %v2071 = vshrl.u32 %v2070, 7
    %v2072 = vsub.s32 0, %v2071
    %v2073 = vrot.slane %v410, %v2072
    %v2074 = vmul.f32 %v2066, %v2073
    %v2075 = vmul.f32 %v2067, %v2073
    %v2076 = vmul.f32 %v2068, %v2073
    %v2077 = vmul.f32 %v2069, %v2073
    %v2078 = vlaneseq
    %v2079 = vshrl.u32 %v2078, 7
    %v2080 = vsub.s32 1, %v2079
    %v2081 = vrot.slane %v410, %v2080
    %v2082 = vadd.f32 %v2074, %v2081
    %v2083 = vadd.f32 %v2075, %v2081
    %v2084 = vadd.f32 %v2076, %v2081
    %v2085 = vadd.f32 %v2077, %v2081
    %v2087 = vlaneseq
    %v2088 = vshrl.u32 %v2087, 7
    %v2089 = vsub.s32 0, %v2088
    %v2090 = vrot.slane %v419, %v2089
    %v2093 = vsel %vm310, %v2082, 0
    %v2096 = vsel %vm310, %v2083, 0
    %v2099 = vsel %vm310, %v2084, 0
    %v2102 = vsel %vm310, %v2085, 0
    %2104 = vmatprep.subr.mxu0 0.0
    %2105 = vmatpush1.msra.mxu0 0.0
    %2106 = vmatprep.subr.mxu0 0.0
    %2107 = vmatpush1.msra.mxu0 0.0
    %2108 = vmatprep.subr.mxu0 0.0
    %2109 = vmatpush1.msra.mxu0 0.0
    %2110 = vmatprep.subr.mxu0 0.0
    %2111 = vmatpush1.msra.mxu0 0.0
    %2112 = vmatprep.subr.mxu0 0.0
    %2113 = vmatpush1.msra.mxu0 0.0
    %2114 = vmatprep.subr.mxu0 0.0
    %2115 = vmatpush1.msra.mxu0 0.0
    %2116 = vmatprep.subr.mxu0 0.0
    %2117 = vmatpush1.msra.mxu0 0.0
    %2118 = vmatprep.subr.mxu0 0.0
    %2119 = vmatpush1.msra.mxu0 0.0
    %2120 = vmatprep.subr.mxu0 0.0
    %2121 = vmatpush1.msra.mxu0 %v418
    %2122 = vmatprep.subr.mxu0 0.0
    %2123 = vmatpush1.msra.mxu0 %v417
    %2124 = vmatprep.subr.mxu0 0.0
    %2125 = vmatpush1.msra.mxu0 %v416
    %2126 = vmatprep.subr.mxu0 0.0
    %2127 = vmatpush1.msra.mxu0 %v415
    %2128 = vmatprep.subr.mxu0 0.0
    %2129 = vmatpush1.msra.mxu0 %v414
    %2130 = vmatprep.subr.mxu0 0.0
    %2131 = vmatpush1.msra.mxu0 %v413
    %2132 = vmatprep.subr.mxu0 0.0
    %2133 = vmatpush1.msra.mxu0 %v412
    %2134 = vmatprep.subr.mxu0 0.0
    %2135 = vmatpush1.msra.mxu0 %v411
    %2136 = vmatprep.subr.mxu0 0.0
    %2137 = vmatpush2.msra.mxu0 0.0
    %2138 = vmatprep.subr.mxu0 0.0
    %2139 = vmatpush2.msra.mxu0 0.0
    %2140 = vmatprep.subr.mxu0 0.0
    %2141 = vmatpush2.msra.mxu0 0.0
    %2142 = vmatprep.subr.mxu0 0.0
    %2143 = vmatpush2.msra.mxu0 0.0
    %2144 = vmatprep.subr.mxu0 0.0
    %2145 = vmatpush2.msra.mxu0 0.0
    %2146 = vmatprep.subr.mxu0 0.0
    %2147 = vmatpush2.msra.mxu0 0.0
    %2148 = vmatprep.subr.mxu0 0.0
    %2149 = vmatpush2.msra.mxu0 0.0
    %2150 = vmatprep.subr.mxu0 0.0
    %2151 = vmatpush2.msra.mxu0 0.0
    %2152 = vmatprep.subr.mxu0 0.0
    %2153 = vmatpush2.msra.mxu0 0.0
    %2154 = vmatprep.subr.mxu0 0.0
    %2155 = vmatpush2.msra.mxu0 0.0
    %2156 = vmatprep.subr.mxu0 0.0
    %2157 = vmatpush2.msra.mxu0 0.0
    %2158 = vmatprep.subr.mxu0 0.0
    %2159 = vmatpush2.msra.mxu0 0.0
    %2160 = vmatprep.subr.mxu0 0.0
    %2161 = vmatpush2.msra.mxu0 0.0
    %2162 = vmatprep.subr.mxu0 0.0
    %2163 = vmatpush2.msra.mxu0 0.0
    %2164 = vmatprep.subr.mxu0 0.0
    %2165 = vmatpush2.msra.mxu0 0.0
    %2166 = vmatprep.subr.mxu0 0.0
    %2167 = vmatpush2.msra.mxu0 0.0
    %2168 = vmatprep.mubr.f32.mxu0 0.0
    %2169 = vmatmul.mubr.f32.gmra.mxu0 %v2093
    %v2170 = vpop.f32.mrf.mxu0
    %v2171 = vadd.f32 %v2090, %v2170
    %v2172 = vpop.f32.mrf.mxu0
    %2173 = vmatprep.mubr.f32.mxu0 0.0
    %2174 = vmatmul.mubr.f32.gmra.mxu0 %v2096
    %v2175 = vpop.f32.mrf.mxu0
    %v2176 = vadd.f32 %v2090, %v2175
    %v2177 = vpop.f32.mrf.mxu0
    %2178 = vmatprep.mubr.f32.mxu0 0.0
    %2179 = vmatmul.mubr.f32.gmra.mxu0 %v2099
    %v2180 = vpop.f32.mrf.mxu0
    %v2181 = vadd.f32 %v2090, %v2180
    %v2182 = vpop.f32.mrf.mxu0
    %2183 = vmatprep.mubr.f32.mxu0 0.0
    %2184 = vmatmul.mubr.f32.gmra.mxu0 %v2102
    %v2185 = vpop.f32.mrf.mxu0
    %v2186 = vadd.f32 %v2090, %v2185
    %v2187 = vpop.f32.mrf.mxu0
    %2188 = vdwg.mxu0
    %v2189 = vmul.f32 %v2171, %v2171
    %v2190 = vmul.f32 %v2176, %v2176
    %v2191 = vmul.f32 %v2181, %v2181
    %v2192 = vmul.f32 %v2186, %v2186
    %v2193 = vmul.f32 %v2171, %v2189
    %v2194 = vmul.f32 %v2176, %v2190
    %v2195 = vmul.f32 %v2181, %v2191
    %v2196 = vmul.f32 %v2186, %v2192
    %v2197 = vmul.f32 %v2193, 0.044715
    %v2198 = vmul.f32 %v2194, 0.044715
    %v2199 = vmul.f32 %v2195, 0.044715
    %v2200 = vmul.f32 %v2196, 0.044715
    %v2201 = vadd.f32 %v2171, %v2197
    %v2202 = vadd.f32 %v2176, %v2198
    %v2203 = vadd.f32 %v2181, %v2199
    %v2204 = vadd.f32 %v2186, %v2200
    %v2205 = vmul.f32 %v2201, 0.7978846
    %v2206 = vmul.f32 %v2202, 0.7978846
    %v2207 = vmul.f32 %v2203, 0.7978846
    %v2208 = vmul.f32 %v2204, 0.7978846
    %v2209 = vtanh.pop %v2205
    %v2210 = vtanh.pop %v2206
    %v2211 = vtanh.pop %v2207
    %v2212 = vtanh.pop %v2208
    %v2213 = vadd.f32 %v2209, 1.0
    %v2214 = vadd.f32 %v2210, 1.0
    %v2215 = vadd.f32 %v2211, 1.0
    %v2216 = vadd.f32 %v2212, 1.0
    %v2217 = vmul.f32 %v2213, 0.5
    %v2218 = vmul.f32 %v2214, 0.5
    %v2219 = vmul.f32 %v2215, 0.5
    %v2220 = vmul.f32 %v2216, 0.5
    %v2221 = vmul.f32 %v2171, %v2217
    %v2222 = vmul.f32 %v2176, %v2218
    %v2223 = vmul.f32 %v2181, %v2219
    %v2224 = vmul.f32 %v2186, %v2220
    %v2226 = vlaneseq
    %v2227 = vshrl.u32 %v2226, 7
    %v2228 = vsub.s32 0, %v2227
    %v2229 = vrot.slane %v436, %v2228
    %2231 = vmatprep.subr.mxu0 0.0
    %2232 = vmatpush1.msra.mxu0 %v435
    %2233 = vmatprep.subr.mxu0 0.0
    %2234 = vmatpush1.msra.mxu0 %v434
    %2235 = vmatprep.subr.mxu0 0.0
    %2236 = vmatpush1.msra.mxu0 %v433
    %2237 = vmatprep.subr.mxu0 0.0
    %2238 = vmatpush1.msra.mxu0 %v432
    %2239 = vmatprep.subr.mxu0 0.0
    %2240 = vmatpush1.msra.mxu0 %v431
    %2241 = vmatprep.subr.mxu0 0.0
    %2242 = vmatpush1.msra.mxu0 %v430
    %2243 = vmatprep.subr.mxu0 0.0
    %2244 = vmatpush1.msra.mxu0 %v429
    %2245 = vmatprep.subr.mxu0 0.0
    %2246 = vmatpush1.msra.mxu0 %v428
    %2247 = vmatprep.subr.mxu0 0.0
    %2248 = vmatpush1.msra.mxu0 %v427
    %2249 = vmatprep.subr.mxu0 0.0
    %2250 = vmatpush1.msra.mxu0 %v426
    %2251 = vmatprep.subr.mxu0 0.0
    %2252 = vmatpush1.msra.mxu0 %v425
    %2253 = vmatprep.subr.mxu0 0.0
    %2254 = vmatpush1.msra.mxu0 %v424
    %2255 = vmatprep.subr.mxu0 0.0
    %2256 = vmatpush1.msra.mxu0 %v423
    %2257 = vmatprep.subr.mxu0 0.0
    %2258 = vmatpush1.msra.mxu0 %v422
    %2259 = vmatprep.subr.mxu0 0.0
    %2260 = vmatpush1.msra.mxu0 %v421
    %2261 = vmatprep.subr.mxu0 0.0
    %2262 = vmatpush1.msra.mxu0 %v420
    %2263 = vmatprep.subr.mxu0 0.0
    %2264 = vmatpush2.msra.mxu0 0.0
    %2265 = vmatprep.subr.mxu0 0.0
    %2266 = vmatpush2.msra.mxu0 0.0
    %2267 = vmatprep.subr.mxu0 0.0
    %2268 = vmatpush2.msra.mxu0 0.0
    %2269 = vmatprep.subr.mxu0 0.0
    %2270 = vmatpush2.msra.mxu0 0.0
    %2271 = vmatprep.subr.mxu0 0.0
    %2272 = vmatpush2.msra.mxu0 0.0
    %2273 = vmatprep.subr.mxu0 0.0
    %2274 = vmatpush2.msra.mxu0 0.0
    %2275 = vmatprep.subr.mxu0 0.0
    %2276 = vmatpush2.msra.mxu0 0.0
    %2277 = vmatprep.subr.mxu0 0.0
    %2278 = vmatpush2.msra.mxu0 0.0
    %2279 = vmatprep.subr.mxu0 0.0
    %2280 = vmatpush2.msra.mxu0 0.0
    %2281 = vmatprep.subr.mxu0 0.0
    %2282 = vmatpush2.msra.mxu0 0.0
    %2283 = vmatprep.subr.mxu0 0.0
    %2284 = vmatpush2.msra.mxu0 0.0
    %2285 = vmatprep.subr.mxu0 0.0
    %2286 = vmatpush2.msra.mxu0 0.0
    %2287 = vmatprep.subr.mxu0 0.0
    %2288 = vmatpush2.msra.mxu0 0.0
    %2289 = vmatprep.subr.mxu0 0.0
    %2290 = vmatpush2.msra.mxu0 0.0
    %2291 = vmatprep.subr.mxu0 0.0
    %2292 = vmatpush2.msra.mxu0 0.0
    %2293 = vmatprep.subr.mxu0 0.0
    %2294 = vmatpush2.msra.mxu0 0.0
    %2295 = vmatprep.mubr.f32.mxu0 0.0
    %2296 = vmatmul.mubr.f32.gmra.mxu0 %v2221
    %v2297 = vpop.f32.mrf.mxu0
    %v2298 = vadd.f32 %v2229, %v2297
    %v2299 = vpop.f32.mrf.mxu0
    %2300 = vmatprep.mubr.f32.mxu0 0.0
    %2301 = vmatmul.mubr.f32.gmra.mxu0 %v2222
    %v2302 = vpop.f32.mrf.mxu0
    %v2303 = vadd.f32 %v2229, %v2302
    %v2304 = vpop.f32.mrf.mxu0
    %2305 = vmatprep.mubr.f32.mxu0 0.0
    %2306 = vmatmul.mubr.f32.gmra.mxu0 %v2223
    %v2307 = vpop.f32.mrf.mxu0
    %v2308 = vadd.f32 %v2229, %v2307
    %v2309 = vpop.f32.mrf.mxu0
    %2310 = vmatprep.mubr.f32.mxu0 0.0
    %2311 = vmatmul.mubr.f32.gmra.mxu0 %v2224
    %v2312 = vpop.f32.mrf.mxu0
    %v2313 = vadd.f32 %v2229, %v2312
    %v2314 = vpop.f32.mrf.mxu0
    %2315 = vdwg.mxu0
    %v2316 = vadd.f32 %v2082, %v2298
    %v2317 = vadd.f32 %v2083, %v2303
    %v2318 = vadd.f32 %v2084, %v2308
    %v2319 = vadd.f32 %v2085, %v2313
    %v2320 = vsel %vm310, %v2316, 0.0
    %2321 = vadd.xlane.f32.xlu0 %v2320
    %v2322 = vpop.xlane.xlu0 %2321
    %v2323 = vsel %vm310, %v2317, 0.0
    %2324 = vadd.xlane.f32.xlu0 %v2323
    %v2325 = vpop.xlane.xlu0 %2324
    %v2326 = vsel %vm310, %v2318, 0.0
    %2327 = vadd.xlane.f32.xlu0 %v2326
    %v2328 = vpop.xlane.xlu0 %2327
    %v2329 = vsel %vm310, %v2319, 0.0
    %2330 = vadd.xlane.f32.xlu0 %v2329
    %v2331 = vpop.xlane.xlu0 %2330
    %v2332 = vmul.f32 %v2322, %v323
    %v2333 = vmul.f32 %v2325, %v323
    %v2334 = vmul.f32 %v2328, %v323
    %v2335 = vmul.f32 %v2331, %v323
    %v2336 = vsub.f32 %v2316, %v2332
    %v2337 = vsub.f32 %v2317, %v2333
    %v2338 = vsub.f32 %v2318, %v2334
    %v2339 = vsub.f32 %v2319, %v2335
    %v2340 = vmul.f32 %v2336, %v2336
    %v2341 = vmul.f32 %v2337, %v2337
    %v2342 = vmul.f32 %v2338, %v2338
    %v2343 = vmul.f32 %v2339, %v2339
    %v2344 = vsel %vm310, %v2340, 0.0
    %2345 = vadd.xlane.f32.xlu0 %v2344
    %v2346 = vpop.xlane.xlu0 %2345
    %v2347 = vsel %vm310, %v2341, 0.0
    %2348 = vadd.xlane.f32.xlu0 %v2347
    %v2349 = vpop.xlane.xlu0 %2348
    %v2350 = vsel %vm310, %v2342, 0.0
    %2351 = vadd.xlane.f32.xlu0 %v2350
    %v2352 = vpop.xlane.xlu0 %2351
    %v2353 = vsel %vm310, %v2343, 0.0
    %2354 = vadd.xlane.f32.xlu0 %v2353
    %v2355 = vpop.xlane.xlu0 %2354
    %v2356 = vmul.f32 %v2346, %v323
    %v2357 = vmul.f32 %v2349, %v323
    %v2358 = vmul.f32 %v2352, %v323
    %v2359 = vmul.f32 %v2355, %v323
    %v2360 = vadd.f32 %v2356, 1e-07
    %v2361 = vadd.f32 %v2357, 1e-07
    %v2362 = vadd.f32 %v2358, 1e-07
    %v2363 = vadd.f32 %v2359, 1e-07
    %v2364 = vrsqrt.pop %v2360
    %v2365 = vrsqrt.pop %v2361
    %v2366 = vrsqrt.pop %v2362
    %v2367 = vrsqrt.pop %v2363
    %v2368 = vmul.f32 %v2336, %v2364
    %v2369 = vmul.f32 %v2337, %v2365
    %v2370 = vmul.f32 %v2338, %v2366
    %v2371 = vmul.f32 %v2339, %v2367
    %v2372 = vlaneseq
    %v2373 = vshrl.u32 %v2372, 7
    %v2374 = vsub.s32 2, %v2373
    %v2375 = vrot.slane %v410, %v2374
    %v2376 = vmul.f32 %v2368, %v2375
    %v2377 = vmul.f32 %v2369, %v2375
    %v2378 = vmul.f32 %v2370, %v2375
    %v2379 = vmul.f32 %v2371, %v2375
    %v2380 = vlaneseq
    %v2381 = vshrl.u32 %v2380, 7
    %v2382 = vsub.s32 3, %v2381
    %v2383 = vrot.slane %v410, %v2382
    %v2384 = vadd.f32 %v2376, %v2383
    %v2385 = vadd.f32 %v2377, %v2383
    %v2386 = vadd.f32 %v2378, %v2383
    %v2387 = vadd.f32 %v2379, %v2383
    %s2388 = scalar_lea.vmem %s7, 128
    %v2389 = vld [vmem:[%s2388] sm:$0xff]
    %v2390 = vld [vmem:[%s2388 + $0x8] sm:$0xff]
    %v2391 = vld [vmem:[%s2388 + $0x10] sm:$0xff]
    %v2392 = vld [vmem:[%s2388 + $0x18] sm:$0xff]
    %v2393 = vld [vmem:[%s2388 + $0x20] sm:$0xff]
    %v2394 = vld [vmem:[%s2388 + $0x28] sm:$0xff]
    %v2395 = vld [vmem:[%s2388 + $0x30] sm:$0xff]
    %v2396 = vld [vmem:[%s2388 + $0x38] sm:$0xff]
    %v2397 = vld [vmem:[%s2388 + $0x40] sm:$0xff]
    %v2398 = vld [vmem:[%s2388 + $0x48] sm:$0xff]
    %v2399 = vld [vmem:[%s2388 + $0x50] sm:$0xff]
    %v2400 = vld [vmem:[%s2388 + $0x58] sm:$0xff]
    %v2401 = vld [vmem:[%s2388 + $0x60] sm:$0xff]
    %v2402 = vld [vmem:[%s2388 + $0x68] sm:$0xff]
    %v2403 = vld [vmem:[%s2388 + $0x70] sm:$0xff]
    %v2404 = vld [vmem:[%s2388 + $0x78] sm:$0xff]
    %s2405 = scalar_lea.vmem [#allocation7], 2
    %v2406 = vld [vmem:[%s2405] sm:$0x3]
    %s2407 = scalar_lea.vmem %s9, 64
    %v2408 = vld [vmem:[%s2407] sm:$0xff]
    %v2409 = vld [vmem:[%s2407 + $0x8] sm:$0xff]
    %v2410 = vld [vmem:[%s2407 + $0x10] sm:$0xff]
    %v2411 = vld [vmem:[%s2407 + $0x18] sm:$0xff]
    %v2412 = vld [vmem:[%s2407 + $0x20] sm:$0xff]
    %v2413 = vld [vmem:[%s2407 + $0x28] sm:$0xff]
    %v2414 = vld [vmem:[%s2407 + $0x30] sm:$0xff]
    %v2415 = vld [vmem:[%s2407 + $0x38] sm:$0xff]
    %s2416 = scalar_lea.vmem %s10, 1
    %v2417 = vld [vmem:[%s2416] sm:$0x1]
    %s2418 = scalar_lea.vmem %s11, 4
    %v2419 = vld [vmem:[%s2418] sm:$0xf]
    %s2420 = scalar_lea.vmem %s12, 64
    %v2421 = vld [vmem:[%s2420] sm:$0xff]
    %v2422 = vld [vmem:[%s2420 + $0x8] sm:$0xff]
    %v2423 = vld [vmem:[%s2420 + $0x10] sm:$0xff]
    %v2424 = vld [vmem:[%s2420 + $0x18] sm:$0xff]
    %v2425 = vld [vmem:[%s2420 + $0x20] sm:$0xff]
    %v2426 = vld [vmem:[%s2420 + $0x28] sm:$0xff]
    %v2427 = vld [vmem:[%s2420 + $0x30] sm:$0xff]
    %v2428 = vld [vmem:[%s2420 + $0x38] sm:$0xff]
    %s2429 = scalar_lea.vmem [#allocation8], 1
    %v2430 = vld [vmem:[%s2429] sm:$0x1]
    %s2431 = scalar_lea.vmem %s14, 128
    %v2432 = vld [vmem:[%s2431] sm:$0xff]
    %v2433 = vld [vmem:[%s2431 + $0x8] sm:$0xff]
    %v2434 = vld [vmem:[%s2431 + $0x10] sm:$0xff]
    %v2435 = vld [vmem:[%s2431 + $0x18] sm:$0xff]
    %v2436 = vld [vmem:[%s2431 + $0x20] sm:$0xff]
    %v2437 = vld [vmem:[%s2431 + $0x28] sm:$0xff]
    %v2438 = vld [vmem:[%s2431 + $0x30] sm:$0xff]
    %v2439 = vld [vmem:[%s2431 + $0x38] sm:$0xff]
    %v2440 = vld [vmem:[%s2431 + $0x40] sm:$0xff]
    %v2441 = vld [vmem:[%s2431 + $0x48] sm:$0xff]
    %v2442 = vld [vmem:[%s2431 + $0x50] sm:$0xff]
    %v2443 = vld [vmem:[%s2431 + $0x58] sm:$0xff]
    %v2444 = vld [vmem:[%s2431 + $0x60] sm:$0xff]
    %v2445 = vld [vmem:[%s2431 + $0x68] sm:$0xff]
    %v2446 = vld [vmem:[%s2431 + $0x70] sm:$0xff]
    %v2447 = vld [vmem:[%s2431 + $0x78] sm:$0xff]
    %s2448 = scalar_lea.vmem %s15, 1
    %v2449 = vld [vmem:[%s2448] sm:$0x1]
    %v2451 = vlaneseq
    %v2452 = vshrl.u32 %v2451, 7
    %v2453 = vsub.s32 0, %v2452
    %v2454 = vrot.slane %v2406, %v2453
    %v2455 = vlaneseq
    %v2456 = vshrl.u32 %v2455, 7
    %v2457 = vsub.s32 1, %v2456
    %v2458 = vrot.slane %v2406, %v2457
    %v2462 = vsel %vm310, %v2384, 0
    %v2465 = vsel %vm310, %v2385, 0
    %v2468 = vsel %vm310, %v2386, 0
    %v2471 = vsel %vm310, %v2387, 0
    %2473 = vmatprep.subr.mxu0 0.0
    %2474 = vmatpush1.msra.mxu0 0.0
    %2475 = vmatprep.subr.mxu0 0.0
    %2476 = vmatpush1.msra.mxu0 0.0
    %2477 = vmatprep.subr.mxu0 0.0
    %2478 = vmatpush1.msra.mxu0 0.0
    %2479 = vmatprep.subr.mxu0 0.0
    %2480 = vmatpush1.msra.mxu0 0.0
    %2481 = vmatprep.subr.mxu0 0.0
    %2482 = vmatpush1.msra.mxu0 0.0
    %2483 = vmatprep.subr.mxu0 0.0
    %2484 = vmatpush1.msra.mxu0 0.0
    %2485 = vmatprep.subr.mxu0 0.0
    %2486 = vmatpush1.msra.mxu0 0.0
    %2487 = vmatprep.subr.mxu0 0.0
    %2488 = vmatpush1.msra.mxu0 0.0
    %2489 = vmatprep.subr.mxu0 %v2404
    %2490 = vmatpush1.msra.mxu0 %v2403
    %2491 = vmatprep.subr.mxu0 %v2402
    %2492 = vmatpush1.msra.mxu0 %v2401
    %2493 = vmatprep.subr.mxu0 %v2400
    %2494 = vmatpush1.msra.mxu0 %v2399
    %2495 = vmatprep.subr.mxu0 %v2398
    %2496 = vmatpush1.msra.mxu0 %v2397
    %2497 = vmatprep.subr.mxu0 %v2396
    %2498 = vmatpush1.msra.mxu0 %v2395
    %2499 = vmatprep.subr.mxu0 %v2394
    %2500 = vmatpush1.msra.mxu0 %v2393
    %2501 = vmatprep.subr.mxu0 %v2392
    %2502 = vmatpush1.msra.mxu0 %v2391
    %2503 = vmatprep.subr.mxu0 %v2390
    %2504 = vmatpush1.msra.mxu0 %v2389
    %2505 = vmatprep.subr.mxu0 0.0
    %2506 = vmatpush2.msra.mxu0 0.0
    %2507 = vmatprep.subr.mxu0 0.0
    %2508 = vmatpush2.msra.mxu0 0.0
    %2509 = vmatprep.subr.mxu0 0.0
    %2510 = vmatpush2.msra.mxu0 0.0
    %2511 = vmatprep.subr.mxu0 0.0
    %2512 = vmatpush2.msra.mxu0 0.0
    %2513 = vmatprep.subr.mxu0 0.0
    %2514 = vmatpush2.msra.mxu0 0.0
    %2515 = vmatprep.subr.mxu0 0.0
    %2516 = vmatpush2.msra.mxu0 0.0
    %2517 = vmatprep.subr.mxu0 0.0
    %2518 = vmatpush2.msra.mxu0 0.0
    %2519 = vmatprep.subr.mxu0 0.0
    %2520 = vmatpush2.msra.mxu0 0.0
    %2521 = vmatprep.subr.mxu0 0.0
    %2522 = vmatpush2.msra.mxu0 0.0
    %2523 = vmatprep.subr.mxu0 0.0
    %2524 = vmatpush2.msra.mxu0 0.0
    %2525 = vmatprep.subr.mxu0 0.0
    %2526 = vmatpush2.msra.mxu0 0.0
    %2527 = vmatprep.subr.mxu0 0.0
    %2528 = vmatpush2.msra.mxu0 0.0
    %2529 = vmatprep.subr.mxu0 0.0
    %2530 = vmatpush2.msra.mxu0 0.0
    %2531 = vmatprep.subr.mxu0 0.0
    %2532 = vmatpush2.msra.mxu0 0.0
    %2533 = vmatprep.subr.mxu0 0.0
    %2534 = vmatpush2.msra.mxu0 0.0
    %2535 = vmatprep.subr.mxu0 0.0
    %2536 = vmatpush2.msra.mxu0 0.0
    %2537 = vmatprep.mubr.f32.mxu0 0.0
    %2538 = vmatmul.mubr.f32.gmra.mxu0 %v2462
    %v2539 = vpop.f32.mrf.mxu0
    %v2540 = vadd.f32 %v2454, %v2539
    %v2541 = vpop.f32.mrf.mxu0
    %v2542 = vadd.f32 %v2458, %v2541
    %2543 = vmatprep.mubr.f32.mxu0 0.0
    %2544 = vmatmul.mubr.f32.gmra.mxu0 %v2465
    %v2545 = vpop.f32.mrf.mxu0
    %v2546 = vadd.f32 %v2454, %v2545
    %v2547 = vpop.f32.mrf.mxu0
    %v2548 = vadd.f32 %v2458, %v2547
    %2549 = vmatprep.mubr.f32.mxu0 0.0
    %2550 = vmatmul.mubr.f32.gmra.mxu0 %v2468
    %v2551 = vpop.f32.mrf.mxu0
    %v2552 = vadd.f32 %v2454, %v2551
    %v2553 = vpop.f32.mrf.mxu0
    %v2554 = vadd.f32 %v2458, %v2553
    %2555 = vmatprep.mubr.f32.mxu0 0.0
    %2556 = vmatmul.mubr.f32.gmra.mxu0 %v2471
    %v2557 = vpop.f32.mrf.mxu0
    %v2558 = vadd.f32 %v2454, %v2557
    %v2559 = vpop.f32.mrf.mxu0
    %v2560 = vadd.f32 %v2458, %v2559
    %2561 = vdwg.mxu0
    %2563 = vrot.lane.b32.xlu0 %v2540, 64
    %v2564 = vpop.permute.xlu0 %2563
    %v2565 = vsel %vm552, %v2540, 0
    %v2567 = vsel %vm552, %v2564, 0
    %2569 = vmatprep.subr.mxu0 0.0
    %2570 = vmatpush1.xpose.msra.mxu0 0.0
    %2571 = vmatprep.subr.mxu0 0.0
    %2572 = vmatpush1.xpose.msra.mxu0 0.0
    %2573 = vmatprep.subr.mxu0 0.0
    %2574 = vmatpush1.xpose.msra.mxu0 0.0
    %2575 = vmatprep.subr.mxu0 0.0
    %2576 = vmatpush1.xpose.msra.mxu0 0.0
    %2577 = vmatprep.subr.mxu0 0.0
    %2578 = vmatpush1.xpose.msra.mxu0 0.0
    %2579 = vmatprep.subr.mxu0 0.0
    %2580 = vmatpush1.xpose.msra.mxu0 0.0
    %2581 = vmatprep.subr.mxu0 0.0
    %2582 = vmatpush1.xpose.msra.mxu0 0.0
    %2583 = vmatprep.subr.mxu0 0.0
    %2584 = vmatpush1.xpose.msra.mxu0 0.0
    %2585 = vmatprep.subr.mxu0 0.0
    %2586 = vmatpush1.xpose.msra.mxu0 0.0
    %2587 = vmatprep.subr.mxu0 0.0
    %2588 = vmatpush1.xpose.msra.mxu0 0.0
    %2589 = vmatprep.subr.mxu0 0.0
    %2590 = vmatpush1.xpose.msra.mxu0 0.0
    %2591 = vmatprep.subr.mxu0 0.0
    %2592 = vmatpush1.xpose.msra.mxu0 0.0
    %2593 = vmatprep.subr.mxu0 0.0
    %2594 = vmatpush1.xpose.msra.mxu0 0.0
    %2595 = vmatprep.subr.mxu0 0.0
    %2596 = vmatpush1.xpose.msra.mxu0 0.0
    %2597 = vmatprep.subr.mxu0 0.0
    %2598 = vmatpush1.xpose.msra.mxu0 0.0
    %2599 = vmatprep.subr.mxu0 0.0
    %2600 = vmatpush1.xpose.msra.mxu0 %v2567
    %2601 = vmatprep.subr.mxu0 0.0
    %2602 = vmatpush2.xpose.msra.mxu0 0.0
    %2603 = vmatprep.subr.mxu0 0.0
    %2604 = vmatpush2.xpose.msra.mxu0 0.0
    %2605 = vmatprep.subr.mxu0 0.0
    %2606 = vmatpush2.xpose.msra.mxu0 0.0
    %2607 = vmatprep.subr.mxu0 0.0
    %2608 = vmatpush2.xpose.msra.mxu0 0.0
    %2609 = vmatprep.subr.mxu0 0.0
    %2610 = vmatpush2.xpose.msra.mxu0 0.0
    %2611 = vmatprep.subr.mxu0 0.0
    %2612 = vmatpush2.xpose.msra.mxu0 0.0
    %2613 = vmatprep.subr.mxu0 0.0
    %2614 = vmatpush2.xpose.msra.mxu0 0.0
    %2615 = vmatprep.subr.mxu0 0.0
    %2616 = vmatpush2.xpose.msra.mxu0 0.0
    %2617 = vmatprep.subr.mxu0 0.0
    %2618 = vmatpush2.xpose.msra.mxu0 0.0
    %2619 = vmatprep.subr.mxu0 0.0
    %2620 = vmatpush2.xpose.msra.mxu0 0.0
    %2621 = vmatprep.subr.mxu0 0.0
    %2622 = vmatpush2.xpose.msra.mxu0 0.0
    %2623 = vmatprep.subr.mxu0 0.0
    %2624 = vmatpush2.xpose.msra.mxu0 0.0
    %2625 = vmatprep.subr.mxu0 0.0
    %2626 = vmatpush2.xpose.msra.mxu0 0.0
    %2627 = vmatprep.subr.mxu0 0.0
    %2628 = vmatpush2.xpose.msra.mxu0 0.0
    %2629 = vmatprep.subr.mxu0 0.0
    %2630 = vmatpush2.xpose.msra.mxu0 0.0
    %2631 = vmatprep.subr.mxu0 0.0
    %2632 = vmatpush2.xpose.msra.mxu0 0.0
    %2633 = vmatprep.mubr.f32.mxu0 0.0
    %2634 = vmatmul.mubr.f32.gmra.mxu0 %v2565
    %v2635 = vpop.f32.mrf.mxu0
    %v2636 = vadd.f32 0.0, %v2635
    %v2637 = vpop.f32.mrf.mxu0
    %2638 = vdwg.mxu0
    %v2639 = vmul.f32 %v2636, 0.17677669
    %v2640 = vadd.f32 %v2639, %v631
    %v2641 = vsel %vm633, %v2640, -inf
    %2642 = vmax.xlane.f32.xlu0 %v2641
    %v2643 = vpop.xlane.xlu0 %2642
    %v2644 = vsub.f32 %v2640, %v2643
    %v2645 = vmul.f32 %v2644, 1.442695
    %v2646 = vpow.pop %v2645
    %v2647 = vsel %vm633, %v2646, 0.0
    %2648 = vadd.xlane.f32.xlu0 %v2647
    %v2649 = vpop.xlane.xlu0 %2648
    %v2650 = vrcp.pop %v2649
    %v2651 = vmul.f32 %v2646, %v2650
    %v2653 = vsel %vm633, %v2651, 0
    %2655 = vmatprep.subr.mxu0 0.0
    %2656 = vmatpush1.msra.mxu0 0.0
    %2657 = vmatprep.subr.mxu0 0.0
    %2658 = vmatpush1.msra.mxu0 0.0
    %2659 = vmatprep.subr.mxu0 0.0
    %2660 = vmatpush1.msra.mxu0 0.0
    %2661 = vmatprep.subr.mxu0 0.0
    %2662 = vmatpush1.msra.mxu0 0.0
    %2663 = vmatprep.subr.mxu0 0.0
    %2664 = vmatpush1.msra.mxu0 0.0
    %2665 = vmatprep.subr.mxu0 0.0
    %2666 = vmatpush1.msra.mxu0 0.0
    %2667 = vmatprep.subr.mxu0 0.0
    %2668 = vmatpush1.msra.mxu0 0.0
    %2669 = vmatprep.subr.mxu0 0.0
    %2670 = vmatpush1.msra.mxu0 0.0
    %2671 = vmatprep.subr.mxu0 0.0
    %2672 = vmatpush1.msra.mxu0 0.0
    %2673 = vmatprep.subr.mxu0 0.0
    %2674 = vmatpush1.msra.mxu0 0.0
    %2675 = vmatprep.subr.mxu0 0.0
    %2676 = vmatpush1.msra.mxu0 0.0
    %2677 = vmatprep.subr.mxu0 0.0
    %2678 = vmatpush1.msra.mxu0 0.0
    %2679 = vmatprep.subr.mxu0 0.0
    %2680 = vmatpush1.msra.mxu0 0.0
    %2681 = vmatprep.subr.mxu0 0.0
    %2682 = vmatpush1.msra.mxu0 0.0
    %2683 = vmatprep.subr.mxu0 0.0
    %2684 = vmatpush1.msra.mxu0 0.0
    %2685 = vmatprep.subr.mxu0 0.0
    %2686 = vmatpush1.msra.mxu0 %v2542
    %2687 = vmatprep.subr.mxu0 0.0
    %2688 = vmatpush2.msra.mxu0 0.0
    %2689 = vmatprep.subr.mxu0 0.0
    %2690 = vmatpush2.msra.mxu0 0.0
    %2691 = vmatprep.subr.mxu0 0.0
    %2692 = vmatpush2.msra.mxu0 0.0
    %2693 = vmatprep.subr.mxu0 0.0
    %2694 = vmatpush2.msra.mxu0 0.0
    %2695 = vmatprep.subr.mxu0 0.0
    %2696 = vmatpush2.msra.mxu0 0.0
    %2697 = vmatprep.subr.mxu0 0.0
    %2698 = vmatpush2.msra.mxu0 0.0
    %2699 = vmatprep.subr.mxu0 0.0
    %2700 = vmatpush2.msra.mxu0 0.0
    %2701 = vmatprep.subr.mxu0 0.0
    %2702 = vmatpush2.msra.mxu0 0.0
    %2703 = vmatprep.subr.mxu0 0.0
    %2704 = vmatpush2.msra.mxu0 0.0
    %2705 = vmatprep.subr.mxu0 0.0
    %2706 = vmatpush2.msra.mxu0 0.0
    %2707 = vmatprep.subr.mxu0 0.0
    %2708 = vmatpush2.msra.mxu0 0.0
    %2709 = vmatprep.subr.mxu0 0.0
    %2710 = vmatpush2.msra.mxu0 0.0
    %2711 = vmatprep.subr.mxu0 0.0
    %2712 = vmatpush2.msra.mxu0 0.0
    %2713 = vmatprep.subr.mxu0 0.0
    %2714 = vmatpush2.msra.mxu0 0.0
    %2715 = vmatprep.subr.mxu0 0.0
    %2716 = vmatpush2.msra.mxu0 0.0
    %2717 = vmatprep.subr.mxu0 0.0
    %2718 = vmatpush2.msra.mxu0 0.0
    %2719 = vmatprep.mubr.f32.mxu0 0.0
    %2720 = vmatmul.mubr.f32.gmra.mxu0 %v2653
    %v2721 = vpop.f32.mrf.mxu0
    %v2722 = vadd.f32 0.0, %v2721
    %v2723 = vpop.f32.mrf.mxu0
    %2724 = vdwg.mxu0
    %2725 = vrot.lane.b32.xlu0 %v2540, 96
    %v2726 = vpop.permute.xlu0 %2725
    %2727 = vrot.lane.b32.xlu0 %v2540, 32
    %v2728 = vpop.permute.xlu0 %2727
    %v2729 = vsel %vm552, %v2726, 0
    %v2731 = vsel %vm552, %v2728, 0
    %2733 = vmatprep.subr.mxu0 0.0
    %2734 = vmatpush1.xpose.msra.mxu0 0.0
    %2735 = vmatprep.subr.mxu0 0.0
    %2736 = vmatpush1.xpose.msra.mxu0 0.0
    %2737 = vmatprep.subr.mxu0 0.0
    %2738 = vmatpush1.xpose.msra.mxu0 0.0
    %2739 = vmatprep.subr.mxu0 0.0
    %2740 = vmatpush1.xpose.msra.mxu0 0.0
    %2741 = vmatprep.subr.mxu0 0.0
    %2742 = vmatpush1.xpose.msra.mxu0 0.0
    %2743 = vmatprep.subr.mxu0 0.0
    %2744 = vmatpush1.xpose.msra.mxu0 0.0
    %2745 = vmatprep.subr.mxu0 0.0
    %2746 = vmatpush1.xpose.msra.mxu0 0.0
    %2747 = vmatprep.subr.mxu0 0.0
    %2748 = vmatpush1.xpose.msra.mxu0 0.0
    %2749 = vmatprep.subr.mxu0 0.0
    %2750 = vmatpush1.xpose.msra.mxu0 0.0
    %2751 = vmatprep.subr.mxu0 0.0
    %2752 = vmatpush1.xpose.msra.mxu0 0.0
    %2753 = vmatprep.subr.mxu0 0.0
    %2754 = vmatpush1.xpose.msra.mxu0 0.0
    %2755 = vmatprep.subr.mxu0 0.0
    %2756 = vmatpush1.xpose.msra.mxu0 0.0
    %2757 = vmatprep.subr.mxu0 0.0
    %2758 = vmatpush1.xpose.msra.mxu0 0.0
    %2759 = vmatprep.subr.mxu0 0.0
    %2760 = vmatpush1.xpose.msra.mxu0 0.0
    %2761 = vmatprep.subr.mxu0 0.0
    %2762 = vmatpush1.xpose.msra.mxu0 0.0
    %2763 = vmatprep.subr.mxu0 0.0
    %2764 = vmatpush1.xpose.msra.mxu0 %v2731
    %2765 = vmatprep.subr.mxu0 0.0
    %2766 = vmatpush2.xpose.msra.mxu0 0.0
    %2767 = vmatprep.subr.mxu0 0.0
    %2768 = vmatpush2.xpose.msra.mxu0 0.0
    %2769 = vmatprep.subr.mxu0 0.0
    %2770 = vmatpush2.xpose.msra.mxu0 0.0
    %2771 = vmatprep.subr.mxu0 0.0
    %2772 = vmatpush2.xpose.msra.mxu0 0.0
    %2773 = vmatprep.subr.mxu0 0.0
    %2774 = vmatpush2.xpose.msra.mxu0 0.0
    %2775 = vmatprep.subr.mxu0 0.0
    %2776 = vmatpush2.xpose.msra.mxu0 0.0
    %2777 = vmatprep.subr.mxu0 0.0
    %2778 = vmatpush2.xpose.msra.mxu0 0.0
    %2779 = vmatprep.subr.mxu0 0.0
    %2780 = vmatpush2.xpose.msra.mxu0 0.0
    %2781 = vmatprep.subr.mxu0 0.0
    %2782 = vmatpush2.xpose.msra.mxu0 0.0
    %2783 = vmatprep.subr.mxu0 0.0
    %2784 = vmatpush2.xpose.msra.mxu0 0.0
    %2785 = vmatprep.subr.mxu0 0.0
    %2786 = vmatpush2.xpose.msra.mxu0 0.0
    %2787 = vmatprep.subr.mxu0 0.0
    %2788 = vmatpush2.xpose.msra.mxu0 0.0
    %2789 = vmatprep.subr.mxu0 0.0
    %2790 = vmatpush2.xpose.msra.mxu0 0.0
    %2791 = vmatprep.subr.mxu0 0.0
    %2792 = vmatpush2.xpose.msra.mxu0 0.0
    %2793 = vmatprep.subr.mxu0 0.0
    %2794 = vmatpush2.xpose.msra.mxu0 0.0
    %2795 = vmatprep.subr.mxu0 0.0
    %2796 = vmatpush2.xpose.msra.mxu0 0.0
    %2797 = vmatprep.mubr.f32.mxu0 0.0
    %2798 = vmatmul.mubr.f32.gmra.mxu0 %v2729
    %v2799 = vpop.f32.mrf.mxu0
    %v2800 = vadd.f32 0.0, %v2799
    %v2801 = vpop.f32.mrf.mxu0
    %2802 = vdwg.mxu0
    %v2803 = vmul.f32 %v2800, 0.17677669
    %v2804 = vadd.f32 %v2803, %v631
    %v2805 = vsel %vm633, %v2804, -inf
    %2806 = vmax.xlane.f32.xlu0 %v2805
    %v2807 = vpop.xlane.xlu0 %2806
    %v2808 = vsub.f32 %v2804, %v2807
    %v2809 = vmul.f32 %v2808, 1.442695
    %v2810 = vpow.pop %v2809
    %v2811 = vsel %vm633, %v2810, 0.0
    %2812 = vadd.xlane.f32.xlu0 %v2811
    %v2813 = vpop.xlane.xlu0 %2812
    %v2814 = vrcp.pop %v2813
    %v2815 = vmul.f32 %v2810, %v2814
    %2817 = vrot.lane.b32.xlu0 %v2542, 96
    %v2818 = vpop.permute.xlu0 %2817
    %v2821 = vsel %vm633, %v2815, 0
    %2823 = vmatprep.subr.mxu0 0.0
    %2824 = vmatpush1.msra.mxu0 0.0
    %2825 = vmatprep.subr.mxu0 0.0
    %2826 = vmatpush1.msra.mxu0 0.0
    %2827 = vmatprep.subr.mxu0 0.0
    %2828 = vmatpush1.msra.mxu0 0.0
    %2829 = vmatprep.subr.mxu0 0.0
    %2830 = vmatpush1.msra.mxu0 0.0
    %2831 = vmatprep.subr.mxu0 0.0
    %2832 = vmatpush1.msra.mxu0 0.0
    %2833 = vmatprep.subr.mxu0 0.0
    %2834 = vmatpush1.msra.mxu0 0.0
    %2835 = vmatprep.subr.mxu0 0.0
    %2836 = vmatpush1.msra.mxu0 0.0
    %2837 = vmatprep.subr.mxu0 0.0
    %2838 = vmatpush1.msra.mxu0 0.0
    %2839 = vmatprep.subr.mxu0 0.0
    %2840 = vmatpush1.msra.mxu0 0.0
    %2841 = vmatprep.subr.mxu0 0.0
    %2842 = vmatpush1.msra.mxu0 0.0
    %2843 = vmatprep.subr.mxu0 0.0
    %2844 = vmatpush1.msra.mxu0 0.0
    %2845 = vmatprep.subr.mxu0 0.0
    %2846 = vmatpush1.msra.mxu0 0.0
    %2847 = vmatprep.subr.mxu0 0.0
    %2848 = vmatpush1.msra.mxu0 0.0
    %2849 = vmatprep.subr.mxu0 0.0
    %2850 = vmatpush1.msra.mxu0 0.0
    %2851 = vmatprep.subr.mxu0 0.0
    %2852 = vmatpush1.msra.mxu0 0.0
    %2853 = vmatprep.subr.mxu0 0.0
    %2854 = vmatpush1.msra.mxu0 %v2818
    %2855 = vmatprep.subr.mxu0 0.0
    %2856 = vmatpush2.msra.mxu0 0.0
    %2857 = vmatprep.subr.mxu0 0.0
    %2858 = vmatpush2.msra.mxu0 0.0
    %2859 = vmatprep.subr.mxu0 0.0
    %2860 = vmatpush2.msra.mxu0 0.0
    %2861 = vmatprep.subr.mxu0 0.0
    %2862 = vmatpush2.msra.mxu0 0.0
    %2863 = vmatprep.subr.mxu0 0.0
    %2864 = vmatpush2.msra.mxu0 0.0
    %2865 = vmatprep.subr.mxu0 0.0
    %2866 = vmatpush2.msra.mxu0 0.0
    %2867 = vmatprep.subr.mxu0 0.0
    %2868 = vmatpush2.msra.mxu0 0.0
    %2869 = vmatprep.subr.mxu0 0.0
    %2870 = vmatpush2.msra.mxu0 0.0
    %2871 = vmatprep.subr.mxu0 0.0
    %2872 = vmatpush2.msra.mxu0 0.0
    %2873 = vmatprep.subr.mxu0 0.0
    %2874 = vmatpush2.msra.mxu0 0.0
    %2875 = vmatprep.subr.mxu0 0.0
    %2876 = vmatpush2.msra.mxu0 0.0
    %2877 = vmatprep.subr.mxu0 0.0
    %2878 = vmatpush2.msra.mxu0 0.0
    %2879 = vmatprep.subr.mxu0 0.0
    %2880 = vmatpush2.msra.mxu0 0.0
    %2881 = vmatprep.subr.mxu0 0.0
    %2882 = vmatpush2.msra.mxu0 0.0
    %2883 = vmatprep.subr.mxu0 0.0
    %2884 = vmatpush2.msra.mxu0 0.0
    %2885 = vmatprep.subr.mxu0 0.0
    %2886 = vmatpush2.msra.mxu0 0.0
    %2887 = vmatprep.mubr.f32.mxu0 0.0
    %2888 = vmatmul.mubr.f32.gmra.mxu0 %v2821
    %v2889 = vpop.f32.mrf.mxu0
    %v2890 = vadd.f32 0.0, %v2889
    %v2891 = vpop.f32.mrf.mxu0
    %2892 = vdwg.mxu0
    %2894 = vrot.lane.b32.xlu0 %v2890, 32
    %v2895 = vpop.permute.xlu0 %2894
    %v2897 = vsel %vm552, %v2722, %v2895
    %2899 = vrot.lane.b32.xlu0 %v2546, 64
    %v2900 = vpop.permute.xlu0 %2899
    %v2901 = vsel %vm552, %v2546, 0
    %v2903 = vsel %vm552, %v2900, 0
    %2905 = vmatprep.subr.mxu0 0.0
    %2906 = vmatpush1.xpose.msra.mxu0 0.0
    %2907 = vmatprep.subr.mxu0 0.0
    %2908 = vmatpush1.xpose.msra.mxu0 0.0
    %2909 = vmatprep.subr.mxu0 0.0
    %2910 = vmatpush1.xpose.msra.mxu0 0.0
    %2911 = vmatprep.subr.mxu0 0.0
    %2912 = vmatpush1.xpose.msra.mxu0 0.0
    %2913 = vmatprep.subr.mxu0 0.0
    %2914 = vmatpush1.xpose.msra.mxu0 0.0
    %2915 = vmatprep.subr.mxu0 0.0
    %2916 = vmatpush1.xpose.msra.mxu0 0.0
    %2917 = vmatprep.subr.mxu0 0.0
    %2918 = vmatpush1.xpose.msra.mxu0 0.0
    %2919 = vmatprep.subr.mxu0 0.0
    %2920 = vmatpush1.xpose.msra.mxu0 0.0
    %2921 = vmatprep.subr.mxu0 0.0
    %2922 = vmatpush1.xpose.msra.mxu0 0.0
    %2923 = vmatprep.subr.mxu0 0.0
    %2924 = vmatpush1.xpose.msra.mxu0 0.0
    %2925 = vmatprep.subr.mxu0 0.0
    %2926 = vmatpush1.xpose.msra.mxu0 0.0
    %2927 = vmatprep.subr.mxu0 0.0
    %2928 = vmatpush1.xpose.msra.mxu0 0.0
    %2929 = vmatprep.subr.mxu0 0.0
    %2930 = vmatpush1.xpose.msra.mxu0 0.0
    %2931 = vmatprep.subr.mxu0 0.0
    %2932 = vmatpush1.xpose.msra.mxu0 0.0
    %2933 = vmatprep.subr.mxu0 0.0
    %2934 = vmatpush1.xpose.msra.mxu0 0.0
    %2935 = vmatprep.subr.mxu0 0.0
    %2936 = vmatpush1.xpose.msra.mxu0 %v2903
    %2937 = vmatprep.subr.mxu0 0.0
    %2938 = vmatpush2.xpose.msra.mxu0 0.0
    %2939 = vmatprep.subr.mxu0 0.0
    %2940 = vmatpush2.xpose.msra.mxu0 0.0
    %2941 = vmatprep.subr.mxu0 0.0
    %2942 = vmatpush2.xpose.msra.mxu0 0.0
    %2943 = vmatprep.subr.mxu0 0.0
    %2944 = vmatpush2.xpose.msra.mxu0 0.0
    %2945 = vmatprep.subr.mxu0 0.0
    %2946 = vmatpush2.xpose.msra.mxu0 0.0
    %2947 = vmatprep.subr.mxu0 0.0
    %2948 = vmatpush2.xpose.msra.mxu0 0.0
    %2949 = vmatprep.subr.mxu0 0.0
    %2950 = vmatpush2.xpose.msra.mxu0 0.0
    %2951 = vmatprep.subr.mxu0 0.0
    %2952 = vmatpush2.xpose.msra.mxu0 0.0
    %2953 = vmatprep.subr.mxu0 0.0
    %2954 = vmatpush2.xpose.msra.mxu0 0.0
    %2955 = vmatprep.subr.mxu0 0.0
    %2956 = vmatpush2.xpose.msra.mxu0 0.0
    %2957 = vmatprep.subr.mxu0 0.0
    %2958 = vmatpush2.xpose.msra.mxu0 0.0
    %2959 = vmatprep.subr.mxu0 0.0
    %2960 = vmatpush2.xpose.msra.mxu0 0.0
    %2961 = vmatprep.subr.mxu0 0.0
    %2962 = vmatpush2.xpose.msra.mxu0 0.0
    %2963 = vmatprep.subr.mxu0 0.0
    %2964 = vmatpush2.xpose.msra.mxu0 0.0
    %2965 = vmatprep.subr.mxu0 0.0
    %2966 = vmatpush2.xpose.msra.mxu0 0.0
    %2967 = vmatprep.subr.mxu0 0.0
    %2968 = vmatpush2.xpose.msra.mxu0 0.0
    %2969 = vmatprep.mubr.f32.mxu0 0.0
    %2970 = vmatmul.mubr.f32.gmra.mxu0 %v2901
    %v2971 = vpop.f32.mrf.mxu0
    %v2972 = vadd.f32 0.0, %v2971
    %v2973 = vpop.f32.mrf.mxu0
    %2974 = vdwg.mxu0
    %v2975 = vmul.f32 %v2972, 0.17677669
    %v2976 = vadd.f32 %v2975, %v972
    %v2977 = vsel %vm633, %v2976, -inf
    %2978 = vmax.xlane.f32.xlu0 %v2977
    %v2979 = vpop.xlane.xlu0 %2978
    %v2980 = vsub.f32 %v2976, %v2979
    %v2981 = vmul.f32 %v2980, 1.442695
    %v2982 = vpow.pop %v2981
    %v2983 = vsel %vm633, %v2982, 0.0
    %2984 = vadd.xlane.f32.xlu0 %v2983
    %v2985 = vpop.xlane.xlu0 %2984
    %v2986 = vrcp.pop %v2985
    %v2987 = vmul.f32 %v2982, %v2986
    %v2989 = vsel %vm633, %v2987, 0
    %2991 = vmatprep.subr.mxu0 0.0
    %2992 = vmatpush1.msra.mxu0 0.0
    %2993 = vmatprep.subr.mxu0 0.0
    %2994 = vmatpush1.msra.mxu0 0.0
    %2995 = vmatprep.subr.mxu0 0.0
    %2996 = vmatpush1.msra.mxu0 0.0
    %2997 = vmatprep.subr.mxu0 0.0
    %2998 = vmatpush1.msra.mxu0 0.0
    %2999 = vmatprep.subr.mxu0 0.0
    %3000 = vmatpush1.msra.mxu0 0.0
    %3001 = vmatprep.subr.mxu0 0.0
    %3002 = vmatpush1.msra.mxu0 0.0
    %3003 = vmatprep.subr.mxu0 0.0
    %3004 = vmatpush1.msra.mxu0 0.0
    %3005 = vmatprep.subr.mxu0 0.0
    %3006 = vmatpush1.msra.mxu0 0.0
    %3007 = vmatprep.subr.mxu0 0.0
    %3008 = vmatpush1.msra.mxu0 0.0
    %3009 = vmatprep.subr.mxu0 0.0
    %3010 = vmatpush1.msra.mxu0 0.0
    %3011 = vmatprep.subr.mxu0 0.0
    %3012 = vmatpush1.msra.mxu0 0.0
    %3013 = vmatprep.subr.mxu0 0.0
    %3014 = vmatpush1.msra.mxu0 0.0
    %3015 = vmatprep.subr.mxu0 0.0
    %3016 = vmatpush1.msra.mxu0 0.0
    %3017 = vmatprep.subr.mxu0 0.0
    %3018 = vmatpush1.msra.mxu0 0.0
    %3019 = vmatprep.subr.mxu0 0.0
    %3020 = vmatpush1.msra.mxu0 0.0
    %3021 = vmatprep.subr.mxu0 0.0
    %3022 = vmatpush1.msra.mxu0 %v2548
    %3023 = vmatprep.subr.mxu0 0.0
    %3024 = vmatpush2.msra.mxu0 0.0
    %3025 = vmatprep.subr.mxu0 0.0
    %3026 = vmatpush2.msra.mxu0 0.0
    %3027 = vmatprep.subr.mxu0 0.0
    %3028 = vmatpush2.msra.mxu0 0.0
    %3029 = vmatprep.subr.mxu0 0.0
    %3030 = vmatpush2.msra.mxu0 0.0
    %3031 = vmatprep.subr.mxu0 0.0
    %3032 = vmatpush2.msra.mxu0 0.0
    %3033 = vmatprep.subr.mxu0 0.0
    %3034 = vmatpush2.msra.mxu0 0.0
    %3035 = vmatprep.subr.mxu0 0.0
    %3036 = vmatpush2.msra.mxu0 0.0
    %3037 = vmatprep.subr.mxu0 0.0
    %3038 = vmatpush2.msra.mxu0 0.0
    %3039 = vmatprep.subr.mxu0 0.0
    %3040 = vmatpush2.msra.mxu0 0.0
    %3041 = vmatprep.subr.mxu0 0.0
    %3042 = vmatpush2.msra.mxu0 0.0
    %3043 = vmatprep.subr.mxu0 0.0
    %3044 = vmatpush2.msra.mxu0 0.0
    %3045 = vmatprep.subr.mxu0 0.0
    %3046 = vmatpush2.msra.mxu0 0.0
    %3047 = vmatprep.subr.mxu0 0.0
    %3048 = vmatpush2.msra.mxu0 0.0
    %3049 = vmatprep.subr.mxu0 0.0
    %3050 = vmatpush2.msra.mxu0 0.0
    %3051 = vmatprep.subr.mxu0 0.0
    %3052 = vmatpush2.msra.mxu0 0.0
    %3053 = vmatprep.subr.mxu0 0.0
    %3054 = vmatpush2.msra.mxu0 0.0
    %3055 = vmatprep.mubr.f32.mxu0 0.0
    %3056 = vmatmul.mubr.f32.gmra.mxu0 %v2989
    %v3057 = vpop.f32.mrf.mxu0
    %v3058 = vadd.f32 0.0, %v3057
    %v3059 = vpop.f32.mrf.mxu0
    %3060 = vdwg.mxu0
    %3061 = vrot.lane.b32.xlu0 %v2546, 96
    %v3062 = vpop.permute.xlu0 %3061
    %3063 = vrot.lane.b32.xlu0 %v2546, 32
    %v3064 = vpop.permute.xlu0 %3063
    %v3065 = vsel %vm552, %v3062, 0
    %v3067 = vsel %vm552, %v3064, 0
    %3069 = vmatprep.subr.mxu0 0.0
    %3070 = vmatpush1.xpose.msra.mxu0 0.0
    %3071 = vmatprep.subr.mxu0 0.0
    %3072 = vmatpush1.xpose.msra.mxu0 0.0
    %3073 = vmatprep.subr.mxu0 0.0
    %3074 = vmatpush1.xpose.msra.mxu0 0.0
    %3075 = vmatprep.subr.mxu0 0.0
    %3076 = vmatpush1.xpose.msra.mxu0 0.0
    %3077 = vmatprep.subr.mxu0 0.0
    %3078 = vmatpush1.xpose.msra.mxu0 0.0
    %3079 = vmatprep.subr.mxu0 0.0
    %3080 = vmatpush1.xpose.msra.mxu0 0.0
    %3081 = vmatprep.subr.mxu0 0.0
    %3082 = vmatpush1.xpose.msra.mxu0 0.0
    %3083 = vmatprep.subr.mxu0 0.0
    %3084 = vmatpush1.xpose.msra.mxu0 0.0
    %3085 = vmatprep.subr.mxu0 0.0
    %3086 = vmatpush1.xpose.msra.mxu0 0.0
    %3087 = vmatprep.subr.mxu0 0.0
    %3088 = vmatpush1.xpose.msra.mxu0 0.0
    %3089 = vmatprep.subr.mxu0 0.0
    %3090 = vmatpush1.xpose.msra.mxu0 0.0
    %3091 = vmatprep.subr.mxu0 0.0
    %3092 = vmatpush1.xpose.msra.mxu0 0.0
    %3093 = vmatprep.subr.mxu0 0.0
    %3094 = vmatpush1.xpose.msra.mxu0 0.0
    %3095 = vmatprep.subr.mxu0 0.0
    %3096 = vmatpush1.xpose.msra.mxu0 0.0
    %3097 = vmatprep.subr.mxu0 0.0
    %3098 = vmatpush1.xpose.msra.mxu0 0.0
    %3099 = vmatprep.subr.mxu0 0.0
    %3100 = vmatpush1.xpose.msra.mxu0 %v3067
    %3101 = vmatprep.subr.mxu0 0.0
    %3102 = vmatpush2.xpose.msra.mxu0 0.0
    %3103 = vmatprep.subr.mxu0 0.0
    %3104 = vmatpush2.xpose.msra.mxu0 0.0
    %3105 = vmatprep.subr.mxu0 0.0
    %3106 = vmatpush2.xpose.msra.mxu0 0.0
    %3107 = vmatprep.subr.mxu0 0.0
    %3108 = vmatpush2.xpose.msra.mxu0 0.0
    %3109 = vmatprep.subr.mxu0 0.0
    %3110 = vmatpush2.xpose.msra.mxu0 0.0
    %3111 = vmatprep.subr.mxu0 0.0
    %3112 = vmatpush2.xpose.msra.mxu0 0.0
    %3113 = vmatprep.subr.mxu0 0.0
    %3114 = vmatpush2.xpose.msra.mxu0 0.0
    %3115 = vmatprep.subr.mxu0 0.0
    %3116 = vmatpush2.xpose.msra.mxu0 0.0
    %3117 = vmatprep.subr.mxu0 0.0
    %3118 = vmatpush2.xpose.msra.mxu0 0.0
    %3119 = vmatprep.subr.mxu0 0.0
    %3120 = vmatpush2.xpose.msra.mxu0 0.0
    %3121 = vmatprep.subr.mxu0 0.0
    %3122 = vmatpush2.xpose.msra.mxu0 0.0
    %3123 = vmatprep.subr.mxu0 0.0
    %3124 = vmatpush2.xpose.msra.mxu0 0.0
    %3125 = vmatprep.subr.mxu0 0.0
    %3126 = vmatpush2.xpose.msra.mxu0 0.0
    %3127 = vmatprep.subr.mxu0 0.0
    %3128 = vmatpush2.xpose.msra.mxu0 0.0
    %3129 = vmatprep.subr.mxu0 0.0
    %3130 = vmatpush2.xpose.msra.mxu0 0.0
    %3131 = vmatprep.subr.mxu0 0.0
    %3132 = vmatpush2.xpose.msra.mxu0 0.0
    %3133 = vmatprep.mubr.f32.mxu0 0.0
    %3134 = vmatmul.mubr.f32.gmra.mxu0 %v3065
    %v3135 = vpop.f32.mrf.mxu0
    %v3136 = vadd.f32 0.0, %v3135
    %v3137 = vpop.f32.mrf.mxu0
    %3138 = vdwg.mxu0
    %v3139 = vmul.f32 %v3136, 0.17677669
    %v3140 = vadd.f32 %v3139, %v972
    %v3141 = vsel %vm633, %v3140, -inf
    %3142 = vmax.xlane.f32.xlu0 %v3141
    %v3143 = vpop.xlane.xlu0 %3142
    %v3144 = vsub.f32 %v3140, %v3143
    %v3145 = vmul.f32 %v3144, 1.442695
    %v3146 = vpow.pop %v3145
    %v3147 = vsel %vm633, %v3146, 0.0
    %3148 = vadd.xlane.f32.xlu0 %v3147
    %v3149 = vpop.xlane.xlu0 %3148
    %v3150 = vrcp.pop %v3149
    %v3151 = vmul.f32 %v3146, %v3150
    %3153 = vrot.lane.b32.xlu0 %v2548, 96
    %v3154 = vpop.permute.xlu0 %3153
    %v3157 = vsel %vm633, %v3151, 0
    %3159 = vmatprep.subr.mxu0 0.0
    %3160 = vmatpush1.msra.mxu0 0.0
    %3161 = vmatprep.subr.mxu0 0.0
    %3162 = vmatpush1.msra.mxu0 0.0
    %3163 = vmatprep.subr.mxu0 0.0
    %3164 = vmatpush1.msra.mxu0 0.0
    %3165 = vmatprep.subr.mxu0 0.0
    %3166 = vmatpush1.msra.mxu0 0.0
    %3167 = vmatprep.subr.mxu0 0.0
    %3168 = vmatpush1.msra.mxu0 0.0
    %3169 = vmatprep.subr.mxu0 0.0
    %3170 = vmatpush1.msra.mxu0 0.0
    %3171 = vmatprep.subr.mxu0 0.0
    %3172 = vmatpush1.msra.mxu0 0.0
    %3173 = vmatprep.subr.mxu0 0.0
    %3174 = vmatpush1.msra.mxu0 0.0
    %3175 = vmatprep.subr.mxu0 0.0
    %3176 = vmatpush1.msra.mxu0 0.0
    %3177 = vmatprep.subr.mxu0 0.0
    %3178 = vmatpush1.msra.mxu0 0.0
    %3179 = vmatprep.subr.mxu0 0.0
    %3180 = vmatpush1.msra.mxu0 0.0
    %3181 = vmatprep.subr.mxu0 0.0
    %3182 = vmatpush1.msra.mxu0 0.0
    %3183 = vmatprep.subr.mxu0 0.0
    %3184 = vmatpush1.msra.mxu0 0.0
    %3185 = vmatprep.subr.mxu0 0.0
    %3186 = vmatpush1.msra.mxu0 0.0
    %3187 = vmatprep.subr.mxu0 0.0
    %3188 = vmatpush1.msra.mxu0 0.0
    %3189 = vmatprep.subr.mxu0 0.0
    %3190 = vmatpush1.msra.mxu0 %v3154
    %3191 = vmatprep.subr.mxu0 0.0
    %3192 = vmatpush2.msra.mxu0 0.0
    %3193 = vmatprep.subr.mxu0 0.0
    %3194 = vmatpush2.msra.mxu0 0.0
    %3195 = vmatprep.subr.mxu0 0.0
    %3196 = vmatpush2.msra.mxu0 0.0
    %3197 = vmatprep.subr.mxu0 0.0
    %3198 = vmatpush2.msra.mxu0 0.0
    %3199 = vmatprep.subr.mxu0 0.0
    %3200 = vmatpush2.msra.mxu0 0.0
    %3201 = vmatprep.subr.mxu0 0.0
    %3202 = vmatpush2.msra.mxu0 0.0
    %3203 = vmatprep.subr.mxu0 0.0
    %3204 = vmatpush2.msra.mxu0 0.0
    %3205 = vmatprep.subr.mxu0 0.0
    %3206 = vmatpush2.msra.mxu0 0.0
    %3207 = vmatprep.subr.mxu0 0.0
    %3208 = vmatpush2.msra.mxu0 0.0
    %3209 = vmatprep.subr.mxu0 0.0
    %3210 = vmatpush2.msra.mxu0 0.0
    %3211 = vmatprep.subr.mxu0 0.0
    %3212 = vmatpush2.msra.mxu0 0.0
    %3213 = vmatprep.subr.mxu0 0.0
    %3214 = vmatpush2.msra.mxu0 0.0
    %3215 = vmatprep.subr.mxu0 0.0
    %3216 = vmatpush2.msra.mxu0 0.0
    %3217 = vmatprep.subr.mxu0 0.0
    %3218 = vmatpush2.msra.mxu0 0.0
    %3219 = vmatprep.subr.mxu0 0.0
    %3220 = vmatpush2.msra.mxu0 0.0
    %3221 = vmatprep.subr.mxu0 0.0
    %3222 = vmatpush2.msra.mxu0 0.0
    %3223 = vmatprep.mubr.f32.mxu0 0.0
    %3224 = vmatmul.mubr.f32.gmra.mxu0 %v3157
    %v3225 = vpop.f32.mrf.mxu0
    %v3226 = vadd.f32 0.0, %v3225
    %v3227 = vpop.f32.mrf.mxu0
    %3228 = vdwg.mxu0
    %3230 = vrot.lane.b32.xlu0 %v3226, 32
    %v3231 = vpop.permute.xlu0 %3230
    %v3233 = vsel %vm552, %v3058, %v3231
    %3235 = vrot.lane.b32.xlu0 %v2552, 64
    %v3236 = vpop.permute.xlu0 %3235
    %v3237 = vsel %vm552, %v2552, 0
    %v3239 = vsel %vm552, %v3236, 0
    %3241 = vmatprep.subr.mxu0 0.0
    %3242 = vmatpush1.xpose.msra.mxu0 0.0
    %3243 = vmatprep.subr.mxu0 0.0
    %3244 = vmatpush1.xpose.msra.mxu0 0.0
    %3245 = vmatprep.subr.mxu0 0.0
    %3246 = vmatpush1.xpose.msra.mxu0 0.0
    %3247 = vmatprep.subr.mxu0 0.0
    %3248 = vmatpush1.xpose.msra.mxu0 0.0
    %3249 = vmatprep.subr.mxu0 0.0
    %3250 = vmatpush1.xpose.msra.mxu0 0.0
    %3251 = vmatprep.subr.mxu0 0.0
    %3252 = vmatpush1.xpose.msra.mxu0 0.0
    %3253 = vmatprep.subr.mxu0 0.0
    %3254 = vmatpush1.xpose.msra.mxu0 0.0
    %3255 = vmatprep.subr.mxu0 0.0
    %3256 = vmatpush1.xpose.msra.mxu0 0.0
    %3257 = vmatprep.subr.mxu0 0.0
    %3258 = vmatpush1.xpose.msra.mxu0 0.0
    %3259 = vmatprep.subr.mxu0 0.0
    %3260 = vmatpush1.xpose.msra.mxu0 0.0
    %3261 = vmatprep.subr.mxu0 0.0
    %3262 = vmatpush1.xpose.msra.mxu0 0.0
    %3263 = vmatprep.subr.mxu0 0.0
    %3264 = vmatpush1.xpose.msra.mxu0 0.0
    %3265 = vmatprep.subr.mxu0 0.0
    %3266 = vmatpush1.xpose.msra.mxu0 0.0
    %3267 = vmatprep.subr.mxu0 0.0
    %3268 = vmatpush1.xpose.msra.mxu0 0.0
    %3269 = vmatprep.subr.mxu0 0.0
    %3270 = vmatpush1.xpose.msra.mxu0 0.0
    %3271 = vmatprep.subr.mxu0 0.0
    %3272 = vmatpush1.xpose.msra.mxu0 %v3239
    %3273 = vmatprep.subr.mxu0 0.0
    %3274 = vmatpush2.xpose.msra.mxu0 0.0
    %3275 = vmatprep.subr.mxu0 0.0
    %3276 = vmatpush2.xpose.msra.mxu0 0.0
    %3277 = vmatprep.subr.mxu0 0.0
    %3278 = vmatpush2.xpose.msra.mxu0 0.0
    %3279 = vmatprep.subr.mxu0 0.0
    %3280 = vmatpush2.xpose.msra.mxu0 0.0
    %3281 = vmatprep.subr.mxu0 0.0
    %3282 = vmatpush2.xpose.msra.mxu0 0.0
    %3283 = vmatprep.subr.mxu0 0.0
    %3284 = vmatpush2.xpose.msra.mxu0 0.0
    %3285 = vmatprep.subr.mxu0 0.0
    %3286 = vmatpush2.xpose.msra.mxu0 0.0
    %3287 = vmatprep.subr.mxu0 0.0
    %3288 = vmatpush2.xpose.msra.mxu0 0.0
    %3289 = vmatprep.subr.mxu0 0.0
    %3290 = vmatpush2.xpose.msra.mxu0 0.0
    %3291 = vmatprep.subr.mxu0 0.0
    %3292 = vmatpush2.xpose.msra.mxu0 0.0
    %3293 = vmatprep.subr.mxu0 0.0
    %3294 = vmatpush2.xpose.msra.mxu0 0.0
    %3295 = vmatprep.subr.mxu0 0.0
    %3296 = vmatpush2.xpose.msra.mxu0 0.0
    %3297 = vmatprep.subr.mxu0 0.0
    %3298 = vmatpush2.xpose.msra.mxu0 0.0
    %3299 = vmatprep.subr.mxu0 0.0
    %3300 = vmatpush2.xpose.msra.mxu0 0.0
    %3301 = vmatprep.subr.mxu0 0.0
    %3302 = vmatpush2.xpose.msra.mxu0 0.0
    %3303 = vmatprep.subr.mxu0 0.0
    %3304 = vmatpush2.xpose.msra.mxu0 0.0
    %3305 = vmatprep.mubr.f32.mxu0 0.0
    %3306 = vmatmul.mubr.f32.gmra.mxu0 %v3237
    %v3307 = vpop.f32.mrf.mxu0
    %v3308 = vadd.f32 0.0, %v3307
    %v3309 = vpop.f32.mrf.mxu0
    %3310 = vdwg.mxu0
    %v3311 = vmul.f32 %v3308, 0.17677669
    %v3312 = vadd.f32 %v3311, %v1312
    %v3313 = vsel %vm633, %v3312, -inf
    %3314 = vmax.xlane.f32.xlu0 %v3313
    %v3315 = vpop.xlane.xlu0 %3314
    %v3316 = vsub.f32 %v3312, %v3315
    %v3317 = vmul.f32 %v3316, 1.442695
    %v3318 = vpow.pop %v3317
    %v3319 = vsel %vm633, %v3318, 0.0
    %3320 = vadd.xlane.f32.xlu0 %v3319
    %v3321 = vpop.xlane.xlu0 %3320
    %v3322 = vrcp.pop %v3321
    %v3323 = vmul.f32 %v3318, %v3322
    %v3325 = vsel %vm633, %v3323, 0
    %3327 = vmatprep.subr.mxu0 0.0
    %3328 = vmatpush1.msra.mxu0 0.0
    %3329 = vmatprep.subr.mxu0 0.0
    %3330 = vmatpush1.msra.mxu0 0.0
    %3331 = vmatprep.subr.mxu0 0.0
    %3332 = vmatpush1.msra.mxu0 0.0
    %3333 = vmatprep.subr.mxu0 0.0
    %3334 = vmatpush1.msra.mxu0 0.0
    %3335 = vmatprep.subr.mxu0 0.0
    %3336 = vmatpush1.msra.mxu0 0.0
    %3337 = vmatprep.subr.mxu0 0.0
    %3338 = vmatpush1.msra.mxu0 0.0
    %3339 = vmatprep.subr.mxu0 0.0
    %3340 = vmatpush1.msra.mxu0 0.0
    %3341 = vmatprep.subr.mxu0 0.0
    %3342 = vmatpush1.msra.mxu0 0.0
    %3343 = vmatprep.subr.mxu0 0.0
    %3344 = vmatpush1.msra.mxu0 0.0
    %3345 = vmatprep.subr.mxu0 0.0
    %3346 = vmatpush1.msra.mxu0 0.0
    %3347 = vmatprep.subr.mxu0 0.0
    %3348 = vmatpush1.msra.mxu0 0.0
    %3349 = vmatprep.subr.mxu0 0.0
    %3350 = vmatpush1.msra.mxu0 0.0
    %3351 = vmatprep.subr.mxu0 0.0
    %3352 = vmatpush1.msra.mxu0 0.0
    %3353 = vmatprep.subr.mxu0 0.0
    %3354 = vmatpush1.msra.mxu0 0.0
    %3355 = vmatprep.subr.mxu0 0.0
    %3356 = vmatpush1.msra.mxu0 0.0
    %3357 = vmatprep.subr.mxu0 0.0
    %3358 = vmatpush1.msra.mxu0 %v2554
    %3359 = vmatprep.subr.mxu0 0.0
    %3360 = vmatpush2.msra.mxu0 0.0
    %3361 = vmatprep.subr.mxu0 0.0
    %3362 = vmatpush2.msra.mxu0 0.0
    %3363 = vmatprep.subr.mxu0 0.0
    %3364 = vmatpush2.msra.mxu0 0.0
    %3365 = vmatprep.subr.mxu0 0.0
    %3366 = vmatpush2.msra.mxu0 0.0
    %3367 = vmatprep.subr.mxu0 0.0
    %3368 = vmatpush2.msra.mxu0 0.0
    %3369 = vmatprep.subr.mxu0 0.0
    %3370 = vmatpush2.msra.mxu0 0.0
    %3371 = vmatprep.subr.mxu0 0.0
    %3372 = vmatpush2.msra.mxu0 0.0
    %3373 = vmatprep.subr.mxu0 0.0
    %3374 = vmatpush2.msra.mxu0 0.0
    %3375 = vmatprep.subr.mxu0 0.0
    %3376 = vmatpush2.msra.mxu0 0.0
    %3377 = vmatprep.subr.mxu0 0.0
    %3378 = vmatpush2.msra.mxu0 0.0
    %3379 = vmatprep.subr.mxu0 0.0
    %3380 = vmatpush2.msra.mxu0 0.0
    %3381 = vmatprep.subr.mxu0 0.0
    %3382 = vmatpush2.msra.mxu0 0.0
    %3383 = vmatprep.subr.mxu0 0.0
    %3384 = vmatpush2.msra.mxu0 0.0
    %3385 = vmatprep.subr.mxu0 0.0
    %3386 = vmatpush2.msra.mxu0 0.0
    %3387 = vmatprep.subr.mxu0 0.0
    %3388 = vmatpush2.msra.mxu0 0.0
    %3389 = vmatprep.subr.mxu0 0.0
    %3390 = vmatpush2.msra.mxu0 0.0
    %3391 = vmatprep.mubr.f32.mxu0 0.0
    %3392 = vmatmul.mubr.f32.gmra.mxu0 %v3325
    %v3393 = vpop.f32.mrf.mxu0
    %v3394 = vadd.f32 0.0, %v3393
    %v3395 = vpop.f32.mrf.mxu0
    %3396 = vdwg.mxu0
    %3397 = vrot.lane.b32.xlu0 %v2552, 96
    %v3398 = vpop.permute.xlu0 %3397
    %3399 = vrot.lane.b32.xlu0 %v2552, 32
    %v3400 = vpop.permute.xlu0 %3399
    %v3401 = vsel %vm552, %v3398, 0
    %v3403 = vsel %vm552, %v3400, 0
    %3405 = vmatprep.subr.mxu0 0.0
    %3406 = vmatpush1.xpose.msra.mxu0 0.0
    %3407 = vmatprep.subr.mxu0 0.0
    %3408 = vmatpush1.xpose.msra.mxu0 0.0
    %3409 = vmatprep.subr.mxu0 0.0
    %3410 = vmatpush1.xpose.msra.mxu0 0.0
    %3411 = vmatprep.subr.mxu0 0.0
    %3412 = vmatpush1.xpose.msra.mxu0 0.0
    %3413 = vmatprep.subr.mxu0 0.0
    %3414 = vmatpush1.xpose.msra.mxu0 0.0
    %3415 = vmatprep.subr.mxu0 0.0
    %3416 = vmatpush1.xpose.msra.mxu0 0.0
    %3417 = vmatprep.subr.mxu0 0.0
    %3418 = vmatpush1.xpose.msra.mxu0 0.0
    %3419 = vmatprep.subr.mxu0 0.0
    %3420 = vmatpush1.xpose.msra.mxu0 0.0
    %3421 = vmatprep.subr.mxu0 0.0
    %3422 = vmatpush1.xpose.msra.mxu0 0.0
    %3423 = vmatprep.subr.mxu0 0.0
    %3424 = vmatpush1.xpose.msra.mxu0 0.0
    %3425 = vmatprep.subr.mxu0 0.0
    %3426 = vmatpush1.xpose.msra.mxu0 0.0
    %3427 = vmatprep.subr.mxu0 0.0
    %3428 = vmatpush1.xpose.msra.mxu0 0.0
    %3429 = vmatprep.subr.mxu0 0.0
    %3430 = vmatpush1.xpose.msra.mxu0 0.0
    %3431 = vmatprep.subr.mxu0 0.0
    %3432 = vmatpush1.xpose.msra.mxu0 0.0
    %3433 = vmatprep.subr.mxu0 0.0
    %3434 = vmatpush1.xpose.msra.mxu0 0.0
    %3435 = vmatprep.subr.mxu0 0.0
    %3436 = vmatpush1.xpose.msra.mxu0 %v3403
    %3437 = vmatprep.subr.mxu0 0.0
    %3438 = vmatpush2.xpose.msra.mxu0 0.0
    %3439 = vmatprep.subr.mxu0 0.0
    %3440 = vmatpush2.xpose.msra.mxu0 0.0
    %3441 = vmatprep.subr.mxu0 0.0
    %3442 = vmatpush2.xpose.msra.mxu0 0.0
    %3443 = vmatprep.subr.mxu0 0.0
    %3444 = vmatpush2.xpose.msra.mxu0 0.0
    %3445 = vmatprep.subr.mxu0 0.0
    %3446 = vmatpush2.xpose.msra.mxu0 0.0
    %3447 = vmatprep.subr.mxu0 0.0
    %3448 = vmatpush2.xpose.msra.mxu0 0.0
    %3449 = vmatprep.subr.mxu0 0.0
    %3450 = vmatpush2.xpose.msra.mxu0 0.0
    %3451 = vmatprep.subr.mxu0 0.0
    %3452 = vmatpush2.xpose.msra.mxu0 0.0
    %3453 = vmatprep.subr.mxu0 0.0
    %3454 = vmatpush2.xpose.msra.mxu0 0.0
    %3455 = vmatprep.subr.mxu0 0.0
    %3456 = vmatpush2.xpose.msra.mxu0 0.0
    %3457 = vmatprep.subr.mxu0 0.0
    %3458 = vmatpush2.xpose.msra.mxu0 0.0
    %3459 = vmatprep.subr.mxu0 0.0
    %3460 = vmatpush2.xpose.msra.mxu0 0.0
    %3461 = vmatprep.subr.mxu0 0.0
    %3462 = vmatpush2.xpose.msra.mxu0 0.0
    %3463 = vmatprep.subr.mxu0 0.0
    %3464 = vmatpush2.xpose.msra.mxu0 0.0
    %3465 = vmatprep.subr.mxu0 0.0
    %3466 = vmatpush2.xpose.msra.mxu0 0.0
    %3467 = vmatprep.subr.mxu0 0.0
    %3468 = vmatpush2.xpose.msra.mxu0 0.0
    %3469 = vmatprep.mubr.f32.mxu0 0.0
    %3470 = vmatmul.mubr.f32.gmra.mxu0 %v3401
    %v3471 = vpop.f32.mrf.mxu0
    %v3472 = vadd.f32 0.0, %v3471
    %v3473 = vpop.f32.mrf.mxu0
    %3474 = vdwg.mxu0
    %v3475 = vmul.f32 %v3472, 0.17677669
    %v3476 = vadd.f32 %v3475, %v1312
    %v3477 = vsel %vm633, %v3476, -inf
    %3478 = vmax.xlane.f32.xlu0 %v3477
    %v3479 = vpop.xlane.xlu0 %3478
    %v3480 = vsub.f32 %v3476, %v3479
    %v3481 = vmul.f32 %v3480, 1.442695
    %v3482 = vpow.pop %v3481
    %v3483 = vsel %vm633, %v3482, 0.0
    %3484 = vadd.xlane.f32.xlu0 %v3483
    %v3485 = vpop.xlane.xlu0 %3484
    %v3486 = vrcp.pop %v3485
    %v3487 = vmul.f32 %v3482, %v3486
    %3489 = vrot.lane.b32.xlu0 %v2554, 96
    %v3490 = vpop.permute.xlu0 %3489
    %v3493 = vsel %vm633, %v3487, 0
    %3495 = vmatprep.subr.mxu0 0.0
    %3496 = vmatpush1.msra.mxu0 0.0
    %3497 = vmatprep.subr.mxu0 0.0
    %3498 = vmatpush1.msra.mxu0 0.0
    %3499 = vmatprep.subr.mxu0 0.0
    %3500 = vmatpush1.msra.mxu0 0.0
    %3501 = vmatprep.subr.mxu0 0.0
    %3502 = vmatpush1.msra.mxu0 0.0
    %3503 = vmatprep.subr.mxu0 0.0
    %3504 = vmatpush1.msra.mxu0 0.0
    %3505 = vmatprep.subr.mxu0 0.0
    %3506 = vmatpush1.msra.mxu0 0.0
    %3507 = vmatprep.subr.mxu0 0.0
    %3508 = vmatpush1.msra.mxu0 0.0
    %3509 = vmatprep.subr.mxu0 0.0
    %3510 = vmatpush1.msra.mxu0 0.0
    %3511 = vmatprep.subr.mxu0 0.0
    %3512 = vmatpush1.msra.mxu0 0.0
    %3513 = vmatprep.subr.mxu0 0.0
    %3514 = vmatpush1.msra.mxu0 0.0
    %3515 = vmatprep.subr.mxu0 0.0
    %3516 = vmatpush1.msra.mxu0 0.0
    %3517 = vmatprep.subr.mxu0 0.0
    %3518 = vmatpush1.msra.mxu0 0.0
    %3519 = vmatprep.subr.mxu0 0.0
    %3520 = vmatpush1.msra.mxu0 0.0
    %3521 = vmatprep.subr.mxu0 0.0
    %3522 = vmatpush1.msra.mxu0 0.0
    %3523 = vmatprep.subr.mxu0 0.0
    %3524 = vmatpush1.msra.mxu0 0.0
    %3525 = vmatprep.subr.mxu0 0.0
    %3526 = vmatpush1.msra.mxu0 %v3490
    %3527 = vmatprep.subr.mxu0 0.0
    %3528 = vmatpush2.msra.mxu0 0.0
    %3529 = vmatprep.subr.mxu0 0.0
    %3530 = vmatpush2.msra.mxu0 0.0
    %3531 = vmatprep.subr.mxu0 0.0
    %3532 = vmatpush2.msra.mxu0 0.0
    %3533 = vmatprep.subr.mxu0 0.0
    %3534 = vmatpush2.msra.mxu0 0.0
    %3535 = vmatprep.subr.mxu0 0.0
    %3536 = vmatpush2.msra.mxu0 0.0
    %3537 = vmatprep.subr.mxu0 0.0
    %3538 = vmatpush2.msra.mxu0 0.0
    %3539 = vmatprep.subr.mxu0 0.0
    %3540 = vmatpush2.msra.mxu0 0.0
    %3541 = vmatprep.subr.mxu0 0.0
    %3542 = vmatpush2.msra.mxu0 0.0
    %3543 = vmatprep.subr.mxu0 0.0
    %3544 = vmatpush2.msra.mxu0 0.0
    %3545 = vmatprep.subr.mxu0 0.0
    %3546 = vmatpush2.msra.mxu0 0.0
    %3547 = vmatprep.subr.mxu0 0.0
    %3548 = vmatpush2.msra.mxu0 0.0
    %3549 = vmatprep.subr.mxu0 0.0
    %3550 = vmatpush2.msra.mxu0 0.0
    %3551 = vmatprep.subr.mxu0 0.0
    %3552 = vmatpush2.msra.mxu0 0.0
    %3553 = vmatprep.subr.mxu0 0.0
    %3554 = vmatpush2.msra.mxu0 0.0
    %3555 = vmatprep.subr.mxu0 0.0
    %3556 = vmatpush2.msra.mxu0 0.0
    %3557 = vmatprep.subr.mxu0 0.0
    %3558 = vmatpush2.msra.mxu0 0.0
    %3559 = vmatprep.mubr.f32.mxu0 0.0
    %3560 = vmatmul.mubr.f32.gmra.mxu0 %v3493
    %v3561 = vpop.f32.mrf.mxu0
    %v3562 = vadd.f32 0.0, %v3561
    %v3563 = vpop.f32.mrf.mxu0
    %3564 = vdwg.mxu0
    %3566 = vrot.lane.b32.xlu0 %v3562, 32
    %v3567 = vpop.permute.xlu0 %3566
    %v3569 = vsel %vm552, %v3394, %v3567
    %3571 = vrot.lane.b32.xlu0 %v2558, 64
    %v3572 = vpop.permute.xlu0 %3571
    %v3573 = vsel %vm552, %v2558, 0
    %v3575 = vsel %vm552, %v3572, 0
    %3577 = vmatprep.subr.mxu0 0.0
    %3578 = vmatpush1.xpose.msra.mxu0 0.0
    %3579 = vmatprep.subr.mxu0 0.0
    %3580 = vmatpush1.xpose.msra.mxu0 0.0
    %3581 = vmatprep.subr.mxu0 0.0
    %3582 = vmatpush1.xpose.msra.mxu0 0.0
    %3583 = vmatprep.subr.mxu0 0.0
    %3584 = vmatpush1.xpose.msra.mxu0 0.0
    %3585 = vmatprep.subr.mxu0 0.0
    %3586 = vmatpush1.xpose.msra.mxu0 0.0
    %3587 = vmatprep.subr.mxu0 0.0
    %3588 = vmatpush1.xpose.msra.mxu0 0.0
    %3589 = vmatprep.subr.mxu0 0.0
    %3590 = vmatpush1.xpose.msra.mxu0 0.0
    %3591 = vmatprep.subr.mxu0 0.0
    %3592 = vmatpush1.xpose.msra.mxu0 0.0
    %3593 = vmatprep.subr.mxu0 0.0
    %3594 = vmatpush1.xpose.msra.mxu0 0.0
    %3595 = vmatprep.subr.mxu0 0.0
    %3596 = vmatpush1.xpose.msra.mxu0 0.0
    %3597 = vmatprep.subr.mxu0 0.0
    %3598 = vmatpush1.xpose.msra.mxu0 0.0
    %3599 = vmatprep.subr.mxu0 0.0
    %3600 = vmatpush1.xpose.msra.mxu0 0.0
    %3601 = vmatprep.subr.mxu0 0.0
    %3602 = vmatpush1.xpose.msra.mxu0 0.0
    %3603 = vmatprep.subr.mxu0 0.0
    %3604 = vmatpush1.xpose.msra.mxu0 0.0
    %3605 = vmatprep.subr.mxu0 0.0
    %3606 = vmatpush1.xpose.msra.mxu0 0.0
    %3607 = vmatprep.subr.mxu0 0.0
    %3608 = vmatpush1.xpose.msra.mxu0 %v3575
    %3609 = vmatprep.subr.mxu0 0.0
    %3610 = vmatpush2.xpose.msra.mxu0 0.0
    %3611 = vmatprep.subr.mxu0 0.0
    %3612 = vmatpush2.xpose.msra.mxu0 0.0
    %3613 = vmatprep.subr.mxu0 0.0
    %3614 = vmatpush2.xpose.msra.mxu0 0.0
    %3615 = vmatprep.subr.mxu0 0.0
    %3616 = vmatpush2.xpose.msra.mxu0 0.0
    %3617 = vmatprep.subr.mxu0 0.0
    %3618 = vmatpush2.xpose.msra.mxu0 0.0
    %3619 = vmatprep.subr.mxu0 0.0
    %3620 = vmatpush2.xpose.msra.mxu0 0.0
    %3621 = vmatprep.subr.mxu0 0.0
    %3622 = vmatpush2.xpose.msra.mxu0 0.0
    %3623 = vmatprep.subr.mxu0 0.0
    %3624 = vmatpush2.xpose.msra.mxu0 0.0
    %3625 = vmatprep.subr.mxu0 0.0
    %3626 = vmatpush2.xpose.msra.mxu0 0.0
    %3627 = vmatprep.subr.mxu0 0.0
    %3628 = vmatpush2.xpose.msra.mxu0 0.0
    %3629 = vmatprep.subr.mxu0 0.0
    %3630 = vmatpush2.xpose.msra.mxu0 0.0
    %3631 = vmatprep.subr.mxu0 0.0
    %3632 = vmatpush2.xpose.msra.mxu0 0.0
    %3633 = vmatprep.subr.mxu0 0.0
    %3634 = vmatpush2.xpose.msra.mxu0 0.0
    %3635 = vmatprep.subr.mxu0 0.0
    %3636 = vmatpush2.xpose.msra.mxu0 0.0
    %3637 = vmatprep.subr.mxu0 0.0
    %3638 = vmatpush2.xpose.msra.mxu0 0.0
    %3639 = vmatprep.subr.mxu0 0.0
    %3640 = vmatpush2.xpose.msra.mxu0 0.0
    %3641 = vmatprep.mubr.f32.mxu0 0.0
    %3642 = vmatmul.mubr.f32.gmra.mxu0 %v3573
    %v3643 = vpop.f32.mrf.mxu0
    %v3644 = vadd.f32 0.0, %v3643
    %v3645 = vpop.f32.mrf.mxu0
    %3646 = vdwg.mxu0
    %v3647 = vmul.f32 %v3644, 0.17677669
    %v3648 = vadd.f32 %v3647, %v1652
    %v3649 = vsel %vm633, %v3648, -inf
    %3650 = vmax.xlane.f32.xlu0 %v3649
    %v3651 = vpop.xlane.xlu0 %3650
    %v3652 = vsub.f32 %v3648, %v3651
    %v3653 = vmul.f32 %v3652, 1.442695
    %v3654 = vpow.pop %v3653
    %v3655 = vsel %vm633, %v3654, 0.0
    %3656 = vadd.xlane.f32.xlu0 %v3655
    %v3657 = vpop.xlane.xlu0 %3656
    %v3658 = vrcp.pop %v3657
    %v3659 = vmul.f32 %v3654, %v3658
    %v3661 = vsel %vm633, %v3659, 0
    %3663 = vmatprep.subr.mxu0 0.0
    %3664 = vmatpush1.msra.mxu0 0.0
    %3665 = vmatprep.subr.mxu0 0.0
    %3666 = vmatpush1.msra.mxu0 0.0
    %3667 = vmatprep.subr.mxu0 0.0
    %3668 = vmatpush1.msra.mxu0 0.0
    %3669 = vmatprep.subr.mxu0 0.0
    %3670 = vmatpush1.msra.mxu0 0.0
    %3671 = vmatprep.subr.mxu0 0.0
    %3672 = vmatpush1.msra.mxu0 0.0
    %3673 = vmatprep.subr.mxu0 0.0
    %3674 = vmatpush1.msra.mxu0 0.0
    %3675 = vmatprep.subr.mxu0 0.0
    %3676 = vmatpush1.msra.mxu0 0.0
    %3677 = vmatprep.subr.mxu0 0.0
    %3678 = vmatpush1.msra.mxu0 0.0
    %3679 = vmatprep.subr.mxu0 0.0
    %3680 = vmatpush1.msra.mxu0 0.0
    %3681 = vmatprep.subr.mxu0 0.0
    %3682 = vmatpush1.msra.mxu0 0.0
    %3683 = vmatprep.subr.mxu0 0.0
    %3684 = vmatpush1.msra.mxu0 0.0
    %3685 = vmatprep.subr.mxu0 0.0
    %3686 = vmatpush1.msra.mxu0 0.0
    %3687 = vmatprep.subr.mxu0 0.0
    %3688 = vmatpush1.msra.mxu0 0.0
    %3689 = vmatprep.subr.mxu0 0.0
    %3690 = vmatpush1.msra.mxu0 0.0
    %3691 = vmatprep.subr.mxu0 0.0
    %3692 = vmatpush1.msra.mxu0 0.0
    %3693 = vmatprep.subr.mxu0 0.0
    %3694 = vmatpush1.msra.mxu0 %v2560
    %3695 = vmatprep.subr.mxu0 0.0
    %3696 = vmatpush2.msra.mxu0 0.0
    %3697 = vmatprep.subr.mxu0 0.0
    %3698 = vmatpush2.msra.mxu0 0.0
    %3699 = vmatprep.subr.mxu0 0.0
    %3700 = vmatpush2.msra.mxu0 0.0
    %3701 = vmatprep.subr.mxu0 0.0
    %3702 = vmatpush2.msra.mxu0 0.0
    %3703 = vmatprep.subr.mxu0 0.0
    %3704 = vmatpush2.msra.mxu0 0.0
    %3705 = vmatprep.subr.mxu0 0.0
    %3706 = vmatpush2.msra.mxu0 0.0
    %3707 = vmatprep.subr.mxu0 0.0
    %3708 = vmatpush2.msra.mxu0 0.0
    %3709 = vmatprep.subr.mxu0 0.0
    %3710 = vmatpush2.msra.mxu0 0.0
    %3711 = vmatprep.subr.mxu0 0.0
    %3712 = vmatpush2.msra.mxu0 0.0
    %3713 = vmatprep.subr.mxu0 0.0
    %3714 = vmatpush2.msra.mxu0 0.0
    %3715 = vmatprep.subr.mxu0 0.0
    %3716 = vmatpush2.msra.mxu0 0.0
    %3717 = vmatprep.subr.mxu0 0.0
    %3718 = vmatpush2.msra.mxu0 0.0
    %3719 = vmatprep.subr.mxu0 0.0
    %3720 = vmatpush2.msra.mxu0 0.0
    %3721 = vmatprep.subr.mxu0 0.0
    %3722 = vmatpush2.msra.mxu0 0.0
    %3723 = vmatprep.subr.mxu0 0.0
    %3724 = vmatpush2.msra.mxu0 0.0
    %3725 = vmatprep.subr.mxu0 0.0
    %3726 = vmatpush2.msra.mxu0 0.0
    %3727 = vmatprep.mubr.f32.mxu0 0.0
    %3728 = vmatmul.mubr.f32.gmra.mxu0 %v3661
    %v3729 = vpop.f32.mrf.mxu0
    %v3730 = vadd.f32 0.0, %v3729
    %v3731 = vpop.f32.mrf.mxu0
    %3732 = vdwg.mxu0
    %3733 = vrot.lane.b32.xlu0 %v2558, 96
    %v3734 = vpop.permute.xlu0 %3733
    %3735 = vrot.lane.b32.xlu0 %v2558, 32
    %v3736 = vpop.permute.xlu0 %3735
    %v3737 = vsel %vm552, %v3734, 0
    %v3739 = vsel %vm552, %v3736, 0
    %3741 = vmatprep.subr.mxu0 0.0
    %3742 = vmatpush1.xpose.msra.mxu0 0.0
    %3743 = vmatprep.subr.mxu0 0.0
    %3744 = vmatpush1.xpose.msra.mxu0 0.0
    %3745 = vmatprep.subr.mxu0 0.0
    %3746 = vmatpush1.xpose.msra.mxu0 0.0
    %3747 = vmatprep.subr.mxu0 0.0
    %3748 = vmatpush1.xpose.msra.mxu0 0.0
    %3749 = vmatprep.subr.mxu0 0.0
    %3750 = vmatpush1.xpose.msra.mxu0 0.0
    %3751 = vmatprep.subr.mxu0 0.0
    %3752 = vmatpush1.xpose.msra.mxu0 0.0
    %3753 = vmatprep.subr.mxu0 0.0
    %3754 = vmatpush1.xpose.msra.mxu0 0.0
    %3755 = vmatprep.subr.mxu0 0.0
    %3756 = vmatpush1.xpose.msra.mxu0 0.0
    %3757 = vmatprep.subr.mxu0 0.0
    %3758 = vmatpush1.xpose.msra.mxu0 0.0
    %3759 = vmatprep.subr.mxu0 0.0
    %3760 = vmatpush1.xpose.msra.mxu0 0.0
    %3761 = vmatprep.subr.mxu0 0.0
    %3762 = vmatpush1.xpose.msra.mxu0 0.0
    %3763 = vmatprep.subr.mxu0 0.0
    %3764 = vmatpush1.xpose.msra.mxu0 0.0
    %3765 = vmatprep.subr.mxu0 0.0
    %3766 = vmatpush1.xpose.msra.mxu0 0.0
    %3767 = vmatprep.subr.mxu0 0.0
    %3768 = vmatpush1.xpose.msra.mxu0 0.0
    %3769 = vmatprep.subr.mxu0 0.0
    %3770 = vmatpush1.xpose.msra.mxu0 0.0
    %3771 = vmatprep.subr.mxu0 0.0
    %3772 = vmatpush1.xpose.msra.mxu0 %v3739
    %3773 = vmatprep.subr.mxu0 0.0
    %3774 = vmatpush2.xpose.msra.mxu0 0.0
    %3775 = vmatprep.subr.mxu0 0.0
    %3776 = vmatpush2.xpose.msra.mxu0 0.0
    %3777 = vmatprep.subr.mxu0 0.0
    %3778 = vmatpush2.xpose.msra.mxu0 0.0
    %3779 = vmatprep.subr.mxu0 0.0
    %3780 = vmatpush2.xpose.msra.mxu0 0.0
    %3781 = vmatprep.subr.mxu0 0.0
    %3782 = vmatpush2.xpose.msra.mxu0 0.0
    %3783 = vmatprep.subr.mxu0 0.0
    %3784 = vmatpush2.xpose.msra.mxu0 0.0
    %3785 = vmatprep.subr.mxu0 0.0
    %3786 = vmatpush2.xpose.msra.mxu0 0.0
    %3787 = vmatprep.subr.mxu0 0.0
    %3788 = vmatpush2.xpose.msra.mxu0 0.0
    %3789 = vmatprep.subr.mxu0 0.0
    %3790 = vmatpush2.xpose.msra.mxu0 0.0
    %3791 = vmatprep.subr.mxu0 0.0
    %3792 = vmatpush2.xpose.msra.mxu0 0.0
    %3793 = vmatprep.subr.mxu0 0.0
    %3794 = vmatpush2.xpose.msra.mxu0 0.0
    %3795 = vmatprep.subr.mxu0 0.0
    %3796 = vmatpush2.xpose.msra.mxu0 0.0
    %3797 = vmatprep.subr.mxu0 0.0
    %3798 = vmatpush2.xpose.msra.mxu0 0.0
    %3799 = vmatprep.subr.mxu0 0.0
    %3800 = vmatpush2.xpose.msra.mxu0 0.0
    %3801 = vmatprep.subr.mxu0 0.0
    %3802 = vmatpush2.xpose.msra.mxu0 0.0
    %3803 = vmatprep.subr.mxu0 0.0
    %3804 = vmatpush2.xpose.msra.mxu0 0.0
    %3805 = vmatprep.mubr.f32.mxu0 0.0
    %3806 = vmatmul.mubr.f32.gmra.mxu0 %v3737
    %v3807 = vpop.f32.mrf.mxu0
    %v3808 = vadd.f32 0.0, %v3807
    %v3809 = vpop.f32.mrf.mxu0
    %3810 = vdwg.mxu0
    %v3811 = vmul.f32 %v3808, 0.17677669
    %v3812 = vadd.f32 %v3811, %v1652
    %v3813 = vsel %vm633, %v3812, -inf
    %3814 = vmax.xlane.f32.xlu0 %v3813
    %v3815 = vpop.xlane.xlu0 %3814
    %v3816 = vsub.f32 %v3812, %v3815
    %v3817 = vmul.f32 %v3816, 1.442695
    %v3818 = vpow.pop %v3817
    %v3819 = vsel %vm633, %v3818, 0.0
    %3820 = vadd.xlane.f32.xlu0 %v3819
    %v3821 = vpop.xlane.xlu0 %3820
    %v3822 = vrcp.pop %v3821
    %v3823 = vmul.f32 %v3818, %v3822
    %3825 = vrot.lane.b32.xlu0 %v2560, 96
    %v3826 = vpop.permute.xlu0 %3825
    %v3829 = vsel %vm633, %v3823, 0
    %3831 = vmatprep.subr.mxu0 0.0
    %3832 = vmatpush1.msra.mxu0 0.0
    %3833 = vmatprep.subr.mxu0 0.0
    %3834 = vmatpush1.msra.mxu0 0.0
    %3835 = vmatprep.subr.mxu0 0.0
    %3836 = vmatpush1.msra.mxu0 0.0
    %3837 = vmatprep.subr.mxu0 0.0
    %3838 = vmatpush1.msra.mxu0 0.0
    %3839 = vmatprep.subr.mxu0 0.0
    %3840 = vmatpush1.msra.mxu0 0.0
    %3841 = vmatprep.subr.mxu0 0.0
    %3842 = vmatpush1.msra.mxu0 0.0
    %3843 = vmatprep.subr.mxu0 0.0
    %3844 = vmatpush1.msra.mxu0 0.0
    %3845 = vmatprep.subr.mxu0 0.0
    %3846 = vmatpush1.msra.mxu0 0.0
    %3847 = vmatprep.subr.mxu0 0.0
    %3848 = vmatpush1.msra.mxu0 0.0
    %3849 = vmatprep.subr.mxu0 0.0
    %3850 = vmatpush1.msra.mxu0 0.0
    %3851 = vmatprep.subr.mxu0 0.0
    %3852 = vmatpush1.msra.mxu0 0.0
    %3853 = vmatprep.subr.mxu0 0.0
    %3854 = vmatpush1.msra.mxu0 0.0
    %3855 = vmatprep.subr.mxu0 0.0
    %3856 = vmatpush1.msra.mxu0 0.0
    %3857 = vmatprep.subr.mxu0 0.0
    %3858 = vmatpush1.msra.mxu0 0.0
    %3859 = vmatprep.subr.mxu0 0.0
    %3860 = vmatpush1.msra.mxu0 0.0
    %3861 = vmatprep.subr.mxu0 0.0
    %3862 = vmatpush1.msra.mxu0 %v3826
    %3863 = vmatprep.subr.mxu0 0.0
    %3864 = vmatpush2.msra.mxu0 0.0
    %3865 = vmatprep.subr.mxu0 0.0
    %3866 = vmatpush2.msra.mxu0 0.0
    %3867 = vmatprep.subr.mxu0 0.0
    %3868 = vmatpush2.msra.mxu0 0.0
    %3869 = vmatprep.subr.mxu0 0.0
    %3870 = vmatpush2.msra.mxu0 0.0
    %3871 = vmatprep.subr.mxu0 0.0
    %3872 = vmatpush2.msra.mxu0 0.0
    %3873 = vmatprep.subr.mxu0 0.0
    %3874 = vmatpush2.msra.mxu0 0.0
    %3875 = vmatprep.subr.mxu0 0.0
    %3876 = vmatpush2.msra.mxu0 0.0
    %3877 = vmatprep.subr.mxu0 0.0
    %3878 = vmatpush2.msra.mxu0 0.0
    %3879 = vmatprep.subr.mxu0 0.0
    %3880 = vmatpush2.msra.mxu0 0.0
    %3881 = vmatprep.subr.mxu0 0.0
    %3882 = vmatpush2.msra.mxu0 0.0
    %3883 = vmatprep.subr.mxu0 0.0
    %3884 = vmatpush2.msra.mxu0 0.0
    %3885 = vmatprep.subr.mxu0 0.0
    %3886 = vmatpush2.msra.mxu0 0.0
    %3887 = vmatprep.subr.mxu0 0.0
    %3888 = vmatpush2.msra.mxu0 0.0
    %3889 = vmatprep.subr.mxu0 0.0
    %3890 = vmatpush2.msra.mxu0 0.0
    %3891 = vmatprep.subr.mxu0 0.0
    %3892 = vmatpush2.msra.mxu0 0.0
    %3893 = vmatprep.subr.mxu0 0.0
    %3894 = vmatpush2.msra.mxu0 0.0
    %3895 = vmatprep.mubr.f32.mxu0 0.0
    %3896 = vmatmul.mubr.f32.gmra.mxu0 %v3829
    %v3897 = vpop.f32.mrf.mxu0
    %v3898 = vadd.f32 0.0, %v3897
    %v3899 = vpop.f32.mrf.mxu0
    %3900 = vdwg.mxu0
    %3902 = vrot.lane.b32.xlu0 %v3898, 32
    %v3903 = vpop.permute.xlu0 %3902
    %v3905 = vsel %vm552, %v3730, %v3903
    %v3907 = vlaneseq
    %v3908 = vshrl.u32 %v3907, 7
    %v3909 = vsub.s32 0, %v3908
    %v3910 = vrot.slane %v2417, %v3909
    %v3913 = vsel %vm310, %v2897, 0
    %v3916 = vsel %vm310, %v3233, 0
    %v3919 = vsel %vm310, %v3569, 0
    %v3922 = vsel %vm310, %v3905, 0
    %3924 = vmatprep.subr.mxu0 0.0
    %3925 = vmatpush1.msra.mxu0 0.0
    %3926 = vmatprep.subr.mxu0 0.0
    %3927 = vmatpush1.msra.mxu0 0.0
    %3928 = vmatprep.subr.mxu0 0.0
    %3929 = vmatpush1.msra.mxu0 0.0
    %3930 = vmatprep.subr.mxu0 0.0
    %3931 = vmatpush1.msra.mxu0 0.0
    %3932 = vmatprep.subr.mxu0 0.0
    %3933 = vmatpush1.msra.mxu0 0.0
    %3934 = vmatprep.subr.mxu0 0.0
    %3935 = vmatpush1.msra.mxu0 0.0
    %3936 = vmatprep.subr.mxu0 0.0
    %3937 = vmatpush1.msra.mxu0 0.0
    %3938 = vmatprep.subr.mxu0 0.0
    %3939 = vmatpush1.msra.mxu0 0.0
    %3940 = vmatprep.subr.mxu0 0.0
    %3941 = vmatpush1.msra.mxu0 %v2415
    %3942 = vmatprep.subr.mxu0 0.0
    %3943 = vmatpush1.msra.mxu0 %v2414
    %3944 = vmatprep.subr.mxu0 0.0
    %3945 = vmatpush1.msra.mxu0 %v2413
    %3946 = vmatprep.subr.mxu0 0.0
    %3947 = vmatpush1.msra.mxu0 %v2412
    %3948 = vmatprep.subr.mxu0 0.0
    %3949 = vmatpush1.msra.mxu0 %v2411
    %3950 = vmatprep.subr.mxu0 0.0
    %3951 = vmatpush1.msra.mxu0 %v2410
    %3952 = vmatprep.subr.mxu0 0.0
    %3953 = vmatpush1.msra.mxu0 %v2409
    %3954 = vmatprep.subr.mxu0 0.0
    %3955 = vmatpush1.msra.mxu0 %v2408
    %3956 = vmatprep.subr.mxu0 0.0
    %3957 = vmatpush2.msra.mxu0 0.0
    %3958 = vmatprep.subr.mxu0 0.0
    %3959 = vmatpush2.msra.mxu0 0.0
    %3960 = vmatprep.subr.mxu0 0.0
    %3961 = vmatpush2.msra.mxu0 0.0
    %3962 = vmatprep.subr.mxu0 0.0
    %3963 = vmatpush2.msra.mxu0 0.0
    %3964 = vmatprep.subr.mxu0 0.0
    %3965 = vmatpush2.msra.mxu0 0.0
    %3966 = vmatprep.subr.mxu0 0.0
    %3967 = vmatpush2.msra.mxu0 0.0
    %3968 = vmatprep.subr.mxu0 0.0
    %3969 = vmatpush2.msra.mxu0 0.0
    %3970 = vmatprep.subr.mxu0 0.0
    %3971 = vmatpush2.msra.mxu0 0.0
    %3972 = vmatprep.subr.mxu0 0.0
    %3973 = vmatpush2.msra.mxu0 0.0
    %3974 = vmatprep.subr.mxu0 0.0
    %3975 = vmatpush2.msra.mxu0 0.0
    %3976 = vmatprep.subr.mxu0 0.0
    %3977 = vmatpush2.msra.mxu0 0.0
    %3978 = vmatprep.subr.mxu0 0.0
    %3979 = vmatpush2.msra.mxu0 0.0
    %3980 = vmatprep.subr.mxu0 0.0
    %3981 = vmatpush2.msra.mxu0 0.0
    %3982 = vmatprep.subr.mxu0 0.0
    %3983 = vmatpush2.msra.mxu0 0.0
    %3984 = vmatprep.subr.mxu0 0.0
    %3985 = vmatpush2.msra.mxu0 0.0
    %3986 = vmatprep.subr.mxu0 0.0
    %3987 = vmatpush2.msra.mxu0 0.0
    %3988 = vmatprep.mubr.f32.mxu0 0.0
    %3989 = vmatmul.mubr.f32.gmra.mxu0 %v3913
    %v3990 = vpop.f32.mrf.mxu0
    %v3991 = vadd.f32 %v3910, %v3990
    %v3992 = vpop.f32.mrf.mxu0
    %3993 = vmatprep.mubr.f32.mxu0 0.0
    %3994 = vmatmul.mubr.f32.gmra.mxu0 %v3916
    %v3995 = vpop.f32.mrf.mxu0
    %v3996 = vadd.f32 %v3910, %v3995
    %v3997 = vpop.f32.mrf.mxu0
    %3998 = vmatprep.mubr.f32.mxu0 0.0
    %3999 = vmatmul.mubr.f32.gmra.mxu0 %v3919
    %v4000 = vpop.f32.mrf.mxu0
    %v4001 = vadd.f32 %v3910, %v4000
    %v4002 = vpop.f32.mrf.mxu0
    %4003 = vmatprep.mubr.f32.mxu0 0.0
    %4004 = vmatmul.mubr.f32.gmra.mxu0 %v3922
    %v4005 = vpop.f32.mrf.mxu0
    %v4006 = vadd.f32 %v3910, %v4005
    %v4007 = vpop.f32.mrf.mxu0
    %4008 = vdwg.mxu0
    %v4009 = vadd.f32 %v2384, %v3991
    %v4010 = vadd.f32 %v2385, %v3996
    %v4011 = vadd.f32 %v2386, %v4001
    %v4012 = vadd.f32 %v2387, %v4006
    %v4013 = vsel %vm310, %v4009, 0.0
    %4014 = vadd.xlane.f32.xlu0 %v4013
    %v4015 = vpop.xlane.xlu0 %4014
    %v4016 = vsel %vm310, %v4010, 0.0
    %4017 = vadd.xlane.f32.xlu0 %v4016
    %v4018 = vpop.xlane.xlu0 %4017
    %v4019 = vsel %vm310, %v4011, 0.0
    %4020 = vadd.xlane.f32.xlu0 %v4019
    %v4021 = vpop.xlane.xlu0 %4020
    %v4022 = vsel %vm310, %v4012, 0.0
    %4023 = vadd.xlane.f32.xlu0 %v4022
    %v4024 = vpop.xlane.xlu0 %4023
    %v4025 = vmul.f32 %v4015, %v323
    %v4026 = vmul.f32 %v4018, %v323
    %v4027 = vmul.f32 %v4021, %v323
    %v4028 = vmul.f32 %v4024, %v323
    %v4029 = vsub.f32 %v4009, %v4025
    %v4030 = vsub.f32 %v4010, %v4026
    %v4031 = vsub.f32 %v4011, %v4027
    %v4032 = vsub.f32 %v4012, %v4028
    %v4033 = vmul.f32 %v4029, %v4029
    %v4034 = vmul.f32 %v4030, %v4030
    %v4035 = vmul.f32 %v4031, %v4031
    %v4036 = vmul.f32 %v4032, %v4032
    %v4037 = vsel %vm310, %v4033, 0.0
    %4038 = vadd.xlane.f32.xlu0 %v4037
    %v4039 = vpop.xlane.xlu0 %4038
    %v4040 = vsel %vm310, %v4034, 0.0
    %4041 = vadd.xlane.f32.xlu0 %v4040
    %v4042 = vpop.xlane.xlu0 %4041
    %v4043 = vsel %vm310, %v4035, 0.0
    %4044 = vadd.xlane.f32.xlu0 %v4043
    %v4045 = vpop.xlane.xlu0 %4044
    %v4046 = vsel %vm310, %v4036, 0.0
    %4047 = vadd.xlane.f32.xlu0 %v4046
    %v4048 = vpop.xlane.xlu0 %4047
    %v4049 = vmul.f32 %v4039, %v323
    %v4050 = vmul.f32 %v4042, %v323
    %v4051 = vmul.f32 %v4045, %v323
    %v4052 = vmul.f32 %v4048, %v323
    %v4053 = vadd.f32 %v4049, 1e-07
    %v4054 = vadd.f32 %v4050, 1e-07
    %v4055 = vadd.f32 %v4051, 1e-07
    %v4056 = vadd.f32 %v4052, 1e-07
    %v4057 = vrsqrt.pop %v4053
    %v4058 = vrsqrt.pop %v4054
    %v4059 = vrsqrt.pop %v4055
    %v4060 = vrsqrt.pop %v4056
    %v4061 = vmul.f32 %v4029, %v4057
    %v4062 = vmul.f32 %v4030, %v4058
    %v4063 = vmul.f32 %v4031, %v4059
    %v4064 = vmul.f32 %v4032, %v4060
    %v4065 = vlaneseq
    %v4066 = vshrl.u32 %v4065, 7
    %v4067 = vsub.s32 0, %v4066
    %v4068 = vrot.slane %v2419, %v4067
    %v4069 = vmul.f32 %v4061, %v4068
    %v4070 = vmul.f32 %v4062, %v4068
    %v4071 = vmul.f32 %v4063, %v4068
    %v4072 = vmul.f32 %v4064, %v4068
    %v4073 = vlaneseq
    %v4074 = vshrl.u32 %v4073, 7
    %v4075 = vsub.s32 1, %v4074
    %v4076 = vrot.slane %v2419, %v4075
    %v4077 = vadd.f32 %v4069, %v4076
    %v4078 = vadd.f32 %v4070, %v4076
    %v4079 = vadd.f32 %v4071, %v4076
    %v4080 = vadd.f32 %v4072, %v4076
    %v4082 = vlaneseq
    %v4083 = vshrl.u32 %v4082, 7
    %v4084 = vsub.s32 0, %v4083
    %v4085 = vrot.slane %v2430, %v4084
    %v4088 = vsel %vm310, %v4077, 0
    %v4091 = vsel %vm310, %v4078, 0
    %v4094 = vsel %vm310, %v4079, 0
    %v4097 = vsel %vm310, %v4080, 0
    %4099 = vmatprep.subr.mxu0 0.0
    %4100 = vmatpush1.msra.mxu0 0.0
    %4101 = vmatprep.subr.mxu0 0.0
    %4102 = vmatpush1.msra.mxu0 0.0
    %4103 = vmatprep.subr.mxu0 0.0
    %4104 = vmatpush1.msra.mxu0 0.0
    %4105 = vmatprep.subr.mxu0 0.0
    %4106 = vmatpush1.msra.mxu0 0.0
    %4107 = vmatprep.subr.mxu0 0.0
    %4108 = vmatpush1.msra.mxu0 0.0
    %4109 = vmatprep.subr.mxu0 0.0
    %4110 = vmatpush1.msra.mxu0 0.0
    %4111 = vmatprep.subr.mxu0 0.0
    %4112 = vmatpush1.msra.mxu0 0.0
    %4113 = vmatprep.subr.mxu0 0.0
    %4114 = vmatpush1.msra.mxu0 0.0
    %4115 = vmatprep.subr.mxu0 0.0
    %4116 = vmatpush1.msra.mxu0 %v2428
    %4117 = vmatprep.subr.mxu0 0.0
    %4118 = vmatpush1.msra.mxu0 %v2427
    %4119 = vmatprep.subr.mxu0 0.0
    %4120 = vmatpush1.msra.mxu0 %v2426
    %4121 = vmatprep.subr.mxu0 0.0
    %4122 = vmatpush1.msra.mxu0 %v2425
    %4123 = vmatprep.subr.mxu0 0.0
    %4124 = vmatpush1.msra.mxu0 %v2424
    %4125 = vmatprep.subr.mxu0 0.0
    %4126 = vmatpush1.msra.mxu0 %v2423
    %4127 = vmatprep.subr.mxu0 0.0
    %4128 = vmatpush1.msra.mxu0 %v2422
    %4129 = vmatprep.subr.mxu0 0.0
    %4130 = vmatpush1.msra.mxu0 %v2421
    %4131 = vmatprep.subr.mxu0 0.0
    %4132 = vmatpush2.msra.mxu0 0.0
    %4133 = vmatprep.subr.mxu0 0.0
    %4134 = vmatpush2.msra.mxu0 0.0
    %4135 = vmatprep.subr.mxu0 0.0
    %4136 = vmatpush2.msra.mxu0 0.0
    %4137 = vmatprep.subr.mxu0 0.0
    %4138 = vmatpush2.msra.mxu0 0.0
    %4139 = vmatprep.subr.mxu0 0.0
    %4140 = vmatpush2.msra.mxu0 0.0
    %4141 = vmatprep.subr.mxu0 0.0
    %4142 = vmatpush2.msra.mxu0 0.0
    %4143 = vmatprep.subr.mxu0 0.0
    %4144 = vmatpush2.msra.mxu0 0.0
    %4145 = vmatprep.subr.mxu0 0.0
    %4146 = vmatpush2.msra.mxu0 0.0
    %4147 = vmatprep.subr.mxu0 0.0
    %4148 = vmatpush2.msra.mxu0 0.0
    %4149 = vmatprep.subr.mxu0 0.0
    %4150 = vmatpush2.msra.mxu0 0.0
    %4151 = vmatprep.subr.mxu0 0.0
    %4152 = vmatpush2.msra.mxu0 0.0
    %4153 = vmatprep.subr.mxu0 0.0
    %4154 = vmatpush2.msra.mxu0 0.0
    %4155 = vmatprep.subr.mxu0 0.0
    %4156 = vmatpush2.msra.mxu0 0.0
    %4157 = vmatprep.subr.mxu0 0.0
    %4158 = vmatpush2.msra.mxu0 0.0
    %4159 = vmatprep.subr.mxu0 0.0
    %4160 = vmatpush2.msra.mxu0 0.0
    %4161 = vmatprep.subr.mxu0 0.0
    %4162 = vmatpush2.msra.mxu0 0.0
    %4163 = vmatprep.mubr.f32.mxu0 0.0
    %4164 = vmatmul.mubr.f32.gmra.mxu0 %v4088
    %v4165 = vpop.f32.mrf.mxu0
    %v4166 = vadd.f32 %v4085, %v4165
    %v4167 = vpop.f32.mrf.mxu0
    %4168 = vmatprep.mubr.f32.mxu0 0.0
    %4169 = vmatmul.mubr.f32.gmra.mxu0 %v4091
    %v4170 = vpop.f32.mrf.mxu0
    %v4171 = vadd.f32 %v4085, %v4170
    %v4172 = vpop.f32.mrf.mxu0
    %4173 = vmatprep.mubr.f32.mxu0 0.0
    %4174 = vmatmul.mubr.f32.gmra.mxu0 %v4094
    %v4175 = vpop.f32.mrf.mxu0
    %v4176 = vadd.f32 %v4085, %v4175
    %v4177 = vpop.f32.mrf.mxu0
    %4178 = vmatprep.mubr.f32.mxu0 0.0
    %4179 = vmatmul.mubr.f32.gmra.mxu0 %v4097
    %v4180 = vpop.f32.mrf.mxu0
    %v4181 = vadd.f32 %v4085, %v4180
    %v4182 = vpop.f32.mrf.mxu0
    %4183 = vdwg.mxu0
    %v4184 = vmul.f32 %v4166, %v4166
    %v4185 = vmul.f32 %v4171, %v4171
    %v4186 = vmul.f32 %v4176, %v4176
    %v4187 = vmul.f32 %v4181, %v4181
    %v4188 = vmul.f32 %v4166, %v4184
    %v4189 = vmul.f32 %v4171, %v4185
    %v4190 = vmul.f32 %v4176, %v4186
    %v4191 = vmul.f32 %v4181, %v4187
    %v4192 = vmul.f32 %v4188, 0.044715
    %v4193 = vmul.f32 %v4189, 0.044715
    %v4194 = vmul.f32 %v4190, 0.044715
    %v4195 = vmul.f32 %v4191, 0.044715
    %v4196 = vadd.f32 %v4166, %v4192
    %v4197 = vadd.f32 %v4171, %v4193
    %v4198 = vadd.f32 %v4176, %v4194
    %v4199 = vadd.f32 %v4181, %v4195
    %v4200 = vmul.f32 %v4196, 0.7978846
    %v4201 = vmul.f32 %v4197, 0.7978846
    %v4202 = vmul.f32 %v4198, 0.7978846
    %v4203 = vmul.f32 %v4199, 0.7978846
    %v4204 = vtanh.pop %v4200
    %v4205 = vtanh.pop %v4201
    %v4206 = vtanh.pop %v4202
    %v4207 = vtanh.pop %v4203
    %v4208 = vadd.f32 %v4204, 1.0
    %v4209 = vadd.f32 %v4205, 1.0
    %v4210 = vadd.f32 %v4206, 1.0
    %v4211 = vadd.f32 %v4207, 1.0
    %v4212 = vmul.f32 %v4208, 0.5
    %v4213 = vmul.f32 %v4209, 0.5
    %v4214 = vmul.f32 %v4210, 0.5
    %v4215 = vmul.f32 %v4211, 0.5
    %v4216 = vmul.f32 %v4166, %v4212
    %v4217 = vmul.f32 %v4171, %v4213
    %v4218 = vmul.f32 %v4176, %v4214
    %v4219 = vmul.f32 %v4181, %v4215
    %v4221 = vlaneseq
    %v4222 = vshrl.u32 %v4221, 7
    %v4223 = vsub.s32 0, %v4222
    %v4224 = vrot.slane %v2449, %v4223
    %4226 = vmatprep.subr.mxu0 0.0
    %4227 = vmatpush1.msra.mxu0 %v2447
    %4228 = vmatprep.subr.mxu0 0.0
    %4229 = vmatpush1.msra.mxu0 %v2446
    %4230 = vmatprep.subr.mxu0 0.0
    %4231 = vmatpush1.msra.mxu0 %v2445
    %4232 = vmatprep.subr.mxu0 0.0
    %4233 = vmatpush1.msra.mxu0 %v2444
    %4234 = vmatprep.subr.mxu0 0.0
    %4235 = vmatpush1.msra.mxu0 %v2443
    %4236 = vmatprep.subr.mxu0 0.0
    %4237 = vmatpush1.msra.mxu0 %v2442
    %4238 = vmatprep.subr.mxu0 0.0
    %4239 = vmatpush1.msra.mxu0 %v2441
    %4240 = vmatprep.subr.mxu0 0.0
    %4241 = vmatpush1.msra.mxu0 %v2440
    %4242 = vmatprep.subr.mxu0 0.0
    %4243 = vmatpush1.msra.mxu0 %v2439
    %4244 = vmatprep.subr.mxu0 0.0
    %4245 = vmatpush1.msra.mxu0 %v2438
    %4246 = vmatprep.subr.mxu0 0.0
    %4247 = vmatpush1.msra.mxu0 %v2437
    %4248 = vmatprep.subr.mxu0 0.0
    %4249 = vmatpush1.msra.mxu0 %v2436
    %4250 = vmatprep.subr.mxu0 0.0
    %4251 = vmatpush1.msra.mxu0 %v2435
    %4252 = vmatprep.subr.mxu0 0.0
    %4253 = vmatpush1.msra.mxu0 %v2434
    %4254 = vmatprep.subr.mxu0 0.0
    %4255 = vmatpush1.msra.mxu0 %v2433
    %4256 = vmatprep.subr.mxu0 0.0
    %4257 = vmatpush1.msra.mxu0 %v2432
    %4258 = vmatprep.subr.mxu0 0.0
    %4259 = vmatpush2.msra.mxu0 0.0
    %4260 = vmatprep.subr.mxu0 0.0
    %4261 = vmatpush2.msra.mxu0 0.0
    %4262 = vmatprep.subr.mxu0 0.0
    %4263 = vmatpush2.msra.mxu0 0.0
    %4264 = vmatprep.subr.mxu0 0.0
    %4265 = vmatpush2.msra.mxu0 0.0
    %4266 = vmatprep.subr.mxu0 0.0
    %4267 = vmatpush2.msra.mxu0 0.0
    %4268 = vmatprep.subr.mxu0 0.0
    %4269 = vmatpush2.msra.mxu0 0.0
    %4270 = vmatprep.subr.mxu0 0.0
    %4271 = vmatpush2.msra.mxu0 0.0
    %4272 = vmatprep.subr.mxu0 0.0
    %4273 = vmatpush2.msra.mxu0 0.0
    %4274 = vmatprep.subr.mxu0 0.0
    %4275 = vmatpush2.msra.mxu0 0.0
    %4276 = vmatprep.subr.mxu0 0.0
    %4277 = vmatpush2.msra.mxu0 0.0
    %4278 = vmatprep.subr.mxu0 0.0
    %4279 = vmatpush2.msra.mxu0 0.0
    %4280 = vmatprep.subr.mxu0 0.0
    %4281 = vmatpush2.msra.mxu0 0.0
    %4282 = vmatprep.subr.mxu0 0.0
    %4283 = vmatpush2.msra.mxu0 0.0
    %4284 = vmatprep.subr.mxu0 0.0
    %4285 = vmatpush2.msra.mxu0 0.0
    %4286 = vmatprep.subr.mxu0 0.0
    %4287 = vmatpush2.msra.mxu0 0.0
    %4288 = vmatprep.subr.mxu0 0.0
    %4289 = vmatpush2.msra.mxu0 0.0
    %4290 = vmatprep.mubr.f32.mxu0 0.0
    %4291 = vmatmul.mubr.f32.gmra.mxu0 %v4216
    %v4292 = vpop.f32.mrf.mxu0
    %v4293 = vadd.f32 %v4224, %v4292
    %v4294 = vpop.f32.mrf.mxu0
    %4295 = vmatprep.mubr.f32.mxu0 0.0
    %4296 = vmatmul.mubr.f32.gmra.mxu0 %v4217
    %v4297 = vpop.f32.mrf.mxu0
    %v4298 = vadd.f32 %v4224, %v4297
    %v4299 = vpop.f32.mrf.mxu0
    %4300 = vmatprep.mubr.f32.mxu0 0.0
    %4301 = vmatmul.mubr.f32.gmra.mxu0 %v4218
    %v4302 = vpop.f32.mrf.mxu0
    %v4303 = vadd.f32 %v4224, %v4302
    %v4304 = vpop.f32.mrf.mxu0
    %4305 = vmatprep.mubr.f32.mxu0 0.0
    %4306 = vmatmul.mubr.f32.gmra.mxu0 %v4219
    %v4307 = vpop.f32.mrf.mxu0
    %v4308 = vadd.f32 %v4224, %v4307
    %v4309 = vpop.f32.mrf.mxu0
    %4310 = vdwg.mxu0
    %v4311 = vadd.f32 %v4077, %v4293
    %v4312 = vadd.f32 %v4078, %v4298
    %v4313 = vadd.f32 %v4079, %v4303
    %v4314 = vadd.f32 %v4080, %v4308
    %v4315 = vsel %vm310, %v4311, 0.0
    %4316 = vadd.xlane.f32.xlu0 %v4315
    %v4317 = vpop.xlane.xlu0 %4316
    %v4318 = vsel %vm310, %v4312, 0.0
    %4319 = vadd.xlane.f32.xlu0 %v4318
    %v4320 = vpop.xlane.xlu0 %4319
    %v4321 = vsel %vm310, %v4313, 0.0
    %4322 = vadd.xlane.f32.xlu0 %v4321
    %v4323 = vpop.xlane.xlu0 %4322
    %v4324 = vsel %vm310, %v4314, 0.0
    %4325 = vadd.xlane.f32.xlu0 %v4324
    %v4326 = vpop.xlane.xlu0 %4325
    %v4327 = vmul.f32 %v4317, %v323
    %v4328 = vmul.f32 %v4320, %v323
    %v4329 = vmul.f32 %v4323, %v323
    %v4330 = vmul.f32 %v4326, %v323
    %v4331 = vsub.f32 %v4311, %v4327
    %v4332 = vsub.f32 %v4312, %v4328
    %v4333 = vsub.f32 %v4313, %v4329
    %v4334 = vsub.f32 %v4314, %v4330
    %v4335 = vmul.f32 %v4331, %v4331
    %v4336 = vmul.f32 %v4332, %v4332
    %v4337 = vmul.f32 %v4333, %v4333
    %v4338 = vmul.f32 %v4334, %v4334
    %v4339 = vsel %vm310, %v4335, 0.0
    %4340 = vadd.xlane.f32.xlu0 %v4339
    %v4341 = vpop.xlane.xlu0 %4340
    %v4342 = vsel %vm310, %v4336, 0.0
    %4343 = vadd.xlane.f32.xlu0 %v4342
    %v4344 = vpop.xlane.xlu0 %4343
    %v4345 = vsel %vm310, %v4337, 0.0
    %4346 = vadd.xlane.f32.xlu0 %v4345
    %v4347 = vpop.xlane.xlu0 %4346
    %v4348 = vsel %vm310, %v4338, 0.0
    %4349 = vadd.xlane.f32.xlu0 %v4348
    %v4350 = vpop.xlane.xlu0 %4349
    %v4351 = vmul.f32 %v4341, %v323
    %v4352 = vmul.f32 %v4344, %v323
    %v4353 = vmul.f32 %v4347, %v323
    %v4354 = vmul.f32 %v4350, %v323
    %v4355 = vadd.f32 %v4351, 1e-07
    %v4356 = vadd.f32 %v4352, 1e-07
    %v4357 = vadd.f32 %v4353, 1e-07
    %v4358 = vadd.f32 %v4354, 1e-07
    %v4359 = vrsqrt.pop %v4355
    %v4360 = vrsqrt.pop %v4356
    %v4361 = vrsqrt.pop %v4357
    %v4362 = vrsqrt.pop %v4358
    %v4363 = vmul.f32 %v4331, %v4359
    %v4364 = vmul.f32 %v4332, %v4360
    %v4365 = vmul.f32 %v4333, %v4361
    %v4366 = vmul.f32 %v4334, %v4362
    %v4367 = vlaneseq
    %v4368 = vshrl.u32 %v4367, 7
    %v4369 = vsub.s32 2, %v4368
    %v4370 = vrot.slane %v2419, %v4369
    %v4371 = vmul.f32 %v4363, %v4370
    %v4372 = vmul.f32 %v4364, %v4370
    %v4373 = vmul.f32 %v4365, %v4370
    %v4374 = vmul.f32 %v4366, %v4370
    %v4375 = vlaneseq
    %v4376 = vshrl.u32 %v4375, 7
    %v4377 = vsub.s32 3, %v4376
    %v4378 = vrot.slane %v2419, %v4377
    %v4379 = vadd.f32 %v4371, %v4378
    %v4380 = vadd.f32 %v4372, %v4378
    %v4381 = vadd.f32 %v4373, %v4378
    %v4382 = vadd.f32 %v4374, %v4378
    %v4384 = vrot.slane %v4380, 7
    %v4387 = vrot.slane %v4381, 6
    %v4390 = vrot.slane %v4382, 5
    %vm4392 = vcmask 1040384
    %v4393 = vsel %vm4392, %v4379, %v4384
    %vm4394 = vcmask 1041408
    %v4395 = vsel %vm4394, %v4393, %v4387
    %vm4396 = vcmask 1042432
    %v4397 = vsel %vm4396, %v4395, %v4390
    %v4398 = vld [vmem:[#allocation10] sm:$0xff]
    %v4399 = vld [vmem:[#allocation10 + $0x8] sm:$0xff]
    %v4400 = vld [vmem:[#allocation10 + $0x10] sm:$0xff]
    %v4401 = vld [vmem:[#allocation10 + $0x18] sm:$0xff]
    %v4402 = vld [vmem:[#allocation10 + $0x20] sm:$0xff]
    %v4403 = vld [vmem:[#allocation10 + $0x28] sm:$0xff]
    %v4404 = vld [vmem:[#allocation10 + $0x30] sm:$0xff]
    %v4405 = vld [vmem:[#allocation10 + $0x38] sm:$0xff]
    %v4406 = vld [vmem:[%s17] sm:$0x1]
    %v4408 = vlaneseq
    %v4409 = vshrl.u32 %v4408, 7
    %v4410 = vsub.s32 0, %v4409
    %v4411 = vrot.slane %v4406, %v4410
    %v4414 = vsel %vm310, %v4397, 0
    %4416 = vmatprep.subr.mxu0 0.0
    %4417 = vmatpush1.msra.mxu0 0.0
    %4418 = vmatprep.subr.mxu0 0.0
    %4419 = vmatpush1.msra.mxu0 0.0
    %4420 = vmatprep.subr.mxu0 0.0
    %4421 = vmatpush1.msra.mxu0 0.0
    %4422 = vmatprep.subr.mxu0 0.0
    %4423 = vmatpush1.msra.mxu0 0.0
    %4424 = vmatprep.subr.mxu0 0.0
    %4425 = vmatpush1.msra.mxu0 0.0
    %4426 = vmatprep.subr.mxu0 0.0
    %4427 = vmatpush1.msra.mxu0 0.0
    %4428 = vmatprep.subr.mxu0 0.0
    %4429 = vmatpush1.msra.mxu0 0.0
    %4430 = vmatprep.subr.mxu0 0.0
    %4431 = vmatpush1.msra.mxu0 0.0
    %4432 = vmatprep.subr.mxu0 0.0
    %4433 = vmatpush1.msra.mxu0 %v4405
    %4434 = vmatprep.subr.mxu0 0.0
    %4435 = vmatpush1.msra.mxu0 %v4404
    %4436 = vmatprep.subr.mxu0 0.0
    %4437 = vmatpush1.msra.mxu0 %v4403
    %4438 = vmatprep.subr.mxu0 0.0
    %4439 = vmatpush1.msra.mxu0 %v4402
    %4440 = vmatprep.subr.mxu0 0.0
    %4441 = vmatpush1.msra.mxu0 %v4401
    %4442 = vmatprep.subr.mxu0 0.0
    %4443 = vmatpush1.msra.mxu0 %v4400
    %4444 = vmatprep.subr.mxu0 0.0
    %4445 = vmatpush1.msra.mxu0 %v4399
    %4446 = vmatprep.subr.mxu0 0.0
    %4447 = vmatpush1.msra.mxu0 %v4398
    %4448 = vmatprep.subr.mxu0 0.0
    %4449 = vmatpush2.msra.mxu0 0.0
    %4450 = vmatprep.subr.mxu0 0.0
    %4451 = vmatpush2.msra.mxu0 0.0
    %4452 = vmatprep.subr.mxu0 0.0
    %4453 = vmatpush2.msra.mxu0 0.0
    %4454 = vmatprep.subr.mxu0 0.0
    %4455 = vmatpush2.msra.mxu0 0.0
    %4456 = vmatprep.subr.mxu0 0.0
    %4457 = vmatpush2.msra.mxu0 0.0
    %4458 = vmatprep.subr.mxu0 0.0
    %4459 = vmatpush2.msra.mxu0 0.0
    %4460 = vmatprep.subr.mxu0 0.0
    %4461 = vmatpush2.msra.mxu0 0.0
    %4462 = vmatprep.subr.mxu0 0.0
    %4463 = vmatpush2.msra.mxu0 0.0
    %4464 = vmatprep.subr.mxu0 0.0
    %4465 = vmatpush2.msra.mxu0 0.0
    %4466 = vmatprep.subr.mxu0 0.0
    %4467 = vmatpush2.msra.mxu0 0.0
    %4468 = vmatprep.subr.mxu0 0.0
    %4469 = vmatpush2.msra.mxu0 0.0
    %4470 = vmatprep.subr.mxu0 0.0
    %4471 = vmatpush2.msra.mxu0 0.0
    %4472 = vmatprep.subr.mxu0 0.0
    %4473 = vmatpush2.msra.mxu0 0.0
    %4474 = vmatprep.subr.mxu0 0.0
    %4475 = vmatpush2.msra.mxu0 0.0
    %4476 = vmatprep.subr.mxu0 0.0
    %4477 = vmatpush2.msra.mxu0 0.0
    %4478 = vmatprep.subr.mxu0 0.0
    %4479 = vmatpush2.msra.mxu0 0.0
    %4480 = vmatprep.mubr.f32.mxu0 0.0
    %4481 = vmatmul.mubr.f32.gmra.mxu0 %v4414
    %v4482 = vpop.f32.mrf.mxu0
    %v4483 = vadd.f32 %v4411, %v4482
    %v4484 = vpop.f32.mrf.mxu0
    %4485 = vdwg.mxu0
    %v4486 = vtanh.pop %v4483
    %v4487 = vsel %vm310, %v4379, 0.0
    %v4488 = vrot.slane %v4487, 4
    %v4489 = vadd.f32 %v4487, %v4488
    %v4490 = vrot.slane %v4489, 2
    %v4491 = vadd.f32 %v4489, %v4490
    %v4492 = vrot.slane %v4491, 1
    %v4493 = vadd.f32 %v4491, %v4492
    %v4494 = vrcp.pop 8.0
    %v4495 = vmul.f32 %v4493, %v4494
    %v4496 = vsel %vm310, %v4380, 0.0
    %v4497 = vrot.slane %v4496, 4
    %v4498 = vadd.f32 %v4496, %v4497
    %v4499 = vrot.slane %v4498, 2
    %v4500 = vadd.f32 %v4498, %v4499
    %v4501 = vrot.slane %v4500, 1
    %v4502 = vadd.f32 %v4500, %v4501
    %v4503 = vmul.f32 %v4502, %v4494
    %v4504 = vsel %vm310, %v4381, 0.0
    %v4505 = vrot.slane %v4504, 4
    %v4506 = vadd.f32 %v4504, %v4505
    %v4507 = vrot.slane %v4506, 2
    %v4508 = vadd.f32 %v4506, %v4507
    %v4509 = vrot.slane %v4508, 1
    %v4510 = vadd.f32 %v4508, %v4509
    %v4511 = vmul.f32 %v4510, %v4494
    %v4512 = vsel %vm310, %v4382, 0.0
    %v4513 = vrot.slane %v4512, 4
    %v4514 = vadd.f32 %v4512, %v4513
    %v4515 = vrot.slane %v4514, 2
    %v4516 = vadd.f32 %v4514, %v4515
    %v4517 = vrot.slane %v4516, 1
    %v4518 = vadd.f32 %v4516, %v4517
    %v4519 = vmul.f32 %v4518, %v4494
    %v4520 = vsel %vm4392, %v4495, %v4503
    %v4521 = vsel %vm4394, %v4520, %v4511
    %v4522 = vsel %vm4396, %v4521, %v4519
    %v4523 = vld [vmem:[%s18] sm:$0xff]
    %v4524 = vld [vmem:[%s18 + $0x8] sm:$0xff]
    %v4525 = vld [vmem:[%s18 + $0x10] sm:$0xff]
    %v4526 = vld [vmem:[%s18 + $0x18] sm:$0xff]
    %v4527 = vld [vmem:[%s18 + $0x20] sm:$0xff]
    %v4528 = vld [vmem:[%s18 + $0x28] sm:$0xff]
    %v4529 = vld [vmem:[%s18 + $0x30] sm:$0xff]
    %v4530 = vld [vmem:[%s18 + $0x38] sm:$0xff]
    %v4531 = vld [vmem:[%s19] sm:$0x1]
    %v4533 = vlaneseq
    %v4534 = vshrl.u32 %v4533, 7
    %v4535 = vsub.s32 0, %v4534
    %v4536 = vrot.slane %v4531, %v4535
    %v4539 = vsel %vm310, %v4486, 0
    %4541 = vmatprep.subr.mxu0 0.0
    %4542 = vmatpush1.msra.mxu0 0.0
    %4543 = vmatprep.subr.mxu0 0.0
    %4544 = vmatpush1.msra.mxu0 0.0
    %4545 = vmatprep.subr.mxu0 0.0
    %4546 = vmatpush1.msra.mxu0 0.0
    %4547 = vmatprep.subr.mxu0 0.0
    %4548 = vmatpush1.msra.mxu0 0.0
    %4549 = vmatprep.subr.mxu0 0.0
    %4550 = vmatpush1.msra.mxu0 0.0
    %4551 = vmatprep.subr.mxu0 0.0
    %4552 = vmatpush1.msra.mxu0 0.0
    %4553 = vmatprep.subr.mxu0 0.0
    %4554 = vmatpush1.msra.mxu0 0.0
    %4555 = vmatprep.subr.mxu0 0.0
    %4556 = vmatpush1.msra.mxu0 0.0
    %4557 = vmatprep.subr.mxu0 0.0
    %4558 = vmatpush1.msra.mxu0 %v4530
    %4559 = vmatprep.subr.mxu0 0.0
    %4560 = vmatpush1.msra.mxu0 %v4529
    %4561 = vmatprep.subr.mxu0 0.0
    %4562 = vmatpush1.msra.mxu0 %v4528
    %4563 = vmatprep.subr.mxu0 0.0
    %4564 = vmatpush1.msra.mxu0 %v4527
    %4565 = vmatprep.subr.mxu0 0.0
    %4566 = vmatpush1.msra.mxu0 %v4526
    %4567 = vmatprep.subr.mxu0 0.0
    %4568 = vmatpush1.msra.mxu0 %v4525
    %4569 = vmatprep.subr.mxu0 0.0
    %4570 = vmatpush1.msra.mxu0 %v4524
    %4571 = vmatprep.subr.mxu0 0.0
    %4572 = vmatpush1.msra.mxu0 %v4523
    %4573 = vmatprep.subr.mxu0 0.0
    %4574 = vmatpush2.msra.mxu0 0.0
    %4575 = vmatprep.subr.mxu0 0.0
    %4576 = vmatpush2.msra.mxu0 0.0
    %4577 = vmatprep.subr.mxu0 0.0
    %4578 = vmatpush2.msra.mxu0 0.0
    %4579 = vmatprep.subr.mxu0 0.0
    %4580 = vmatpush2.msra.mxu0 0.0
    %4581 = vmatprep.subr.mxu0 0.0
    %4582 = vmatpush2.msra.mxu0 0.0
    %4583 = vmatprep.subr.mxu0 0.0
    %4584 = vmatpush2.msra.mxu0 0.0
    %4585 = vmatprep.subr.mxu0 0.0
    %4586 = vmatpush2.msra.mxu0 0.0
    %4587 = vmatprep.subr.mxu0 0.0
    %4588 = vmatpush2.msra.mxu0 0.0
    %4589 = vmatprep.subr.mxu0 0.0
    %4590 = vmatpush2.msra.mxu0 0.0
    %4591 = vmatprep.subr.mxu0 0.0
    %4592 = vmatpush2.msra.mxu0 0.0
    %4593 = vmatprep.subr.mxu0 0.0
    %4594 = vmatpush2.msra.mxu0 0.0
    %4595 = vmatprep.subr.mxu0 0.0
    %4596 = vmatpush2.msra.mxu0 0.0
    %4597 = vmatprep.subr.mxu0 0.0
    %4598 = vmatpush2.msra.mxu0 0.0
    %4599 = vmatprep.subr.mxu0 0.0
    %4600 = vmatpush2.msra.mxu0 0.0
    %4601 = vmatprep.subr.mxu0 0.0
    %4602 = vmatpush2.msra.mxu0 0.0
    %4603 = vmatprep.subr.mxu0 0.0
    %4604 = vmatpush2.msra.mxu0 0.0
    %4605 = vmatprep.mubr.f32.mxu0 0.0
    %4606 = vmatmul.mubr.f32.gmra.mxu0 %v4539
    %v4607 = vpop.f32.mrf.mxu0
    %v4608 = vadd.f32 %v4536, %v4607
    %v4609 = vpop.f32.mrf.mxu0
    %4610 = vdwg.mxu0
    %v4611 = vrot.slane %v4486, 2
    %4620 = vrot.lane.b32.xlu0 %v4523, 126
    %v4621 = vpop.permute.xlu0 %4620
    %4622 = vrot.lane.b32.xlu0 %v4524, 126
    %v4623 = vpop.permute.xlu0 %4622
    %4624 = vrot.lane.b32.xlu0 %v4525, 126
    %v4625 = vpop.permute.xlu0 %4624
    %4626 = vrot.lane.b32.xlu0 %v4526, 126
    %v4627 = vpop.permute.xlu0 %4626
    %4628 = vrot.lane.b32.xlu0 %v4527, 126
    %v4629 = vpop.permute.xlu0 %4628
    %4630 = vrot.lane.b32.xlu0 %v4528, 126
    %v4631 = vpop.permute.xlu0 %4630
    %4632 = vrot.lane.b32.xlu0 %v4529, 126
    %v4633 = vpop.permute.xlu0 %4632
    %4634 = vrot.lane.b32.xlu0 %v4530, 126
    %v4635 = vpop.permute.xlu0 %4634
    %4644 = vrot.lane.b32.xlu0 %v4536, 126
    %v4645 = vpop.permute.xlu0 %4644
    %v4647 = vsel %vm310, %v4611, 0
    %4649 = vmatprep.subr.mxu0 0.0
    %4650 = vmatpush1.msra.mxu0 0.0
    %4651 = vmatprep.subr.mxu0 0.0
    %4652 = vmatpush1.msra.mxu0 0.0
    %4653 = vmatprep.subr.mxu0 0.0
    %4654 = vmatpush1.msra.mxu0 0.0
    %4655 = vmatprep.subr.mxu0 0.0
    %4656 = vmatpush1.msra.mxu0 0.0
    %4657 = vmatprep.subr.mxu0 0.0
    %4658 = vmatpush1.msra.mxu0 0.0
    %4659 = vmatprep.subr.mxu0 0.0
    %4660 = vmatpush1.msra.mxu0 0.0
    %4661 = vmatprep.subr.mxu0 0.0
    %4662 = vmatpush1.msra.mxu0 0.0
    %4663 = vmatprep.subr.mxu0 0.0
    %4664 = vmatpush1.msra.mxu0 0.0
    %4665 = vmatprep.subr.mxu0 0.0
    %4666 = vmatpush1.msra.mxu0 %v4635
    %4667 = vmatprep.subr.mxu0 0.0
    %4668 = vmatpush1.msra.mxu0 %v4633
    %4669 = vmatprep.subr.mxu0 0.0
    %4670 = vmatpush1.msra.mxu0 %v4631
    %4671 = vmatprep.subr.mxu0 0.0
    %4672 = vmatpush1.msra.mxu0 %v4629
    %4673 = vmatprep.subr.mxu0 0.0
    %4674 = vmatpush1.msra.mxu0 %v4627
    %4675 = vmatprep.subr.mxu0 0.0
    %4676 = vmatpush1.msra.mxu0 %v4625
    %4677 = vmatprep.subr.mxu0 0.0
    %4678 = vmatpush1.msra.mxu0 %v4623
    %4679 = vmatprep.subr.mxu0 0.0
    %4680 = vmatpush1.msra.mxu0 %v4621
    %4681 = vmatprep.subr.mxu0 0.0
    %4682 = vmatpush2.msra.mxu0 0.0
    %4683 = vmatprep.subr.mxu0 0.0
    %4684 = vmatpush2.msra.mxu0 0.0
    %4685 = vmatprep.subr.mxu0 0.0
    %4686 = vmatpush2.msra.mxu0 0.0
    %4687 = vmatprep.subr.mxu0 0.0
    %4688 = vmatpush2.msra.mxu0 0.0
    %4689 = vmatprep.subr.mxu0 0.0
    %4690 = vmatpush2.msra.mxu0 0.0
    %4691 = vmatprep.subr.mxu0 0.0
    %4692 = vmatpush2.msra.mxu0 0.0
    %4693 = vmatprep.subr.mxu0 0.0
    %4694 = vmatpush2.msra.mxu0 0.0
    %4695 = vmatprep.subr.mxu0 0.0
    %4696 = vmatpush2.msra.mxu0 0.0
    %4697 = vmatprep.subr.mxu0 0.0
    %4698 = vmatpush2.msra.mxu0 0.0
    %4699 = vmatprep.subr.mxu0 0.0
    %4700 = vmatpush2.msra.mxu0 0.0
    %4701 = vmatprep.subr.mxu0 0.0
    %4702 = vmatpush2.msra.mxu0 0.0
    %4703 = vmatprep.subr.mxu0 0.0
    %4704 = vmatpush2.msra.mxu0 0.0
    %4705 = vmatprep.subr.mxu0 0.0
    %4706 = vmatpush2.msra.mxu0 0.0
    %4707 = vmatprep.subr.mxu0 0.0
    %4708 = vmatpush2.msra.mxu0 0.0
    %4709 = vmatprep.subr.mxu0 0.0
    %4710 = vmatpush2.msra.mxu0 0.0
    %4711 = vmatprep.subr.mxu0 0.0
    %4712 = vmatpush2.msra.mxu0 0.0
    %4713 = vmatprep.mubr.f32.mxu0 0.0
    %4714 = vmatmul.mubr.f32.gmra.mxu0 %v4647
    %v4715 = vpop.f32.mrf.mxu0
    %v4716 = vadd.f32 %v4645, %v4715
    %v4717 = vpop.f32.mrf.mxu0
    %4718 = vdwg.mxu0
    %4719 = vrot.lane.b32.xlu0 %v4523, 124
    %v4720 = vpop.permute.xlu0 %4719
    %4721 = vrot.lane.b32.xlu0 %v4524, 124
    %v4722 = vpop.permute.xlu0 %4721
    %4723 = vrot.lane.b32.xlu0 %v4525, 124
    %v4724 = vpop.permute.xlu0 %4723
    %4725 = vrot.lane.b32.xlu0 %v4526, 124
    %v4726 = vpop.permute.xlu0 %4725
    %4727 = vrot.lane.b32.xlu0 %v4527, 124
    %v4728 = vpop.permute.xlu0 %4727
    %4729 = vrot.lane.b32.xlu0 %v4528, 124
    %v4730 = vpop.permute.xlu0 %4729
    %4731 = vrot.lane.b32.xlu0 %v4529, 124
    %v4732 = vpop.permute.xlu0 %4731
    %4733 = vrot.lane.b32.xlu0 %v4530, 124
    %v4734 = vpop.permute.xlu0 %4733
    %4743 = vrot.lane.b32.xlu0 %v4536, 124
    %v4744 = vpop.permute.xlu0 %4743
    %v4747 = vsel %vm310, %v4522, 0
    %4749 = vmatprep.subr.mxu0 0.0
    %4750 = vmatpush1.msra.mxu0 0.0
    %4751 = vmatprep.subr.mxu0 0.0
    %4752 = vmatpush1.msra.mxu0 0.0
    %4753 = vmatprep.subr.mxu0 0.0
    %4754 = vmatpush1.msra.mxu0 0.0
    %4755 = vmatprep.subr.mxu0 0.0
    %4756 = vmatpush1.msra.mxu0 0.0
    %4757 = vmatprep.subr.mxu0 0.0
    %4758 = vmatpush1.msra.mxu0 0.0
    %4759 = vmatprep.subr.mxu0 0.0
    %4760 = vmatpush1.msra.mxu0 0.0
    %4761 = vmatprep.subr.mxu0 0.0
    %4762 = vmatpush1.msra.mxu0 0.0
    %4763 = vmatprep.subr.mxu0 0.0
    %4764 = vmatpush1.msra.mxu0 0.0
    %4765 = vmatprep.subr.mxu0 0.0
    %4766 = vmatpush1.msra.mxu0 %v4734
    %4767 = vmatprep.subr.mxu0 0.0
    %4768 = vmatpush1.msra.mxu0 %v4732
    %4769 = vmatprep.subr.mxu0 0.0
    %4770 = vmatpush1.msra.mxu0 %v4730
    %4771 = vmatprep.subr.mxu0 0.0
    %4772 = vmatpush1.msra.mxu0 %v4728
    %4773 = vmatprep.subr.mxu0 0.0
    %4774 = vmatpush1.msra.mxu0 %v4726
    %4775 = vmatprep.subr.mxu0 0.0
    %4776 = vmatpush1.msra.mxu0 %v4724
    %4777 = vmatprep.subr.mxu0 0.0
    %4778 = vmatpush1.msra.mxu0 %v4722
    %4779 = vmatprep.subr.mxu0 0.0
    %4780 = vmatpush1.msra.mxu0 %v4720
    %4781 = vmatprep.subr.mxu0 0.0
    %4782 = vmatpush2.msra.mxu0 0.0
    %4783 = vmatprep.subr.mxu0 0.0
    %4784 = vmatpush2.msra.mxu0 0.0
    %4785 = vmatprep.subr.mxu0 0.0
    %4786 = vmatpush2.msra.mxu0 0.0
    %4787 = vmatprep.subr.mxu0 0.0
    %4788 = vmatpush2.msra.mxu0 0.0
    %4789 = vmatprep.subr.mxu0 0.0
    %4790 = vmatpush2.msra.mxu0 0.0
    %4791 = vmatprep.subr.mxu0 0.0
    %4792 = vmatpush2.msra.mxu0 0.0
    %4793 = vmatprep.subr.mxu0 0.0
    %4794 = vmatpush2.msra.mxu0 0.0
    %4795 = vmatprep.subr.mxu0 0.0
    %4796 = vmatpush2.msra.mxu0 0.0
    %4797 = vmatprep.subr.mxu0 0.0
    %4798 = vmatpush2.msra.mxu0 0.0
    %4799 = vmatprep.subr.mxu0 0.0
    %4800 = vmatpush2.msra.mxu0 0.0
    %4801 = vmatprep.subr.mxu0 0.0
    %4802 = vmatpush2.msra.mxu0 0.0
    %4803 = vmatprep.subr.mxu0 0.0
    %4804 = vmatpush2.msra.mxu0 0.0
    %4805 = vmatprep.subr.mxu0 0.0
    %4806 = vmatpush2.msra.mxu0 0.0
    %4807 = vmatprep.subr.mxu0 0.0
    %4808 = vmatpush2.msra.mxu0 0.0
    %4809 = vmatprep.subr.mxu0 0.0
    %4810 = vmatpush2.msra.mxu0 0.0
    %4811 = vmatprep.subr.mxu0 0.0
    %4812 = vmatpush2.msra.mxu0 0.0
    %4813 = vmatprep.mubr.f32.mxu0 0.0
    %4814 = vmatmul.mubr.f32.gmra.mxu0 %v4747
    %v4815 = vpop.f32.mrf.mxu0
    %v4816 = vadd.f32 %v4744, %v4815
    %v4817 = vpop.f32.mrf.mxu0
    %4818 = vdwg.mxu0
    %vm4819 = vcmask 9216
    %v4820 = vsel %vm4819, %v4608, -inf
    %4821 = vmax.xlane.f32.xlu0 %v4820
    %v4822 = vpop.xlane.xlu0 %4821
    %v4823 = vsub.f32 %v4608, %v4822
    %v4824 = vmul.f32 %v4823, 1.442695
    %v4825 = vpow.pop %v4824
    %v4826 = vsel %vm4819, %v4825, 0.0
    %4827 = vadd.xlane.f32.xlu0 %v4826
    %v4828 = vpop.xlane.xlu0 %4827
    %v4829 = vrcp.pop %v4828
    %v4830 = vmul.f32 %v4825, %v4829
    %v4831 = vsel %vm4819, %v4716, -inf
    %4832 = vmax.xlane.f32.xlu0 %v4831
    %v4833 = vpop.xlane.xlu0 %4832
    %v4834 = vsub.f32 %v4716, %v4833
    %v4835 = vmul.f32 %v4834, 1.442695
    %v4836 = vpow.pop %v4835
    %v4837 = vsel %vm4819, %v4836, 0.0
    %4838 = vadd.xlane.f32.xlu0 %v4837
    %v4839 = vpop.xlane.xlu0 %4838
    %v4840 = vrcp.pop %v4839
    %v4841 = vmul.f32 %v4836, %v4840
    %4843 = vset.pattern.permute.xlu0 0
    %4844 = vperm.xlu0 %4843, %v4830
    %v4845 = vpop.permute.xlu0 %4844
    %v4847 = vmul.f32 %v4845, %v4522
    %4848 = vrot.lane.b32.xlu0 %v4523, 121
    %v4849 = vpop.permute.xlu0 %4848
    %4850 = vrot.lane.b32.xlu0 %v4524, 121
    %v4851 = vpop.permute.xlu0 %4850
    %4852 = vrot.lane.b32.xlu0 %v4525, 121
    %v4853 = vpop.permute.xlu0 %4852
    %4854 = vrot.lane.b32.xlu0 %v4526, 121
    %v4855 = vpop.permute.xlu0 %4854
    %4856 = vrot.lane.b32.xlu0 %v4527, 121
    %v4857 = vpop.permute.xlu0 %4856
    %4858 = vrot.lane.b32.xlu0 %v4528, 121
    %v4859 = vpop.permute.xlu0 %4858
    %4860 = vrot.lane.b32.xlu0 %v4529, 121
    %v4861 = vpop.permute.xlu0 %4860
    %4862 = vrot.lane.b32.xlu0 %v4530, 121
    %v4863 = vpop.permute.xlu0 %4862
    %4872 = vrot.lane.b32.xlu0 %v4536, 121
    %v4873 = vpop.permute.xlu0 %4872
    %v4876 = vsel %vm310, %v4847, 0
    %4878 = vmatprep.subr.mxu0 0.0
    %4879 = vmatpush1.msra.mxu0 0.0
    %4880 = vmatprep.subr.mxu0 0.0
    %4881 = vmatpush1.msra.mxu0 0.0
    %4882 = vmatprep.subr.mxu0 0.0
    %4883 = vmatpush1.msra.mxu0 0.0
    %4884 = vmatprep.subr.mxu0 0.0
    %4885 = vmatpush1.msra.mxu0 0.0
    %4886 = vmatprep.subr.mxu0 0.0
    %4887 = vmatpush1.msra.mxu0 0.0
    %4888 = vmatprep.subr.mxu0 0.0
    %4889 = vmatpush1.msra.mxu0 0.0
    %4890 = vmatprep.subr.mxu0 0.0
    %4891 = vmatpush1.msra.mxu0 0.0
    %4892 = vmatprep.subr.mxu0 0.0
    %4893 = vmatpush1.msra.mxu0 0.0
    %4894 = vmatprep.subr.mxu0 0.0
    %4895 = vmatpush1.msra.mxu0 %v4863
    %4896 = vmatprep.subr.mxu0 0.0
    %4897 = vmatpush1.msra.mxu0 %v4861
    %4898 = vmatprep.subr.mxu0 0.0
    %4899 = vmatpush1.msra.mxu0 %v4859
    %4900 = vmatprep.subr.mxu0 0.0
    %4901 = vmatpush1.msra.mxu0 %v4857
    %4902 = vmatprep.subr.mxu0 0.0
    %4903 = vmatpush1.msra.mxu0 %v4855
    %4904 = vmatprep.subr.mxu0 0.0
    %4905 = vmatpush1.msra.mxu0 %v4853
    %4906 = vmatprep.subr.mxu0 0.0
    %4907 = vmatpush1.msra.mxu0 %v4851
    %4908 = vmatprep.subr.mxu0 0.0
    %4909 = vmatpush1.msra.mxu0 %v4849
    %4910 = vmatprep.subr.mxu0 0.0
    %4911 = vmatpush2.msra.mxu0 0.0
    %4912 = vmatprep.subr.mxu0 0.0
    %4913 = vmatpush2.msra.mxu0 0.0
    %4914 = vmatprep.subr.mxu0 0.0
    %4915 = vmatpush2.msra.mxu0 0.0
    %4916 = vmatprep.subr.mxu0 0.0
    %4917 = vmatpush2.msra.mxu0 0.0
    %4918 = vmatprep.subr.mxu0 0.0
    %4919 = vmatpush2.msra.mxu0 0.0
    %4920 = vmatprep.subr.mxu0 0.0
    %4921 = vmatpush2.msra.mxu0 0.0
    %4922 = vmatprep.subr.mxu0 0.0
    %4923 = vmatpush2.msra.mxu0 0.0
    %4924 = vmatprep.subr.mxu0 0.0
    %4925 = vmatpush2.msra.mxu0 0.0
    %4926 = vmatprep.subr.mxu0 0.0
    %4927 = vmatpush2.msra.mxu0 0.0
    %4928 = vmatprep.subr.mxu0 0.0
    %4929 = vmatpush2.msra.mxu0 0.0
    %4930 = vmatprep.subr.mxu0 0.0
    %4931 = vmatpush2.msra.mxu0 0.0
    %4932 = vmatprep.subr.mxu0 0.0
    %4933 = vmatpush2.msra.mxu0 0.0
    %4934 = vmatprep.subr.mxu0 0.0
    %4935 = vmatpush2.msra.mxu0 0.0
    %4936 = vmatprep.subr.mxu0 0.0
    %4937 = vmatpush2.msra.mxu0 0.0
    %4938 = vmatprep.subr.mxu0 0.0
    %4939 = vmatpush2.msra.mxu0 0.0
    %4940 = vmatprep.subr.mxu0 0.0
    %4941 = vmatpush2.msra.mxu0 0.0
    %4942 = vmatprep.mubr.f32.mxu0 0.0
    %4943 = vmatmul.mubr.f32.gmra.mxu0 %v4876
    %v4944 = vpop.f32.mrf.mxu0
    %v4945 = vadd.f32 %v4873, %v4944
    %v4946 = vpop.f32.mrf.mxu0
    %4947 = vdwg.mxu0
    %4949 = vset.pattern.permute.xlu0 0
    %4950 = vperm.xlu0 %4949, %v4841
    %v4951 = vpop.permute.xlu0 %4950
    %v4953 = vrot.slane %v4522, 2
    %v4955 = vmul.f32 %v4951, %v4953
    %v4957 = vsel %vm310, %v4955, 0
    %4959 = vmatprep.subr.mxu0 0.0
    %4960 = vmatpush1.msra.mxu0 0.0
    %4961 = vmatprep.subr.mxu0 0.0
    %4962 = vmatpush1.msra.mxu0 0.0
    %4963 = vmatprep.subr.mxu0 0.0
    %4964 = vmatpush1.msra.mxu0 0.0
    %4965 = vmatprep.subr.mxu0 0.0
    %4966 = vmatpush1.msra.mxu0 0.0
    %4967 = vmatprep.subr.mxu0 0.0
    %4968 = vmatpush1.msra.mxu0 0.0
    %4969 = vmatprep.subr.mxu0 0.0
    %4970 = vmatpush1.msra.mxu0 0.0
    %4971 = vmatprep.subr.mxu0 0.0
    %4972 = vmatpush1.msra.mxu0 0.0
    %4973 = vmatprep.subr.mxu0 0.0
    %4974 = vmatpush1.msra.mxu0 0.0
    %4975 = vmatprep.subr.mxu0 0.0
    %4976 = vmatpush1.msra.mxu0 %v4863
    %4977 = vmatprep.subr.mxu0 0.0
    %4978 = vmatpush1.msra.mxu0 %v4861
    %4979 = vmatprep.subr.mxu0 0.0
    %4980 = vmatpush1.msra.mxu0 %v4859
    %4981 = vmatprep.subr.mxu0 0.0
    %4982 = vmatpush1.msra.mxu0 %v4857
    %4983 = vmatprep.subr.mxu0 0.0
    %4984 = vmatpush1.msra.mxu0 %v4855
    %4985 = vmatprep.subr.mxu0 0.0
    %4986 = vmatpush1.msra.mxu0 %v4853
    %4987 = vmatprep.subr.mxu0 0.0
    %4988 = vmatpush1.msra.mxu0 %v4851
    %4989 = vmatprep.subr.mxu0 0.0
    %4990 = vmatpush1.msra.mxu0 %v4849
    %4991 = vmatprep.subr.mxu0 0.0
    %4992 = vmatpush2.msra.mxu0 0.0
    %4993 = vmatprep.subr.mxu0 0.0
    %4994 = vmatpush2.msra.mxu0 0.0
    %4995 = vmatprep.subr.mxu0 0.0
    %4996 = vmatpush2.msra.mxu0 0.0
    %4997 = vmatprep.subr.mxu0 0.0
    %4998 = vmatpush2.msra.mxu0 0.0
    %4999 = vmatprep.subr.mxu0 0.0
    %5000 = vmatpush2.msra.mxu0 0.0
    %5001 = vmatprep.subr.mxu0 0.0
    %5002 = vmatpush2.msra.mxu0 0.0
    %5003 = vmatprep.subr.mxu0 0.0
    %5004 = vmatpush2.msra.mxu0 0.0
    %5005 = vmatprep.subr.mxu0 0.0
    %5006 = vmatpush2.msra.mxu0 0.0
    %5007 = vmatprep.subr.mxu0 0.0
    %5008 = vmatpush2.msra.mxu0 0.0
    %5009 = vmatprep.subr.mxu0 0.0
    %5010 = vmatpush2.msra.mxu0 0.0
    %5011 = vmatprep.subr.mxu0 0.0
    %5012 = vmatpush2.msra.mxu0 0.0
    %5013 = vmatprep.subr.mxu0 0.0
    %5014 = vmatpush2.msra.mxu0 0.0
    %5015 = vmatprep.subr.mxu0 0.0
    %5016 = vmatpush2.msra.mxu0 0.0
    %5017 = vmatprep.subr.mxu0 0.0
    %5018 = vmatpush2.msra.mxu0 0.0
    %5019 = vmatprep.subr.mxu0 0.0
    %5020 = vmatpush2.msra.mxu0 0.0
    %5021 = vmatprep.subr.mxu0 0.0
    %5022 = vmatpush2.msra.mxu0 0.0
    %5023 = vmatprep.mubr.f32.mxu0 0.0
    %5024 = vmatmul.mubr.f32.gmra.mxu0 %v4957
    %v5025 = vpop.f32.mrf.mxu0
    %v5026 = vadd.f32 %v4873, %v5025
    %v5027 = vpop.f32.mrf.mxu0
    %5028 = vdwg.mxu0
    %5029 = vset.pattern.permute.xlu0 1
    %5030 = vperm.xlu0 %5029, %v4830
    %v5031 = vpop.permute.xlu0 %5030
    %v5033 = vmul.f32 %v5031, %v4522
    %5034 = vrot.lane.b32.xlu0 %v4523, 119
    %v5035 = vpop.permute.xlu0 %5034
    %5036 = vrot.lane.b32.xlu0 %v4524, 119
    %v5037 = vpop.permute.xlu0 %5036
    %5038 = vrot.lane.b32.xlu0 %v4525, 119
    %v5039 = vpop.permute.xlu0 %5038
    %5040 = vrot.lane.b32.xlu0 %v4526, 119
    %v5041 = vpop.permute.xlu0 %5040
    %5042 = vrot.lane.b32.xlu0 %v4527, 119
    %v5043 = vpop.permute.xlu0 %5042
    %5044 = vrot.lane.b32.xlu0 %v4528, 119
    %v5045 = vpop.permute.xlu0 %5044
    %5046 = vrot.lane.b32.xlu0 %v4529, 119
    %v5047 = vpop.permute.xlu0 %5046
    %5048 = vrot.lane.b32.xlu0 %v4530, 119
    %v5049 = vpop.permute.xlu0 %5048
    %5058 = vrot.lane.b32.xlu0 %v4536, 119
    %v5059 = vpop.permute.xlu0 %5058
    %v5062 = vsel %vm310, %v5033, 0
    %5064 = vmatprep.subr.mxu0 0.0
    %5065 = vmatpush1.msra.mxu0 0.0
    %5066 = vmatprep.subr.mxu0 0.0
    %5067 = vmatpush1.msra.mxu0 0.0
    %5068 = vmatprep.subr.mxu0 0.0
    %5069 = vmatpush1.msra.mxu0 0.0
    %5070 = vmatprep.subr.mxu0 0.0
    %5071 = vmatpush1.msra.mxu0 0.0
    %5072 = vmatprep.subr.mxu0 0.0
    %5073 = vmatpush1.msra.mxu0 0.0
    %5074 = vmatprep.subr.mxu0 0.0
    %5075 = vmatpush1.msra.mxu0 0.0
    %5076 = vmatprep.subr.mxu0 0.0
    %5077 = vmatpush1.msra.mxu0 0.0
    %5078 = vmatprep.subr.mxu0 0.0
    %5079 = vmatpush1.msra.mxu0 0.0
    %5080 = vmatprep.subr.mxu0 0.0
    %5081 = vmatpush1.msra.mxu0 %v5049
    %5082 = vmatprep.subr.mxu0 0.0
    %5083 = vmatpush1.msra.mxu0 %v5047
    %5084 = vmatprep.subr.mxu0 0.0
    %5085 = vmatpush1.msra.mxu0 %v5045
    %5086 = vmatprep.subr.mxu0 0.0
    %5087 = vmatpush1.msra.mxu0 %v5043
    %5088 = vmatprep.subr.mxu0 0.0
    %5089 = vmatpush1.msra.mxu0 %v5041
    %5090 = vmatprep.subr.mxu0 0.0
    %5091 = vmatpush1.msra.mxu0 %v5039
    %5092 = vmatprep.subr.mxu0 0.0
    %5093 = vmatpush1.msra.mxu0 %v5037
    %5094 = vmatprep.subr.mxu0 0.0
    %5095 = vmatpush1.msra.mxu0 %v5035
    %5096 = vmatprep.subr.mxu0 0.0
    %5097 = vmatpush2.msra.mxu0 0.0
    %5098 = vmatprep.subr.mxu0 0.0
    %5099 = vmatpush2.msra.mxu0 0.0
    %5100 = vmatprep.subr.mxu0 0.0
    %5101 = vmatpush2.msra.mxu0 0.0
    %5102 = vmatprep.subr.mxu0 0.0
    %5103 = vmatpush2.msra.mxu0 0.0
    %5104 = vmatprep.subr.mxu0 0.0
    %5105 = vmatpush2.msra.mxu0 0.0
    %5106 = vmatprep.subr.mxu0 0.0
    %5107 = vmatpush2.msra.mxu0 0.0
    %5108 = vmatprep.subr.mxu0 0.0
    %5109 = vmatpush2.msra.mxu0 0.0
    %5110 = vmatprep.subr.mxu0 0.0
    %5111 = vmatpush2.msra.mxu0 0.0
    %5112 = vmatprep.subr.mxu0 0.0
    %5113 = vmatpush2.msra.mxu0 0.0
    %5114 = vmatprep.subr.mxu0 0.0
    %5115 = vmatpush2.msra.mxu0 0.0
    %5116 = vmatprep.subr.mxu0 0.0
    %5117 = vmatpush2.msra.mxu0 0.0
    %5118 = vmatprep.subr.mxu0 0.0
    %5119 = vmatpush2.msra.mxu0 0.0
    %5120 = vmatprep.subr.mxu0 0.0
    %5121 = vmatpush2.msra.mxu0 0.0
    %5122 = vmatprep.subr.mxu0 0.0
    %5123 = vmatpush2.msra.mxu0 0.0
    %5124 = vmatprep.subr.mxu0 0.0
    %5125 = vmatpush2.msra.mxu0 0.0
    %5126 = vmatprep.subr.mxu0 0.0
    %5127 = vmatpush2.msra.mxu0 0.0
    %5128 = vmatprep.mubr.f32.mxu0 0.0
    %5129 = vmatmul.mubr.f32.gmra.mxu0 %v5062
    %v5130 = vpop.f32.mrf.mxu0
    %v5131 = vadd.f32 %v5059, %v5130
    %v5132 = vpop.f32.mrf.mxu0
    %5133 = vdwg.mxu0
    %5134 = vset.pattern.permute.xlu0 1
    %5135 = vperm.xlu0 %5134, %v4841
    %v5136 = vpop.permute.xlu0 %5135
    %v5138 = vmul.f32 %v5136, %v4953
    %v5140 = vsel %vm310, %v5138, 0
    %5142 = vmatprep.subr.mxu0 0.0
    %5143 = vmatpush1.msra.mxu0 0.0
    %5144 = vmatprep.subr.mxu0 0.0
    %5145 = vmatpush1.msra.mxu0 0.0
    %5146 = vmatprep.subr.mxu0 0.0
    %5147 = vmatpush1.msra.mxu0 0.0
    %5148 = vmatprep.subr.mxu0 0.0
    %5149 = vmatpush1.msra.mxu0 0.0
    %5150 = vmatprep.subr.mxu0 0.0
    %5151 = vmatpush1.msra.mxu0 0.0
    %5152 = vmatprep.subr.mxu0 0.0
    %5153 = vmatpush1.msra.mxu0 0.0
    %5154 = vmatprep.subr.mxu0 0.0
    %5155 = vmatpush1.msra.mxu0 0.0
    %5156 = vmatprep.subr.mxu0 0.0
    %5157 = vmatpush1.msra.mxu0 0.0
    %5158 = vmatprep.subr.mxu0 0.0
    %5159 = vmatpush1.msra.mxu0 %v5049
    %5160 = vmatprep.subr.mxu0 0.0
    %5161 = vmatpush1.msra.mxu0 %v5047
    %5162 = vmatprep.subr.mxu0 0.0
    %5163 = vmatpush1.msra.mxu0 %v5045
    %5164 = vmatprep.subr.mxu0 0.0
    %5165 = vmatpush1.msra.mxu0 %v5043
    %5166 = vmatprep.subr.mxu0 0.0
    %5167 = vmatpush1.msra.mxu0 %v5041
    %5168 = vmatprep.subr.mxu0 0.0
    %5169 = vmatpush1.msra.mxu0 %v5039
    %5170 = vmatprep.subr.mxu0 0.0
    %5171 = vmatpush1.msra.mxu0 %v5037
    %5172 = vmatprep.subr.mxu0 0.0
    %5173 = vmatpush1.msra.mxu0 %v5035
    %5174 = vmatprep.subr.mxu0 0.0
    %5175 = vmatpush2.msra.mxu0 0.0
    %5176 = vmatprep.subr.mxu0 0.0
    %5177 = vmatpush2.msra.mxu0 0.0
    %5178 = vmatprep.subr.mxu0 0.0
    %5179 = vmatpush2.msra.mxu0 0.0
    %5180 = vmatprep.subr.mxu0 0.0
    %5181 = vmatpush2.msra.mxu0 0.0
    %5182 = vmatprep.subr.mxu0 0.0
    %5183 = vmatpush2.msra.mxu0 0.0
    %5184 = vmatprep.subr.mxu0 0.0
    %5185 = vmatpush2.msra.mxu0 0.0
    %5186 = vmatprep.subr.mxu0 0.0
    %5187 = vmatpush2.msra.mxu0 0.0
    %5188 = vmatprep.subr.mxu0 0.0
    %5189 = vmatpush2.msra.mxu0 0.0
    %5190 = vmatprep.subr.mxu0 0.0
    %5191 = vmatpush2.msra.mxu0 0.0
    %5192 = vmatprep.subr.mxu0 0.0
    %5193 = vmatpush2.msra.mxu0 0.0
    %5194 = vmatprep.subr.mxu0 0.0
    %5195 = vmatpush2.msra.mxu0 0.0
    %5196 = vmatprep.subr.mxu0 0.0
    %5197 = vmatpush2.msra.mxu0 0.0
    %5198 = vmatprep.subr.mxu0 0.0
    %5199 = vmatpush2.msra.mxu0 0.0
    %5200 = vmatprep.subr.mxu0 0.0
    %5201 = vmatpush2.msra.mxu0 0.0
    %5202 = vmatprep.subr.mxu0 0.0
    %5203 = vmatpush2.msra.mxu0 0.0
    %5204 = vmatprep.subr.mxu0 0.0
    %5205 = vmatpush2.msra.mxu0 0.0
    %5206 = vmatprep.mubr.f32.mxu0 0.0
    %5207 = vmatmul.mubr.f32.gmra.mxu0 %v5140
    %v5208 = vpop.f32.mrf.mxu0
    %v5209 = vadd.f32 %v5059, %v5208
    %v5210 = vpop.f32.mrf.mxu0
    %5211 = vdwg.mxu0
    %v5213 = vrot.slane %v4716, 6
    %v5215 = vsel %vm4394, %v4608, %v5213
    %v5217 = vrot.slane %v5026, 6
    %v5219 = vsel %vm4394, %v4945, %v5217
    %v5221 = vrot.slane %v5209, 6
    %v5223 = vsel %vm4394, %v5131, %v5221
    %5225 = vrot.lane.b32.xlu0 %v5219, 2
    %v5226 = vpop.permute.xlu0 %5225
    %5229 = vrot.lane.b32.xlu0 %v5223, 4
    %v5230 = vpop.permute.xlu0 %5229
    %5233 = vrot.lane.b32.xlu0 %v4816, 6
    %v5234 = vpop.permute.xlu0 %5233
    %vm5236 = vcmask 15360
    %v5237 = vsel %vm5236, %v5215, %v5226
    %vm5238 = vcmask 31744
    %v5239 = vsel %vm5238, %v5237, %v5230
    %vm5240 = vcmask 48128
    %v5241 = vsel %vm5240, %v5239, %v5234
    %vm5242 = vcmask 72704
    %v5243 = vsel %vm5242, %v5241, 0.0
    %5244 = vst [vmem:[#allocation11] sm:$0xf] %v5243
    // Predicated region
    $region102: #{tpu_custom_call.1} parent=1 // pred_check
      _
    $region103: #{tpu_custom_call.1} parent=1 // pred_check_branch
      %5246 = sbr.rel (0) target = $region105
    $region104: #{tpu_custom_call.1} parent=1 // pred_region
      %s5248 = ssub.s32 64, 64
      %5249 = vsyncadd [#allocation4], %s5248
      %s5251 = sshll.u32 [#allocation11], 4
      %s5252 = int_to_ptr.vmem [resolvable:$true] %s5251
      %5254 = dma.vmem_to_hbm [thread:$0]  %s5252, 64, %s20, [#allocation4]
    $region105: #{tpu_custom_call.1} parent=1 // pred_fallthru
      _
    // Predicated region
    $region106: #{tpu_custom_call.1} parent=1 // pred_check
      _
    $region107: #{tpu_custom_call.1} parent=1 // pred_check_branch
      %5256 = sbr.rel (0) target = $region109
    $region108: #{tpu_custom_call.1} parent=1 // pred_region
      %5257 = dma.done [#allocation4], 64
    $region109: #{tpu_custom_call.1} parent=1 // pred_fallthru
      _
    %5258 = vsyncpa [#allocation3], 1
    %5259 = vsyncpa [#allocation6], 1
    %5260 = vsyncpa [#allocation9], 1
    %5261 = vsyncpa [#allocation4], 1

</llo_original>
